<compile_context>
chip_gen: v7x
topology: tpu7x:2x2x1
jax: 0.10.0
libtpu: 0.0.40
codegen_flags: <defaults>
</compile_context>

<pallas_src>
import jax
import jax.numpy as jnp
from jax import lax
from jax.experimental import pallas as pl
from jax.experimental.pallas import tpu as pltpu

K = 5
STRIDE = 2
BN_EPS = 1e-5
CPAD = 128                    # lane width for all channel blocks
C1, C2, C3 = 16, 32, 32       # true channel counts of the three convs

_VMEM = pl.BlockSpec(memory_space=pltpu.MemorySpace.VMEM)


def conv2d_size_out(size, kernel_size=K, stride=STRIDE):
    return (size - (kernel_size - 1) - 1) // stride + 1


# ------------------------------ fused kernel --------------------------------

def _make_fused_kernel(n, ho1, wo1, ho2, wo2):
    """Build the fused Actor kernel for a fixed (batch, spatial) config."""
    hh, wh = ho1 // 2, wo1 // 2           # parity-split extents of the a1 grid
    r1 = 4 * hh * wh * n                  # conv1 patch rows == a1 rows
    r2 = ho2 * wo2 * n                    # conv2 patch rows == a2 rows
    taps = K * K

    def bn_relu(y, g, be):
        # BatchNorm2d with batch statistics (training-mode forward), biased
        # variance, numerically robust two-pass form, f32 throughout.
        inv_r = 1.0 / y.shape[0]
        mean = jnp.sum(y, axis=0, keepdims=True) * inv_r
        d = y - mean
        var = jnp.sum(d * d, axis=0, keepdims=True) * inv_r
        return jnp.maximum(d * lax.rsqrt(var + BN_EPS) * g + be, 0.0)

    def kernel(p1_ref, w1_ref, b1_ref, g1_ref, be1_ref,
               w2_ref, b2_ref, g2_ref, be2_ref,
               w3_ref, b3_ref, g3_ref, be3_ref,
               wl_ref, bl_ref,
               o_ref,
               a1_ref, p2_ref, a2_ref, p3_ref):
        # ---- conv1 + bn1 + relu (patch rows parity-ordered by the glue) ----
        y1 = jnp.dot(p1_ref[...], w1_ref[...],
                     preferred_element_type=jnp.float32) + b1_ref[...]
        a1_ref[...] = bn_relu(y1, g1_ref[...], be1_ref[...])

        # ---- in-kernel im2col for conv2 ------------------------------------
        # a1 row index = (((hp*2 + wp)*hh + h2)*wh + w2)*n + b, where the
        # conv1 output position is (2*h2 + hp, 2*w2 + wp).  For kernel tap
        # (kh, kw) the conv2 window needs hp = kh%2, wp = kw%2,
        # h2 = kh//2 + ho, w2 = kw//2 + wo: for each output row ho, the
        # (wo, batch) block is one contiguous run of wo2*n a1 rows.
        for kh in range(K):
            for kw in range(K):
                kidx = kh * K + kw
                base = ((kh % 2) * 2 + (kw % 2)) * hh + kh // 2
                for ho in range(ho2):
                    src = ((base + ho) * wh + kw // 2) * n
                    dst = ho * wo2 * n
                    run = wo2 * n
                    p2_ref[dst:dst + run, kidx * CPAD:(kidx + 1) * CPAD] = (
                        a1_ref[src:src + run, :])

        # ---- conv2 + bn2 + relu --------------------------------------------
        y2 = jnp.dot(p2_ref[...].astype(jnp.bfloat16), w2_ref[...],
                     preferred_element_type=jnp.float32) + b2_ref[...]
        a2_ref[...] = bn_relu(y2, g2_ref[...], be2_ref[...])

        # ---- conv3 patches: output is 1x1, so tap (kh,kw) == a2 position ---
        for kh in range(K):
            for kw in range(K):
                kidx = kh * K + kw
                src = (kh * wo2 + kw) * n
                p3_ref[:, kidx * CPAD:(kidx + 1) * CPAD] = a2_ref[src:src + n, :]

        # ---- conv3 + bn3 + relu + linear + tanh ----------------------------
        y3 = jnp.dot(p3_ref[...].astype(jnp.bfloat16), w3_ref[...],
                     preferred_element_type=jnp.float32) + b3_ref[...]
        a3 = bn_relu(y3, g3_ref[...], be3_ref[...])
        z = jnp.dot(a3.astype(jnp.bfloat16), wl_ref[...],
                    preferred_element_type=jnp.float32) + bl_ref[...]
        o_ref[...] = jnp.tanh(z)

    scratch = [
        pltpu.VMEM((r1, CPAD), jnp.float32),           # a1  (conv1 activation)
        pltpu.VMEM((r2, taps * CPAD), jnp.float32),    # p2  (conv2 patches)
        pltpu.VMEM((r2, CPAD), jnp.float32),           # a2  (conv2 activation)
        pltpu.VMEM((n, taps * CPAD), jnp.float32),     # p3  (conv3 patches)
    ]
    return kernel, scratch, r1, r2


# --------------------------------- glue -------------------------------------

def _layer1_patches(x, kd1_pad):
    # x: (N, H, W, C) NHWC bf16.  Rows ordered (h_parity, w_parity, h//2, w//2,
    # batch) so every stride-2 window needed by conv2's in-kernel im2col is a
    # contiguous row run; columns ordered (kh, kw, c), zero-padded to kd1_pad.
    n, h, w, c = x.shape
    ho, wo = conv2d_size_out(h), conv2d_size_out(w)
    # TODO(synk): odd conv1 output sizes would need a padded parity grid.
    assert ho % 2 == 0 and wo % 2 == 0, "parity ordering assumes even conv1 output"
    cols = []
    for kh in range(K):
        for kw in range(K):
            cols.append(x[:, kh:kh + STRIDE * (ho - 1) + 1:STRIDE,
                          kw:kw + STRIDE * (wo - 1) + 1:STRIDE, :])
    p = jnp.stack(cols, axis=3).reshape(n, ho, wo, K * K * c)
    p = p.reshape(n, ho // 2, 2, wo // 2, 2, K * K * c)
    p = jnp.transpose(p, (2, 4, 1, 3, 0, 5))        # (hp, wp, h2, w2, n, cols)
    p = p.reshape(4 * (ho // 2) * (wo // 2) * n, K * K * c)
    return jnp.pad(p, ((0, 0), (0, kd1_pad - K * K * c))), ho, wo


def actor_forward(params, obs, action_dim):
    # obs: (N, C, H, W) float32 (NCHW, same as PyTorch)
    n = obs.shape[0]
    x = jnp.transpose(obs, (0, 2, 3, 1)).astype(jnp.bfloat16)   # NCHW->NHWC once
    p1, ho1, wo1 = _layer1_patches(x, params["w1"].shape[0])
    ho2, wo2 = conv2d_size_out(ho1), conv2d_size_out(wo1)
    assert conv2d_size_out(ho2) == 1 and conv2d_size_out(wo2) == 1, \
        "fused head assumes 1x1 conv3 output"

    kernel, scratch, r1, r2 = _make_fused_kernel(n, ho1, wo1, ho2, wo2)
    taps = K * K
    weight_keys = ("w1", "b1", "g1", "be1", "w2", "b2", "g2", "be2",
                   "w3", "b3", "g3", "be3", "w_lin", "b_lin")
    cost = pl.CostEstimate(
        flops=2 * (r1 * p1.shape[1] * CPAD + r2 * taps * CPAD * CPAD
                   + n * taps * CPAD * CPAD + n * CPAD * CPAD)
        + 10 * (r1 + r2 + n) * CPAD,
        transcendentals=(3 + n) * CPAD,
        bytes_accessed=p1.size * p1.dtype.itemsize
        + sum(params[k].size * params[k].dtype.itemsize for k in weight_keys)
        + n * CPAD * 4)
    out = pl.pallas_call(
        kernel,
        out_shape=jax.ShapeDtypeStruct((n, CPAD), jnp.float32),
        in_specs=[_VMEM] * (1 + len(weight_keys)),
        out_specs=_VMEM,
        scratch_shapes=scratch,
        cost_estimate=cost,
    )(p1, *(params[k] for k in weight_keys))
    return out[:, :action_dim]


# ------------------------- parameter preparation ----------------------------

def _pad_row(v, ncols):
    return jnp.pad(v.reshape(1, -1),
                   ((0, 0), (0, ncols - v.shape[-1]))).astype(jnp.float32)


def _prep_conv1(w, b):
    # torch conv weight (Cout, Cin, K, K) -> (kd1_pad, CPAD) bf16; row order
    # (kh, kw, cin) matches the glue im2col column order.
    cout, cin = w.shape[0], w.shape[1]
    kd = K * K * cin
    kd_pad = ((kd + CPAD - 1) // CPAD) * CPAD
    wm = jnp.transpose(w, (2, 3, 1, 0)).reshape(kd, cout)
    wm = jnp.pad(wm, ((0, kd_pad - kd), (0, CPAD - cout))).astype(jnp.bfloat16)
    return wm, _pad_row(b, CPAD)


def _prep_conv_blocked(w, b):
    # Per-tap 128-wide channel blocks: row order (kh, kw, cin padded to 128),
    # matching the 128-lane activation blocks assembled in-kernel.
    cout, cin = w.shape[0], w.shape[1]
    wm = jnp.transpose(w, (2, 3, 1, 0))                      # (K, K, cin, cout)
    wm = jnp.pad(wm, ((0, 0), (0, 0), (0, CPAD - cin), (0, CPAD - cout)))
    return wm.reshape(K * K * CPAD, CPAD).astype(jnp.bfloat16), _pad_row(b, CPAD)


def init_params(key, state_dim, action_dim):
    c0 = state_dim[0]
    convw = conv2d_size_out(conv2d_size_out(conv2d_size_out(state_dim[2])))
    convh = conv2d_size_out(conv2d_size_out(conv2d_size_out(state_dim[1])))
    lin_in = convw * convh * 32
    assert convw == 1 and convh == 1, "fused head assumes 1x1 conv3 output"

    keys = jax.random.split(key, 8)
    raw = {
        "w1": jax.random.normal(keys[0], (C1, c0, K, K), jnp.float32) * 0.1,
        "b1": jax.random.normal(keys[1], (C1,), jnp.float32) * 0.1,
        "w2": jax.random.normal(keys[2], (C2, C1, K, K), jnp.float32) * 0.1,
        "b2": jax.random.normal(keys[3], (C2,), jnp.float32) * 0.1,
        "w3": jax.random.normal(keys[4], (C3, C2, K, K), jnp.float32) * 0.1,
        "b3": jax.random.normal(keys[5], (C3,), jnp.float32) * 0.1,
        "w_out": jax.random.normal(keys[6], (action_dim, lin_in), jnp.float32) * 0.1,
        "b_out": jax.random.normal(keys[7], (action_dim,), jnp.float32) * 0.1,
    }

    params = {}
    params["w1"], params["b1"] = _prep_conv1(raw["w1"], raw["b1"])
    params["w2"], params["b2"] = _prep_conv_blocked(raw["w2"], raw["b2"])
    params["w3"], params["b3"] = _prep_conv_blocked(raw["w3"], raw["b3"])
    for i, cout in ((1, C1), (2, C2), (3, C3)):
        # BN affine: PyTorch default gamma=1, beta=0; padded lanes get 0 so
        # they stay exactly zero through BN + ReLU.
        params[f"g{i}"] = _pad_row(jnp.ones((cout,), jnp.float32), CPAD)
        params[f"be{i}"] = _pad_row(jnp.zeros((cout,), jnp.float32), CPAD)
    params["w_lin"] = jnp.pad(
        raw["w_out"].T,
        ((0, CPAD - lin_in), (0, CPAD - action_dim))).astype(jnp.bfloat16)
    params["b_lin"] = _pad_row(raw["b_out"], CPAD)
    return params, raw


# ------------------------- pure-JAX reference check --------------------------

def _reference_forward(raw, obs):
    # Mirrors the kernel's precision choices: bf16 MXU operands, f32
    # accumulation / BN / activations, bf16 rounding of activations between
    # layers.
    def layer(x, w, b):
        y = lax.conv_general_dilated(
            x.astype(jnp.bfloat16), w.astype(jnp.bfloat16),
            window_strides=(STRIDE, STRIDE), padding="VALID",
            dimension_numbers=("NCHW", "OIHW", "NCHW"),
            preferred_element_type=jnp.float32)
        y = y + b.reshape(1, -1, 1, 1)
        mean = jnp.mean(y, axis=(0, 2, 3), keepdims=True)
        var = jnp.mean((y - mean) ** 2, axis=(0, 2, 3), keepdims=True)
        y = (y - mean) * lax.rsqrt(var + BN_EPS)
        return jnp.maximum(y, 0.0).astype(jnp.bfloat16).astype(jnp.float32)

    x = layer(obs, raw["w1"], raw["b1"])
    x = layer(x, raw["w2"], raw["b2"])
    x = layer(x, raw["w3"], raw["b3"])
    flat = x.reshape(x.shape[0], -1)                  # torch x.view(N, -1)
    z = jnp.dot(flat.astype(jnp.bfloat16), raw["w_out"].T.astype(jnp.bfloat16),
                preferred_element_type=jnp.float32) + raw["b_out"]
    return jnp.tanh(z)


if __name__ == "__main__":
    # smallest-ish spatial size that survives three k=5, stride=2 convs
    state_dim = (3, 32, 32)   # (C, H, W)
    action_dim = 4
    batch = 2

    key = jax.random.PRNGKey(0)
    k_obs, k_par = jax.random.split(key)
    obs = jax.random.normal(k_obs, (batch,) + state_dim, jnp.float32)
    params, raw = init_params(k_par, state_dim, action_dim)

    fwd = jax.jit(lambda p, o: actor_forward(p, o, action_dim))
    out = jax.block_until_ready(fwd(params, obs))

    assert out.shape == (batch, action_dim)
    assert bool(jnp.all(jnp.isfinite(out)))
    assert bool(jnp.all(jnp.abs(out) <= 1.0))

    ref = _reference_forward(raw, obs)
    assert bool(jnp.max(jnp.abs(out - ref)) < 2e-2)

    print("KERNEL_OK")
</pallas_src>

<mosaic_0001>
module attributes {stable_mosaic.version = 11 : i64} {
  func.func @kernel(%arg0: memref<392x128xbf16, #tpu.memory_space<vmem>>, %arg1: memref<128x128xbf16, #tpu.memory_space<vmem>>, %arg2: memref<1x128xf32, #tpu.memory_space<vmem>>, %arg3: memref<1x128xf32, #tpu.memory_space<vmem>>, %arg4: memref<1x128xf32, #tpu.memory_space<vmem>>, %arg5: memref<3200x128xbf16, #tpu.memory_space<vmem>>, %arg6: memref<1x128xf32, #tpu.memory_space<vmem>>, %arg7: memref<1x128xf32, #tpu.memory_space<vmem>>, %arg8: memref<1x128xf32, #tpu.memory_space<vmem>>, %arg9: memref<3200x128xbf16, #tpu.memory_space<vmem>>, %arg10: memref<1x128xf32, #tpu.memory_space<vmem>>, %arg11: memref<1x128xf32, #tpu.memory_space<vmem>>, %arg12: memref<1x128xf32, #tpu.memory_space<vmem>>, %arg13: memref<128x128xbf16, #tpu.memory_space<vmem>>, %arg14: memref<1x128xf32, #tpu.memory_space<vmem>>, %arg15: memref<2x128xf32, #tpu.memory_space<vmem>>, %arg16: memref<392x128xf32, #tpu.memory_space<vmem>>, %arg17: memref<50x3200xf32, #tpu.memory_space<vmem>>, %arg18: memref<50x128xf32, #tpu.memory_space<vmem>>, %arg19: memref<2x3200xf32, #tpu.memory_space<vmem>>) attributes {dimension_semantics = [], scalar_prefetch = 0 : i64, scratch_operands = 4 : i64, tpu.core_type = #tpu.core_type<tc>} {
    %c0 = arith.constant 0 : index
    %c0_0 = arith.constant 0 : index
    %0 = vector.load %arg0[%c0, %c0_0] : memref<392x128xbf16, #tpu.memory_space<vmem>>, vector<392x128xbf16>
    %c0_1 = arith.constant 0 : index
    %c0_2 = arith.constant 0 : index
    %1 = vector.load %arg1[%c0_1, %c0_2] : memref<128x128xbf16, #tpu.memory_space<vmem>>, vector<128x128xbf16>
    %cst = arith.constant dense<0.000000e+00> : vector<392x128xf32>
    %2 = tpu.matmul %0, %1, %cst {dimension_numbers = #tpu.dot_dimension_numbers<[1], [0], [0], [1], [0, 0, 1, 1], [], []>} : vector<392x128xbf16>, vector<128x128xbf16>, vector<392x128xf32> -> vector<392x128xf32>
    %c0_3 = arith.constant 0 : index
    %c0_4 = arith.constant 0 : index
    %3 = vector.load %arg2[%c0_3, %c0_4] : memref<1x128xf32, #tpu.memory_space<vmem>>, vector<1x128xf32>
    %4 = vector.broadcast %3 : vector<1x128xf32> to vector<392x128xf32>
    %5 = arith.addf %2, %4 : vector<392x128xf32>
    %c0_5 = arith.constant 0 : index
    %c0_6 = arith.constant 0 : index
    %6 = vector.load %arg3[%c0_5, %c0_6] : memref<1x128xf32, #tpu.memory_space<vmem>>, vector<1x128xf32>
    %c0_7 = arith.constant 0 : index
    %c0_8 = arith.constant 0 : index
    %7 = vector.load %arg4[%c0_7, %c0_8] : memref<1x128xf32, #tpu.memory_space<vmem>>, vector<1x128xf32>
    %cst_9 = arith.constant dense<0.000000e+00> : vector<128xf32>
    %8 = vector.multi_reduction <add>, %5, %cst_9 [0] : vector<392x128xf32> to vector<128xf32>
    %9 = vector.shape_cast %8 : vector<128xf32> to vector<1x128xf32>
    %cst_10 = arith.constant 0.00255102036 : f32
    %10 = vector.broadcast %cst_10 : f32 to vector<1x128xf32>
    %11 = arith.mulf %9, %10 : vector<1x128xf32>
    %12 = vector.broadcast %11 : vector<1x128xf32> to vector<392x128xf32>
    %13 = arith.subf %5, %12 : vector<392x128xf32>
    %14 = arith.mulf %13, %13 : vector<392x128xf32>
    %cst_11 = arith.constant dense<0.000000e+00> : vector<128xf32>
    %15 = vector.multi_reduction <add>, %14, %cst_11 [0] : vector<392x128xf32> to vector<128xf32>
    %16 = vector.shape_cast %15 : vector<128xf32> to vector<1x128xf32>
    %cst_12 = arith.constant 0.00255102036 : f32
    %17 = vector.broadcast %cst_12 : f32 to vector<1x128xf32>
    %18 = arith.mulf %16, %17 : vector<1x128xf32>
    %cst_13 = arith.constant 9.99999974E-6 : f32
    %19 = vector.broadcast %cst_13 : f32 to vector<1x128xf32>
    %20 = arith.addf %18, %19 : vector<1x128xf32>
    %21 = math.rsqrt %20 : vector<1x128xf32>
    %22 = vector.broadcast %21 : vector<1x128xf32> to vector<392x128xf32>
    %23 = arith.mulf %13, %22 : vector<392x128xf32>
    %24 = vector.broadcast %6 : vector<1x128xf32> to vector<392x128xf32>
    %25 = arith.mulf %23, %24 : vector<392x128xf32>
    %26 = vector.broadcast %7 : vector<1x128xf32> to vector<392x128xf32>
    %27 = arith.addf %25, %26 : vector<392x128xf32>
    %cst_14 = arith.constant 0.000000e+00 : f32
    %28 = vector.broadcast %cst_14 : f32 to vector<392x128xf32>
    %29 = arith.maximumf %27, %28 : vector<392x128xf32>
    %c0_15 = arith.constant 0 : index
    %c0_16 = arith.constant 0 : index
    %30 = vector.load %arg16[%c0_15, %c0_16] : memref<392x128xf32, #tpu.memory_space<vmem>>, vector<392x128xf32>
    tpu.vector_store %arg16[%c0_15, %c0_16], %29 {strides = array<i32>} : memref<392x128xf32, #tpu.memory_space<vmem>>, vector<392x128xf32>,
    %c0_17 = arith.constant 0 : index
    %c0_18 = arith.constant 0 : index
    %31 = vector.load %arg16[%c0_17, %c0_18] : memref<392x128xf32, #tpu.memory_space<vmem>>, vector<10x128xf32>
    %c0_19 = arith.constant 0 : index
    %c0_20 = arith.constant 0 : index
    %32 = vector.load %arg17[%c0_19, %c0_20] : memref<50x3200xf32, #tpu.memory_space<vmem>>, vector<10x128xf32>
    tpu.vector_store %arg17[%c0_19, %c0_20], %31 {strides = array<i32>} : memref<50x3200xf32, #tpu.memory_space<vmem>>, vector<10x128xf32>,
    %c14 = arith.constant 14 : index
    %c0_21 = arith.constant 0 : index
    %33 = vector.load %arg16[%c14, %c0_21] : memref<392x128xf32, #tpu.memory_space<vmem>>, vector<10x128xf32>
    %c10 = arith.constant 10 : index
    %c0_22 = arith.constant 0 : index
    %34 = vector.load %arg17[%c10, %c0_22] : memref<50x3200xf32, #tpu.memory_space<vmem>>, vector<10x128xf32>
    tpu.vector_store %arg17[%c10, %c0_22], %33 {strides = array<i32>} : memref<50x3200xf32, #tpu.memory_space<vmem>>, vector<10x128xf32>,
    %c28 = arith.constant 28 : index
    %c0_23 = arith.constant 0 : index
    %35 = vector.load %arg16[%c28, %c0_23] : memref<392x128xf32, #tpu.memory_space<vmem>>, vector<10x128xf32>
    %c20 = arith.constant 20 : index
    %c0_24 = arith.constant 0 : index
    %36 = vector.load %arg17[%c20, %c0_24] : memref<50x3200xf32, #tpu.memory_space<vmem>>, vector<10x128xf32>
    tpu.vector_store %arg17[%c20, %c0_24], %35 {strides = array<i32>} : memref<50x3200xf32, #tpu.memory_space<vmem>>, vector<10x128xf32>,
    %c42 = arith.constant 42 : index
    %c0_25 = arith.constant 0 : index
    %37 = vector.load %arg16[%c42, %c0_25] : memref<392x128xf32, #tpu.memory_space<vmem>>, vector<10x128xf32>
    %c30 = arith.constant 30 : index
    %c0_26 = arith.constant 0 : index
    %38 = vector.load %arg17[%c30, %c0_26] : memref<50x3200xf32, #tpu.memory_space<vmem>>, vector<10x128xf32>
    tpu.vector_store %arg17[%c30, %c0_26], %37 {strides = array<i32>} : memref<50x3200xf32, #tpu.memory_space<vmem>>, vector<10x128xf32>,
    %c56 = arith.constant 56 : index
    %c0_27 = arith.constant 0 : index
    %39 = vector.load %arg16[%c56, %c0_27] : memref<392x128xf32, #tpu.memory_space<vmem>>, vector<10x128xf32>
    %c40 = arith.constant 40 : index
    %c0_28 = arith.constant 0 : index
    %40 = vector.load %arg17[%c40, %c0_28] : memref<50x3200xf32, #tpu.memory_space<vmem>>, vector<10x128xf32>
    tpu.vector_store %arg17[%c40, %c0_28], %39 {strides = array<i32>} : memref<50x3200xf32, #tpu.memory_space<vmem>>, vector<10x128xf32>,
    %c98 = arith.constant 98 : index
    %c0_29 = arith.constant 0 : index
    %41 = vector.load %arg16[%c98, %c0_29] : memref<392x128xf32, #tpu.memory_space<vmem>>, vector<10x128xf32>
    %c0_30 = arith.constant 0 : index
    %c128 = arith.constant 128 : index
    %42 = vector.load %arg17[%c0_30, %c128] : memref<50x3200xf32, #tpu.memory_space<vmem>>, vector<10x128xf32>
    tpu.vector_store %arg17[%c0_30, %c128], %41 {strides = array<i32>} : memref<50x3200xf32, #tpu.memory_space<vmem>>, vector<10x128xf32>,
    %c112 = arith.constant 112 : index
    %c0_31 = arith.constant 0 : index
    %43 = vector.load %arg16[%c112, %c0_31] : memref<392x128xf32, #tpu.memory_space<vmem>>, vector<10x128xf32>
    %c10_32 = arith.constant 10 : index
    %c128_33 = arith.constant 128 : index
    %44 = vector.load %arg17[%c10_32, %c128_33] : memref<50x3200xf32, #tpu.memory_space<vmem>>, vector<10x128xf32>
    tpu.vector_store %arg17[%c10_32, %c128_33], %43 {strides = array<i32>} : memref<50x3200xf32, #tpu.memory_space<vmem>>, vector<10x128xf32>,
    %c126 = arith.constant 126 : index
    %c0_34 = arith.constant 0 : index
    %45 = vector.load %arg16[%c126, %c0_34] : memref<392x128xf32, #tpu.memory_space<vmem>>, vector<10x128xf32>
    %c20_35 = arith.constant 20 : index
    %c128_36 = arith.constant 128 : index
    %46 = vector.load %arg17[%c20_35, %c128_36] : memref<50x3200xf32, #tpu.memory_space<vmem>>, vector<10x128xf32>
    tpu.vector_store %arg17[%c20_35, %c128_36], %45 {strides = array<i32>} : memref<50x3200xf32, #tpu.memory_space<vmem>>, vector<10x128xf32>,
    %c140 = arith.constant 140 : index
    %c0_37 = arith.constant 0 : index
    %47 = vector.load %arg16[%c140, %c0_37] : memref<392x128xf32, #tpu.memory_space<vmem>>, vector<10x128xf32>
    %c30_38 = arith.constant 30 : index
    %c128_39 = arith.constant 128 : index
    %48 = vector.load %arg17[%c30_38, %c128_39] : memref<50x3200xf32, #tpu.memory_space<vmem>>, vector<10x128xf32>
    tpu.vector_store %arg17[%c30_38, %c128_39], %47 {strides = array<i32>} : memref<50x3200xf32, #tpu.memory_space<vmem>>, vector<10x128xf32>,
    %c154 = arith.constant 154 : index
    %c0_40 = arith.constant 0 : index
    %49 = vector.load %arg16[%c154, %c0_40] : memref<392x128xf32, #tpu.memory_space<vmem>>, vector<10x128xf32>
    %c40_41 = arith.constant 40 : index
    %c128_42 = arith.constant 128 : index
    %50 = vector.load %arg17[%c40_41, %c128_42] : memref<50x3200xf32, #tpu.memory_space<vmem>>, vector<10x128xf32>
    tpu.vector_store %arg17[%c40_41, %c128_42], %49 {strides = array<i32>} : memref<50x3200xf32, #tpu.memory_space<vmem>>, vector<10x128xf32>,
    %c2 = arith.constant 2 : index
    %c0_43 = arith.constant 0 : index
    %51 = vector.load %arg16[%c2, %c0_43] : memref<392x128xf32, #tpu.memory_space<vmem>>, vector<10x128xf32>
    %c0_44 = arith.constant 0 : index
    %c256 = arith.constant 256 : index
    %52 = vector.load %arg17[%c0_44, %c256] : memref<50x3200xf32, #tpu.memory_space<vmem>>, vector<10x128xf32>
    tpu.vector_store %arg17[%c0_44, %c256], %51 {strides = array<i32>} : memref<50x3200xf32, #tpu.memory_space<vmem>>, vector<10x128xf32>,
    %c16 = arith.constant 16 : index
    %c0_45 = arith.constant 0 : index
    %53 = vector.load %arg16[%c16, %c0_45] : memref<392x128xf32, #tpu.memory_space<vmem>>, vector<10x128xf32>
    %c10_46 = arith.constant 10 : index
    %c256_47 = arith.constant 256 : index
    %54 = vector.load %arg17[%c10_46, %c256_47] : memref<50x3200xf32, #tpu.memory_space<vmem>>, vector<10x128xf32>
    tpu.vector_store %arg17[%c10_46, %c256_47], %53 {strides = array<i32>} : memref<50x3200xf32, #tpu.memory_space<vmem>>, vector<10x128xf32>,
    %c30_48 = arith.constant 30 : index
    %c0_49 = arith.constant 0 : index
    %55 = vector.load %arg16[%c30_48, %c0_49] : memref<392x128xf32, #tpu.memory_space<vmem>>, vector<10x128xf32>
    %c20_50 = arith.constant 20 : index
    %c256_51 = arith.constant 256 : index
    %56 = vector.load %arg17[%c20_50, %c256_51] : memref<50x3200xf32, #tpu.memory_space<vmem>>, vector<10x128xf32>
    tpu.vector_store %arg17[%c20_50, %c256_51], %55 {strides = array<i32>} : memref<50x3200xf32, #tpu.memory_space<vmem>>, vector<10x128xf32>,
    %c44 = arith.constant 44 : index
    %c0_52 = arith.constant 0 : index
    %57 = vector.load %arg16[%c44, %c0_52] : memref<392x128xf32, #tpu.memory_space<vmem>>, vector<10x128xf32>
    %c30_53 = arith.constant 30 : index
    %c256_54 = arith.constant 256 : index
    %58 = vector.load %arg17[%c30_53, %c256_54] : memref<50x3200xf32, #tpu.memory_space<vmem>>, vector<10x128xf32>
    tpu.vector_store %arg17[%c30_53, %c256_54], %57 {strides = array<i32>} : memref<50x3200xf32, #tpu.memory_space<vmem>>, vector<10x128xf32>,
    %c58 = arith.constant 58 : index
    %c0_55 = arith.constant 0 : index
    %59 = vector.load %arg16[%c58, %c0_55] : memref<392x128xf32, #tpu.memory_space<vmem>>, vector<10x128xf32>
    %c40_56 = arith.constant 40 : index
    %c256_57 = arith.constant 256 : index
    %60 = vector.load %arg17[%c40_56, %c256_57] : memref<50x3200xf32, #tpu.memory_space<vmem>>, vector<10x128xf32>
    tpu.vector_store %arg17[%c40_56, %c256_57], %59 {strides = array<i32>} : memref<50x3200xf32, #tpu.memory_space<vmem>>, vector<10x128xf32>,
    %c100 = arith.constant 100 : index
    %c0_58 = arith.constant 0 : index
    %61 = vector.load %arg16[%c100, %c0_58] : memref<392x128xf32, #tpu.memory_space<vmem>>, vector<10x128xf32>
    %c0_59 = arith.constant 0 : index
    %c384 = arith.constant 384 : index
    %62 = vector.load %arg17[%c0_59, %c384] : memref<50x3200xf32, #tpu.memory_space<vmem>>, vector<10x128xf32>
    tpu.vector_store %arg17[%c0_59, %c384], %61 {strides = array<i32>} : memref<50x3200xf32, #tpu.memory_space<vmem>>, vector<10x128xf32>,
    %c114 = arith.constant 114 : index
    %c0_60 = arith.constant 0 : index
    %63 = vector.load %arg16[%c114, %c0_60] : memref<392x128xf32, #tpu.memory_space<vmem>>, vector<10x128xf32>
    %c10_61 = arith.constant 10 : index
    %c384_62 = arith.constant 384 : index
    %64 = vector.load %arg17[%c10_61, %c384_62] : memref<50x3200xf32, #tpu.memory_space<vmem>>, vector<10x128xf32>
    tpu.vector_store %arg17[%c10_61, %c384_62], %63 {strides = array<i32>} : memref<50x3200xf32, #tpu.memory_space<vmem>>, vector<10x128xf32>,
    %c128_63 = arith.constant 128 : index
    %c0_64 = arith.constant 0 : index
    %65 = vector.load %arg16[%c128_63, %c0_64] : memref<392x128xf32, #tpu.memory_space<vmem>>, vector<10x128xf32>
    %c20_65 = arith.constant 20 : index
    %c384_66 = arith.constant 384 : index
    %66 = vector.load %arg17[%c20_65, %c384_66] : memref<50x3200xf32, #tpu.memory_space<vmem>>, vector<10x128xf32>
    tpu.vector_store %arg17[%c20_65, %c384_66], %65 {strides = array<i32>} : memref<50x3200xf32, #tpu.memory_space<vmem>>, vector<10x128xf32>,
    %c142 = arith.constant 142 : index
    %c0_67 = arith.constant 0 : index
    %67 = vector.load %arg16[%c142, %c0_67] : memref<392x128xf32, #tpu.memory_space<vmem>>, vector<10x128xf32>
    %c30_68 = arith.constant 30 : index
    %c384_69 = arith.constant 384 : index
    %68 = vector.load %arg17[%c30_68, %c384_69] : memref<50x3200xf32, #tpu.memory_space<vmem>>, vector<10x128xf32>
    tpu.vector_store %arg17[%c30_68, %c384_69], %67 {strides = array<i32>} : memref<50x3200xf32, #tpu.memory_space<vmem>>, vector<10x128xf32>,
    %c156 = arith.constant 156 : index
    %c0_70 = arith.constant 0 : index
    %69 = vector.load %arg16[%c156, %c0_70] : memref<392x128xf32, #tpu.memory_space<vmem>>, vector<10x128xf32>
    %c40_71 = arith.constant 40 : index
    %c384_72 = arith.constant 384 : index
    %70 = vector.load %arg17[%c40_71, %c384_72] : memref<50x3200xf32, #tpu.memory_space<vmem>>, vector<10x128xf32>
    tpu.vector_store %arg17[%c40_71, %c384_72], %69 {strides = array<i32>} : memref<50x3200xf32, #tpu.memory_space<vmem>>, vector<10x128xf32>,
    %c4 = arith.constant 4 : index
    %c0_73 = arith.constant 0 : index
    %71 = vector.load %arg16[%c4, %c0_73] : memref<392x128xf32, #tpu.memory_space<vmem>>, vector<10x128xf32>
    %c0_74 = arith.constant 0 : index
    %c512 = arith.constant 512 : index
    %72 = vector.load %arg17[%c0_74, %c512] : memref<50x3200xf32, #tpu.memory_space<vmem>>, vector<10x128xf32>
    tpu.vector_store %arg17[%c0_74, %c512], %71 {strides = array<i32>} : memref<50x3200xf32, #tpu.memory_space<vmem>>, vector<10x128xf32>,
    %c18 = arith.constant 18 : index
    %c0_75 = arith.constant 0 : index
    %73 = vector.load %arg16[%c18, %c0_75] : memref<392x128xf32, #tpu.memory_space<vmem>>, vector<10x128xf32>
    %c10_76 = arith.constant 10 : index
    %c512_77 = arith.constant 512 : index
    %74 = vector.load %arg17[%c10_76, %c512_77] : memref<50x3200xf32, #tpu.memory_space<vmem>>, vector<10x128xf32>
    tpu.vector_store %arg17[%c10_76, %c512_77], %73 {strides = array<i32>} : memref<50x3200xf32, #tpu.memory_space<vmem>>, vector<10x128xf32>,
    %c32 = arith.constant 32 : index
    %c0_78 = arith.constant 0 : index
    %75 = vector.load %arg16[%c32, %c0_78] : memref<392x128xf32, #tpu.memory_space<vmem>>, vector<10x128xf32>
    %c20_79 = arith.constant 20 : index
    %c512_80 = arith.constant 512 : index
    %76 = vector.load %arg17[%c20_79, %c512_80] : memref<50x3200xf32, #tpu.memory_space<vmem>>, vector<10x128xf32>
    tpu.vector_store %arg17[%c20_79, %c512_80], %75 {strides = array<i32>} : memref<50x3200xf32, #tpu.memory_space<vmem>>, vector<10x128xf32>,
    %c46 = arith.constant 46 : index
    %c0_81 = arith.constant 0 : index
    %77 = vector.load %arg16[%c46, %c0_81] : memref<392x128xf32, #tpu.memory_space<vmem>>, vector<10x128xf32>
    %c30_82 = arith.constant 30 : index
    %c512_83 = arith.constant 512 : index
    %78 = vector.load %arg17[%c30_82, %c512_83] : memref<50x3200xf32, #tpu.memory_space<vmem>>, vector<10x128xf32>
    tpu.vector_store %arg17[%c30_82, %c512_83], %77 {strides = array<i32>} : memref<50x3200xf32, #tpu.memory_space<vmem>>, vector<10x128xf32>,
    %c60 = arith.constant 60 : index
    %c0_84 = arith.constant 0 : index
    %79 = vector.load %arg16[%c60, %c0_84] : memref<392x128xf32, #tpu.memory_space<vmem>>, vector<10x128xf32>
    %c40_85 = arith.constant 40 : index
    %c512_86 = arith.constant 512 : index
    %80 = vector.load %arg17[%c40_85, %c512_86] : memref<50x3200xf32, #tpu.memory_space<vmem>>, vector<10x128xf32>
    tpu.vector_store %arg17[%c40_85, %c512_86], %79 {strides = array<i32>} : memref<50x3200xf32, #tpu.memory_space<vmem>>, vector<10x128xf32>,
    %c196 = arith.constant 196 : index
    %c0_87 = arith.constant 0 : index
    %81 = vector.load %arg16[%c196, %c0_87] : memref<392x128xf32, #tpu.memory_space<vmem>>, vector<10x128xf32>
    %c0_88 = arith.constant 0 : index
    %c640 = arith.constant 640 : index
    %82 = vector.load %arg17[%c0_88, %c640] : memref<50x3200xf32, #tpu.memory_space<vmem>>, vector<10x128xf32>
    tpu.vector_store %arg17[%c0_88, %c640], %81 {strides = array<i32>} : memref<50x3200xf32, #tpu.memory_space<vmem>>, vector<10x128xf32>,
    %c210 = arith.constant 210 : index
    %c0_89 = arith.constant 0 : index
    %83 = vector.load %arg16[%c210, %c0_89] : memref<392x128xf32, #tpu.memory_space<vmem>>, vector<10x128xf32>
    %c10_90 = arith.constant 10 : index
    %c640_91 = arith.constant 640 : index
    %84 = vector.load %arg17[%c10_90, %c640_91] : memref<50x3200xf32, #tpu.memory_space<vmem>>, vector<10x128xf32>
    tpu.vector_store %arg17[%c10_90, %c640_91], %83 {strides = array<i32>} : memref<50x3200xf32, #tpu.memory_space<vmem>>, vector<10x128xf32>,
    %c224 = arith.constant 224 : index
    %c0_92 = arith.constant 0 : index
    %85 = vector.load %arg16[%c224, %c0_92] : memref<392x128xf32, #tpu.memory_space<vmem>>, vector<10x128xf32>
    %c20_93 = arith.constant 20 : index
    %c640_94 = arith.constant 640 : index
    %86 = vector.load %arg17[%c20_93, %c640_94] : memref<50x3200xf32, #tpu.memory_space<vmem>>, vector<10x128xf32>
    tpu.vector_store %arg17[%c20_93, %c640_94], %85 {strides = array<i32>} : memref<50x3200xf32, #tpu.memory_space<vmem>>, vector<10x128xf32>,
    %c238 = arith.constant 238 : index
    %c0_95 = arith.constant 0 : index
    %87 = vector.load %arg16[%c238, %c0_95] : memref<392x128xf32, #tpu.memory_space<vmem>>, vector<10x128xf32>
    %c30_96 = arith.constant 30 : index
    %c640_97 = arith.constant 640 : index
    %88 = vector.load %arg17[%c30_96, %c640_97] : memref<50x3200xf32, #tpu.memory_space<vmem>>, vector<10x128xf32>
    tpu.vector_store %arg17[%c30_96, %c640_97], %87 {strides = array<i32>} : memref<50x3200xf32, #tpu.memory_space<vmem>>, vector<10x128xf32>,
    %c252 = arith.constant 252 : index
    %c0_98 = arith.constant 0 : index
    %89 = vector.load %arg16[%c252, %c0_98] : memref<392x128xf32, #tpu.memory_space<vmem>>, vector<10x128xf32>
    %c40_99 = arith.constant 40 : index
    %c640_100 = arith.constant 640 : index
    %90 = vector.load %arg17[%c40_99, %c640_100] : memref<50x3200xf32, #tpu.memory_space<vmem>>, vector<10x128xf32>
    tpu.vector_store %arg17[%c40_99, %c640_100], %89 {strides = array<i32>} : memref<50x3200xf32, #tpu.memory_space<vmem>>, vector<10x128xf32>,
    %c294 = arith.constant 294 : index
    %c0_101 = arith.constant 0 : index
    %91 = vector.load %arg16[%c294, %c0_101] : memref<392x128xf32, #tpu.memory_space<vmem>>, vector<10x128xf32>
    %c0_102 = arith.constant 0 : index
    %c768 = arith.constant 768 : index
    %92 = vector.load %arg17[%c0_102, %c768] : memref<50x3200xf32, #tpu.memory_space<vmem>>, vector<10x128xf32>
    tpu.vector_store %arg17[%c0_102, %c768], %91 {strides = array<i32>} : memref<50x3200xf32, #tpu.memory_space<vmem>>, vector<10x128xf32>,
    %c308 = arith.constant 308 : index
    %c0_103 = arith.constant 0 : index
    %93 = vector.load %arg16[%c308, %c0_103] : memref<392x128xf32, #tpu.memory_space<vmem>>, vector<10x128xf32>
    %c10_104 = arith.constant 10 : index
    %c768_105 = arith.constant 768 : index
    %94 = vector.load %arg17[%c10_104, %c768_105] : memref<50x3200xf32, #tpu.memory_space<vmem>>, vector<10x128xf32>
    tpu.vector_store %arg17[%c10_104, %c768_105], %93 {strides = array<i32>} : memref<50x3200xf32, #tpu.memory_space<vmem>>, vector<10x128xf32>,
    %c322 = arith.constant 322 : index
    %c0_106 = arith.constant 0 : index
    %95 = vector.load %arg16[%c322, %c0_106] : memref<392x128xf32, #tpu.memory_space<vmem>>, vector<10x128xf32>
    %c20_107 = arith.constant 20 : index
    %c768_108 = arith.constant 768 : index
    %96 = vector.load %arg17[%c20_107, %c768_108] : memref<50x3200xf32, #tpu.memory_space<vmem>>, vector<10x128xf32>
    tpu.vector_store %arg17[%c20_107, %c768_108], %95 {strides = array<i32>} : memref<50x3200xf32, #tpu.memory_space<vmem>>, vector<10x128xf32>,
    %c336 = arith.constant 336 : index
    %c0_109 = arith.constant 0 : index
    %97 = vector.load %arg16[%c336, %c0_109] : memref<392x128xf32, #tpu.memory_space<vmem>>, vector<10x128xf32>
    %c30_110 = arith.constant 30 : index
    %c768_111 = arith.constant 768 : index
    %98 = vector.load %arg17[%c30_110, %c768_111] : memref<50x3200xf32, #tpu.memory_space<vmem>>, vector<10x128xf32>
    tpu.vector_store %arg17[%c30_110, %c768_111], %97 {strides = array<i32>} : memref<50x3200xf32, #tpu.memory_space<vmem>>, vector<10x128xf32>,
    %c350 = arith.constant 350 : index
    %c0_112 = arith.constant 0 : index
    %99 = vector.load %arg16[%c350, %c0_112] : memref<392x128xf32, #tpu.memory_space<vmem>>, vector<10x128xf32>
    %c40_113 = arith.constant 40 : index
    %c768_114 = arith.constant 768 : index
    %100 = vector.load %arg17[%c40_113, %c768_114] : memref<50x3200xf32, #tpu.memory_space<vmem>>, vector<10x128xf32>
    tpu.vector_store %arg17[%c40_113, %c768_114], %99 {strides = array<i32>} : memref<50x3200xf32, #tpu.memory_space<vmem>>, vector<10x128xf32>,
    %c198 = arith.constant 198 : index
    %c0_115 = arith.constant 0 : index
    %101 = vector.load %arg16[%c198, %c0_115] : memref<392x128xf32, #tpu.memory_space<vmem>>, vector<10x128xf32>
    %c0_116 = arith.constant 0 : index
    %c896 = arith.constant 896 : index
    %102 = vector.load %arg17[%c0_116, %c896] : memref<50x3200xf32, #tpu.memory_space<vmem>>, vector<10x128xf32>
    tpu.vector_store %arg17[%c0_116, %c896], %101 {strides = array<i32>} : memref<50x3200xf32, #tpu.memory_space<vmem>>, vector<10x128xf32>,
    %c212 = arith.constant 212 : index
    %c0_117 = arith.constant 0 : index
    %103 = vector.load %arg16[%c212, %c0_117] : memref<392x128xf32, #tpu.memory_space<vmem>>, vector<10x128xf32>
    %c10_118 = arith.constant 10 : index
    %c896_119 = arith.constant 896 : index
    %104 = vector.load %arg17[%c10_118, %c896_119] : memref<50x3200xf32, #tpu.memory_space<vmem>>, vector<10x128xf32>
    tpu.vector_store %arg17[%c10_118, %c896_119], %103 {strides = array<i32>} : memref<50x3200xf32, #tpu.memory_space<vmem>>, vector<10x128xf32>,
    %c226 = arith.constant 226 : index
    %c0_120 = arith.constant 0 : index
    %105 = vector.load %arg16[%c226, %c0_120] : memref<392x128xf32, #tpu.memory_space<vmem>>, vector<10x128xf32>
    %c20_121 = arith.constant 20 : index
    %c896_122 = arith.constant 896 : index
    %106 = vector.load %arg17[%c20_121, %c896_122] : memref<50x3200xf32, #tpu.memory_space<vmem>>, vector<10x128xf32>
    tpu.vector_store %arg17[%c20_121, %c896_122], %105 {strides = array<i32>} : memref<50x3200xf32, #tpu.memory_space<vmem>>, vector<10x128xf32>,
    %c240 = arith.constant 240 : index
    %c0_123 = arith.constant 0 : index
    %107 = vector.load %arg16[%c240, %c0_123] : memref<392x128xf32, #tpu.memory_space<vmem>>, vector<10x128xf32>
    %c30_124 = arith.constant 30 : index
    %c896_125 = arith.constant 896 : index
    %108 = vector.load %arg17[%c30_124, %c896_125] : memref<50x3200xf32, #tpu.memory_space<vmem>>, vector<10x128xf32>
    tpu.vector_store %arg17[%c30_124, %c896_125], %107 {strides = array<i32>} : memref<50x3200xf32, #tpu.memory_space<vmem>>, vector<10x128xf32>,
    %c254 = arith.constant 254 : index
    %c0_126 = arith.constant 0 : index
    %109 = vector.load %arg16[%c254, %c0_126] : memref<392x128xf32, #tpu.memory_space<vmem>>, vector<10x128xf32>
    %c40_127 = arith.constant 40 : index
    %c896_128 = arith.constant 896 : index
    %110 = vector.load %arg17[%c40_127, %c896_128] : memref<50x3200xf32, #tpu.memory_space<vmem>>, vector<10x128xf32>
    tpu.vector_store %arg17[%c40_127, %c896_128], %109 {strides = array<i32>} : memref<50x3200xf32, #tpu.memory_space<vmem>>, vector<10x128xf32>,
    %c296 = arith.constant 296 : index
    %c0_129 = arith.constant 0 : index
    %111 = vector.load %arg16[%c296, %c0_129] : memref<392x128xf32, #tpu.memory_space<vmem>>, vector<10x128xf32>
    %c0_130 = arith.constant 0 : index
    %c1024 = arith.constant 1024 : index
    %112 = vector.load %arg17[%c0_130, %c1024] : memref<50x3200xf32, #tpu.memory_space<vmem>>, vector<10x128xf32>
    tpu.vector_store %arg17[%c0_130, %c1024], %111 {strides = array<i32>} : memref<50x3200xf32, #tpu.memory_space<vmem>>, vector<10x128xf32>,
    %c310 = arith.constant 310 : index
    %c0_131 = arith.constant 0 : index
    %113 = vector.load %arg16[%c310, %c0_131] : memref<392x128xf32, #tpu.memory_space<vmem>>, vector<10x128xf32>
    %c10_132 = arith.constant 10 : index
    %c1024_133 = arith.constant 1024 : index
    %114 = vector.load %arg17[%c10_132, %c1024_133] : memref<50x3200xf32, #tpu.memory_space<vmem>>, vector<10x128xf32>
    tpu.vector_store %arg17[%c10_132, %c1024_133], %113 {strides = array<i32>} : memref<50x3200xf32, #tpu.memory_space<vmem>>, vector<10x128xf32>,
    %c324 = arith.constant 324 : index
    %c0_134 = arith.constant 0 : index
    %115 = vector.load %arg16[%c324, %c0_134] : memref<392x128xf32, #tpu.memory_space<vmem>>, vector<10x128xf32>
    %c20_135 = arith.constant 20 : index
    %c1024_136 = arith.constant 1024 : index
    %116 = vector.load %arg17[%c20_135, %c1024_136] : memref<50x3200xf32, #tpu.memory_space<vmem>>, vector<10x128xf32>
    tpu.vector_store %arg17[%c20_135, %c1024_136], %115 {strides = array<i32>} : memref<50x3200xf32, #tpu.memory_space<vmem>>, vector<10x128xf32>,
    %c338 = arith.constant 338 : index
    %c0_137 = arith.constant 0 : index
    %117 = vector.load %arg16[%c338, %c0_137] : memref<392x128xf32, #tpu.memory_space<vmem>>, vector<10x128xf32>
    %c30_138 = arith.constant 30 : index
    %c1024_139 = arith.constant 1024 : index
    %118 = vector.load %arg17[%c30_138, %c1024_139] : memref<50x3200xf32, #tpu.memory_space<vmem>>, vector<10x128xf32>
    tpu.vector_store %arg17[%c30_138, %c1024_139], %117 {strides = array<i32>} : memref<50x3200xf32, #tpu.memory_space<vmem>>, vector<10x128xf32>,
    %c352 = arith.constant 352 : index
    %c0_140 = arith.constant 0 : index
    %119 = vector.load %arg16[%c352, %c0_140] : memref<392x128xf32, #tpu.memory_space<vmem>>, vector<10x128xf32>
    %c40_141 = arith.constant 40 : index
    %c1024_142 = arith.constant 1024 : index
    %120 = vector.load %arg17[%c40_141, %c1024_142] : memref<50x3200xf32, #tpu.memory_space<vmem>>, vector<10x128xf32>
    tpu.vector_store %arg17[%c40_141, %c1024_142], %119 {strides = array<i32>} : memref<50x3200xf32, #tpu.memory_space<vmem>>, vector<10x128xf32>,
    %c200 = arith.constant 200 : index
    %c0_143 = arith.constant 0 : index
    %121 = vector.load %arg16[%c200, %c0_143] : memref<392x128xf32, #tpu.memory_space<vmem>>, vector<10x128xf32>
    %c0_144 = arith.constant 0 : index
    %c1152 = arith.constant 1152 : index
    %122 = vector.load %arg17[%c0_144, %c1152] : memref<50x3200xf32, #tpu.memory_space<vmem>>, vector<10x128xf32>
    tpu.vector_store %arg17[%c0_144, %c1152], %121 {strides = array<i32>} : memref<50x3200xf32, #tpu.memory_space<vmem>>, vector<10x128xf32>,
    %c214 = arith.constant 214 : index
    %c0_145 = arith.constant 0 : index
    %123 = vector.load %arg16[%c214, %c0_145] : memref<392x128xf32, #tpu.memory_space<vmem>>, vector<10x128xf32>
    %c10_146 = arith.constant 10 : index
    %c1152_147 = arith.constant 1152 : index
    %124 = vector.load %arg17[%c10_146, %c1152_147] : memref<50x3200xf32, #tpu.memory_space<vmem>>, vector<10x128xf32>
    tpu.vector_store %arg17[%c10_146, %c1152_147], %123 {strides = array<i32>} : memref<50x3200xf32, #tpu.memory_space<vmem>>, vector<10x128xf32>,
    %c228 = arith.constant 228 : index
    %c0_148 = arith.constant 0 : index
    %125 = vector.load %arg16[%c228, %c0_148] : memref<392x128xf32, #tpu.memory_space<vmem>>, vector<10x128xf32>
    %c20_149 = arith.constant 20 : index
    %c1152_150 = arith.constant 1152 : index
    %126 = vector.load %arg17[%c20_149, %c1152_150] : memref<50x3200xf32, #tpu.memory_space<vmem>>, vector<10x128xf32>
    tpu.vector_store %arg17[%c20_149, %c1152_150], %125 {strides = array<i32>} : memref<50x3200xf32, #tpu.memory_space<vmem>>, vector<10x128xf32>,
    %c242 = arith.constant 242 : index
    %c0_151 = arith.constant 0 : index
    %127 = vector.load %arg16[%c242, %c0_151] : memref<392x128xf32, #tpu.memory_space<vmem>>, vector<10x128xf32>
    %c30_152 = arith.constant 30 : index
    %c1152_153 = arith.constant 1152 : index
    %128 = vector.load %arg17[%c30_152, %c1152_153] : memref<50x3200xf32, #tpu.memory_space<vmem>>, vector<10x128xf32>
    tpu.vector_store %arg17[%c30_152, %c1152_153], %127 {strides = array<i32>} : memref<50x3200xf32, #tpu.memory_space<vmem>>, vector<10x128xf32>,
    %c256_154 = arith.constant 256 : index
    %c0_155 = arith.constant 0 : index
    %129 = vector.load %arg16[%c256_154, %c0_155] : memref<392x128xf32, #tpu.memory_space<vmem>>, vector<10x128xf32>
    %c40_156 = arith.constant 40 : index
    %c1152_157 = arith.constant 1152 : index
    %130 = vector.load %arg17[%c40_156, %c1152_157] : memref<50x3200xf32, #tpu.memory_space<vmem>>, vector<10x128xf32>
    tpu.vector_store %arg17[%c40_156, %c1152_157], %129 {strides = array<i32>} : memref<50x3200xf32, #tpu.memory_space<vmem>>, vector<10x128xf32>,
    %c14_158 = arith.constant 14 : index
    %c0_159 = arith.constant 0 : index
    %131 = vector.load %arg16[%c14_158, %c0_159] : memref<392x128xf32, #tpu.memory_space<vmem>>, vector<10x128xf32>
    %c0_160 = arith.constant 0 : index
    %c1280 = arith.constant 1280 : index
    %132 = vector.load %arg17[%c0_160, %c1280] : memref<50x3200xf32, #tpu.memory_space<vmem>>, vector<10x128xf32>
    tpu.vector_store %arg17[%c0_160, %c1280], %131 {strides = array<i32>} : memref<50x3200xf32, #tpu.memory_space<vmem>>, vector<10x128xf32>,
    %c28_161 = arith.constant 28 : index
    %c0_162 = arith.constant 0 : index
    %133 = vector.load %arg16[%c28_161, %c0_162] : memref<392x128xf32, #tpu.memory_space<vmem>>, vector<10x128xf32>
    %c10_163 = arith.constant 10 : index
    %c1280_164 = arith.constant 1280 : index
    %134 = vector.load %arg17[%c10_163, %c1280_164] : memref<50x3200xf32, #tpu.memory_space<vmem>>, vector<10x128xf32>
    tpu.vector_store %arg17[%c10_163, %c1280_164], %133 {strides = array<i32>} : memref<50x3200xf32, #tpu.memory_space<vmem>>, vector<10x128xf32>,
    %c42_165 = arith.constant 42 : index
    %c0_166 = arith.constant 0 : index
    %135 = vector.load %arg16[%c42_165, %c0_166] : memref<392x128xf32, #tpu.memory_space<vmem>>, vector<10x128xf32>
    %c20_167 = arith.constant 20 : index
    %c1280_168 = arith.constant 1280 : index
    %136 = vector.load %arg17[%c20_167, %c1280_168] : memref<50x3200xf32, #tpu.memory_space<vmem>>, vector<10x128xf32>
    tpu.vector_store %arg17[%c20_167, %c1280_168], %135 {strides = array<i32>} : memref<50x3200xf32, #tpu.memory_space<vmem>>, vector<10x128xf32>,
    %c56_169 = arith.constant 56 : index
    %c0_170 = arith.constant 0 : index
    %137 = vector.load %arg16[%c56_169, %c0_170] : memref<392x128xf32, #tpu.memory_space<vmem>>, vector<10x128xf32>
    %c30_171 = arith.constant 30 : index
    %c1280_172 = arith.constant 1280 : index
    %138 = vector.load %arg17[%c30_171, %c1280_172] : memref<50x3200xf32, #tpu.memory_space<vmem>>, vector<10x128xf32>
    tpu.vector_store %arg17[%c30_171, %c1280_172], %137 {strides = array<i32>} : memref<50x3200xf32, #tpu.memory_space<vmem>>, vector<10x128xf32>,
    %c70 = arith.constant 70 : index
    %c0_173 = arith.constant 0 : index
    %139 = vector.load %arg16[%c70, %c0_173] : memref<392x128xf32, #tpu.memory_space<vmem>>, vector<10x128xf32>
    %c40_174 = arith.constant 40 : index
    %c1280_175 = arith.constant 1280 : index
    %140 = vector.load %arg17[%c40_174, %c1280_175] : memref<50x3200xf32, #tpu.memory_space<vmem>>, vector<10x128xf32>
    tpu.vector_store %arg17[%c40_174, %c1280_175], %139 {strides = array<i32>} : memref<50x3200xf32, #tpu.memory_space<vmem>>, vector<10x128xf32>,
    %c112_176 = arith.constant 112 : index
    %c0_177 = arith.constant 0 : index
    %141 = vector.load %arg16[%c112_176, %c0_177] : memref<392x128xf32, #tpu.memory_space<vmem>>, vector<10x128xf32>
    %c0_178 = arith.constant 0 : index
    %c1408 = arith.constant 1408 : index
    %142 = vector.load %arg17[%c0_178, %c1408] : memref<50x3200xf32, #tpu.memory_space<vmem>>, vector<10x128xf32>
    tpu.vector_store %arg17[%c0_178, %c1408], %141 {strides = array<i32>} : memref<50x3200xf32, #tpu.memory_space<vmem>>, vector<10x128xf32>,
    %c126_179 = arith.constant 126 : index
    %c0_180 = arith.constant 0 : index
    %143 = vector.load %arg16[%c126_179, %c0_180] : memref<392x128xf32, #tpu.memory_space<vmem>>, vector<10x128xf32>
    %c10_181 = arith.constant 10 : index
    %c1408_182 = arith.constant 1408 : index
    %144 = vector.load %arg17[%c10_181, %c1408_182] : memref<50x3200xf32, #tpu.memory_space<vmem>>, vector<10x128xf32>
    tpu.vector_store %arg17[%c10_181, %c1408_182], %143 {strides = array<i32>} : memref<50x3200xf32, #tpu.memory_space<vmem>>, vector<10x128xf32>,
    %c140_183 = arith.constant 140 : index
    %c0_184 = arith.constant 0 : index
    %145 = vector.load %arg16[%c140_183, %c0_184] : memref<392x128xf32, #tpu.memory_space<vmem>>, vector<10x128xf32>
    %c20_185 = arith.constant 20 : index
    %c1408_186 = arith.constant 1408 : index
    %146 = vector.load %arg17[%c20_185, %c1408_186] : memref<50x3200xf32, #tpu.memory_space<vmem>>, vector<10x128xf32>
    tpu.vector_store %arg17[%c20_185, %c1408_186], %145 {strides = array<i32>} : memref<50x3200xf32, #tpu.memory_space<vmem>>, vector<10x128xf32>,
    %c154_187 = arith.constant 154 : index
    %c0_188 = arith.constant 0 : index
    %147 = vector.load %arg16[%c154_187, %c0_188] : memref<392x128xf32, #tpu.memory_space<vmem>>, vector<10x128xf32>
    %c30_189 = arith.constant 30 : index
    %c1408_190 = arith.constant 1408 : index
    %148 = vector.load %arg17[%c30_189, %c1408_190] : memref<50x3200xf32, #tpu.memory_space<vmem>>, vector<10x128xf32>
    tpu.vector_store %arg17[%c30_189, %c1408_190], %147 {strides = array<i32>} : memref<50x3200xf32, #tpu.memory_space<vmem>>, vector<10x128xf32>,
    %c168 = arith.constant 168 : index
    %c0_191 = arith.constant 0 : index
    %149 = vector.load %arg16[%c168, %c0_191] : memref<392x128xf32, #tpu.memory_space<vmem>>, vector<10x128xf32>
    %c40_192 = arith.constant 40 : index
    %c1408_193 = arith.constant 1408 : index
    %150 = vector.load %arg17[%c40_192, %c1408_193] : memref<50x3200xf32, #tpu.memory_space<vmem>>, vector<10x128xf32>
    tpu.vector_store %arg17[%c40_192, %c1408_193], %149 {strides = array<i32>} : memref<50x3200xf32, #tpu.memory_space<vmem>>, vector<10x128xf32>,
    %c16_194 = arith.constant 16 : index
    %c0_195 = arith.constant 0 : index
    %151 = vector.load %arg16[%c16_194, %c0_195] : memref<392x128xf32, #tpu.memory_space<vmem>>, vector<10x128xf32>
    %c0_196 = arith.constant 0 : index
    %c1536 = arith.constant 1536 : index
    %152 = vector.load %arg17[%c0_196, %c1536] : memref<50x3200xf32, #tpu.memory_space<vmem>>, vector<10x128xf32>
    tpu.vector_store %arg17[%c0_196, %c1536], %151 {strides = array<i32>} : memref<50x3200xf32, #tpu.memory_space<vmem>>, vector<10x128xf32>,
    %c30_197 = arith.constant 30 : index
    %c0_198 = arith.constant 0 : index
    %153 = vector.load %arg16[%c30_197, %c0_198] : memref<392x128xf32, #tpu.memory_space<vmem>>, vector<10x128xf32>
    %c10_199 = arith.constant 10 : index
    %c1536_200 = arith.constant 1536 : index
    %154 = vector.load %arg17[%c10_199, %c1536_200] : memref<50x3200xf32, #tpu.memory_space<vmem>>, vector<10x128xf32>
    tpu.vector_store %arg17[%c10_199, %c1536_200], %153 {strides = array<i32>} : memref<50x3200xf32, #tpu.memory_space<vmem>>, vector<10x128xf32>,
    %c44_201 = arith.constant 44 : index
    %c0_202 = arith.constant 0 : index
    %155 = vector.load %arg16[%c44_201, %c0_202] : memref<392x128xf32, #tpu.memory_space<vmem>>, vector<10x128xf32>
    %c20_203 = arith.constant 20 : index
    %c1536_204 = arith.constant 1536 : index
    %156 = vector.load %arg17[%c20_203, %c1536_204] : memref<50x3200xf32, #tpu.memory_space<vmem>>, vector<10x128xf32>
    tpu.vector_store %arg17[%c20_203, %c1536_204], %155 {strides = array<i32>} : memref<50x3200xf32, #tpu.memory_space<vmem>>, vector<10x128xf32>,
    %c58_205 = arith.constant 58 : index
    %c0_206 = arith.constant 0 : index
    %157 = vector.load %arg16[%c58_205, %c0_206] : memref<392x128xf32, #tpu.memory_space<vmem>>, vector<10x128xf32>
    %c30_207 = arith.constant 30 : index
    %c1536_208 = arith.constant 1536 : index
    %158 = vector.load %arg17[%c30_207, %c1536_208] : memref<50x3200xf32, #tpu.memory_space<vmem>>, vector<10x128xf32>
    tpu.vector_store %arg17[%c30_207, %c1536_208], %157 {strides = array<i32>} : memref<50x3200xf32, #tpu.memory_space<vmem>>, vector<10x128xf32>,
    %c72 = arith.constant 72 : index
    %c0_209 = arith.constant 0 : index
    %159 = vector.load %arg16[%c72, %c0_209] : memref<392x128xf32, #tpu.memory_space<vmem>>, vector<10x128xf32>
    %c40_210 = arith.constant 40 : index
    %c1536_211 = arith.constant 1536 : index
    %160 = vector.load %arg17[%c40_210, %c1536_211] : memref<50x3200xf32, #tpu.memory_space<vmem>>, vector<10x128xf32>
    tpu.vector_store %arg17[%c40_210, %c1536_211], %159 {strides = array<i32>} : memref<50x3200xf32, #tpu.memory_space<vmem>>, vector<10x128xf32>,
    %c114_212 = arith.constant 114 : index
    %c0_213 = arith.constant 0 : index
    %161 = vector.load %arg16[%c114_212, %c0_213] : memref<392x128xf32, #tpu.memory_space<vmem>>, vector<10x128xf32>
    %c0_214 = arith.constant 0 : index
    %c1664 = arith.constant 1664 : index
    %162 = vector.load %arg17[%c0_214, %c1664] : memref<50x3200xf32, #tpu.memory_space<vmem>>, vector<10x128xf32>
    tpu.vector_store %arg17[%c0_214, %c1664], %161 {strides = array<i32>} : memref<50x3200xf32, #tpu.memory_space<vmem>>, vector<10x128xf32>,
    %c128_215 = arith.constant 128 : index
    %c0_216 = arith.constant 0 : index
    %163 = vector.load %arg16[%c128_215, %c0_216] : memref<392x128xf32, #tpu.memory_space<vmem>>, vector<10x128xf32>
    %c10_217 = arith.constant 10 : index
    %c1664_218 = arith.constant 1664 : index
    %164 = vector.load %arg17[%c10_217, %c1664_218] : memref<50x3200xf32, #tpu.memory_space<vmem>>, vector<10x128xf32>
    tpu.vector_store %arg17[%c10_217, %c1664_218], %163 {strides = array<i32>} : memref<50x3200xf32, #tpu.memory_space<vmem>>, vector<10x128xf32>,
    %c142_219 = arith.constant 142 : index
    %c0_220 = arith.constant 0 : index
    %165 = vector.load %arg16[%c142_219, %c0_220] : memref<392x128xf32, #tpu.memory_space<vmem>>, vector<10x128xf32>
    %c20_221 = arith.constant 20 : index
    %c1664_222 = arith.constant 1664 : index
    %166 = vector.load %arg17[%c20_221, %c1664_222] : memref<50x3200xf32, #tpu.memory_space<vmem>>, vector<10x128xf32>
    tpu.vector_store %arg17[%c20_221, %c1664_222], %165 {strides = array<i32>} : memref<50x3200xf32, #tpu.memory_space<vmem>>, vector<10x128xf32>,
    %c156_223 = arith.constant 156 : index
    %c0_224 = arith.constant 0 : index
    %167 = vector.load %arg16[%c156_223, %c0_224] : memref<392x128xf32, #tpu.memory_space<vmem>>, vector<10x128xf32>
    %c30_225 = arith.constant 30 : index
    %c1664_226 = arith.constant 1664 : index
    %168 = vector.load %arg17[%c30_225, %c1664_226] : memref<50x3200xf32, #tpu.memory_space<vmem>>, vector<10x128xf32>
    tpu.vector_store %arg17[%c30_225, %c1664_226], %167 {strides = array<i32>} : memref<50x3200xf32, #tpu.memory_space<vmem>>, vector<10x128xf32>,
    %c170 = arith.constant 170 : index
    %c0_227 = arith.constant 0 : index
    %169 = vector.load %arg16[%c170, %c0_227] : memref<392x128xf32, #tpu.memory_space<vmem>>, vector<10x128xf32>
    %c40_228 = arith.constant 40 : index
    %c1664_229 = arith.constant 1664 : index
    %170 = vector.load %arg17[%c40_228, %c1664_229] : memref<50x3200xf32, #tpu.memory_space<vmem>>, vector<10x128xf32>
    tpu.vector_store %arg17[%c40_228, %c1664_229], %169 {strides = array<i32>} : memref<50x3200xf32, #tpu.memory_space<vmem>>, vector<10x128xf32>,
    %c18_230 = arith.constant 18 : index
    %c0_231 = arith.constant 0 : index
    %171 = vector.load %arg16[%c18_230, %c0_231] : memref<392x128xf32, #tpu.memory_space<vmem>>, vector<10x128xf32>
    %c0_232 = arith.constant 0 : index
    %c1792 = arith.constant 1792 : index
    %172 = vector.load %arg17[%c0_232, %c1792] : memref<50x3200xf32, #tpu.memory_space<vmem>>, vector<10x128xf32>
    tpu.vector_store %arg17[%c0_232, %c1792], %171 {strides = array<i32>} : memref<50x3200xf32, #tpu.memory_space<vmem>>, vector<10x128xf32>,
    %c32_233 = arith.constant 32 : index
    %c0_234 = arith.constant 0 : index
    %173 = vector.load %arg16[%c32_233, %c0_234] : memref<392x128xf32, #tpu.memory_space<vmem>>, vector<10x128xf32>
    %c10_235 = arith.constant 10 : index
    %c1792_236 = arith.constant 1792 : index
    %174 = vector.load %arg17[%c10_235, %c1792_236] : memref<50x3200xf32, #tpu.memory_space<vmem>>, vector<10x128xf32>
    tpu.vector_store %arg17[%c10_235, %c1792_236], %173 {strides = array<i32>} : memref<50x3200xf32, #tpu.memory_space<vmem>>, vector<10x128xf32>,
    %c46_237 = arith.constant 46 : index
    %c0_238 = arith.constant 0 : index
    %175 = vector.load %arg16[%c46_237, %c0_238] : memref<392x128xf32, #tpu.memory_space<vmem>>, vector<10x128xf32>
    %c20_239 = arith.constant 20 : index
    %c1792_240 = arith.constant 1792 : index
    %176 = vector.load %arg17[%c20_239, %c1792_240] : memref<50x3200xf32, #tpu.memory_space<vmem>>, vector<10x128xf32>
    tpu.vector_store %arg17[%c20_239, %c1792_240], %175 {strides = array<i32>} : memref<50x3200xf32, #tpu.memory_space<vmem>>, vector<10x128xf32>,
    %c60_241 = arith.constant 60 : index
    %c0_242 = arith.constant 0 : index
    %177 = vector.load %arg16[%c60_241, %c0_242] : memref<392x128xf32, #tpu.memory_space<vmem>>, vector<10x128xf32>
    %c30_243 = arith.constant 30 : index
    %c1792_244 = arith.constant 1792 : index
    %178 = vector.load %arg17[%c30_243, %c1792_244] : memref<50x3200xf32, #tpu.memory_space<vmem>>, vector<10x128xf32>
    tpu.vector_store %arg17[%c30_243, %c1792_244], %177 {strides = array<i32>} : memref<50x3200xf32, #tpu.memory_space<vmem>>, vector<10x128xf32>,
    %c74 = arith.constant 74 : index
    %c0_245 = arith.constant 0 : index
    %179 = vector.load %arg16[%c74, %c0_245] : memref<392x128xf32, #tpu.memory_space<vmem>>, vector<10x128xf32>
    %c40_246 = arith.constant 40 : index
    %c1792_247 = arith.constant 1792 : index
    %180 = vector.load %arg17[%c40_246, %c1792_247] : memref<50x3200xf32, #tpu.memory_space<vmem>>, vector<10x128xf32>
    tpu.vector_store %arg17[%c40_246, %c1792_247], %179 {strides = array<i32>} : memref<50x3200xf32, #tpu.memory_space<vmem>>, vector<10x128xf32>,
    %c210_248 = arith.constant 210 : index
    %c0_249 = arith.constant 0 : index
    %181 = vector.load %arg16[%c210_248, %c0_249] : memref<392x128xf32, #tpu.memory_space<vmem>>, vector<10x128xf32>
    %c0_250 = arith.constant 0 : index
    %c1920 = arith.constant 1920 : index
    %182 = vector.load %arg17[%c0_250, %c1920] : memref<50x3200xf32, #tpu.memory_space<vmem>>, vector<10x128xf32>
    tpu.vector_store %arg17[%c0_250, %c1920], %181 {strides = array<i32>} : memref<50x3200xf32, #tpu.memory_space<vmem>>, vector<10x128xf32>,
    %c224_251 = arith.constant 224 : index
    %c0_252 = arith.constant 0 : index
    %183 = vector.load %arg16[%c224_251, %c0_252] : memref<392x128xf32, #tpu.memory_space<vmem>>, vector<10x128xf32>
    %c10_253 = arith.constant 10 : index
    %c1920_254 = arith.constant 1920 : index
    %184 = vector.load %arg17[%c10_253, %c1920_254] : memref<50x3200xf32, #tpu.memory_space<vmem>>, vector<10x128xf32>
    tpu.vector_store %arg17[%c10_253, %c1920_254], %183 {strides = array<i32>} : memref<50x3200xf32, #tpu.memory_space<vmem>>, vector<10x128xf32>,
    %c238_255 = arith.constant 238 : index
    %c0_256 = arith.constant 0 : index
    %185 = vector.load %arg16[%c238_255, %c0_256] : memref<392x128xf32, #tpu.memory_space<vmem>>, vector<10x128xf32>
    %c20_257 = arith.constant 20 : index
    %c1920_258 = arith.constant 1920 : index
    %186 = vector.load %arg17[%c20_257, %c1920_258] : memref<50x3200xf32, #tpu.memory_space<vmem>>, vector<10x128xf32>
    tpu.vector_store %arg17[%c20_257, %c1920_258], %185 {strides = array<i32>} : memref<50x3200xf32, #tpu.memory_space<vmem>>, vector<10x128xf32>,
    %c252_259 = arith.constant 252 : index
    %c0_260 = arith.constant 0 : index
    %187 = vector.load %arg16[%c252_259, %c0_260] : memref<392x128xf32, #tpu.memory_space<vmem>>, vector<10x128xf32>
    %c30_261 = arith.constant 30 : index
    %c1920_262 = arith.constant 1920 : index
    %188 = vector.load %arg17[%c30_261, %c1920_262] : memref<50x3200xf32, #tpu.memory_space<vmem>>, vector<10x128xf32>
    tpu.vector_store %arg17[%c30_261, %c1920_262], %187 {strides = array<i32>} : memref<50x3200xf32, #tpu.memory_space<vmem>>, vector<10x128xf32>,
    %c266 = arith.constant 266 : index
    %c0_263 = arith.constant 0 : index
    %189 = vector.load %arg16[%c266, %c0_263] : memref<392x128xf32, #tpu.memory_space<vmem>>, vector<10x128xf32>
    %c40_264 = arith.constant 40 : index
    %c1920_265 = arith.constant 1920 : index
    %190 = vector.load %arg17[%c40_264, %c1920_265] : memref<50x3200xf32, #tpu.memory_space<vmem>>, vector<10x128xf32>
    tpu.vector_store %arg17[%c40_264, %c1920_265], %189 {strides = array<i32>} : memref<50x3200xf32, #tpu.memory_space<vmem>>, vector<10x128xf32>,
    %c308_266 = arith.constant 308 : index
    %c0_267 = arith.constant 0 : index
    %191 = vector.load %arg16[%c308_266, %c0_267] : memref<392x128xf32, #tpu.memory_space<vmem>>, vector<10x128xf32>
    %c0_268 = arith.constant 0 : index
    %c2048 = arith.constant 2048 : index
    %192 = vector.load %arg17[%c0_268, %c2048] : memref<50x3200xf32, #tpu.memory_space<vmem>>, vector<10x128xf32>
    tpu.vector_store %arg17[%c0_268, %c2048], %191 {strides = array<i32>} : memref<50x3200xf32, #tpu.memory_space<vmem>>, vector<10x128xf32>,
    %c322_269 = arith.constant 322 : index
    %c0_270 = arith.constant 0 : index
    %193 = vector.load %arg16[%c322_269, %c0_270] : memref<392x128xf32, #tpu.memory_space<vmem>>, vector<10x128xf32>
    %c10_271 = arith.constant 10 : index
    %c2048_272 = arith.constant 2048 : index
    %194 = vector.load %arg17[%c10_271, %c2048_272] : memref<50x3200xf32, #tpu.memory_space<vmem>>, vector<10x128xf32>
    tpu.vector_store %arg17[%c10_271, %c2048_272], %193 {strides = array<i32>} : memref<50x3200xf32, #tpu.memory_space<vmem>>, vector<10x128xf32>,
    %c336_273 = arith.constant 336 : index
    %c0_274 = arith.constant 0 : index
    %195 = vector.load %arg16[%c336_273, %c0_274] : memref<392x128xf32, #tpu.memory_space<vmem>>, vector<10x128xf32>
    %c20_275 = arith.constant 20 : index
    %c2048_276 = arith.constant 2048 : index
    %196 = vector.load %arg17[%c20_275, %c2048_276] : memref<50x3200xf32, #tpu.memory_space<vmem>>, vector<10x128xf32>
    tpu.vector_store %arg17[%c20_275, %c2048_276], %195 {strides = array<i32>} : memref<50x3200xf32, #tpu.memory_space<vmem>>, vector<10x128xf32>,
    %c350_277 = arith.constant 350 : index
    %c0_278 = arith.constant 0 : index
    %197 = vector.load %arg16[%c350_277, %c0_278] : memref<392x128xf32, #tpu.memory_space<vmem>>, vector<10x128xf32>
    %c30_279 = arith.constant 30 : index
    %c2048_280 = arith.constant 2048 : index
    %198 = vector.load %arg17[%c30_279, %c2048_280] : memref<50x3200xf32, #tpu.memory_space<vmem>>, vector<10x128xf32>
    tpu.vector_store %arg17[%c30_279, %c2048_280], %197 {strides = array<i32>} : memref<50x3200xf32, #tpu.memory_space<vmem>>, vector<10x128xf32>,
    %c364 = arith.constant 364 : index
    %c0_281 = arith.constant 0 : index
    %199 = vector.load %arg16[%c364, %c0_281] : memref<392x128xf32, #tpu.memory_space<vmem>>, vector<10x128xf32>
    %c40_282 = arith.constant 40 : index
    %c2048_283 = arith.constant 2048 : index
    %200 = vector.load %arg17[%c40_282, %c2048_283] : memref<50x3200xf32, #tpu.memory_space<vmem>>, vector<10x128xf32>
    tpu.vector_store %arg17[%c40_282, %c2048_283], %199 {strides = array<i32>} : memref<50x3200xf32, #tpu.memory_space<vmem>>, vector<10x128xf32>,
    %c212_284 = arith.constant 212 : index
    %c0_285 = arith.constant 0 : index
    %201 = vector.load %arg16[%c212_284, %c0_285] : memref<392x128xf32, #tpu.memory_space<vmem>>, vector<10x128xf32>
    %c0_286 = arith.constant 0 : index
    %c2176 = arith.constant 2176 : index
    %202 = vector.load %arg17[%c0_286, %c2176] : memref<50x3200xf32, #tpu.memory_space<vmem>>, vector<10x128xf32>
    tpu.vector_store %arg17[%c0_286, %c2176], %201 {strides = array<i32>} : memref<50x3200xf32, #tpu.memory_space<vmem>>, vector<10x128xf32>,
    %c226_287 = arith.constant 226 : index
    %c0_288 = arith.constant 0 : index
    %203 = vector.load %arg16[%c226_287, %c0_288] : memref<392x128xf32, #tpu.memory_space<vmem>>, vector<10x128xf32>
    %c10_289 = arith.constant 10 : index
    %c2176_290 = arith.constant 2176 : index
    %204 = vector.load %arg17[%c10_289, %c2176_290] : memref<50x3200xf32, #tpu.memory_space<vmem>>, vector<10x128xf32>
    tpu.vector_store %arg17[%c10_289, %c2176_290], %203 {strides = array<i32>} : memref<50x3200xf32, #tpu.memory_space<vmem>>, vector<10x128xf32>,
    %c240_291 = arith.constant 240 : index
    %c0_292 = arith.constant 0 : index
    %205 = vector.load %arg16[%c240_291, %c0_292] : memref<392x128xf32, #tpu.memory_space<vmem>>, vector<10x128xf32>
    %c20_293 = arith.constant 20 : index
    %c2176_294 = arith.constant 2176 : index
    %206 = vector.load %arg17[%c20_293, %c2176_294] : memref<50x3200xf32, #tpu.memory_space<vmem>>, vector<10x128xf32>
    tpu.vector_store %arg17[%c20_293, %c2176_294], %205 {strides = array<i32>} : memref<50x3200xf32, #tpu.memory_space<vmem>>, vector<10x128xf32>,
    %c254_295 = arith.constant 254 : index
    %c0_296 = arith.constant 0 : index
    %207 = vector.load %arg16[%c254_295, %c0_296] : memref<392x128xf32, #tpu.memory_space<vmem>>, vector<10x128xf32>
    %c30_297 = arith.constant 30 : index
    %c2176_298 = arith.constant 2176 : index
    %208 = vector.load %arg17[%c30_297, %c2176_298] : memref<50x3200xf32, #tpu.memory_space<vmem>>, vector<10x128xf32>
    tpu.vector_store %arg17[%c30_297, %c2176_298], %207 {strides = array<i32>} : memref<50x3200xf32, #tpu.memory_space<vmem>>, vector<10x128xf32>,
    %c268 = arith.constant 268 : index
    %c0_299 = arith.constant 0 : index
    %209 = vector.load %arg16[%c268, %c0_299] : memref<392x128xf32, #tpu.memory_space<vmem>>, vector<10x128xf32>
    %c40_300 = arith.constant 40 : index
    %c2176_301 = arith.constant 2176 : index
    %210 = vector.load %arg17[%c40_300, %c2176_301] : memref<50x3200xf32, #tpu.memory_space<vmem>>, vector<10x128xf32>
    tpu.vector_store %arg17[%c40_300, %c2176_301], %209 {strides = array<i32>} : memref<50x3200xf32, #tpu.memory_space<vmem>>, vector<10x128xf32>,
    %c310_302 = arith.constant 310 : index
    %c0_303 = arith.constant 0 : index
    %211 = vector.load %arg16[%c310_302, %c0_303] : memref<392x128xf32, #tpu.memory_space<vmem>>, vector<10x128xf32>
    %c0_304 = arith.constant 0 : index
    %c2304 = arith.constant 2304 : index
    %212 = vector.load %arg17[%c0_304, %c2304] : memref<50x3200xf32, #tpu.memory_space<vmem>>, vector<10x128xf32>
    tpu.vector_store %arg17[%c0_304, %c2304], %211 {strides = array<i32>} : memref<50x3200xf32, #tpu.memory_space<vmem>>, vector<10x128xf32>,
    %c324_305 = arith.constant 324 : index
    %c0_306 = arith.constant 0 : index
    %213 = vector.load %arg16[%c324_305, %c0_306] : memref<392x128xf32, #tpu.memory_space<vmem>>, vector<10x128xf32>
    %c10_307 = arith.constant 10 : index
    %c2304_308 = arith.constant 2304 : index
    %214 = vector.load %arg17[%c10_307, %c2304_308] : memref<50x3200xf32, #tpu.memory_space<vmem>>, vector<10x128xf32>
    tpu.vector_store %arg17[%c10_307, %c2304_308], %213 {strides = array<i32>} : memref<50x3200xf32, #tpu.memory_space<vmem>>, vector<10x128xf32>,
    %c338_309 = arith.constant 338 : index
    %c0_310 = arith.constant 0 : index
    %215 = vector.load %arg16[%c338_309, %c0_310] : memref<392x128xf32, #tpu.memory_space<vmem>>, vector<10x128xf32>
    %c20_311 = arith.constant 20 : index
    %c2304_312 = arith.constant 2304 : index
    %216 = vector.load %arg17[%c20_311, %c2304_312] : memref<50x3200xf32, #tpu.memory_space<vmem>>, vector<10x128xf32>
    tpu.vector_store %arg17[%c20_311, %c2304_312], %215 {strides = array<i32>} : memref<50x3200xf32, #tpu.memory_space<vmem>>, vector<10x128xf32>,
    %c352_313 = arith.constant 352 : index
    %c0_314 = arith.constant 0 : index
    %217 = vector.load %arg16[%c352_313, %c0_314] : memref<392x128xf32, #tpu.memory_space<vmem>>, vector<10x128xf32>
    %c30_315 = arith.constant 30 : index
    %c2304_316 = arith.constant 2304 : index
    %218 = vector.load %arg17[%c30_315, %c2304_316] : memref<50x3200xf32, #tpu.memory_space<vmem>>, vector<10x128xf32>
    tpu.vector_store %arg17[%c30_315, %c2304_316], %217 {strides = array<i32>} : memref<50x3200xf32, #tpu.memory_space<vmem>>, vector<10x128xf32>,
    %c366 = arith.constant 366 : index
    %c0_317 = arith.constant 0 : index
    %219 = vector.load %arg16[%c366, %c0_317] : memref<392x128xf32, #tpu.memory_space<vmem>>, vector<10x128xf32>
    %c40_318 = arith.constant 40 : index
    %c2304_319 = arith.constant 2304 : index
    %220 = vector.load %arg17[%c40_318, %c2304_319] : memref<50x3200xf32, #tpu.memory_space<vmem>>, vector<10x128xf32>
    tpu.vector_store %arg17[%c40_318, %c2304_319], %219 {strides = array<i32>} : memref<50x3200xf32, #tpu.memory_space<vmem>>, vector<10x128xf32>,
    %c214_320 = arith.constant 214 : index
    %c0_321 = arith.constant 0 : index
    %221 = vector.load %arg16[%c214_320, %c0_321] : memref<392x128xf32, #tpu.memory_space<vmem>>, vector<10x128xf32>
    %c0_322 = arith.constant 0 : index
    %c2432 = arith.constant 2432 : index
    %222 = vector.load %arg17[%c0_322, %c2432] : memref<50x3200xf32, #tpu.memory_space<vmem>>, vector<10x128xf32>
    tpu.vector_store %arg17[%c0_322, %c2432], %221 {strides = array<i32>} : memref<50x3200xf32, #tpu.memory_space<vmem>>, vector<10x128xf32>,
    %c228_323 = arith.constant 228 : index
    %c0_324 = arith.constant 0 : index
    %223 = vector.load %arg16[%c228_323, %c0_324] : memref<392x128xf32, #tpu.memory_space<vmem>>, vector<10x128xf32>
    %c10_325 = arith.constant 10 : index
    %c2432_326 = arith.constant 2432 : index
    %224 = vector.load %arg17[%c10_325, %c2432_326] : memref<50x3200xf32, #tpu.memory_space<vmem>>, vector<10x128xf32>
    tpu.vector_store %arg17[%c10_325, %c2432_326], %223 {strides = array<i32>} : memref<50x3200xf32, #tpu.memory_space<vmem>>, vector<10x128xf32>,
    %c242_327 = arith.constant 242 : index
    %c0_328 = arith.constant 0 : index
    %225 = vector.load %arg16[%c242_327, %c0_328] : memref<392x128xf32, #tpu.memory_space<vmem>>, vector<10x128xf32>
    %c20_329 = arith.constant 20 : index
    %c2432_330 = arith.constant 2432 : index
    %226 = vector.load %arg17[%c20_329, %c2432_330] : memref<50x3200xf32, #tpu.memory_space<vmem>>, vector<10x128xf32>
    tpu.vector_store %arg17[%c20_329, %c2432_330], %225 {strides = array<i32>} : memref<50x3200xf32, #tpu.memory_space<vmem>>, vector<10x128xf32>,
    %c256_331 = arith.constant 256 : index
    %c0_332 = arith.constant 0 : index
    %227 = vector.load %arg16[%c256_331, %c0_332] : memref<392x128xf32, #tpu.memory_space<vmem>>, vector<10x128xf32>
    %c30_333 = arith.constant 30 : index
    %c2432_334 = arith.constant 2432 : index
    %228 = vector.load %arg17[%c30_333, %c2432_334] : memref<50x3200xf32, #tpu.memory_space<vmem>>, vector<10x128xf32>
    tpu.vector_store %arg17[%c30_333, %c2432_334], %227 {strides = array<i32>} : memref<50x3200xf32, #tpu.memory_space<vmem>>, vector<10x128xf32>,
    %c270 = arith.constant 270 : index
    %c0_335 = arith.constant 0 : index
    %229 = vector.load %arg16[%c270, %c0_335] : memref<392x128xf32, #tpu.memory_space<vmem>>, vector<10x128xf32>
    %c40_336 = arith.constant 40 : index
    %c2432_337 = arith.constant 2432 : index
    %230 = vector.load %arg17[%c40_336, %c2432_337] : memref<50x3200xf32, #tpu.memory_space<vmem>>, vector<10x128xf32>
    tpu.vector_store %arg17[%c40_336, %c2432_337], %229 {strides = array<i32>} : memref<50x3200xf32, #tpu.memory_space<vmem>>, vector<10x128xf32>,
    %c28_338 = arith.constant 28 : index
    %c0_339 = arith.constant 0 : index
    %231 = vector.load %arg16[%c28_338, %c0_339] : memref<392x128xf32, #tpu.memory_space<vmem>>, vector<10x128xf32>
    %c0_340 = arith.constant 0 : index
    %c2560 = arith.constant 2560 : index
    %232 = vector.load %arg17[%c0_340, %c2560] : memref<50x3200xf32, #tpu.memory_space<vmem>>, vector<10x128xf32>
    tpu.vector_store %arg17[%c0_340, %c2560], %231 {strides = array<i32>} : memref<50x3200xf32, #tpu.memory_space<vmem>>, vector<10x128xf32>,
    %c42_341 = arith.constant 42 : index
    %c0_342 = arith.constant 0 : index
    %233 = vector.load %arg16[%c42_341, %c0_342] : memref<392x128xf32, #tpu.memory_space<vmem>>, vector<10x128xf32>
    %c10_343 = arith.constant 10 : index
    %c2560_344 = arith.constant 2560 : index
    %234 = vector.load %arg17[%c10_343, %c2560_344] : memref<50x3200xf32, #tpu.memory_space<vmem>>, vector<10x128xf32>
    tpu.vector_store %arg17[%c10_343, %c2560_344], %233 {strides = array<i32>} : memref<50x3200xf32, #tpu.memory_space<vmem>>, vector<10x128xf32>,
    %c56_345 = arith.constant 56 : index
    %c0_346 = arith.constant 0 : index
    %235 = vector.load %arg16[%c56_345, %c0_346] : memref<392x128xf32, #tpu.memory_space<vmem>>, vector<10x128xf32>
    %c20_347 = arith.constant 20 : index
    %c2560_348 = arith.constant 2560 : index
    %236 = vector.load %arg17[%c20_347, %c2560_348] : memref<50x3200xf32, #tpu.memory_space<vmem>>, vector<10x128xf32>
    tpu.vector_store %arg17[%c20_347, %c2560_348], %235 {strides = array<i32>} : memref<50x3200xf32, #tpu.memory_space<vmem>>, vector<10x128xf32>,
    %c70_349 = arith.constant 70 : index
    %c0_350 = arith.constant 0 : index
    %237 = vector.load %arg16[%c70_349, %c0_350] : memref<392x128xf32, #tpu.memory_space<vmem>>, vector<10x128xf32>
    %c30_351 = arith.constant 30 : index
    %c2560_352 = arith.constant 2560 : index
    %238 = vector.load %arg17[%c30_351, %c2560_352] : memref<50x3200xf32, #tpu.memory_space<vmem>>, vector<10x128xf32>
    tpu.vector_store %arg17[%c30_351, %c2560_352], %237 {strides = array<i32>} : memref<50x3200xf32, #tpu.memory_space<vmem>>, vector<10x128xf32>,
    %c84 = arith.constant 84 : index
    %c0_353 = arith.constant 0 : index
    %239 = vector.load %arg16[%c84, %c0_353] : memref<392x128xf32, #tpu.memory_space<vmem>>, vector<10x128xf32>
    %c40_354 = arith.constant 40 : index
    %c2560_355 = arith.constant 2560 : index
    %240 = vector.load %arg17[%c40_354, %c2560_355] : memref<50x3200xf32, #tpu.memory_space<vmem>>, vector<10x128xf32>
    tpu.vector_store %arg17[%c40_354, %c2560_355], %239 {strides = array<i32>} : memref<50x3200xf32, #tpu.memory_space<vmem>>, vector<10x128xf32>,
    %c126_356 = arith.constant 126 : index
    %c0_357 = arith.constant 0 : index
    %241 = vector.load %arg16[%c126_356, %c0_357] : memref<392x128xf32, #tpu.memory_space<vmem>>, vector<10x128xf32>
    %c0_358 = arith.constant 0 : index
    %c2688 = arith.constant 2688 : index
    %242 = vector.load %arg17[%c0_358, %c2688] : memref<50x3200xf32, #tpu.memory_space<vmem>>, vector<10x128xf32>
    tpu.vector_store %arg17[%c0_358, %c2688], %241 {strides = array<i32>} : memref<50x3200xf32, #tpu.memory_space<vmem>>, vector<10x128xf32>,
    %c140_359 = arith.constant 140 : index
    %c0_360 = arith.constant 0 : index
    %243 = vector.load %arg16[%c140_359, %c0_360] : memref<392x128xf32, #tpu.memory_space<vmem>>, vector<10x128xf32>
    %c10_361 = arith.constant 10 : index
    %c2688_362 = arith.constant 2688 : index
    %244 = vector.load %arg17[%c10_361, %c2688_362] : memref<50x3200xf32, #tpu.memory_space<vmem>>, vector<10x128xf32>
    tpu.vector_store %arg17[%c10_361, %c2688_362], %243 {strides = array<i32>} : memref<50x3200xf32, #tpu.memory_space<vmem>>, vector<10x128xf32>,
    %c154_363 = arith.constant 154 : index
    %c0_364 = arith.constant 0 : index
    %245 = vector.load %arg16[%c154_363, %c0_364] : memref<392x128xf32, #tpu.memory_space<vmem>>, vector<10x128xf32>
    %c20_365 = arith.constant 20 : index
    %c2688_366 = arith.constant 2688 : index
    %246 = vector.load %arg17[%c20_365, %c2688_366] : memref<50x3200xf32, #tpu.memory_space<vmem>>, vector<10x128xf32>
    tpu.vector_store %arg17[%c20_365, %c2688_366], %245 {strides = array<i32>} : memref<50x3200xf32, #tpu.memory_space<vmem>>, vector<10x128xf32>,
    %c168_367 = arith.constant 168 : index
    %c0_368 = arith.constant 0 : index
    %247 = vector.load %arg16[%c168_367, %c0_368] : memref<392x128xf32, #tpu.memory_space<vmem>>, vector<10x128xf32>
    %c30_369 = arith.constant 30 : index
    %c2688_370 = arith.constant 2688 : index
    %248 = vector.load %arg17[%c30_369, %c2688_370] : memref<50x3200xf32, #tpu.memory_space<vmem>>, vector<10x128xf32>
    tpu.vector_store %arg17[%c30_369, %c2688_370], %247 {strides = array<i32>} : memref<50x3200xf32, #tpu.memory_space<vmem>>, vector<10x128xf32>,
    %c182 = arith.constant 182 : index
    %c0_371 = arith.constant 0 : index
    %249 = vector.load %arg16[%c182, %c0_371] : memref<392x128xf32, #tpu.memory_space<vmem>>, vector<10x128xf32>
    %c40_372 = arith.constant 40 : index
    %c2688_373 = arith.constant 2688 : index
    %250 = vector.load %arg17[%c40_372, %c2688_373] : memref<50x3200xf32, #tpu.memory_space<vmem>>, vector<10x128xf32>
    tpu.vector_store %arg17[%c40_372, %c2688_373], %249 {strides = array<i32>} : memref<50x3200xf32, #tpu.memory_space<vmem>>, vector<10x128xf32>,
    %c30_374 = arith.constant 30 : index
    %c0_375 = arith.constant 0 : index
    %251 = vector.load %arg16[%c30_374, %c0_375] : memref<392x128xf32, #tpu.memory_space<vmem>>, vector<10x128xf32>
    %c0_376 = arith.constant 0 : index
    %c2816 = arith.constant 2816 : index
    %252 = vector.load %arg17[%c0_376, %c2816] : memref<50x3200xf32, #tpu.memory_space<vmem>>, vector<10x128xf32>
    tpu.vector_store %arg17[%c0_376, %c2816], %251 {strides = array<i32>} : memref<50x3200xf32, #tpu.memory_space<vmem>>, vector<10x128xf32>,
    %c44_377 = arith.constant 44 : index
    %c0_378 = arith.constant 0 : index
    %253 = vector.load %arg16[%c44_377, %c0_378] : memref<392x128xf32, #tpu.memory_space<vmem>>, vector<10x128xf32>
    %c10_379 = arith.constant 10 : index
    %c2816_380 = arith.constant 2816 : index
    %254 = vector.load %arg17[%c10_379, %c2816_380] : memref<50x3200xf32, #tpu.memory_space<vmem>>, vector<10x128xf32>
    tpu.vector_store %arg17[%c10_379, %c2816_380], %253 {strides = array<i32>} : memref<50x3200xf32, #tpu.memory_space<vmem>>, vector<10x128xf32>,
    %c58_381 = arith.constant 58 : index
    %c0_382 = arith.constant 0 : index
    %255 = vector.load %arg16[%c58_381, %c0_382] : memref<392x128xf32, #tpu.memory_space<vmem>>, vector<10x128xf32>
    %c20_383 = arith.constant 20 : index
    %c2816_384 = arith.constant 2816 : index
    %256 = vector.load %arg17[%c20_383, %c2816_384] : memref<50x3200xf32, #tpu.memory_space<vmem>>, vector<10x128xf32>
    tpu.vector_store %arg17[%c20_383, %c2816_384], %255 {strides = array<i32>} : memref<50x3200xf32, #tpu.memory_space<vmem>>, vector<10x128xf32>,
    %c72_385 = arith.constant 72 : index
    %c0_386 = arith.constant 0 : index
    %257 = vector.load %arg16[%c72_385, %c0_386] : memref<392x128xf32, #tpu.memory_space<vmem>>, vector<10x128xf32>
    %c30_387 = arith.constant 30 : index
    %c2816_388 = arith.constant 2816 : index
    %258 = vector.load %arg17[%c30_387, %c2816_388] : memref<50x3200xf32, #tpu.memory_space<vmem>>, vector<10x128xf32>
    tpu.vector_store %arg17[%c30_387, %c2816_388], %257 {strides = array<i32>} : memref<50x3200xf32, #tpu.memory_space<vmem>>, vector<10x128xf32>,
    %c86 = arith.constant 86 : index
    %c0_389 = arith.constant 0 : index
    %259 = vector.load %arg16[%c86, %c0_389] : memref<392x128xf32, #tpu.memory_space<vmem>>, vector<10x128xf32>
    %c40_390 = arith.constant 40 : index
    %c2816_391 = arith.constant 2816 : index
    %260 = vector.load %arg17[%c40_390, %c2816_391] : memref<50x3200xf32, #tpu.memory_space<vmem>>, vector<10x128xf32>
    tpu.vector_store %arg17[%c40_390, %c2816_391], %259 {strides = array<i32>} : memref<50x3200xf32, #tpu.memory_space<vmem>>, vector<10x128xf32>,
    %c128_392 = arith.constant 128 : index
    %c0_393 = arith.constant 0 : index
    %261 = vector.load %arg16[%c128_392, %c0_393] : memref<392x128xf32, #tpu.memory_space<vmem>>, vector<10x128xf32>
    %c0_394 = arith.constant 0 : index
    %c2944 = arith.constant 2944 : index
    %262 = vector.load %arg17[%c0_394, %c2944] : memref<50x3200xf32, #tpu.memory_space<vmem>>, vector<10x128xf32>
    tpu.vector_store %arg17[%c0_394, %c2944], %261 {strides = array<i32>} : memref<50x3200xf32, #tpu.memory_space<vmem>>, vector<10x128xf32>,
    %c142_395 = arith.constant 142 : index
    %c0_396 = arith.constant 0 : index
    %263 = vector.load %arg16[%c142_395, %c0_396] : memref<392x128xf32, #tpu.memory_space<vmem>>, vector<10x128xf32>
    %c10_397 = arith.constant 10 : index
    %c2944_398 = arith.constant 2944 : index
    %264 = vector.load %arg17[%c10_397, %c2944_398] : memref<50x3200xf32, #tpu.memory_space<vmem>>, vector<10x128xf32>
    tpu.vector_store %arg17[%c10_397, %c2944_398], %263 {strides = array<i32>} : memref<50x3200xf32, #tpu.memory_space<vmem>>, vector<10x128xf32>,
    %c156_399 = arith.constant 156 : index
    %c0_400 = arith.constant 0 : index
    %265 = vector.load %arg16[%c156_399, %c0_400] : memref<392x128xf32, #tpu.memory_space<vmem>>, vector<10x128xf32>
    %c20_401 = arith.constant 20 : index
    %c2944_402 = arith.constant 2944 : index
    %266 = vector.load %arg17[%c20_401, %c2944_402] : memref<50x3200xf32, #tpu.memory_space<vmem>>, vector<10x128xf32>
    tpu.vector_store %arg17[%c20_401, %c2944_402], %265 {strides = array<i32>} : memref<50x3200xf32, #tpu.memory_space<vmem>>, vector<10x128xf32>,
    %c170_403 = arith.constant 170 : index
    %c0_404 = arith.constant 0 : index
    %267 = vector.load %arg16[%c170_403, %c0_404] : memref<392x128xf32, #tpu.memory_space<vmem>>, vector<10x128xf32>
    %c30_405 = arith.constant 30 : index
    %c2944_406 = arith.constant 2944 : index
    %268 = vector.load %arg17[%c30_405, %c2944_406] : memref<50x3200xf32, #tpu.memory_space<vmem>>, vector<10x128xf32>
    tpu.vector_store %arg17[%c30_405, %c2944_406], %267 {strides = array<i32>} : memref<50x3200xf32, #tpu.memory_space<vmem>>, vector<10x128xf32>,
    %c184 = arith.constant 184 : index
    %c0_407 = arith.constant 0 : index
    %269 = vector.load %arg16[%c184, %c0_407] : memref<392x128xf32, #tpu.memory_space<vmem>>, vector<10x128xf32>
    %c40_408 = arith.constant 40 : index
    %c2944_409 = arith.constant 2944 : index
    %270 = vector.load %arg17[%c40_408, %c2944_409] : memref<50x3200xf32, #tpu.memory_space<vmem>>, vector<10x128xf32>
    tpu.vector_store %arg17[%c40_408, %c2944_409], %269 {strides = array<i32>} : memref<50x3200xf32, #tpu.memory_space<vmem>>, vector<10x128xf32>,
    %c32_410 = arith.constant 32 : index
    %c0_411 = arith.constant 0 : index
    %271 = vector.load %arg16[%c32_410, %c0_411] : memref<392x128xf32, #tpu.memory_space<vmem>>, vector<10x128xf32>
    %c0_412 = arith.constant 0 : index
    %c3072 = arith.constant 3072 : index
    %272 = vector.load %arg17[%c0_412, %c3072] : memref<50x3200xf32, #tpu.memory_space<vmem>>, vector<10x128xf32>
    tpu.vector_store %arg17[%c0_412, %c3072], %271 {strides = array<i32>} : memref<50x3200xf32, #tpu.memory_space<vmem>>, vector<10x128xf32>,
    %c46_413 = arith.constant 46 : index
    %c0_414 = arith.constant 0 : index
    %273 = vector.load %arg16[%c46_413, %c0_414] : memref<392x128xf32, #tpu.memory_space<vmem>>, vector<10x128xf32>
    %c10_415 = arith.constant 10 : index
    %c3072_416 = arith.constant 3072 : index
    %274 = vector.load %arg17[%c10_415, %c3072_416] : memref<50x3200xf32, #tpu.memory_space<vmem>>, vector<10x128xf32>
    tpu.vector_store %arg17[%c10_415, %c3072_416], %273 {strides = array<i32>} : memref<50x3200xf32, #tpu.memory_space<vmem>>, vector<10x128xf32>,
    %c60_417 = arith.constant 60 : index
    %c0_418 = arith.constant 0 : index
    %275 = vector.load %arg16[%c60_417, %c0_418] : memref<392x128xf32, #tpu.memory_space<vmem>>, vector<10x128xf32>
    %c20_419 = arith.constant 20 : index
    %c3072_420 = arith.constant 3072 : index
    %276 = vector.load %arg17[%c20_419, %c3072_420] : memref<50x3200xf32, #tpu.memory_space<vmem>>, vector<10x128xf32>
    tpu.vector_store %arg17[%c20_419, %c3072_420], %275 {strides = array<i32>} : memref<50x3200xf32, #tpu.memory_space<vmem>>, vector<10x128xf32>,
    %c74_421 = arith.constant 74 : index
    %c0_422 = arith.constant 0 : index
    %277 = vector.load %arg16[%c74_421, %c0_422] : memref<392x128xf32, #tpu.memory_space<vmem>>, vector<10x128xf32>
    %c30_423 = arith.constant 30 : index
    %c3072_424 = arith.constant 3072 : index
    %278 = vector.load %arg17[%c30_423, %c3072_424] : memref<50x3200xf32, #tpu.memory_space<vmem>>, vector<10x128xf32>
    tpu.vector_store %arg17[%c30_423, %c3072_424], %277 {strides = array<i32>} : memref<50x3200xf32, #tpu.memory_space<vmem>>, vector<10x128xf32>,
    %c88 = arith.constant 88 : index
    %c0_425 = arith.constant 0 : index
    %279 = vector.load %arg16[%c88, %c0_425] : memref<392x128xf32, #tpu.memory_space<vmem>>, vector<10x128xf32>
    %c40_426 = arith.constant 40 : index
    %c3072_427 = arith.constant 3072 : index
    %280 = vector.load %arg17[%c40_426, %c3072_427] : memref<50x3200xf32, #tpu.memory_space<vmem>>, vector<10x128xf32>
    tpu.vector_store %arg17[%c40_426, %c3072_427], %279 {strides = array<i32>} : memref<50x3200xf32, #tpu.memory_space<vmem>>, vector<10x128xf32>,
    %c0_428 = arith.constant 0 : index
    %c0_429 = arith.constant 0 : index
    %281 = vector.load %arg17[%c0_428, %c0_429] : memref<50x3200xf32, #tpu.memory_space<vmem>>, vector<50x3200xf32>
    %282 = arith.truncf %281 : vector<50x3200xf32> to vector<50x3200xbf16>
    %c0_430 = arith.constant 0 : index
    %c0_431 = arith.constant 0 : index
    %283 = vector.load %arg5[%c0_430, %c0_431] : memref<3200x128xbf16, #tpu.memory_space<vmem>>, vector<3200x128xbf16>
    %cst_432 = arith.constant dense<0.000000e+00> : vector<50x128xf32>
    %284 = tpu.matmul %282, %283, %cst_432 {dimension_numbers = #tpu.dot_dimension_numbers<[1], [0], [0], [1], [0, 0, 1, 1], [], []>} : vector<50x3200xbf16>, vector<3200x128xbf16>, vector<50x128xf32> -> vector<50x128xf32>
    %c0_433 = arith.constant 0 : index
    %c0_434 = arith.constant 0 : index
    %285 = vector.load %arg6[%c0_433, %c0_434] : memref<1x128xf32, #tpu.memory_space<vmem>>, vector<1x128xf32>
    %286 = vector.broadcast %285 : vector<1x128xf32> to vector<50x128xf32>
    %287 = arith.addf %284, %286 : vector<50x128xf32>
    %c0_435 = arith.constant 0 : index
    %c0_436 = arith.constant 0 : index
    %288 = vector.load %arg7[%c0_435, %c0_436] : memref<1x128xf32, #tpu.memory_space<vmem>>, vector<1x128xf32>
    %c0_437 = arith.constant 0 : index
    %c0_438 = arith.constant 0 : index
    %289 = vector.load %arg8[%c0_437, %c0_438] : memref<1x128xf32, #tpu.memory_space<vmem>>, vector<1x128xf32>
    %cst_439 = arith.constant dense<0.000000e+00> : vector<128xf32>
    %290 = vector.multi_reduction <add>, %287, %cst_439 [0] : vector<50x128xf32> to vector<128xf32>
    %291 = vector.shape_cast %290 : vector<128xf32> to vector<1x128xf32>
    %cst_440 = arith.constant 2.000000e-02 : f32
    %292 = vector.broadcast %cst_440 : f32 to vector<1x128xf32>
    %293 = arith.mulf %291, %292 : vector<1x128xf32>
    %294 = vector.broadcast %293 : vector<1x128xf32> to vector<50x128xf32>
    %295 = arith.subf %287, %294 : vector<50x128xf32>
    %296 = arith.mulf %295, %295 : vector<50x128xf32>
    %cst_441 = arith.constant dense<0.000000e+00> : vector<128xf32>
    %297 = vector.multi_reduction <add>, %296, %cst_441 [0] : vector<50x128xf32> to vector<128xf32>
    %298 = vector.shape_cast %297 : vector<128xf32> to vector<1x128xf32>
    %cst_442 = arith.constant 2.000000e-02 : f32
    %299 = vector.broadcast %cst_442 : f32 to vector<1x128xf32>
    %300 = arith.mulf %298, %299 : vector<1x128xf32>
    %cst_443 = arith.constant 9.99999974E-6 : f32
    %301 = vector.broadcast %cst_443 : f32 to vector<1x128xf32>
    %302 = arith.addf %300, %301 : vector<1x128xf32>
    %303 = math.rsqrt %302 : vector<1x128xf32>
    %304 = vector.broadcast %303 : vector<1x128xf32> to vector<50x128xf32>
    %305 = arith.mulf %295, %304 : vector<50x128xf32>
    %306 = vector.broadcast %288 : vector<1x128xf32> to vector<50x128xf32>
    %307 = arith.mulf %305, %306 : vector<50x128xf32>
    %308 = vector.broadcast %289 : vector<1x128xf32> to vector<50x128xf32>
    %309 = arith.addf %307, %308 : vector<50x128xf32>
    %cst_444 = arith.constant 0.000000e+00 : f32
    %310 = vector.broadcast %cst_444 : f32 to vector<50x128xf32>
    %311 = arith.maximumf %309, %310 : vector<50x128xf32>
    %c0_445 = arith.constant 0 : index
    %c0_446 = arith.constant 0 : index
    %312 = vector.load %arg18[%c0_445, %c0_446] : memref<50x128xf32, #tpu.memory_space<vmem>>, vector<50x128xf32>
    tpu.vector_store %arg18[%c0_445, %c0_446], %311 {strides = array<i32>} : memref<50x128xf32, #tpu.memory_space<vmem>>, vector<50x128xf32>,
    %c0_447 = arith.constant 0 : index
    %c0_448 = arith.constant 0 : index
    %313 = vector.load %arg18[%c0_447, %c0_448] : memref<50x128xf32, #tpu.memory_space<vmem>>, vector<2x128xf32>
    %c0_449 = arith.constant 0 : index
    %c0_450 = arith.constant 0 : index
    %314 = vector.load %arg19[%c0_449, %c0_450] : memref<2x3200xf32, #tpu.memory_space<vmem>>, vector<2x128xf32>
    tpu.vector_store %arg19[%c0_449, %c0_450], %313 {strides = array<i32>} : memref<2x3200xf32, #tpu.memory_space<vmem>>, vector<2x128xf32>,
    %c2_451 = arith.constant 2 : index
    %c0_452 = arith.constant 0 : index
    %315 = vector.load %arg18[%c2_451, %c0_452] : memref<50x128xf32, #tpu.memory_space<vmem>>, vector<2x128xf32>
    %c0_453 = arith.constant 0 : index
    %c128_454 = arith.constant 128 : index
    %316 = vector.load %arg19[%c0_453, %c128_454] : memref<2x3200xf32, #tpu.memory_space<vmem>>, vector<2x128xf32>
    tpu.vector_store %arg19[%c0_453, %c128_454], %315 {strides = array<i32>} : memref<2x3200xf32, #tpu.memory_space<vmem>>, vector<2x128xf32>,
    %c4_455 = arith.constant 4 : index
    %c0_456 = arith.constant 0 : index
    %317 = vector.load %arg18[%c4_455, %c0_456] : memref<50x128xf32, #tpu.memory_space<vmem>>, vector<2x128xf32>
    %c0_457 = arith.constant 0 : index
    %c256_458 = arith.constant 256 : index
    %318 = vector.load %arg19[%c0_457, %c256_458] : memref<2x3200xf32, #tpu.memory_space<vmem>>, vector<2x128xf32>
    tpu.vector_store %arg19[%c0_457, %c256_458], %317 {strides = array<i32>} : memref<2x3200xf32, #tpu.memory_space<vmem>>, vector<2x128xf32>,
    %c6 = arith.constant 6 : index
    %c0_459 = arith.constant 0 : index
    %319 = vector.load %arg18[%c6, %c0_459] : memref<50x128xf32, #tpu.memory_space<vmem>>, vector<2x128xf32>
    %c0_460 = arith.constant 0 : index
    %c384_461 = arith.constant 384 : index
    %320 = vector.load %arg19[%c0_460, %c384_461] : memref<2x3200xf32, #tpu.memory_space<vmem>>, vector<2x128xf32>
    tpu.vector_store %arg19[%c0_460, %c384_461], %319 {strides = array<i32>} : memref<2x3200xf32, #tpu.memory_space<vmem>>, vector<2x128xf32>,
    %c8 = arith.constant 8 : index
    %c0_462 = arith.constant 0 : index
    %321 = vector.load %arg18[%c8, %c0_462] : memref<50x128xf32, #tpu.memory_space<vmem>>, vector<2x128xf32>
    %c0_463 = arith.constant 0 : index
    %c512_464 = arith.constant 512 : index
    %322 = vector.load %arg19[%c0_463, %c512_464] : memref<2x3200xf32, #tpu.memory_space<vmem>>, vector<2x128xf32>
    tpu.vector_store %arg19[%c0_463, %c512_464], %321 {strides = array<i32>} : memref<2x3200xf32, #tpu.memory_space<vmem>>, vector<2x128xf32>,
    %c10_465 = arith.constant 10 : index
    %c0_466 = arith.constant 0 : index
    %323 = vector.load %arg18[%c10_465, %c0_466] : memref<50x128xf32, #tpu.memory_space<vmem>>, vector<2x128xf32>
    %c0_467 = arith.constant 0 : index
    %c640_468 = arith.constant 640 : index
    %324 = vector.load %arg19[%c0_467, %c640_468] : memref<2x3200xf32, #tpu.memory_space<vmem>>, vector<2x128xf32>
    tpu.vector_store %arg19[%c0_467, %c640_468], %323 {strides = array<i32>} : memref<2x3200xf32, #tpu.memory_space<vmem>>, vector<2x128xf32>,
    %c12 = arith.constant 12 : index
    %c0_469 = arith.constant 0 : index
    %325 = vector.load %arg18[%c12, %c0_469] : memref<50x128xf32, #tpu.memory_space<vmem>>, vector<2x128xf32>
    %c0_470 = arith.constant 0 : index
    %c768_471 = arith.constant 768 : index
    %326 = vector.load %arg19[%c0_470, %c768_471] : memref<2x3200xf32, #tpu.memory_space<vmem>>, vector<2x128xf32>
    tpu.vector_store %arg19[%c0_470, %c768_471], %325 {strides = array<i32>} : memref<2x3200xf32, #tpu.memory_space<vmem>>, vector<2x128xf32>,
    %c14_472 = arith.constant 14 : index
    %c0_473 = arith.constant 0 : index
    %327 = vector.load %arg18[%c14_472, %c0_473] : memref<50x128xf32, #tpu.memory_space<vmem>>, vector<2x128xf32>
    %c0_474 = arith.constant 0 : index
    %c896_475 = arith.constant 896 : index
    %328 = vector.load %arg19[%c0_474, %c896_475] : memref<2x3200xf32, #tpu.memory_space<vmem>>, vector<2x128xf32>
    tpu.vector_store %arg19[%c0_474, %c896_475], %327 {strides = array<i32>} : memref<2x3200xf32, #tpu.memory_space<vmem>>, vector<2x128xf32>,
    %c16_476 = arith.constant 16 : index
    %c0_477 = arith.constant 0 : index
    %329 = vector.load %arg18[%c16_476, %c0_477] : memref<50x128xf32, #tpu.memory_space<vmem>>, vector<2x128xf32>
    %c0_478 = arith.constant 0 : index
    %c1024_479 = arith.constant 1024 : index
    %330 = vector.load %arg19[%c0_478, %c1024_479] : memref<2x3200xf32, #tpu.memory_space<vmem>>, vector<2x128xf32>
    tpu.vector_store %arg19[%c0_478, %c1024_479], %329 {strides = array<i32>} : memref<2x3200xf32, #tpu.memory_space<vmem>>, vector<2x128xf32>,
    %c18_480 = arith.constant 18 : index
    %c0_481 = arith.constant 0 : index
    %331 = vector.load %arg18[%c18_480, %c0_481] : memref<50x128xf32, #tpu.memory_space<vmem>>, vector<2x128xf32>
    %c0_482 = arith.constant 0 : index
    %c1152_483 = arith.constant 1152 : index
    %332 = vector.load %arg19[%c0_482, %c1152_483] : memref<2x3200xf32, #tpu.memory_space<vmem>>, vector<2x128xf32>
    tpu.vector_store %arg19[%c0_482, %c1152_483], %331 {strides = array<i32>} : memref<2x3200xf32, #tpu.memory_space<vmem>>, vector<2x128xf32>,
    %c20_484 = arith.constant 20 : index
    %c0_485 = arith.constant 0 : index
    %333 = vector.load %arg18[%c20_484, %c0_485] : memref<50x128xf32, #tpu.memory_space<vmem>>, vector<2x128xf32>
    %c0_486 = arith.constant 0 : index
    %c1280_487 = arith.constant 1280 : index
    %334 = vector.load %arg19[%c0_486, %c1280_487] : memref<2x3200xf32, #tpu.memory_space<vmem>>, vector<2x128xf32>
    tpu.vector_store %arg19[%c0_486, %c1280_487], %333 {strides = array<i32>} : memref<2x3200xf32, #tpu.memory_space<vmem>>, vector<2x128xf32>,
    %c22 = arith.constant 22 : index
    %c0_488 = arith.constant 0 : index
    %335 = vector.load %arg18[%c22, %c0_488] : memref<50x128xf32, #tpu.memory_space<vmem>>, vector<2x128xf32>
    %c0_489 = arith.constant 0 : index
    %c1408_490 = arith.constant 1408 : index
    %336 = vector.load %arg19[%c0_489, %c1408_490] : memref<2x3200xf32, #tpu.memory_space<vmem>>, vector<2x128xf32>
    tpu.vector_store %arg19[%c0_489, %c1408_490], %335 {strides = array<i32>} : memref<2x3200xf32, #tpu.memory_space<vmem>>, vector<2x128xf32>,
    %c24 = arith.constant 24 : index
    %c0_491 = arith.constant 0 : index
    %337 = vector.load %arg18[%c24, %c0_491] : memref<50x128xf32, #tpu.memory_space<vmem>>, vector<2x128xf32>
    %c0_492 = arith.constant 0 : index
    %c1536_493 = arith.constant 1536 : index
    %338 = vector.load %arg19[%c0_492, %c1536_493] : memref<2x3200xf32, #tpu.memory_space<vmem>>, vector<2x128xf32>
    tpu.vector_store %arg19[%c0_492, %c1536_493], %337 {strides = array<i32>} : memref<2x3200xf32, #tpu.memory_space<vmem>>, vector<2x128xf32>,
    %c26 = arith.constant 26 : index
    %c0_494 = arith.constant 0 : index
    %339 = vector.load %arg18[%c26, %c0_494] : memref<50x128xf32, #tpu.memory_space<vmem>>, vector<2x128xf32>
    %c0_495 = arith.constant 0 : index
    %c1664_496 = arith.constant 1664 : index
    %340 = vector.load %arg19[%c0_495, %c1664_496] : memref<2x3200xf32, #tpu.memory_space<vmem>>, vector<2x128xf32>
    tpu.vector_store %arg19[%c0_495, %c1664_496], %339 {strides = array<i32>} : memref<2x3200xf32, #tpu.memory_space<vmem>>, vector<2x128xf32>,
    %c28_497 = arith.constant 28 : index
    %c0_498 = arith.constant 0 : index
    %341 = vector.load %arg18[%c28_497, %c0_498] : memref<50x128xf32, #tpu.memory_space<vmem>>, vector<2x128xf32>
    %c0_499 = arith.constant 0 : index
    %c1792_500 = arith.constant 1792 : index
    %342 = vector.load %arg19[%c0_499, %c1792_500] : memref<2x3200xf32, #tpu.memory_space<vmem>>, vector<2x128xf32>
    tpu.vector_store %arg19[%c0_499, %c1792_500], %341 {strides = array<i32>} : memref<2x3200xf32, #tpu.memory_space<vmem>>, vector<2x128xf32>,
    %c30_501 = arith.constant 30 : index
    %c0_502 = arith.constant 0 : index
    %343 = vector.load %arg18[%c30_501, %c0_502] : memref<50x128xf32, #tpu.memory_space<vmem>>, vector<2x128xf32>
    %c0_503 = arith.constant 0 : index
    %c1920_504 = arith.constant 1920 : index
    %344 = vector.load %arg19[%c0_503, %c1920_504] : memref<2x3200xf32, #tpu.memory_space<vmem>>, vector<2x128xf32>
    tpu.vector_store %arg19[%c0_503, %c1920_504], %343 {strides = array<i32>} : memref<2x3200xf32, #tpu.memory_space<vmem>>, vector<2x128xf32>,
    %c32_505 = arith.constant 32 : index
    %c0_506 = arith.constant 0 : index
    %345 = vector.load %arg18[%c32_505, %c0_506] : memref<50x128xf32, #tpu.memory_space<vmem>>, vector<2x128xf32>
    %c0_507 = arith.constant 0 : index
    %c2048_508 = arith.constant 2048 : index
    %346 = vector.load %arg19[%c0_507, %c2048_508] : memref<2x3200xf32, #tpu.memory_space<vmem>>, vector<2x128xf32>
    tpu.vector_store %arg19[%c0_507, %c2048_508], %345 {strides = array<i32>} : memref<2x3200xf32, #tpu.memory_space<vmem>>, vector<2x128xf32>,
    %c34 = arith.constant 34 : index
    %c0_509 = arith.constant 0 : index
    %347 = vector.load %arg18[%c34, %c0_509] : memref<50x128xf32, #tpu.memory_space<vmem>>, vector<2x128xf32>
    %c0_510 = arith.constant 0 : index
    %c2176_511 = arith.constant 2176 : index
    %348 = vector.load %arg19[%c0_510, %c2176_511] : memref<2x3200xf32, #tpu.memory_space<vmem>>, vector<2x128xf32>
    tpu.vector_store %arg19[%c0_510, %c2176_511], %347 {strides = array<i32>} : memref<2x3200xf32, #tpu.memory_space<vmem>>, vector<2x128xf32>,
    %c36 = arith.constant 36 : index
    %c0_512 = arith.constant 0 : index
    %349 = vector.load %arg18[%c36, %c0_512] : memref<50x128xf32, #tpu.memory_space<vmem>>, vector<2x128xf32>
    %c0_513 = arith.constant 0 : index
    %c2304_514 = arith.constant 2304 : index
    %350 = vector.load %arg19[%c0_513, %c2304_514] : memref<2x3200xf32, #tpu.memory_space<vmem>>, vector<2x128xf32>
    tpu.vector_store %arg19[%c0_513, %c2304_514], %349 {strides = array<i32>} : memref<2x3200xf32, #tpu.memory_space<vmem>>, vector<2x128xf32>,
    %c38 = arith.constant 38 : index
    %c0_515 = arith.constant 0 : index
    %351 = vector.load %arg18[%c38, %c0_515] : memref<50x128xf32, #tpu.memory_space<vmem>>, vector<2x128xf32>
    %c0_516 = arith.constant 0 : index
    %c2432_517 = arith.constant 2432 : index
    %352 = vector.load %arg19[%c0_516, %c2432_517] : memref<2x3200xf32, #tpu.memory_space<vmem>>, vector<2x128xf32>
    tpu.vector_store %arg19[%c0_516, %c2432_517], %351 {strides = array<i32>} : memref<2x3200xf32, #tpu.memory_space<vmem>>, vector<2x128xf32>,
    %c40_518 = arith.constant 40 : index
    %c0_519 = arith.constant 0 : index
    %353 = vector.load %arg18[%c40_518, %c0_519] : memref<50x128xf32, #tpu.memory_space<vmem>>, vector<2x128xf32>
    %c0_520 = arith.constant 0 : index
    %c2560_521 = arith.constant 2560 : index
    %354 = vector.load %arg19[%c0_520, %c2560_521] : memref<2x3200xf32, #tpu.memory_space<vmem>>, vector<2x128xf32>
    tpu.vector_store %arg19[%c0_520, %c2560_521], %353 {strides = array<i32>} : memref<2x3200xf32, #tpu.memory_space<vmem>>, vector<2x128xf32>,
    %c42_522 = arith.constant 42 : index
    %c0_523 = arith.constant 0 : index
    %355 = vector.load %arg18[%c42_522, %c0_523] : memref<50x128xf32, #tpu.memory_space<vmem>>, vector<2x128xf32>
    %c0_524 = arith.constant 0 : index
    %c2688_525 = arith.constant 2688 : index
    %356 = vector.load %arg19[%c0_524, %c2688_525] : memref<2x3200xf32, #tpu.memory_space<vmem>>, vector<2x128xf32>
    tpu.vector_store %arg19[%c0_524, %c2688_525], %355 {strides = array<i32>} : memref<2x3200xf32, #tpu.memory_space<vmem>>, vector<2x128xf32>,
    %c44_526 = arith.constant 44 : index
    %c0_527 = arith.constant 0 : index
    %357 = vector.load %arg18[%c44_526, %c0_527] : memref<50x128xf32, #tpu.memory_space<vmem>>, vector<2x128xf32>
    %c0_528 = arith.constant 0 : index
    %c2816_529 = arith.constant 2816 : index
    %358 = vector.load %arg19[%c0_528, %c2816_529] : memref<2x3200xf32, #tpu.memory_space<vmem>>, vector<2x128xf32>
    tpu.vector_store %arg19[%c0_528, %c2816_529], %357 {strides = array<i32>} : memref<2x3200xf32, #tpu.memory_space<vmem>>, vector<2x128xf32>,
    %c46_530 = arith.constant 46 : index
    %c0_531 = arith.constant 0 : index
    %359 = vector.load %arg18[%c46_530, %c0_531] : memref<50x128xf32, #tpu.memory_space<vmem>>, vector<2x128xf32>
    %c0_532 = arith.constant 0 : index
    %c2944_533 = arith.constant 2944 : index
    %360 = vector.load %arg19[%c0_532, %c2944_533] : memref<2x3200xf32, #tpu.memory_space<vmem>>, vector<2x128xf32>
    tpu.vector_store %arg19[%c0_532, %c2944_533], %359 {strides = array<i32>} : memref<2x3200xf32, #tpu.memory_space<vmem>>, vector<2x128xf32>,
    %c48 = arith.constant 48 : index
    %c0_534 = arith.constant 0 : index
    %361 = vector.load %arg18[%c48, %c0_534] : memref<50x128xf32, #tpu.memory_space<vmem>>, vector<2x128xf32>
    %c0_535 = arith.constant 0 : index
    %c3072_536 = arith.constant 3072 : index
    %362 = vector.load %arg19[%c0_535, %c3072_536] : memref<2x3200xf32, #tpu.memory_space<vmem>>, vector<2x128xf32>
    tpu.vector_store %arg19[%c0_535, %c3072_536], %361 {strides = array<i32>} : memref<2x3200xf32, #tpu.memory_space<vmem>>, vector<2x128xf32>,
    %c0_537 = arith.constant 0 : index
    %c0_538 = arith.constant 0 : index
    %363 = vector.load %arg19[%c0_537, %c0_538] : memref<2x3200xf32, #tpu.memory_space<vmem>>, vector<2x3200xf32>
    %364 = arith.truncf %363 : vector<2x3200xf32> to vector<2x3200xbf16>
    %c0_539 = arith.constant 0 : index
    %c0_540 = arith.constant 0 : index
    %365 = vector.load %arg9[%c0_539, %c0_540] : memref<3200x128xbf16, #tpu.memory_space<vmem>>, vector<3200x128xbf16>
    %cst_541 = arith.constant dense<0.000000e+00> : vector<2x128xf32>
    %366 = tpu.matmul %364, %365, %cst_541 {dimension_numbers = #tpu.dot_dimension_numbers<[1], [0], [0], [1], [0, 0, 1, 1], [], []>} : vector<2x3200xbf16>, vector<3200x128xbf16>, vector<2x128xf32> -> vector<2x128xf32>
    %c0_542 = arith.constant 0 : index
    %c0_543 = arith.constant 0 : index
    %367 = vector.load %arg10[%c0_542, %c0_543] : memref<1x128xf32, #tpu.memory_space<vmem>>, vector<1x128xf32>
    %368 = vector.broadcast %367 : vector<1x128xf32> to vector<2x128xf32>
    %369 = arith.addf %366, %368 : vector<2x128xf32>
    %c0_544 = arith.constant 0 : index
    %c0_545 = arith.constant 0 : index
    %370 = vector.load %arg11[%c0_544, %c0_545] : memref<1x128xf32, #tpu.memory_space<vmem>>, vector<1x128xf32>
    %c0_546 = arith.constant 0 : index
    %c0_547 = arith.constant 0 : index
    %371 = vector.load %arg12[%c0_546, %c0_547] : memref<1x128xf32, #tpu.memory_space<vmem>>, vector<1x128xf32>
    %cst_548 = arith.constant dense<0.000000e+00> : vector<128xf32>
    %372 = vector.multi_reduction <add>, %369, %cst_548 [0] : vector<2x128xf32> to vector<128xf32>
    %373 = vector.shape_cast %372 : vector<128xf32> to vector<1x128xf32>
    %cst_549 = arith.constant 5.000000e-01 : f32
    %374 = vector.broadcast %cst_549 : f32 to vector<1x128xf32>
    %375 = arith.mulf %373, %374 : vector<1x128xf32>
    %376 = vector.broadcast %375 : vector<1x128xf32> to vector<2x128xf32>
    %377 = arith.subf %369, %376 : vector<2x128xf32>
    %378 = arith.mulf %377, %377 : vector<2x128xf32>
    %cst_550 = arith.constant dense<0.000000e+00> : vector<128xf32>
    %379 = vector.multi_reduction <add>, %378, %cst_550 [0] : vector<2x128xf32> to vector<128xf32>
    %380 = vector.shape_cast %379 : vector<128xf32> to vector<1x128xf32>
    %cst_551 = arith.constant 5.000000e-01 : f32
    %381 = vector.broadcast %cst_551 : f32 to vector<1x128xf32>
    %382 = arith.mulf %380, %381 : vector<1x128xf32>
    %cst_552 = arith.constant 9.99999974E-6 : f32
    %383 = vector.broadcast %cst_552 : f32 to vector<1x128xf32>
    %384 = arith.addf %382, %383 : vector<1x128xf32>
    %385 = math.rsqrt %384 : vector<1x128xf32>
    %386 = vector.broadcast %385 : vector<1x128xf32> to vector<2x128xf32>
    %387 = arith.mulf %377, %386 : vector<2x128xf32>
    %388 = vector.broadcast %370 : vector<1x128xf32> to vector<2x128xf32>
    %389 = arith.mulf %387, %388 : vector<2x128xf32>
    %390 = vector.broadcast %371 : vector<1x128xf32> to vector<2x128xf32>
    %391 = arith.addf %389, %390 : vector<2x128xf32>
    %cst_553 = arith.constant 0.000000e+00 : f32
    %392 = vector.broadcast %cst_553 : f32 to vector<2x128xf32>
    %393 = arith.maximumf %391, %392 : vector<2x128xf32>
    %394 = arith.truncf %393 : vector<2x128xf32> to vector<2x128xbf16>
    %c0_554 = arith.constant 0 : index
    %c0_555 = arith.constant 0 : index
    %395 = vector.load %arg13[%c0_554, %c0_555] : memref<128x128xbf16, #tpu.memory_space<vmem>>, vector<128x128xbf16>
    %cst_556 = arith.constant dense<0.000000e+00> : vector<2x128xf32>
    %396 = tpu.matmul %394, %395, %cst_556 {dimension_numbers = #tpu.dot_dimension_numbers<[1], [0], [0], [1], [0, 0, 1, 1], [], []>} : vector<2x128xbf16>, vector<128x128xbf16>, vector<2x128xf32> -> vector<2x128xf32>
    %c0_557 = arith.constant 0 : index
    %c0_558 = arith.constant 0 : index
    %397 = vector.load %arg14[%c0_557, %c0_558] : memref<1x128xf32, #tpu.memory_space<vmem>>, vector<1x128xf32>
    %398 = vector.broadcast %397 : vector<1x128xf32> to vector<2x128xf32>
    %399 = arith.addf %396, %398 : vector<2x128xf32>
    %400 = math.tanh %399 : vector<2x128xf32>
    %c0_559 = arith.constant 0 : index
    %c0_560 = arith.constant 0 : index
    %401 = vector.load %arg15[%c0_559, %c0_560] : memref<2x128xf32, #tpu.memory_space<vmem>>, vector<2x128xf32>
    tpu.vector_store %arg15[%c0_559, %c0_560], %400 {strides = array<i32>} : memref<2x128xf32, #tpu.memory_space<vmem>>, vector<2x128xf32>,
    return
  }
}

</mosaic_0001>

<llo_original>
// kernel: _lambda_.1
$region0: #{_lambda_.1}
  #allocation0 [shape = 'u32[]', space=smem, size = 0x4, offset = 0x4, fixed_abs, tag = 'smem constant byte address 0x4 - core index']
  #allocation1 [shape = 'u32[144,128]{1,0:T(1,128)}', space=vmem, size = 0x12000, scoped, tag = 'internal scratch']
  #allocation2 [shape = 'f32[392,128]{1,0:T(8,128)}', space=vmem, size = 0x31000, scoped, tag = 'scratch operand']
  #allocation3 [shape = 'f32[50,3200]{1,0:T(8,128)}', space=vmem, size = 0xaf000, scoped, tag = 'scratch operand']
  #allocation4 [shape = 'f32[50,128]{1,0:T(8,128)}', space=vmem, size = 0x7000, scoped, tag = 'scratch operand']
  #allocation5 [shape = 'f32[2,3200]{1,0:T(2,128)}', space=vmem, size = 0x6400, scoped, tag = 'scratch operand']
  %s0 = inlined_call_operand.vmem [shape: bf16[392,128], index: 0, kind: input, shape index: {}]
  %s1 = inlined_call_operand.vmem [shape: bf16[128,128], index: 1, kind: input, shape index: {}]
  %s2 = inlined_call_operand.vmem [shape: f32[1,128], index: 2, kind: input, shape index: {}]
  %s3 = inlined_call_operand.vmem [shape: f32[1,128], index: 3, kind: input, shape index: {}]
  %s4 = inlined_call_operand.vmem [shape: f32[1,128], index: 4, kind: input, shape index: {}]
  %s5 = inlined_call_operand.vmem [shape: bf16[3200,128], index: 5, kind: input, shape index: {}]
  %s6 = inlined_call_operand.vmem [shape: f32[1,128], index: 6, kind: input, shape index: {}]
  %s7 = inlined_call_operand.vmem [shape: f32[1,128], index: 7, kind: input, shape index: {}]
  %s8 = inlined_call_operand.vmem [shape: f32[1,128], index: 8, kind: input, shape index: {}]
  %s9 = inlined_call_operand.vmem [shape: bf16[3200,128], index: 9, kind: input, shape index: {}]
  %s10 = inlined_call_operand.vmem [shape: f32[1,128], index: 10, kind: input, shape index: {}]
  %s11 = inlined_call_operand.vmem [shape: f32[1,128], index: 11, kind: input, shape index: {}]
  %s12 = inlined_call_operand.vmem [shape: f32[1,128], index: 12, kind: input, shape index: {}]
  %s13 = inlined_call_operand.vmem [shape: bf16[128,128], index: 13, kind: input, shape index: {}]
  %s14 = inlined_call_operand.vmem [shape: f32[1,128], index: 14, kind: input, shape index: {}]
  %s15 = inlined_call_operand.hbm [shape: f32[2,128], index: 15, kind: output, shape index: {}]
  %s16 = sld [smem:[#allocation0]]
  $region70: #{_lambda_.1} parent=0
    _
  %s18 = ssub.s32 1, %s16
  %s19 = scalar_select 0, %s18, %s16
  $region1: #{_lambda_.1} parent=0
    #allocation6 [shape = 'u8[1024]{0}', space=vmem, size = 0x400, scoped, tag = 'output window, operand 0, single buffered']
    #allocation7 [shape = 's32[1]{0}', space=sflag, size = 0x4, scoped, tag = 'scoped memory for _lambda_.1']
    %20 = vsyncpa [#allocation7], 0
    // Predicated region
    $region2: #{_lambda_.1} parent=1 // pred_check
      _
    $region3: #{_lambda_.1} parent=1 // pred_check_branch
      %22 = sbr.rel (0) target = $region5
    $region4: #{_lambda_.1} parent=1 // pred_region
      _
    $region5: #{_lambda_.1} parent=1 // pred_fallthru
      _
    // Predicated region
    $region6: #{_lambda_.1} parent=1 // pred_check
      _
    $region7: #{_lambda_.1} parent=1 // pred_check_branch
      %24 = sbr.rel (0) target = $region9
    $region8: #{_lambda_.1} parent=1 // pred_region
      _
    $region9: #{_lambda_.1} parent=1 // pred_fallthru
      _
    // Predicated region
    $region10: #{_lambda_.1} parent=1 // pred_check
      _
    $region11: #{_lambda_.1} parent=1 // pred_check_branch
      %26 = sbr.rel (0) target = $region13
    $region12: #{_lambda_.1} parent=1 // pred_region
      _
    $region13: #{_lambda_.1} parent=1 // pred_fallthru
      _
    // Predicated region
    $region14: #{_lambda_.1} parent=1 // pred_check
      _
    $region15: #{_lambda_.1} parent=1 // pred_check_branch
      %28 = sbr.rel (0) target = $region17
    $region16: #{_lambda_.1} parent=1 // pred_region
      _
    $region17: #{_lambda_.1} parent=1 // pred_fallthru
      _
    // Predicated region
    $region18: #{_lambda_.1} parent=1 // pred_check
      _
    $region19: #{_lambda_.1} parent=1 // pred_check_branch
      %30 = sbr.rel (0) target = $region21
    $region20: #{_lambda_.1} parent=1 // pred_region
      _
    $region21: #{_lambda_.1} parent=1 // pred_fallthru
      _
    // Predicated region
    $region22: #{_lambda_.1} parent=1 // pred_check
      _
    $region23: #{_lambda_.1} parent=1 // pred_check_branch
      %32 = sbr.rel (0) target = $region25
    $region24: #{_lambda_.1} parent=1 // pred_region
      _
    $region25: #{_lambda_.1} parent=1 // pred_fallthru
      _
    // Predicated region
    $region26: #{_lambda_.1} parent=1 // pred_check
      _
    $region27: #{_lambda_.1} parent=1 // pred_check_branch
      %34 = sbr.rel (0) target = $region29
    $region28: #{_lambda_.1} parent=1 // pred_region
      _
    $region29: #{_lambda_.1} parent=1 // pred_fallthru
      _
    // Predicated region
    $region30: #{_lambda_.1} parent=1 // pred_check
      _
    $region31: #{_lambda_.1} parent=1 // pred_check_branch
      %36 = sbr.rel (0) target = $region33
    $region32: #{_lambda_.1} parent=1 // pred_region
      _
    $region33: #{_lambda_.1} parent=1 // pred_fallthru
      _
    // Predicated region
    $region34: #{_lambda_.1} parent=1 // pred_check
      _
    $region35: #{_lambda_.1} parent=1 // pred_check_branch
      %38 = sbr.rel (0) target = $region37
    $region36: #{_lambda_.1} parent=1 // pred_region
      _
    $region37: #{_lambda_.1} parent=1 // pred_fallthru
      _
    // Predicated region
    $region38: #{_lambda_.1} parent=1 // pred_check
      _
    $region39: #{_lambda_.1} parent=1 // pred_check_branch
      %40 = sbr.rel (0) target = $region41
    $region40: #{_lambda_.1} parent=1 // pred_region
      _
    $region41: #{_lambda_.1} parent=1 // pred_fallthru
      _
    // Predicated region
    $region42: #{_lambda_.1} parent=1 // pred_check
      _
    $region43: #{_lambda_.1} parent=1 // pred_check_branch
      %42 = sbr.rel (0) target = $region45
    $region44: #{_lambda_.1} parent=1 // pred_region
      _
    $region45: #{_lambda_.1} parent=1 // pred_fallthru
      _
    // Predicated region
    $region46: #{_lambda_.1} parent=1 // pred_check
      _
    $region47: #{_lambda_.1} parent=1 // pred_check_branch
      %44 = sbr.rel (0) target = $region49
    $region48: #{_lambda_.1} parent=1 // pred_region
      _
    $region49: #{_lambda_.1} parent=1 // pred_fallthru
      _
    // Predicated region
    $region50: #{_lambda_.1} parent=1 // pred_check
      _
    $region51: #{_lambda_.1} parent=1 // pred_check_branch
      %46 = sbr.rel (0) target = $region53
    $region52: #{_lambda_.1} parent=1 // pred_region
      _
    $region53: #{_lambda_.1} parent=1 // pred_fallthru
      _
    // Predicated region
    $region54: #{_lambda_.1} parent=1 // pred_check
      _
    $region55: #{_lambda_.1} parent=1 // pred_check_branch
      %48 = sbr.rel (0) target = $region57
    $region56: #{_lambda_.1} parent=1 // pred_region
      _
    $region57: #{_lambda_.1} parent=1 // pred_fallthru
      _
    // Predicated region
    $region58: #{_lambda_.1} parent=1 // pred_check
      _
    $region59: #{_lambda_.1} parent=1 // pred_check_branch
      %50 = sbr.rel (0) target = $region61
    $region60: #{_lambda_.1} parent=1 // pred_region
      _
    $region61: #{_lambda_.1} parent=1 // pred_fallthru
      _
    %v52 = vld [vmem:[%s0] sm:$0xf]
    %v53 = vld [vmem:[%s0 + $0x4] sm:$0xf]
    %v54 = vld [vmem:[%s0 + $0x8] sm:$0xf]
    %v55 = vld [vmem:[%s0 + $0xc] sm:$0xf]
    %v56 = vld [vmem:[%s0 + $0x10] sm:$0xf]
    %v57 = vld [vmem:[%s0 + $0x14] sm:$0xf]
    %v58 = vld [vmem:[%s0 + $0x18] sm:$0xf]
    %v59 = vld [vmem:[%s0 + $0x1c] sm:$0xf]
    %v60 = vld [vmem:[%s0 + $0x20] sm:$0xf]
    %v61 = vld [vmem:[%s0 + $0x24] sm:$0xf]
    %v62 = vld [vmem:[%s0 + $0x28] sm:$0xf]
    %v63 = vld [vmem:[%s0 + $0x2c] sm:$0xf]
    %v64 = vld [vmem:[%s0 + $0x30] sm:$0xf]
    %v65 = vld [vmem:[%s0 + $0x34] sm:$0xf]
    %v66 = vld [vmem:[%s0 + $0x38] sm:$0xf]
    %v67 = vld [vmem:[%s0 + $0x3c] sm:$0xf]
    %v68 = vld [vmem:[%s0 + $0x40] sm:$0xf]
    %v69 = vld [vmem:[%s0 + $0x44] sm:$0xf]
    %v70 = vld [vmem:[%s0 + $0x48] sm:$0xf]
    %v71 = vld [vmem:[%s0 + $0x4c] sm:$0xf]
    %v72 = vld [vmem:[%s0 + $0x50] sm:$0xf]
    %v73 = vld [vmem:[%s0 + $0x54] sm:$0xf]
    %v74 = vld [vmem:[%s0 + $0x58] sm:$0xf]
    %v75 = vld [vmem:[%s0 + $0x5c] sm:$0xf]
    %v76 = vld [vmem:[%s0 + $0x60] sm:$0xf]
    %v77 = vld [vmem:[%s0 + $0x64] sm:$0xf]
    %v78 = vld [vmem:[%s0 + $0x68] sm:$0xf]
    %v79 = vld [vmem:[%s0 + $0x6c] sm:$0xf]
    %v80 = vld [vmem:[%s0 + $0x70] sm:$0xf]
    %v81 = vld [vmem:[%s0 + $0x74] sm:$0xf]
    %v82 = vld [vmem:[%s0 + $0x78] sm:$0xf]
    %v83 = vld [vmem:[%s0 + $0x7c] sm:$0xf]
    %v84 = vld [vmem:[%s0 + $0x80] sm:$0xf]
    %v85 = vld [vmem:[%s0 + $0x84] sm:$0xf]
    %v86 = vld [vmem:[%s0 + $0x88] sm:$0xf]
    %v87 = vld [vmem:[%s0 + $0x8c] sm:$0xf]
    %v88 = vld [vmem:[%s0 + $0x90] sm:$0xf]
    %v89 = vld [vmem:[%s0 + $0x94] sm:$0xf]
    %v90 = vld [vmem:[%s0 + $0x98] sm:$0xf]
    %v91 = vld [vmem:[%s0 + $0x9c] sm:$0xf]
    %v92 = vld [vmem:[%s0 + $0xa0] sm:$0xf]
    %v93 = vld [vmem:[%s0 + $0xa4] sm:$0xf]
    %v94 = vld [vmem:[%s0 + $0xa8] sm:$0xf]
    %v95 = vld [vmem:[%s0 + $0xac] sm:$0xf]
    %v96 = vld [vmem:[%s0 + $0xb0] sm:$0xf]
    %v97 = vld [vmem:[%s0 + $0xb4] sm:$0xf]
    %v98 = vld [vmem:[%s0 + $0xb8] sm:$0xf]
    %v99 = vld [vmem:[%s0 + $0xbc] sm:$0xf]
    %v100 = vld [vmem:[%s0 + $0xc0] sm:$0xf]
    %v101 = vld [vmem:[%s1] sm:$0xf]
    %v102 = vld [vmem:[%s1 + $0x4] sm:$0xf]
    %v103 = vld [vmem:[%s1 + $0x8] sm:$0xf]
    %v104 = vld [vmem:[%s1 + $0xc] sm:$0xf]
    %v105 = vld [vmem:[%s1 + $0x10] sm:$0xf]
    %v106 = vld [vmem:[%s1 + $0x14] sm:$0xf]
    %v107 = vld [vmem:[%s1 + $0x18] sm:$0xf]
    %v108 = vld [vmem:[%s1 + $0x1c] sm:$0xf]
    %v109 = vld [vmem:[%s1 + $0x20] sm:$0xf]
    %v110 = vld [vmem:[%s1 + $0x24] sm:$0xf]
    %v111 = vld [vmem:[%s1 + $0x28] sm:$0xf]
    %v112 = vld [vmem:[%s1 + $0x2c] sm:$0xf]
    %v113 = vld [vmem:[%s1 + $0x30] sm:$0xf]
    %v114 = vld [vmem:[%s1 + $0x34] sm:$0xf]
    %v115 = vld [vmem:[%s1 + $0x38] sm:$0xf]
    %v116 = vld [vmem:[%s1 + $0x3c] sm:$0xf]
    %v117 = vld [vmem:[%s2] sm:$0x1]
    %v119 = vlaneseq
    %v120 = vshrl.u32 %v119, 7
    %v121 = vsub.s32 0, %v120
    %v122 = vrot.slane %v117, %v121
    %v173 = vunpack.c.l.b16 %v52
    %v174 = vunpack.c.l.b16 %v53
    %v175 = vunpack.c.l.b16 %v54
    %v176 = vunpack.c.l.b16 %v55
    %v177 = vunpack.c.l.b16 %v56
    %v178 = vunpack.c.l.b16 %v57
    %v179 = vunpack.c.l.b16 %v58
    %v180 = vunpack.c.l.b16 %v59
    %v181 = vunpack.c.l.b16 %v60
    %v182 = vunpack.c.l.b16 %v61
    %v183 = vunpack.c.l.b16 %v62
    %v184 = vunpack.c.l.b16 %v63
    %v185 = vunpack.c.l.b16 %v64
    %v186 = vunpack.c.l.b16 %v65
    %v187 = vunpack.c.l.b16 %v66
    %v188 = vunpack.c.l.b16 %v67
    %v189 = vunpack.c.l.b16 %v68
    %v190 = vunpack.c.l.b16 %v69
    %v191 = vunpack.c.l.b16 %v70
    %v192 = vunpack.c.l.b16 %v71
    %v193 = vunpack.c.l.b16 %v72
    %v194 = vunpack.c.l.b16 %v73
    %v195 = vunpack.c.l.b16 %v74
    %v196 = vunpack.c.l.b16 %v75
    %v197 = vunpack.c.l.b16 %v76
    %v198 = vunpack.c.l.b16 %v77
    %v199 = vunpack.c.l.b16 %v78
    %v200 = vunpack.c.l.b16 %v79
    %v201 = vunpack.c.l.b16 %v80
    %v202 = vunpack.c.l.b16 %v81
    %v203 = vunpack.c.l.b16 %v82
    %v204 = vunpack.c.l.b16 %v83
    %v205 = vunpack.c.l.b16 %v84
    %v206 = vunpack.c.l.b16 %v85
    %v207 = vunpack.c.l.b16 %v86
    %v208 = vunpack.c.l.b16 %v87
    %v209 = vunpack.c.l.b16 %v88
    %v210 = vunpack.c.l.b16 %v89
    %v211 = vunpack.c.l.b16 %v90
    %v212 = vunpack.c.l.b16 %v91
    %v213 = vunpack.c.l.b16 %v92
    %v214 = vunpack.c.l.b16 %v93
    %v215 = vunpack.c.l.b16 %v94
    %v216 = vunpack.c.l.b16 %v95
    %v217 = vunpack.c.l.b16 %v96
    %v218 = vunpack.c.l.b16 %v97
    %v219 = vunpack.c.l.b16 %v98
    %v220 = vunpack.c.l.b16 %v99
    %v221 = vunpack.c.l.b16 %v100
    %v222 = vpack.c.b16 %v174, %v173
    %v223 = vpack.c.b16 %v176, %v175
    %v224 = vpack.c.b16 %v178, %v177
    %v225 = vpack.c.b16 %v180, %v179
    %v226 = vpack.c.b16 %v182, %v181
    %v227 = vpack.c.b16 %v184, %v183
    %v228 = vpack.c.b16 %v186, %v185
    %v229 = vpack.c.b16 %v188, %v187
    %v230 = vpack.c.b16 %v190, %v189
    %v231 = vpack.c.b16 %v192, %v191
    %v232 = vpack.c.b16 %v194, %v193
    %v233 = vpack.c.b16 %v196, %v195
    %v234 = vpack.c.b16 %v198, %v197
    %v235 = vpack.c.b16 %v200, %v199
    %v236 = vpack.c.b16 %v202, %v201
    %v237 = vpack.c.b16 %v204, %v203
    %v238 = vpack.c.b16 %v206, %v205
    %v239 = vpack.c.b16 %v208, %v207
    %v240 = vpack.c.b16 %v210, %v209
    %v241 = vpack.c.b16 %v212, %v211
    %v242 = vpack.c.b16 %v214, %v213
    %v243 = vpack.c.b16 %v216, %v215
    %v244 = vpack.c.b16 %v218, %v217
    %v245 = vpack.c.b16 %v220, %v219
    %v246 = vpack.c.b16 %v221, %v221
    %v288 = vunpack.c.l.b16 %v101
    %v289 = vunpack.c.l.b16 %v102
    %v290 = vunpack.c.l.b16 %v103
    %v291 = vunpack.c.l.b16 %v104
    %v292 = vunpack.c.l.b16 %v105
    %v293 = vunpack.c.l.b16 %v106
    %v294 = vunpack.c.l.b16 %v107
    %v295 = vunpack.c.l.b16 %v108
    %v296 = vunpack.c.l.b16 %v109
    %v297 = vunpack.c.l.b16 %v110
    %v298 = vunpack.c.l.b16 %v111
    %v299 = vunpack.c.l.b16 %v112
    %v300 = vunpack.c.l.b16 %v113
    %v301 = vunpack.c.l.b16 %v114
    %v302 = vunpack.c.l.b16 %v115
    %v303 = vunpack.c.l.b16 %v116
    %v304 = vpack.c.b16 %v289, %v288
    %v305 = vpack.c.b16 %v291, %v290
    %v306 = vpack.c.b16 %v293, %v292
    %v307 = vpack.c.b16 %v295, %v294
    %v308 = vpack.c.b16 %v297, %v296
    %v309 = vpack.c.b16 %v299, %v298
    %v310 = vpack.c.b16 %v301, %v300
    %v311 = vpack.c.b16 %v303, %v302
    %320 = vmatprep.subr.bf16.mxu0 0
    %321 = vmatpush1.bf16.msra.mxu0 %v304
    %322 = vmatprep.subr.bf16.mxu0 0
    %323 = vmatpush1.bf16.msra.mxu0 %v305
    %324 = vmatprep.subr.bf16.mxu0 0
    %325 = vmatpush1.bf16.msra.mxu0 %v306
    %326 = vmatprep.subr.bf16.mxu0 0
    %327 = vmatpush1.bf16.msra.mxu0 %v307
    %328 = vmatprep.subr.bf16.mxu0 0
    %329 = vmatpush1.bf16.msra.mxu0 %v308
    %330 = vmatprep.subr.bf16.mxu0 0
    %331 = vmatpush1.bf16.msra.mxu0 %v309
    %332 = vmatprep.subr.bf16.mxu0 0
    %333 = vmatpush1.bf16.msra.mxu0 %v310
    %334 = vmatprep.subr.bf16.mxu0 0
    %335 = vmatpush1.bf16.msra.mxu0 %v311
    %336 = vmatprep.subr.bf16.mxu0 0
    %337 = vmatpush1.bf16.msra.mxu0 0
    %338 = vmatprep.subr.bf16.mxu0 0
    %339 = vmatpush1.bf16.msra.mxu0 0
    %340 = vmatprep.subr.bf16.mxu0 0
    %341 = vmatpush1.bf16.msra.mxu0 0
    %342 = vmatprep.subr.bf16.mxu0 0
    %343 = vmatpush1.bf16.msra.mxu0 0
    %344 = vmatprep.subr.bf16.mxu0 0
    %345 = vmatpush1.bf16.msra.mxu0 0
    %346 = vmatprep.subr.bf16.mxu0 0
    %347 = vmatpush1.bf16.msra.mxu0 0
    %348 = vmatprep.subr.bf16.mxu0 0
    %349 = vmatpush1.bf16.msra.mxu0 0
    %350 = vmatprep.subr.bf16.mxu0 0
    %351 = vmatpush1.bf16.msra.mxu0 0
    %352 = vmatprep.mubr.bf16.mxu0 0
    %353 = vmatmul.mubr.bf16.gmra.mrb[0].mxu0 %v222
    %v354 = vpop.f32.mrb[0].mxu0
    %v355 = vadd.f32 %v122, %v354
    %v356 = vpop.f32.mrb[0].mxu0
    %v357 = vpop.f32.mrb[0].mxu0
    %v358 = vadd.f32 %v122, %v357
    %v359 = vpop.f32.mrb[0].mxu0
    %360 = vmatprep.mubr.bf16.mxu0 0
    %361 = vmatmul.mubr.bf16.gmra.mrb[0].mxu0 %v223
    %v362 = vpop.f32.mrb[0].mxu0
    %v363 = vadd.f32 %v122, %v362
    %v364 = vpop.f32.mrb[0].mxu0
    %v365 = vpop.f32.mrb[0].mxu0
    %v366 = vadd.f32 %v122, %v365
    %v367 = vpop.f32.mrb[0].mxu0
    %368 = vmatprep.mubr.bf16.mxu0 0
    %369 = vmatmul.mubr.bf16.gmra.mrb[0].mxu0 %v224
    %v370 = vpop.f32.mrb[0].mxu0
    %v371 = vadd.f32 %v122, %v370
    %v372 = vpop.f32.mrb[0].mxu0
    %v373 = vpop.f32.mrb[0].mxu0
    %v374 = vadd.f32 %v122, %v373
    %v375 = vpop.f32.mrb[0].mxu0
    %376 = vmatprep.mubr.bf16.mxu0 0
    %377 = vmatmul.mubr.bf16.gmra.mrb[0].mxu0 %v225
    %v378 = vpop.f32.mrb[0].mxu0
    %v379 = vadd.f32 %v122, %v378
    %v380 = vpop.f32.mrb[0].mxu0
    %v381 = vpop.f32.mrb[0].mxu0
    %v382 = vadd.f32 %v122, %v381
    %v383 = vpop.f32.mrb[0].mxu0
    %384 = vmatprep.mubr.bf16.mxu0 0
    %385 = vmatmul.mubr.bf16.gmra.mrb[0].mxu0 %v226
    %v386 = vpop.f32.mrb[0].mxu0
    %v387 = vadd.f32 %v122, %v386
    %v388 = vpop.f32.mrb[0].mxu0
    %v389 = vpop.f32.mrb[0].mxu0
    %v390 = vadd.f32 %v122, %v389
    %v391 = vpop.f32.mrb[0].mxu0
    %392 = vmatprep.mubr.bf16.mxu0 0
    %393 = vmatmul.mubr.bf16.gmra.mrb[0].mxu0 %v227
    %v394 = vpop.f32.mrb[0].mxu0
    %v395 = vadd.f32 %v122, %v394
    %v396 = vpop.f32.mrb[0].mxu0
    %v397 = vpop.f32.mrb[0].mxu0
    %v398 = vadd.f32 %v122, %v397
    %v399 = vpop.f32.mrb[0].mxu0
    %400 = vmatprep.mubr.bf16.mxu0 0
    %401 = vmatmul.mubr.bf16.gmra.mrb[0].mxu0 %v228
    %v402 = vpop.f32.mrb[0].mxu0
    %v403 = vadd.f32 %v122, %v402
    %v404 = vpop.f32.mrb[0].mxu0
    %v405 = vpop.f32.mrb[0].mxu0
    %v406 = vadd.f32 %v122, %v405
    %v407 = vpop.f32.mrb[0].mxu0
    %408 = vmatprep.mubr.bf16.mxu0 0
    %409 = vmatmul.mubr.bf16.gmra.mrb[0].mxu0 %v229
    %v410 = vpop.f32.mrb[0].mxu0
    %v411 = vadd.f32 %v122, %v410
    %v412 = vpop.f32.mrb[0].mxu0
    %v413 = vpop.f32.mrb[0].mxu0
    %v414 = vadd.f32 %v122, %v413
    %v415 = vpop.f32.mrb[0].mxu0
    %416 = vmatprep.mubr.bf16.mxu0 0
    %417 = vmatmul.mubr.bf16.gmra.mrb[0].mxu0 %v230
    %v418 = vpop.f32.mrb[0].mxu0
    %v419 = vadd.f32 %v122, %v418
    %v420 = vpop.f32.mrb[0].mxu0
    %v421 = vpop.f32.mrb[0].mxu0
    %v422 = vadd.f32 %v122, %v421
    %v423 = vpop.f32.mrb[0].mxu0
    %424 = vmatprep.mubr.bf16.mxu0 0
    %425 = vmatmul.mubr.bf16.gmra.mrb[0].mxu0 %v231
    %v426 = vpop.f32.mrb[0].mxu0
    %v427 = vadd.f32 %v122, %v426
    %v428 = vpop.f32.mrb[0].mxu0
    %v429 = vpop.f32.mrb[0].mxu0
    %v430 = vadd.f32 %v122, %v429
    %v431 = vpop.f32.mrb[0].mxu0
    %432 = vmatprep.mubr.bf16.mxu0 0
    %433 = vmatmul.mubr.bf16.gmra.mrb[0].mxu0 %v232
    %v434 = vpop.f32.mrb[0].mxu0
    %v435 = vadd.f32 %v122, %v434
    %v436 = vpop.f32.mrb[0].mxu0
    %v437 = vpop.f32.mrb[0].mxu0
    %v438 = vadd.f32 %v122, %v437
    %v439 = vpop.f32.mrb[0].mxu0
    %440 = vmatprep.mubr.bf16.mxu0 0
    %441 = vmatmul.mubr.bf16.gmra.mrb[0].mxu0 %v233
    %v442 = vpop.f32.mrb[0].mxu0
    %v443 = vadd.f32 %v122, %v442
    %v444 = vpop.f32.mrb[0].mxu0
    %v445 = vpop.f32.mrb[0].mxu0
    %v446 = vadd.f32 %v122, %v445
    %v447 = vpop.f32.mrb[0].mxu0
    %448 = vmatprep.mubr.bf16.mxu0 0
    %449 = vmatmul.mubr.bf16.gmra.mrb[0].mxu0 %v234
    %v450 = vpop.f32.mrb[0].mxu0
    %v451 = vadd.f32 %v122, %v450
    %v452 = vpop.f32.mrb[0].mxu0
    %v453 = vpop.f32.mrb[0].mxu0
    %v454 = vadd.f32 %v122, %v453
    %v455 = vpop.f32.mrb[0].mxu0
    %456 = vmatprep.mubr.bf16.mxu0 0
    %457 = vmatmul.mubr.bf16.gmra.mrb[0].mxu0 %v235
    %v458 = vpop.f32.mrb[0].mxu0
    %v459 = vadd.f32 %v122, %v458
    %v460 = vpop.f32.mrb[0].mxu0
    %v461 = vpop.f32.mrb[0].mxu0
    %v462 = vadd.f32 %v122, %v461
    %v463 = vpop.f32.mrb[0].mxu0
    %464 = vmatprep.mubr.bf16.mxu0 0
    %465 = vmatmul.mubr.bf16.gmra.mrb[0].mxu0 %v236
    %v466 = vpop.f32.mrb[0].mxu0
    %v467 = vadd.f32 %v122, %v466
    %v468 = vpop.f32.mrb[0].mxu0
    %v469 = vpop.f32.mrb[0].mxu0
    %v470 = vadd.f32 %v122, %v469
    %v471 = vpop.f32.mrb[0].mxu0
    %472 = vmatprep.mubr.bf16.mxu0 0
    %473 = vmatmul.mubr.bf16.gmra.mrb[0].mxu0 %v237
    %v474 = vpop.f32.mrb[0].mxu0
    %v475 = vadd.f32 %v122, %v474
    %v476 = vpop.f32.mrb[0].mxu0
    %v477 = vpop.f32.mrb[0].mxu0
    %v478 = vadd.f32 %v122, %v477
    %v479 = vpop.f32.mrb[0].mxu0
    %480 = vmatprep.mubr.bf16.mxu0 0
    %481 = vmatmul.mubr.bf16.gmra.mrb[0].mxu0 %v238
    %v482 = vpop.f32.mrb[0].mxu0
    %v483 = vadd.f32 %v122, %v482
    %v484 = vpop.f32.mrb[0].mxu0
    %v485 = vpop.f32.mrb[0].mxu0
    %v486 = vadd.f32 %v122, %v485
    %v487 = vpop.f32.mrb[0].mxu0
    %488 = vmatprep.mubr.bf16.mxu0 0
    %489 = vmatmul.mubr.bf16.gmra.mrb[0].mxu0 %v239
    %v490 = vpop.f32.mrb[0].mxu0
    %v491 = vadd.f32 %v122, %v490
    %v492 = vpop.f32.mrb[0].mxu0
    %v493 = vpop.f32.mrb[0].mxu0
    %v494 = vadd.f32 %v122, %v493
    %v495 = vpop.f32.mrb[0].mxu0
    %496 = vmatprep.mubr.bf16.mxu0 0
    %497 = vmatmul.mubr.bf16.gmra.mrb[0].mxu0 %v240
    %v498 = vpop.f32.mrb[0].mxu0
    %v499 = vadd.f32 %v122, %v498
    %v500 = vpop.f32.mrb[0].mxu0
    %v501 = vpop.f32.mrb[0].mxu0
    %v502 = vadd.f32 %v122, %v501
    %v503 = vpop.f32.mrb[0].mxu0
    %504 = vmatprep.mubr.bf16.mxu0 0
    %505 = vmatmul.mubr.bf16.gmra.mrb[0].mxu0 %v241
    %v506 = vpop.f32.mrb[0].mxu0
    %v507 = vadd.f32 %v122, %v506
    %v508 = vpop.f32.mrb[0].mxu0
    %v509 = vpop.f32.mrb[0].mxu0
    %v510 = vadd.f32 %v122, %v509
    %v511 = vpop.f32.mrb[0].mxu0
    %512 = vmatprep.mubr.bf16.mxu0 0
    %513 = vmatmul.mubr.bf16.gmra.mrb[0].mxu0 %v242
    %v514 = vpop.f32.mrb[0].mxu0
    %v515 = vadd.f32 %v122, %v514
    %v516 = vpop.f32.mrb[0].mxu0
    %v517 = vpop.f32.mrb[0].mxu0
    %v518 = vadd.f32 %v122, %v517
    %v519 = vpop.f32.mrb[0].mxu0
    %520 = vmatprep.mubr.bf16.mxu0 0
    %521 = vmatmul.mubr.bf16.gmra.mrb[0].mxu0 %v243
    %v522 = vpop.f32.mrb[0].mxu0
    %v523 = vadd.f32 %v122, %v522
    %v524 = vpop.f32.mrb[0].mxu0
    %v525 = vpop.f32.mrb[0].mxu0
    %v526 = vadd.f32 %v122, %v525
    %v527 = vpop.f32.mrb[0].mxu0
    %528 = vmatprep.mubr.bf16.mxu0 0
    %529 = vmatmul.mubr.bf16.gmra.mrb[0].mxu0 %v244
    %v530 = vpop.f32.mrb[0].mxu0
    %v531 = vadd.f32 %v122, %v530
    %v532 = vpop.f32.mrb[0].mxu0
    %v533 = vpop.f32.mrb[0].mxu0
    %v534 = vadd.f32 %v122, %v533
    %v535 = vpop.f32.mrb[0].mxu0
    %536 = vmatprep.mubr.bf16.mxu0 0
    %537 = vmatmul.mubr.bf16.gmra.mrb[0].mxu0 %v245
    %v538 = vpop.f32.mrb[0].mxu0
    %v539 = vadd.f32 %v122, %v538
    %v540 = vpop.f32.mrb[0].mxu0
    %v541 = vpop.f32.mrb[0].mxu0
    %v542 = vadd.f32 %v122, %v541
    %v543 = vpop.f32.mrb[0].mxu0
    %544 = vmatprep.mubr.bf16.mxu0 0
    %545 = vmatmul.mubr.bf16.gmra.mrb[0].mxu0 %v246
    %v546 = vpop.f32.mrb[0].mxu0
    %v547 = vadd.f32 %v122, %v546
    %v548 = vpop.f32.mrb[0].mxu0
    %v549 = vpop.f32.mrb[0].mxu0
    %v550 = vpop.f32.mrb[0].mxu0
    %551 = vdwg.mxu0
    %v552 = vld [vmem:[%s3] sm:$0x1]
    %v553 = vld [vmem:[%s4] sm:$0x1]
    %v554 = vadd.f32 %v355, %v358
    %v555 = vadd.f32 %v554, %v363
    %v556 = vadd.f32 %v555, %v366
    %v557 = vadd.f32 %v556, %v371
    %v558 = vadd.f32 %v557, %v374
    %v559 = vadd.f32 %v558, %v379
    %v560 = vadd.f32 %v559, %v382
    %v561 = vadd.f32 %v560, %v387
    %v562 = vadd.f32 %v561, %v390
    %v563 = vadd.f32 %v562, %v395
    %v564 = vadd.f32 %v563, %v398
    %v565 = vadd.f32 %v564, %v403
    %v566 = vadd.f32 %v565, %v406
    %v567 = vadd.f32 %v566, %v411
    %v568 = vadd.f32 %v567, %v414
    %v569 = vadd.f32 %v568, %v419
    %v570 = vadd.f32 %v569, %v422
    %v571 = vadd.f32 %v570, %v427
    %v572 = vadd.f32 %v571, %v430
    %v573 = vadd.f32 %v572, %v435
    %v574 = vadd.f32 %v573, %v438
    %v575 = vadd.f32 %v574, %v443
    %v576 = vadd.f32 %v575, %v446
    %v577 = vadd.f32 %v576, %v451
    %v578 = vadd.f32 %v577, %v454
    %v579 = vadd.f32 %v578, %v459
    %v580 = vadd.f32 %v579, %v462
    %v581 = vadd.f32 %v580, %v467
    %v582 = vadd.f32 %v581, %v470
    %v583 = vadd.f32 %v582, %v475
    %v584 = vadd.f32 %v583, %v478
    %v585 = vadd.f32 %v584, %v483
    %v586 = vadd.f32 %v585, %v486
    %v587 = vadd.f32 %v586, %v491
    %v588 = vadd.f32 %v587, %v494
    %v589 = vadd.f32 %v588, %v499
    %v590 = vadd.f32 %v589, %v502
    %v591 = vadd.f32 %v590, %v507
    %v592 = vadd.f32 %v591, %v510
    %v593 = vadd.f32 %v592, %v515
    %v594 = vadd.f32 %v593, %v518
    %v595 = vadd.f32 %v594, %v523
    %v596 = vadd.f32 %v595, %v526
    %v597 = vadd.f32 %v596, %v531
    %v598 = vadd.f32 %v597, %v534
    %v599 = vadd.f32 %v598, %v539
    %v600 = vadd.f32 %v599, %v542
    %v601 = vadd.f32 %v600, %v547
    %v602 = vrot.slane %v601, 4
    %v603 = vadd.f32 %v601, %v602
    %v604 = vrot.slane %v603, 2
    %v605 = vadd.f32 %v603, %v604
    %v606 = vrot.slane %v605, 1
    %v607 = vadd.f32 %v605, %v606
    %v608 = vmul.f32 %v607, 0.0025510204
    %v609 = vsub.f32 %v355, %v608
    %v610 = vsub.f32 %v358, %v608
    %v611 = vsub.f32 %v363, %v608
    %v612 = vsub.f32 %v366, %v608
    %v613 = vsub.f32 %v371, %v608
    %v614 = vsub.f32 %v374, %v608
    %v615 = vsub.f32 %v379, %v608
    %v616 = vsub.f32 %v382, %v608
    %v617 = vsub.f32 %v387, %v608
    %v618 = vsub.f32 %v390, %v608
    %v619 = vsub.f32 %v395, %v608
    %v620 = vsub.f32 %v398, %v608
    %v621 = vsub.f32 %v403, %v608
    %v622 = vsub.f32 %v406, %v608
    %v623 = vsub.f32 %v411, %v608
    %v624 = vsub.f32 %v414, %v608
    %v625 = vsub.f32 %v419, %v608
    %v626 = vsub.f32 %v422, %v608
    %v627 = vsub.f32 %v427, %v608
    %v628 = vsub.f32 %v430, %v608
    %v629 = vsub.f32 %v435, %v608
    %v630 = vsub.f32 %v438, %v608
    %v631 = vsub.f32 %v443, %v608
    %v632 = vsub.f32 %v446, %v608
    %v633 = vsub.f32 %v451, %v608
    %v634 = vsub.f32 %v454, %v608
    %v635 = vsub.f32 %v459, %v608
    %v636 = vsub.f32 %v462, %v608
    %v637 = vsub.f32 %v467, %v608
    %v638 = vsub.f32 %v470, %v608
    %v639 = vsub.f32 %v475, %v608
    %v640 = vsub.f32 %v478, %v608
    %v641 = vsub.f32 %v483, %v608
    %v642 = vsub.f32 %v486, %v608
    %v643 = vsub.f32 %v491, %v608
    %v644 = vsub.f32 %v494, %v608
    %v645 = vsub.f32 %v499, %v608
    %v646 = vsub.f32 %v502, %v608
    %v647 = vsub.f32 %v507, %v608
    %v648 = vsub.f32 %v510, %v608
    %v649 = vsub.f32 %v515, %v608
    %v650 = vsub.f32 %v518, %v608
    %v651 = vsub.f32 %v523, %v608
    %v652 = vsub.f32 %v526, %v608
    %v653 = vsub.f32 %v531, %v608
    %v654 = vsub.f32 %v534, %v608
    %v655 = vsub.f32 %v539, %v608
    %v656 = vsub.f32 %v542, %v608
    %v657 = vsub.f32 %v547, %v608
    %v658 = vmul.f32 %v609, %v609
    %v659 = vmul.f32 %v610, %v610
    %v660 = vmul.f32 %v611, %v611
    %v661 = vmul.f32 %v612, %v612
    %v662 = vmul.f32 %v613, %v613
    %v663 = vmul.f32 %v614, %v614
    %v664 = vmul.f32 %v615, %v615
    %v665 = vmul.f32 %v616, %v616
    %v666 = vmul.f32 %v617, %v617
    %v667 = vmul.f32 %v618, %v618
    %v668 = vmul.f32 %v619, %v619
    %v669 = vmul.f32 %v620, %v620
    %v670 = vmul.f32 %v621, %v621
    %v671 = vmul.f32 %v622, %v622
    %v672 = vmul.f32 %v623, %v623
    %v673 = vmul.f32 %v624, %v624
    %v674 = vmul.f32 %v625, %v625
    %v675 = vmul.f32 %v626, %v626
    %v676 = vmul.f32 %v627, %v627
    %v677 = vmul.f32 %v628, %v628
    %v678 = vmul.f32 %v629, %v629
    %v679 = vmul.f32 %v630, %v630
    %v680 = vmul.f32 %v631, %v631
    %v681 = vmul.f32 %v632, %v632
    %v682 = vmul.f32 %v633, %v633
    %v683 = vmul.f32 %v634, %v634
    %v684 = vmul.f32 %v635, %v635
    %v685 = vmul.f32 %v636, %v636
    %v686 = vmul.f32 %v637, %v637
    %v687 = vmul.f32 %v638, %v638
    %v688 = vmul.f32 %v639, %v639
    %v689 = vmul.f32 %v640, %v640
    %v690 = vmul.f32 %v641, %v641
    %v691 = vmul.f32 %v642, %v642
    %v692 = vmul.f32 %v643, %v643
    %v693 = vmul.f32 %v644, %v644
    %v694 = vmul.f32 %v645, %v645
    %v695 = vmul.f32 %v646, %v646
    %v696 = vmul.f32 %v647, %v647
    %v697 = vmul.f32 %v648, %v648
    %v698 = vmul.f32 %v649, %v649
    %v699 = vmul.f32 %v650, %v650
    %v700 = vmul.f32 %v651, %v651
    %v701 = vmul.f32 %v652, %v652
    %v702 = vmul.f32 %v653, %v653
    %v703 = vmul.f32 %v654, %v654
    %v704 = vmul.f32 %v655, %v655
    %v705 = vmul.f32 %v656, %v656
    %v706 = vmul.f32 %v657, %v657
    %v707 = vadd.f32 %v658, %v659
    %v708 = vadd.f32 %v707, %v660
    %v709 = vadd.f32 %v708, %v661
    %v710 = vadd.f32 %v709, %v662
    %v711 = vadd.f32 %v710, %v663
    %v712 = vadd.f32 %v711, %v664
    %v713 = vadd.f32 %v712, %v665
    %v714 = vadd.f32 %v713, %v666
    %v715 = vadd.f32 %v714, %v667
    %v716 = vadd.f32 %v715, %v668
    %v717 = vadd.f32 %v716, %v669
    %v718 = vadd.f32 %v717, %v670
    %v719 = vadd.f32 %v718, %v671
    %v720 = vadd.f32 %v719, %v672
    %v721 = vadd.f32 %v720, %v673
    %v722 = vadd.f32 %v721, %v674
    %v723 = vadd.f32 %v722, %v675
    %v724 = vadd.f32 %v723, %v676
    %v725 = vadd.f32 %v724, %v677
    %v726 = vadd.f32 %v725, %v678
    %v727 = vadd.f32 %v726, %v679
    %v728 = vadd.f32 %v727, %v680
    %v729 = vadd.f32 %v728, %v681
    %v730 = vadd.f32 %v729, %v682
    %v731 = vadd.f32 %v730, %v683
    %v732 = vadd.f32 %v731, %v684
    %v733 = vadd.f32 %v732, %v685
    %v734 = vadd.f32 %v733, %v686
    %v735 = vadd.f32 %v734, %v687
    %v736 = vadd.f32 %v735, %v688
    %v737 = vadd.f32 %v736, %v689
    %v738 = vadd.f32 %v737, %v690
    %v739 = vadd.f32 %v738, %v691
    %v740 = vadd.f32 %v739, %v692
    %v741 = vadd.f32 %v740, %v693
    %v742 = vadd.f32 %v741, %v694
    %v743 = vadd.f32 %v742, %v695
    %v744 = vadd.f32 %v743, %v696
    %v745 = vadd.f32 %v744, %v697
    %v746 = vadd.f32 %v745, %v698
    %v747 = vadd.f32 %v746, %v699
    %v748 = vadd.f32 %v747, %v700
    %v749 = vadd.f32 %v748, %v701
    %v750 = vadd.f32 %v749, %v702
    %v751 = vadd.f32 %v750, %v703
    %v752 = vadd.f32 %v751, %v704
    %v753 = vadd.f32 %v752, %v705
    %v754 = vadd.f32 %v753, %v706
    %v755 = vrot.slane %v754, 4
    %v756 = vadd.f32 %v754, %v755
    %v757 = vrot.slane %v756, 2
    %v758 = vadd.f32 %v756, %v757
    %v759 = vrot.slane %v758, 1
    %v760 = vadd.f32 %v758, %v759
    %v761 = vmul.f32 %v760, 0.0025510204
    %v762 = vadd.f32 %v761, 1e-05
    %v763 = vrsqrt.pop %v762
    %v764 = vmul.f32 %v609, %v763
    %v765 = vmul.f32 %v610, %v763
    %v766 = vmul.f32 %v611, %v763
    %v767 = vmul.f32 %v612, %v763
    %v768 = vmul.f32 %v613, %v763
    %v769 = vmul.f32 %v614, %v763
    %v770 = vmul.f32 %v615, %v763
    %v771 = vmul.f32 %v616, %v763
    %v772 = vmul.f32 %v617, %v763
    %v773 = vmul.f32 %v618, %v763
    %v774 = vmul.f32 %v619, %v763
    %v775 = vmul.f32 %v620, %v763
    %v776 = vmul.f32 %v621, %v763
    %v777 = vmul.f32 %v622, %v763
    %v778 = vmul.f32 %v623, %v763
    %v779 = vmul.f32 %v624, %v763
    %v780 = vmul.f32 %v625, %v763
    %v781 = vmul.f32 %v626, %v763
    %v782 = vmul.f32 %v627, %v763
    %v783 = vmul.f32 %v628, %v763
    %v784 = vmul.f32 %v629, %v763
    %v785 = vmul.f32 %v630, %v763
    %v786 = vmul.f32 %v631, %v763
    %v787 = vmul.f32 %v632, %v763
    %v788 = vmul.f32 %v633, %v763
    %v789 = vmul.f32 %v634, %v763
    %v790 = vmul.f32 %v635, %v763
    %v791 = vmul.f32 %v636, %v763
    %v792 = vmul.f32 %v637, %v763
    %v793 = vmul.f32 %v638, %v763
    %v794 = vmul.f32 %v639, %v763
    %v795 = vmul.f32 %v640, %v763
    %v796 = vmul.f32 %v641, %v763
    %v797 = vmul.f32 %v642, %v763
    %v798 = vmul.f32 %v643, %v763
    %v799 = vmul.f32 %v644, %v763
    %v800 = vmul.f32 %v645, %v763
    %v801 = vmul.f32 %v646, %v763
    %v802 = vmul.f32 %v647, %v763
    %v803 = vmul.f32 %v648, %v763
    %v804 = vmul.f32 %v649, %v763
    %v805 = vmul.f32 %v650, %v763
    %v806 = vmul.f32 %v651, %v763
    %v807 = vmul.f32 %v652, %v763
    %v808 = vmul.f32 %v653, %v763
    %v809 = vmul.f32 %v654, %v763
    %v810 = vmul.f32 %v655, %v763
    %v811 = vmul.f32 %v656, %v763
    %v812 = vmul.f32 %v657, %v763
    %v814 = vlaneseq
    %v815 = vshrl.u32 %v814, 7
    %v816 = vsub.s32 0, %v815
    %v817 = vrot.slane %v552, %v816
    %v819 = vmul.f32 %v764, %v817
    %v820 = vmul.f32 %v765, %v817
    %v821 = vmul.f32 %v766, %v817
    %v822 = vmul.f32 %v767, %v817
    %v823 = vmul.f32 %v768, %v817
    %v824 = vmul.f32 %v769, %v817
    %v825 = vmul.f32 %v770, %v817
    %v826 = vmul.f32 %v771, %v817
    %v827 = vmul.f32 %v772, %v817
    %v828 = vmul.f32 %v773, %v817
    %v829 = vmul.f32 %v774, %v817
    %v830 = vmul.f32 %v775, %v817
    %v831 = vmul.f32 %v776, %v817
    %v832 = vmul.f32 %v777, %v817
    %v833 = vmul.f32 %v778, %v817
    %v834 = vmul.f32 %v779, %v817
    %v835 = vmul.f32 %v780, %v817
    %v836 = vmul.f32 %v781, %v817
    %v837 = vmul.f32 %v782, %v817
    %v838 = vmul.f32 %v783, %v817
    %v839 = vmul.f32 %v784, %v817
    %v840 = vmul.f32 %v785, %v817
    %v841 = vmul.f32 %v786, %v817
    %v842 = vmul.f32 %v787, %v817
    %v843 = vmul.f32 %v788, %v817
    %v844 = vmul.f32 %v789, %v817
    %v845 = vmul.f32 %v790, %v817
    %v846 = vmul.f32 %v791, %v817
    %v847 = vmul.f32 %v792, %v817
    %v848 = vmul.f32 %v793, %v817
    %v849 = vmul.f32 %v794, %v817
    %v850 = vmul.f32 %v795, %v817
    %v851 = vmul.f32 %v796, %v817
    %v852 = vmul.f32 %v797, %v817
    %v853 = vmul.f32 %v798, %v817
    %v854 = vmul.f32 %v799, %v817
    %v855 = vmul.f32 %v800, %v817
    %v856 = vmul.f32 %v801, %v817
    %v857 = vmul.f32 %v802, %v817
    %v858 = vmul.f32 %v803, %v817
    %v859 = vmul.f32 %v804, %v817
    %v860 = vmul.f32 %v805, %v817
    %v861 = vmul.f32 %v806, %v817
    %v862 = vmul.f32 %v807, %v817
    %v863 = vmul.f32 %v808, %v817
    %v864 = vmul.f32 %v809, %v817
    %v865 = vmul.f32 %v810, %v817
    %v866 = vmul.f32 %v811, %v817
    %v867 = vmul.f32 %v812, %v817
    %v869 = vlaneseq
    %v870 = vshrl.u32 %v869, 7
    %v871 = vsub.s32 0, %v870
    %v872 = vrot.slane %v553, %v871
    %v874 = vadd.f32 %v819, %v872
    %v875 = vadd.f32 %v820, %v872
    %v876 = vadd.f32 %v821, %v872
    %v877 = vadd.f32 %v822, %v872
    %v878 = vadd.f32 %v823, %v872
    %v879 = vadd.f32 %v824, %v872
    %v880 = vadd.f32 %v825, %v872
    %v881 = vadd.f32 %v826, %v872
    %v882 = vadd.f32 %v827, %v872
    %v883 = vadd.f32 %v828, %v872
    %v884 = vadd.f32 %v829, %v872
    %v885 = vadd.f32 %v830, %v872
    %v886 = vadd.f32 %v831, %v872
    %v887 = vadd.f32 %v832, %v872
    %v888 = vadd.f32 %v833, %v872
    %v889 = vadd.f32 %v834, %v872
    %v890 = vadd.f32 %v835, %v872
    %v891 = vadd.f32 %v836, %v872
    %v892 = vadd.f32 %v837, %v872
    %v893 = vadd.f32 %v838, %v872
    %v894 = vadd.f32 %v839, %v872
    %v895 = vadd.f32 %v840, %v872
    %v896 = vadd.f32 %v841, %v872
    %v897 = vadd.f32 %v842, %v872
    %v898 = vadd.f32 %v843, %v872
    %v899 = vadd.f32 %v844, %v872
    %v900 = vadd.f32 %v845, %v872
    %v901 = vadd.f32 %v846, %v872
    %v902 = vadd.f32 %v847, %v872
    %v903 = vadd.f32 %v848, %v872
    %v904 = vadd.f32 %v849, %v872
    %v905 = vadd.f32 %v850, %v872
    %v906 = vadd.f32 %v851, %v872
    %v907 = vadd.f32 %v852, %v872
    %v908 = vadd.f32 %v853, %v872
    %v909 = vadd.f32 %v854, %v872
    %v910 = vadd.f32 %v855, %v872
    %v911 = vadd.f32 %v856, %v872
    %v912 = vadd.f32 %v857, %v872
    %v913 = vadd.f32 %v858, %v872
    %v914 = vadd.f32 %v859, %v872
    %v915 = vadd.f32 %v860, %v872
    %v916 = vadd.f32 %v861, %v872
    %v917 = vadd.f32 %v862, %v872
    %v918 = vadd.f32 %v863, %v872
    %v919 = vadd.f32 %v864, %v872
    %v920 = vadd.f32 %v865, %v872
    %v921 = vadd.f32 %v866, %v872
    %v922 = vadd.f32 %v867, %v872
    %v923 = vmax.f32 %v874, 0.0
    %v924 = vmax.f32 %v875, 0.0
    %v925 = vmax.f32 %v876, 0.0
    %v926 = vmax.f32 %v877, 0.0
    %v927 = vmax.f32 %v878, 0.0
    %v928 = vmax.f32 %v879, 0.0
    %v929 = vmax.f32 %v880, 0.0
    %v930 = vmax.f32 %v881, 0.0
    %v931 = vmax.f32 %v882, 0.0
    %v932 = vmax.f32 %v883, 0.0
    %v933 = vmax.f32 %v884, 0.0
    %v934 = vmax.f32 %v885, 0.0
    %v935 = vmax.f32 %v886, 0.0
    %v936 = vmax.f32 %v887, 0.0
    %v937 = vmax.f32 %v888, 0.0
    %v938 = vmax.f32 %v889, 0.0
    %v939 = vmax.f32 %v890, 0.0
    %v940 = vmax.f32 %v891, 0.0
    %v941 = vmax.f32 %v892, 0.0
    %v942 = vmax.f32 %v893, 0.0
    %v943 = vmax.f32 %v894, 0.0
    %v944 = vmax.f32 %v895, 0.0
    %v945 = vmax.f32 %v896, 0.0
    %v946 = vmax.f32 %v897, 0.0
    %v947 = vmax.f32 %v898, 0.0
    %v948 = vmax.f32 %v899, 0.0
    %v949 = vmax.f32 %v900, 0.0
    %v950 = vmax.f32 %v901, 0.0
    %v951 = vmax.f32 %v902, 0.0
    %v952 = vmax.f32 %v903, 0.0
    %v953 = vmax.f32 %v904, 0.0
    %v954 = vmax.f32 %v905, 0.0
    %v955 = vmax.f32 %v906, 0.0
    %v956 = vmax.f32 %v907, 0.0
    %v957 = vmax.f32 %v908, 0.0
    %v958 = vmax.f32 %v909, 0.0
    %v959 = vmax.f32 %v910, 0.0
    %v960 = vmax.f32 %v911, 0.0
    %v961 = vmax.f32 %v912, 0.0
    %v962 = vmax.f32 %v913, 0.0
    %v963 = vmax.f32 %v914, 0.0
    %v964 = vmax.f32 %v915, 0.0
    %v965 = vmax.f32 %v916, 0.0
    %v966 = vmax.f32 %v917, 0.0
    %v967 = vmax.f32 %v918, 0.0
    %v968 = vmax.f32 %v919, 0.0
    %v969 = vmax.f32 %v920, 0.0
    %v970 = vmax.f32 %v921, 0.0
    %v971 = vmax.f32 %v922, 0.0
    %972 = vst [vmem:[#allocation2] sm:$0xff] %v923
    %973 = vst [vmem:[#allocation2 + $0x8] sm:$0xff] %v924
    %974 = vst [vmem:[#allocation2 + $0x10] sm:$0xff] %v925
    %975 = vst [vmem:[#allocation2 + $0x18] sm:$0xff] %v926
    %976 = vst [vmem:[#allocation2 + $0x20] sm:$0xff] %v927
    %977 = vst [vmem:[#allocation2 + $0x28] sm:$0xff] %v928
    %978 = vst [vmem:[#allocation2 + $0x30] sm:$0xff] %v929
    %979 = vst [vmem:[#allocation2 + $0x38] sm:$0xff] %v930
    %980 = vst [vmem:[#allocation2 + $0x40] sm:$0xff] %v931
    %981 = vst [vmem:[#allocation2 + $0x48] sm:$0xff] %v932
    %982 = vst [vmem:[#allocation2 + $0x50] sm:$0xff] %v933
    %983 = vst [vmem:[#allocation2 + $0x58] sm:$0xff] %v934
    %984 = vst [vmem:[#allocation2 + $0x60] sm:$0xff] %v935
    %985 = vst [vmem:[#allocation2 + $0x68] sm:$0xff] %v936
    %986 = vst [vmem:[#allocation2 + $0x70] sm:$0xff] %v937
    %987 = vst [vmem:[#allocation2 + $0x78] sm:$0xff] %v938
    %988 = vst [vmem:[#allocation2 + $0x80] sm:$0xff] %v939
    %989 = vst [vmem:[#allocation2 + $0x88] sm:$0xff] %v940
    %990 = vst [vmem:[#allocation2 + $0x90] sm:$0xff] %v941
    %991 = vst [vmem:[#allocation2 + $0x98] sm:$0xff] %v942
    %992 = vst [vmem:[#allocation2 + $0xa0] sm:$0xff] %v943
    %993 = vst [vmem:[#allocation2 + $0xa8] sm:$0xff] %v944
    %994 = vst [vmem:[#allocation2 + $0xb0] sm:$0xff] %v945
    %995 = vst [vmem:[#allocation2 + $0xb8] sm:$0xff] %v946
    %996 = vst [vmem:[#allocation2 + $0xc0] sm:$0xff] %v947
    %997 = vst [vmem:[#allocation2 + $0xc8] sm:$0xff] %v948
    %998 = vst [vmem:[#allocation2 + $0xd0] sm:$0xff] %v949
    %999 = vst [vmem:[#allocation2 + $0xd8] sm:$0xff] %v950
    %1000 = vst [vmem:[#allocation2 + $0xe0] sm:$0xff] %v951
    %1001 = vst [vmem:[#allocation2 + $0xe8] sm:$0xff] %v952
    %1002 = vst [vmem:[#allocation2 + $0xf0] sm:$0xff] %v953
    %1003 = vst [vmem:[#allocation2 + $0xf8] sm:$0xff] %v954
    %1004 = vst [vmem:[#allocation2 + $0x100] sm:$0xff] %v955
    %1005 = vst [vmem:[#allocation2 + $0x108] sm:$0xff] %v956
    %1006 = vst [vmem:[#allocation2 + $0x110] sm:$0xff] %v957
    %1007 = vst [vmem:[#allocation2 + $0x118] sm:$0xff] %v958
    %1008 = vst [vmem:[#allocation2 + $0x120] sm:$0xff] %v959
    %1009 = vst [vmem:[#allocation2 + $0x128] sm:$0xff] %v960
    %1010 = vst [vmem:[#allocation2 + $0x130] sm:$0xff] %v961
    %1011 = vst [vmem:[#allocation2 + $0x138] sm:$0xff] %v962
    %1012 = vst [vmem:[#allocation2 + $0x140] sm:$0xff] %v963
    %1013 = vst [vmem:[#allocation2 + $0x148] sm:$0xff] %v964
    %1014 = vst [vmem:[#allocation2 + $0x150] sm:$0xff] %v965
    %1015 = vst [vmem:[#allocation2 + $0x158] sm:$0xff] %v966
    %1016 = vst [vmem:[#allocation2 + $0x160] sm:$0xff] %v967
    %1017 = vst [vmem:[#allocation2 + $0x168] sm:$0xff] %v968
    %1018 = vst [vmem:[#allocation2 + $0x170] sm:$0xff] %v969
    %1019 = vst [vmem:[#allocation2 + $0x178] sm:$0xff] %v970
    %1020 = vst [vmem:[#allocation2 + $0x180] sm:$0xff] %v971
    %v1021 = vld [vmem:[#allocation2] sm:$0xff]
    %v1022 = vld [vmem:[#allocation2 + $0x8] sm:$0x3]
    %1023 = vst [vmem:[#allocation3] sm:$0xff] %v1021
    %1024 = vst [vmem:[#allocation3 + $0xc8] sm:$0x3] %v1022
    %v1025 = vld [vmem:[#allocation2 + $0xe] sm:$0xff]
    %v1026 = vld [vmem:[#allocation2 + $0x16] sm:$0x3]
    %vm1029 = vcmask 1041408
    %v1030 = vrot.slane %v1025, 6
    %v1031 = vrot.slane %v1026, 6
    %v1032 = vsel %vm1029, %v1030, %v1031
    %1035 = vst [vmem:[#allocation3 + $0xc8] sm:$0xfc] %v1030
    %1036 = vst [vmem:[#allocation3 + $0x190] sm:$0xf] %v1032
    %v1037 = vld [vmem:[#allocation2 + $0x1c] sm:$0xff]
    %v1038 = vld [vmem:[#allocation2 + $0x24] sm:$0x3]
    %vm1041 = vcmask 1043456
    %v1042 = vrot.slane %v1037, 4
    %v1043 = vrot.slane %v1038, 4
    %v1044 = vsel %vm1041, %v1042, %v1043
    %1047 = vst [vmem:[#allocation3 + $0x190] sm:$0xf0] %v1042
    %1048 = vst [vmem:[#allocation3 + $0x258] sm:$0x3f] %v1044
    %v1049 = vld [vmem:[#allocation2 + $0x2a] sm:$0xff]
    %v1050 = vld [vmem:[#allocation2 + $0x32] sm:$0x3]
    %vm1053 = vcmask 1045504
    %v1054 = vrot.slane %v1049, 2
    %v1055 = vrot.slane %v1050, 2
    %v1056 = vsel %vm1053, %v1054, %v1055
    %1059 = vst [vmem:[#allocation3 + $0x258] sm:$0xc0] %v1054
    %1060 = vst [vmem:[#allocation3 + $0x320] sm:$0xff] %v1056
    %v1061 = vld [vmem:[#allocation2 + $0x38] sm:$0xff]
    %v1062 = vld [vmem:[#allocation2 + $0x40] sm:$0x3]
    %1063 = vst [vmem:[#allocation3 + $0x3e8] sm:$0xff] %v1061
    %1064 = vst [vmem:[#allocation3 + $0x4b0] sm:$0x3] %v1062
    %v1065 = vld [vmem:[#allocation2 + $0x62] sm:$0xff]
    %v1066 = vld [vmem:[#allocation2 + $0x6a] sm:$0x3]
    %1067 = vst [vmem:[#allocation3 + $0x8] sm:$0xff] %v1065
    %1068 = vst [vmem:[#allocation3 + $0xd0] sm:$0x3] %v1066
    %v1069 = vld [vmem:[#allocation2 + $0x70] sm:$0xff]
    %v1070 = vld [vmem:[#allocation2 + $0x78] sm:$0x3]
    %v1073 = vrot.slane %v1069, 6
    %v1074 = vrot.slane %v1070, 6
    %v1075 = vsel %vm1029, %v1073, %v1074
    %1078 = vst [vmem:[#allocation3 + $0xd0] sm:$0xfc] %v1073
    %1079 = vst [vmem:[#allocation3 + $0x198] sm:$0xf] %v1075
    %v1080 = vld [vmem:[#allocation2 + $0x7e] sm:$0xff]
    %v1081 = vld [vmem:[#allocation2 + $0x86] sm:$0x3]
    %v1084 = vrot.slane %v1080, 4
    %v1085 = vrot.slane %v1081, 4
    %v1086 = vsel %vm1041, %v1084, %v1085
    %1089 = vst [vmem:[#allocation3 + $0x198] sm:$0xf0] %v1084
    %1090 = vst [vmem:[#allocation3 + $0x260] sm:$0x3f] %v1086
    %v1091 = vld [vmem:[#allocation2 + $0x8c] sm:$0xff]
    %v1092 = vld [vmem:[#allocation2 + $0x94] sm:$0x3]
    %v1095 = vrot.slane %v1091, 2
    %v1096 = vrot.slane %v1092, 2
    %v1097 = vsel %vm1053, %v1095, %v1096
    %1100 = vst [vmem:[#allocation3 + $0x260] sm:$0xc0] %v1095
    %1101 = vst [vmem:[#allocation3 + $0x328] sm:$0xff] %v1097
    %v1102 = vld [vmem:[#allocation2 + $0x9a] sm:$0xff]
    %v1103 = vld [vmem:[#allocation2 + $0xa2] sm:$0x3]
    %1104 = vst [vmem:[#allocation3 + $0x3f0] sm:$0xff] %v1102
    %1105 = vst [vmem:[#allocation3 + $0x4b8] sm:$0x3] %v1103
    %v1106 = vld [vmem:[#allocation2 + $0x2] sm:$0xff]
    %v1107 = vld [vmem:[#allocation2 + $0xa] sm:$0x3]
    %1108 = vst [vmem:[#allocation3 + $0x10] sm:$0xff] %v1106
    %1109 = vst [vmem:[#allocation3 + $0xd8] sm:$0x3] %v1107
    %v1110 = vld [vmem:[#allocation2 + $0x10] sm:$0xff]
    %v1111 = vld [vmem:[#allocation2 + $0x18] sm:$0x3]
    %v1114 = vrot.slane %v1110, 6
    %v1115 = vrot.slane %v1111, 6
    %v1116 = vsel %vm1029, %v1114, %v1115
    %1119 = vst [vmem:[#allocation3 + $0xd8] sm:$0xfc] %v1114
    %1120 = vst [vmem:[#allocation3 + $0x1a0] sm:$0xf] %v1116
    %v1121 = vld [vmem:[#allocation2 + $0x1e] sm:$0xff]
    %v1122 = vld [vmem:[#allocation2 + $0x26] sm:$0x3]
    %v1125 = vrot.slane %v1121, 4
    %v1126 = vrot.slane %v1122, 4
    %v1127 = vsel %vm1041, %v1125, %v1126
    %1130 = vst [vmem:[#allocation3 + $0x1a0] sm:$0xf0] %v1125
    %1131 = vst [vmem:[#allocation3 + $0x268] sm:$0x3f] %v1127
    %v1132 = vld [vmem:[#allocation2 + $0x2c] sm:$0xff]
    %v1133 = vld [vmem:[#allocation2 + $0x34] sm:$0x3]
    %v1136 = vrot.slane %v1132, 2
    %v1137 = vrot.slane %v1133, 2
    %v1138 = vsel %vm1053, %v1136, %v1137
    %1141 = vst [vmem:[#allocation3 + $0x268] sm:$0xc0] %v1136
    %1142 = vst [vmem:[#allocation3 + $0x330] sm:$0xff] %v1138
    %v1143 = vld [vmem:[#allocation2 + $0x3a] sm:$0xff]
    %v1144 = vld [vmem:[#allocation2 + $0x42] sm:$0x3]
    %1145 = vst [vmem:[#allocation3 + $0x3f8] sm:$0xff] %v1143
    %1146 = vst [vmem:[#allocation3 + $0x4c0] sm:$0x3] %v1144
    %v1147 = vld [vmem:[#allocation2 + $0x64] sm:$0xff]
    %v1148 = vld [vmem:[#allocation2 + $0x6c] sm:$0x3]
    %1149 = vst [vmem:[#allocation3 + $0x18] sm:$0xff] %v1147
    %1150 = vst [vmem:[#allocation3 + $0xe0] sm:$0x3] %v1148
    %v1151 = vld [vmem:[#allocation2 + $0x72] sm:$0xff]
    %v1152 = vld [vmem:[#allocation2 + $0x7a] sm:$0x3]
    %v1155 = vrot.slane %v1151, 6
    %v1156 = vrot.slane %v1152, 6
    %v1157 = vsel %vm1029, %v1155, %v1156
    %1160 = vst [vmem:[#allocation3 + $0xe0] sm:$0xfc] %v1155
    %1161 = vst [vmem:[#allocation3 + $0x1a8] sm:$0xf] %v1157
    %v1162 = vld [vmem:[#allocation2 + $0x80] sm:$0xff]
    %v1163 = vld [vmem:[#allocation2 + $0x88] sm:$0x3]
    %v1166 = vrot.slane %v1162, 4
    %v1167 = vrot.slane %v1163, 4
    %v1168 = vsel %vm1041, %v1166, %v1167
    %1171 = vst [vmem:[#allocation3 + $0x1a8] sm:$0xf0] %v1166
    %1172 = vst [vmem:[#allocation3 + $0x270] sm:$0x3f] %v1168
    %v1173 = vld [vmem:[#allocation2 + $0x8e] sm:$0xff]
    %v1174 = vld [vmem:[#allocation2 + $0x96] sm:$0x3]
    %v1177 = vrot.slane %v1173, 2
    %v1178 = vrot.slane %v1174, 2
    %v1179 = vsel %vm1053, %v1177, %v1178
    %1182 = vst [vmem:[#allocation3 + $0x270] sm:$0xc0] %v1177
    %1183 = vst [vmem:[#allocation3 + $0x338] sm:$0xff] %v1179
    %v1184 = vld [vmem:[#allocation2 + $0x9c] sm:$0xff]
    %v1185 = vld [vmem:[#allocation2 + $0xa4] sm:$0x3]
    %1186 = vst [vmem:[#allocation3 + $0x400] sm:$0xff] %v1184
    %1187 = vst [vmem:[#allocation3 + $0x4c8] sm:$0x3] %v1185
    %v1188 = vld [vmem:[#allocation2 + $0x4] sm:$0xff]
    %v1189 = vld [vmem:[#allocation2 + $0xc] sm:$0x3]
    %1190 = vst [vmem:[#allocation3 + $0x20] sm:$0xff] %v1188
    %1191 = vst [vmem:[#allocation3 + $0xe8] sm:$0x3] %v1189
    %v1192 = vld [vmem:[#allocation2 + $0x12] sm:$0xff]
    %v1193 = vld [vmem:[#allocation2 + $0x1a] sm:$0x3]
    %v1196 = vrot.slane %v1192, 6
    %v1197 = vrot.slane %v1193, 6
    %v1198 = vsel %vm1029, %v1196, %v1197
    %1201 = vst [vmem:[#allocation3 + $0xe8] sm:$0xfc] %v1196
    %1202 = vst [vmem:[#allocation3 + $0x1b0] sm:$0xf] %v1198
    %v1203 = vld [vmem:[#allocation2 + $0x20] sm:$0xff]
    %v1204 = vld [vmem:[#allocation2 + $0x28] sm:$0x3]
    %v1207 = vrot.slane %v1203, 4
    %v1208 = vrot.slane %v1204, 4
    %v1209 = vsel %vm1041, %v1207, %v1208
    %1212 = vst [vmem:[#allocation3 + $0x1b0] sm:$0xf0] %v1207
    %1213 = vst [vmem:[#allocation3 + $0x278] sm:$0x3f] %v1209
    %v1214 = vld [vmem:[#allocation2 + $0x2e] sm:$0xff]
    %v1215 = vld [vmem:[#allocation2 + $0x36] sm:$0x3]
    %v1218 = vrot.slane %v1214, 2
    %v1219 = vrot.slane %v1215, 2
    %v1220 = vsel %vm1053, %v1218, %v1219
    %1223 = vst [vmem:[#allocation3 + $0x278] sm:$0xc0] %v1218
    %1224 = vst [vmem:[#allocation3 + $0x340] sm:$0xff] %v1220
    %v1225 = vld [vmem:[#allocation2 + $0x3c] sm:$0xff]
    %v1226 = vld [vmem:[#allocation2 + $0x44] sm:$0x3]
    %1227 = vst [vmem:[#allocation3 + $0x408] sm:$0xff] %v1225
    %1228 = vst [vmem:[#allocation3 + $0x4d0] sm:$0x3] %v1226
    %v1229 = vld [vmem:[#allocation2 + $0xc4] sm:$0xff]
    %v1230 = vld [vmem:[#allocation2 + $0xcc] sm:$0x3]
    %1231 = vst [vmem:[#allocation3 + $0x28] sm:$0xff] %v1229
    %1232 = vst [vmem:[#allocation3 + $0xf0] sm:$0x3] %v1230
    %v1233 = vld [vmem:[#allocation2 + $0xd2] sm:$0xff]
    %v1234 = vld [vmem:[#allocation2 + $0xda] sm:$0x3]
    %v1237 = vrot.slane %v1233, 6
    %v1238 = vrot.slane %v1234, 6
    %v1239 = vsel %vm1029, %v1237, %v1238
    %1242 = vst [vmem:[#allocation3 + $0xf0] sm:$0xfc] %v1237
    %1243 = vst [vmem:[#allocation3 + $0x1b8] sm:$0xf] %v1239
    %v1244 = vld [vmem:[#allocation2 + $0xe0] sm:$0xff]
    %v1245 = vld [vmem:[#allocation2 + $0xe8] sm:$0x3]
    %v1248 = vrot.slane %v1244, 4
    %v1249 = vrot.slane %v1245, 4
    %v1250 = vsel %vm1041, %v1248, %v1249
    %1253 = vst [vmem:[#allocation3 + $0x1b8] sm:$0xf0] %v1248
    %1254 = vst [vmem:[#allocation3 + $0x280] sm:$0x3f] %v1250
    %v1255 = vld [vmem:[#allocation2 + $0xee] sm:$0xff]
    %v1256 = vld [vmem:[#allocation2 + $0xf6] sm:$0x3]
    %v1259 = vrot.slane %v1255, 2
    %v1260 = vrot.slane %v1256, 2
    %v1261 = vsel %vm1053, %v1259, %v1260
    %1264 = vst [vmem:[#allocation3 + $0x280] sm:$0xc0] %v1259
    %1265 = vst [vmem:[#allocation3 + $0x348] sm:$0xff] %v1261
    %v1266 = vld [vmem:[#allocation2 + $0xfc] sm:$0xff]
    %v1267 = vld [vmem:[#allocation2 + $0x104] sm:$0x3]
    %1268 = vst [vmem:[#allocation3 + $0x410] sm:$0xff] %v1266
    %1269 = vst [vmem:[#allocation3 + $0x4d8] sm:$0x3] %v1267
    %v1270 = vld [vmem:[#allocation2 + $0x126] sm:$0xff]
    %v1271 = vld [vmem:[#allocation2 + $0x12e] sm:$0x3]
    %1272 = vst [vmem:[#allocation3 + $0x30] sm:$0xff] %v1270
    %1273 = vst [vmem:[#allocation3 + $0xf8] sm:$0x3] %v1271
    %v1274 = vld [vmem:[#allocation2 + $0x134] sm:$0xff]
    %v1275 = vld [vmem:[#allocation2 + $0x13c] sm:$0x3]
    %v1278 = vrot.slane %v1274, 6
    %v1279 = vrot.slane %v1275, 6
    %v1280 = vsel %vm1029, %v1278, %v1279
    %1283 = vst [vmem:[#allocation3 + $0xf8] sm:$0xfc] %v1278
    %1284 = vst [vmem:[#allocation3 + $0x1c0] sm:$0xf] %v1280
    %v1285 = vld [vmem:[#allocation2 + $0x142] sm:$0xff]
    %v1286 = vld [vmem:[#allocation2 + $0x14a] sm:$0x3]
    %v1289 = vrot.slane %v1285, 4
    %v1290 = vrot.slane %v1286, 4
    %v1291 = vsel %vm1041, %v1289, %v1290
    %1294 = vst [vmem:[#allocation3 + $0x1c0] sm:$0xf0] %v1289
    %1295 = vst [vmem:[#allocation3 + $0x288] sm:$0x3f] %v1291
    %v1296 = vld [vmem:[#allocation2 + $0x150] sm:$0xff]
    %v1297 = vld [vmem:[#allocation2 + $0x158] sm:$0x3]
    %v1300 = vrot.slane %v1296, 2
    %v1301 = vrot.slane %v1297, 2
    %v1302 = vsel %vm1053, %v1300, %v1301
    %1305 = vst [vmem:[#allocation3 + $0x288] sm:$0xc0] %v1300
    %1306 = vst [vmem:[#allocation3 + $0x350] sm:$0xff] %v1302
    %v1307 = vld [vmem:[#allocation2 + $0x15e] sm:$0xff]
    %v1308 = vld [vmem:[#allocation2 + $0x166] sm:$0x3]
    %1309 = vst [vmem:[#allocation3 + $0x418] sm:$0xff] %v1307
    %1310 = vst [vmem:[#allocation3 + $0x4e0] sm:$0x3] %v1308
    %v1311 = vld [vmem:[#allocation2 + $0xc6] sm:$0xff]
    %v1312 = vld [vmem:[#allocation2 + $0xce] sm:$0x3]
    %1313 = vst [vmem:[#allocation3 + $0x38] sm:$0xff] %v1311
    %1314 = vst [vmem:[#allocation3 + $0x100] sm:$0x3] %v1312
    %v1315 = vld [vmem:[#allocation2 + $0xd4] sm:$0xff]
    %v1316 = vld [vmem:[#allocation2 + $0xdc] sm:$0x3]
    %v1319 = vrot.slane %v1315, 6
    %v1320 = vrot.slane %v1316, 6
    %v1321 = vsel %vm1029, %v1319, %v1320
    %1324 = vst [vmem:[#allocation3 + $0x100] sm:$0xfc] %v1319
    %1325 = vst [vmem:[#allocation3 + $0x1c8] sm:$0xf] %v1321
    %v1326 = vld [vmem:[#allocation2 + $0xe2] sm:$0xff]
    %v1327 = vld [vmem:[#allocation2 + $0xea] sm:$0x3]
    %v1330 = vrot.slane %v1326, 4
    %v1331 = vrot.slane %v1327, 4
    %v1332 = vsel %vm1041, %v1330, %v1331
    %1335 = vst [vmem:[#allocation3 + $0x1c8] sm:$0xf0] %v1330
    %1336 = vst [vmem:[#allocation3 + $0x290] sm:$0x3f] %v1332
    %v1337 = vld [vmem:[#allocation2 + $0xf0] sm:$0xff]
    %v1338 = vld [vmem:[#allocation2 + $0xf8] sm:$0x3]
    %v1341 = vrot.slane %v1337, 2
    %v1342 = vrot.slane %v1338, 2
    %v1343 = vsel %vm1053, %v1341, %v1342
    %1346 = vst [vmem:[#allocation3 + $0x290] sm:$0xc0] %v1341
    %1347 = vst [vmem:[#allocation3 + $0x358] sm:$0xff] %v1343
    %v1348 = vld [vmem:[#allocation2 + $0xfe] sm:$0xff]
    %v1349 = vld [vmem:[#allocation2 + $0x106] sm:$0x3]
    %1350 = vst [vmem:[#allocation3 + $0x420] sm:$0xff] %v1348
    %1351 = vst [vmem:[#allocation3 + $0x4e8] sm:$0x3] %v1349
    %v1352 = vld [vmem:[#allocation2 + $0x128] sm:$0xff]
    %v1353 = vld [vmem:[#allocation2 + $0x130] sm:$0x3]
    %1354 = vst [vmem:[#allocation3 + $0x40] sm:$0xff] %v1352
    %1355 = vst [vmem:[#allocation3 + $0x108] sm:$0x3] %v1353
    %v1356 = vld [vmem:[#allocation2 + $0x136] sm:$0xff]
    %v1357 = vld [vmem:[#allocation2 + $0x13e] sm:$0x3]
    %v1360 = vrot.slane %v1356, 6
    %v1361 = vrot.slane %v1357, 6
    %v1362 = vsel %vm1029, %v1360, %v1361
    %1365 = vst [vmem:[#allocation3 + $0x108] sm:$0xfc] %v1360
    %1366 = vst [vmem:[#allocation3 + $0x1d0] sm:$0xf] %v1362
    %v1367 = vld [vmem:[#allocation2 + $0x144] sm:$0xff]
    %v1368 = vld [vmem:[#allocation2 + $0x14c] sm:$0x3]
    %v1371 = vrot.slane %v1367, 4
    %v1372 = vrot.slane %v1368, 4
    %v1373 = vsel %vm1041, %v1371, %v1372
    %1376 = vst [vmem:[#allocation3 + $0x1d0] sm:$0xf0] %v1371
    %1377 = vst [vmem:[#allocation3 + $0x298] sm:$0x3f] %v1373
    %v1378 = vld [vmem:[#allocation2 + $0x152] sm:$0xff]
    %v1379 = vld [vmem:[#allocation2 + $0x15a] sm:$0x3]
    %v1382 = vrot.slane %v1378, 2
    %v1383 = vrot.slane %v1379, 2
    %v1384 = vsel %vm1053, %v1382, %v1383
    %1387 = vst [vmem:[#allocation3 + $0x298] sm:$0xc0] %v1382
    %1388 = vst [vmem:[#allocation3 + $0x360] sm:$0xff] %v1384
    %v1389 = vld [vmem:[#allocation2 + $0x160] sm:$0xff]
    %v1390 = vld [vmem:[#allocation2 + $0x168] sm:$0x3]
    %1391 = vst [vmem:[#allocation3 + $0x428] sm:$0xff] %v1389
    %1392 = vst [vmem:[#allocation3 + $0x4f0] sm:$0x3] %v1390
    %v1393 = vld [vmem:[#allocation2 + $0xc8] sm:$0xff]
    %v1394 = vld [vmem:[#allocation2 + $0xd0] sm:$0x3]
    %1395 = vst [vmem:[#allocation3 + $0x48] sm:$0xff] %v1393
    %1396 = vst [vmem:[#allocation3 + $0x110] sm:$0x3] %v1394
    %v1397 = vld [vmem:[#allocation2 + $0xd6] sm:$0xff]
    %v1398 = vld [vmem:[#allocation2 + $0xde] sm:$0x3]
    %v1401 = vrot.slane %v1397, 6
    %v1402 = vrot.slane %v1398, 6
    %v1403 = vsel %vm1029, %v1401, %v1402
    %1406 = vst [vmem:[#allocation3 + $0x110] sm:$0xfc] %v1401
    %1407 = vst [vmem:[#allocation3 + $0x1d8] sm:$0xf] %v1403
    %v1408 = vld [vmem:[#allocation2 + $0xe4] sm:$0xff]
    %v1409 = vld [vmem:[#allocation2 + $0xec] sm:$0x3]
    %v1412 = vrot.slane %v1408, 4
    %v1413 = vrot.slane %v1409, 4
    %v1414 = vsel %vm1041, %v1412, %v1413
    %1417 = vst [vmem:[#allocation3 + $0x1d8] sm:$0xf0] %v1412
    %1418 = vst [vmem:[#allocation3 + $0x2a0] sm:$0x3f] %v1414
    %v1419 = vld [vmem:[#allocation2 + $0xf2] sm:$0xff]
    %v1420 = vld [vmem:[#allocation2 + $0xfa] sm:$0x3]
    %v1423 = vrot.slane %v1419, 2
    %v1424 = vrot.slane %v1420, 2
    %v1425 = vsel %vm1053, %v1423, %v1424
    %1428 = vst [vmem:[#allocation3 + $0x2a0] sm:$0xc0] %v1423
    %1429 = vst [vmem:[#allocation3 + $0x368] sm:$0xff] %v1425
    %v1430 = vld [vmem:[#allocation2 + $0x100] sm:$0xff]
    %v1431 = vld [vmem:[#allocation2 + $0x108] sm:$0x3]
    %1432 = vst [vmem:[#allocation3 + $0x430] sm:$0xff] %v1430
    %1433 = vst [vmem:[#allocation3 + $0x4f8] sm:$0x3] %v1431
    %v1434 = vld [vmem:[#allocation2 + $0xe] sm:$0xff]
    %v1435 = vld [vmem:[#allocation2 + $0x16] sm:$0x3]
    %1436 = vst [vmem:[#allocation3 + $0x50] sm:$0xff] %v1434
    %1437 = vst [vmem:[#allocation3 + $0x118] sm:$0x3] %v1435
    %v1438 = vld [vmem:[#allocation2 + $0x1c] sm:$0xff]
    %v1439 = vld [vmem:[#allocation2 + $0x24] sm:$0x3]
    %v1442 = vrot.slane %v1438, 6
    %v1443 = vrot.slane %v1439, 6
    %v1444 = vsel %vm1029, %v1442, %v1443
    %1447 = vst [vmem:[#allocation3 + $0x118] sm:$0xfc] %v1442
    %1448 = vst [vmem:[#allocation3 + $0x1e0] sm:$0xf] %v1444
    %v1449 = vld [vmem:[#allocation2 + $0x2a] sm:$0xff]
    %v1450 = vld [vmem:[#allocation2 + $0x32] sm:$0x3]
    %v1453 = vrot.slane %v1449, 4
    %v1454 = vrot.slane %v1450, 4
    %v1455 = vsel %vm1041, %v1453, %v1454
    %1458 = vst [vmem:[#allocation3 + $0x1e0] sm:$0xf0] %v1453
    %1459 = vst [vmem:[#allocation3 + $0x2a8] sm:$0x3f] %v1455
    %v1460 = vld [vmem:[#allocation2 + $0x38] sm:$0xff]
    %v1461 = vld [vmem:[#allocation2 + $0x40] sm:$0x3]
    %v1464 = vrot.slane %v1460, 2
    %v1465 = vrot.slane %v1461, 2
    %v1466 = vsel %vm1053, %v1464, %v1465
    %1469 = vst [vmem:[#allocation3 + $0x2a8] sm:$0xc0] %v1464
    %1470 = vst [vmem:[#allocation3 + $0x370] sm:$0xff] %v1466
    %v1471 = vld [vmem:[#allocation2 + $0x46] sm:$0xff]
    %v1472 = vld [vmem:[#allocation2 + $0x4e] sm:$0x3]
    %1473 = vst [vmem:[#allocation3 + $0x438] sm:$0xff] %v1471
    %1474 = vst [vmem:[#allocation3 + $0x500] sm:$0x3] %v1472
    %v1475 = vld [vmem:[#allocation2 + $0x70] sm:$0xff]
    %v1476 = vld [vmem:[#allocation2 + $0x78] sm:$0x3]
    %1477 = vst [vmem:[#allocation3 + $0x58] sm:$0xff] %v1475
    %1478 = vst [vmem:[#allocation3 + $0x120] sm:$0x3] %v1476
    %v1479 = vld [vmem:[#allocation2 + $0x7e] sm:$0xff]
    %v1480 = vld [vmem:[#allocation2 + $0x86] sm:$0x3]
    %v1483 = vrot.slane %v1479, 6
    %v1484 = vrot.slane %v1480, 6
    %v1485 = vsel %vm1029, %v1483, %v1484
    %1488 = vst [vmem:[#allocation3 + $0x120] sm:$0xfc] %v1483
    %1489 = vst [vmem:[#allocation3 + $0x1e8] sm:$0xf] %v1485
    %v1490 = vld [vmem:[#allocation2 + $0x8c] sm:$0xff]
    %v1491 = vld [vmem:[#allocation2 + $0x94] sm:$0x3]
    %v1494 = vrot.slane %v1490, 4
    %v1495 = vrot.slane %v1491, 4
    %v1496 = vsel %vm1041, %v1494, %v1495
    %1499 = vst [vmem:[#allocation3 + $0x1e8] sm:$0xf0] %v1494
    %1500 = vst [vmem:[#allocation3 + $0x2b0] sm:$0x3f] %v1496
    %v1501 = vld [vmem:[#allocation2 + $0x9a] sm:$0xff]
    %v1502 = vld [vmem:[#allocation2 + $0xa2] sm:$0x3]
    %v1505 = vrot.slane %v1501, 2
    %v1506 = vrot.slane %v1502, 2
    %v1507 = vsel %vm1053, %v1505, %v1506
    %1510 = vst [vmem:[#allocation3 + $0x2b0] sm:$0xc0] %v1505
    %1511 = vst [vmem:[#allocation3 + $0x378] sm:$0xff] %v1507
    %v1512 = vld [vmem:[#allocation2 + $0xa8] sm:$0xff]
    %v1513 = vld [vmem:[#allocation2 + $0xb0] sm:$0x3]
    %1514 = vst [vmem:[#allocation3 + $0x440] sm:$0xff] %v1512
    %1515 = vst [vmem:[#allocation3 + $0x508] sm:$0x3] %v1513
    %v1516 = vld [vmem:[#allocation2 + $0x10] sm:$0xff]
    %v1517 = vld [vmem:[#allocation2 + $0x18] sm:$0x3]
    %1518 = vst [vmem:[#allocation3 + $0x60] sm:$0xff] %v1516
    %1519 = vst [vmem:[#allocation3 + $0x128] sm:$0x3] %v1517
    %v1520 = vld [vmem:[#allocation2 + $0x1e] sm:$0xff]
    %v1521 = vld [vmem:[#allocation2 + $0x26] sm:$0x3]
    %v1524 = vrot.slane %v1520, 6
    %v1525 = vrot.slane %v1521, 6
    %v1526 = vsel %vm1029, %v1524, %v1525
    %1529 = vst [vmem:[#allocation3 + $0x128] sm:$0xfc] %v1524
    %1530 = vst [vmem:[#allocation3 + $0x1f0] sm:$0xf] %v1526
    %v1531 = vld [vmem:[#allocation2 + $0x2c] sm:$0xff]
    %v1532 = vld [vmem:[#allocation2 + $0x34] sm:$0x3]
    %v1535 = vrot.slane %v1531, 4
    %v1536 = vrot.slane %v1532, 4
    %v1537 = vsel %vm1041, %v1535, %v1536
    %1540 = vst [vmem:[#allocation3 + $0x1f0] sm:$0xf0] %v1535
    %1541 = vst [vmem:[#allocation3 + $0x2b8] sm:$0x3f] %v1537
    %v1542 = vld [vmem:[#allocation2 + $0x3a] sm:$0xff]
    %v1543 = vld [vmem:[#allocation2 + $0x42] sm:$0x3]
    %v1546 = vrot.slane %v1542, 2
    %v1547 = vrot.slane %v1543, 2
    %v1548 = vsel %vm1053, %v1546, %v1547
    %1551 = vst [vmem:[#allocation3 + $0x2b8] sm:$0xc0] %v1546
    %1552 = vst [vmem:[#allocation3 + $0x380] sm:$0xff] %v1548
    %v1553 = vld [vmem:[#allocation2 + $0x48] sm:$0xff]
    %v1554 = vld [vmem:[#allocation2 + $0x50] sm:$0x3]
    %1555 = vst [vmem:[#allocation3 + $0x448] sm:$0xff] %v1553
    %1556 = vst [vmem:[#allocation3 + $0x510] sm:$0x3] %v1554
    %v1557 = vld [vmem:[#allocation2 + $0x72] sm:$0xff]
    %v1558 = vld [vmem:[#allocation2 + $0x7a] sm:$0x3]
    %1559 = vst [vmem:[#allocation3 + $0x68] sm:$0xff] %v1557
    %1560 = vst [vmem:[#allocation3 + $0x130] sm:$0x3] %v1558
    %v1561 = vld [vmem:[#allocation2 + $0x80] sm:$0xff]
    %v1562 = vld [vmem:[#allocation2 + $0x88] sm:$0x3]
    %v1565 = vrot.slane %v1561, 6
    %v1566 = vrot.slane %v1562, 6
    %v1567 = vsel %vm1029, %v1565, %v1566
    %1570 = vst [vmem:[#allocation3 + $0x130] sm:$0xfc] %v1565
    %1571 = vst [vmem:[#allocation3 + $0x1f8] sm:$0xf] %v1567
    %v1572 = vld [vmem:[#allocation2 + $0x8e] sm:$0xff]
    %v1573 = vld [vmem:[#allocation2 + $0x96] sm:$0x3]
    %v1576 = vrot.slane %v1572, 4
    %v1577 = vrot.slane %v1573, 4
    %v1578 = vsel %vm1041, %v1576, %v1577
    %1581 = vst [vmem:[#allocation3 + $0x1f8] sm:$0xf0] %v1576
    %1582 = vst [vmem:[#allocation3 + $0x2c0] sm:$0x3f] %v1578
    %v1583 = vld [vmem:[#allocation2 + $0x9c] sm:$0xff]
    %v1584 = vld [vmem:[#allocation2 + $0xa4] sm:$0x3]
    %v1587 = vrot.slane %v1583, 2
    %v1588 = vrot.slane %v1584, 2
    %v1589 = vsel %vm1053, %v1587, %v1588
    %1592 = vst [vmem:[#allocation3 + $0x2c0] sm:$0xc0] %v1587
    %1593 = vst [vmem:[#allocation3 + $0x388] sm:$0xff] %v1589
    %v1594 = vld [vmem:[#allocation2 + $0xaa] sm:$0xff]
    %v1595 = vld [vmem:[#allocation2 + $0xb2] sm:$0x3]
    %1596 = vst [vmem:[#allocation3 + $0x450] sm:$0xff] %v1594
    %1597 = vst [vmem:[#allocation3 + $0x518] sm:$0x3] %v1595
    %v1598 = vld [vmem:[#allocation2 + $0x12] sm:$0xff]
    %v1599 = vld [vmem:[#allocation2 + $0x1a] sm:$0x3]
    %1600 = vst [vmem:[#allocation3 + $0x70] sm:$0xff] %v1598
    %1601 = vst [vmem:[#allocation3 + $0x138] sm:$0x3] %v1599
    %v1602 = vld [vmem:[#allocation2 + $0x20] sm:$0xff]
    %v1603 = vld [vmem:[#allocation2 + $0x28] sm:$0x3]
    %v1606 = vrot.slane %v1602, 6
    %v1607 = vrot.slane %v1603, 6
    %v1608 = vsel %vm1029, %v1606, %v1607
    %1611 = vst [vmem:[#allocation3 + $0x138] sm:$0xfc] %v1606
    %1612 = vst [vmem:[#allocation3 + $0x200] sm:$0xf] %v1608
    %v1613 = vld [vmem:[#allocation2 + $0x2e] sm:$0xff]
    %v1614 = vld [vmem:[#allocation2 + $0x36] sm:$0x3]
    %v1617 = vrot.slane %v1613, 4
    %v1618 = vrot.slane %v1614, 4
    %v1619 = vsel %vm1041, %v1617, %v1618
    %1622 = vst [vmem:[#allocation3 + $0x200] sm:$0xf0] %v1617
    %1623 = vst [vmem:[#allocation3 + $0x2c8] sm:$0x3f] %v1619
    %v1624 = vld [vmem:[#allocation2 + $0x3c] sm:$0xff]
    %v1625 = vld [vmem:[#allocation2 + $0x44] sm:$0x3]
    %v1628 = vrot.slane %v1624, 2
    %v1629 = vrot.slane %v1625, 2
    %v1630 = vsel %vm1053, %v1628, %v1629
    %1633 = vst [vmem:[#allocation3 + $0x2c8] sm:$0xc0] %v1628
    %1634 = vst [vmem:[#allocation3 + $0x390] sm:$0xff] %v1630
    %v1635 = vld [vmem:[#allocation2 + $0x4a] sm:$0xff]
    %v1636 = vld [vmem:[#allocation2 + $0x52] sm:$0x3]
    %1637 = vst [vmem:[#allocation3 + $0x458] sm:$0xff] %v1635
    %1638 = vst [vmem:[#allocation3 + $0x520] sm:$0x3] %v1636
    %v1639 = vld [vmem:[#allocation2 + $0xd2] sm:$0xff]
    %v1640 = vld [vmem:[#allocation2 + $0xda] sm:$0x3]
    %1641 = vst [vmem:[#allocation3 + $0x78] sm:$0xff] %v1639
    %1642 = vst [vmem:[#allocation3 + $0x140] sm:$0x3] %v1640
    %v1643 = vld [vmem:[#allocation2 + $0xe0] sm:$0xff]
    %v1644 = vld [vmem:[#allocation2 + $0xe8] sm:$0x3]
    %v1647 = vrot.slane %v1643, 6
    %v1648 = vrot.slane %v1644, 6
    %v1649 = vsel %vm1029, %v1647, %v1648
    %1652 = vst [vmem:[#allocation3 + $0x140] sm:$0xfc] %v1647
    %1653 = vst [vmem:[#allocation3 + $0x208] sm:$0xf] %v1649
    %v1654 = vld [vmem:[#allocation2 + $0xee] sm:$0xff]
    %v1655 = vld [vmem:[#allocation2 + $0xf6] sm:$0x3]
    %v1658 = vrot.slane %v1654, 4
    %v1659 = vrot.slane %v1655, 4
    %v1660 = vsel %vm1041, %v1658, %v1659
    %1663 = vst [vmem:[#allocation3 + $0x208] sm:$0xf0] %v1658
    %1664 = vst [vmem:[#allocation3 + $0x2d0] sm:$0x3f] %v1660
    %v1665 = vld [vmem:[#allocation2 + $0xfc] sm:$0xff]
    %v1666 = vld [vmem:[#allocation2 + $0x104] sm:$0x3]
    %v1669 = vrot.slane %v1665, 2
    %v1670 = vrot.slane %v1666, 2
    %v1671 = vsel %vm1053, %v1669, %v1670
    %1674 = vst [vmem:[#allocation3 + $0x2d0] sm:$0xc0] %v1669
    %1675 = vst [vmem:[#allocation3 + $0x398] sm:$0xff] %v1671
    %v1676 = vld [vmem:[#allocation2 + $0x10a] sm:$0xff]
    %v1677 = vld [vmem:[#allocation2 + $0x112] sm:$0x3]
    %1678 = vst [vmem:[#allocation3 + $0x460] sm:$0xff] %v1676
    %1679 = vst [vmem:[#allocation3 + $0x528] sm:$0x3] %v1677
    %v1680 = vld [vmem:[#allocation2 + $0x134] sm:$0xff]
    %v1681 = vld [vmem:[#allocation2 + $0x13c] sm:$0x3]
    %1682 = vst [vmem:[#allocation3 + $0x80] sm:$0xff] %v1680
    %1683 = vst [vmem:[#allocation3 + $0x148] sm:$0x3] %v1681
    %v1684 = vld [vmem:[#allocation2 + $0x142] sm:$0xff]
    %v1685 = vld [vmem:[#allocation2 + $0x14a] sm:$0x3]
    %v1688 = vrot.slane %v1684, 6
    %v1689 = vrot.slane %v1685, 6
    %v1690 = vsel %vm1029, %v1688, %v1689
    %1693 = vst [vmem:[#allocation3 + $0x148] sm:$0xfc] %v1688
    %1694 = vst [vmem:[#allocation3 + $0x210] sm:$0xf] %v1690
    %v1695 = vld [vmem:[#allocation2 + $0x150] sm:$0xff]
    %v1696 = vld [vmem:[#allocation2 + $0x158] sm:$0x3]
    %v1699 = vrot.slane %v1695, 4
    %v1700 = vrot.slane %v1696, 4
    %v1701 = vsel %vm1041, %v1699, %v1700
    %1704 = vst [vmem:[#allocation3 + $0x210] sm:$0xf0] %v1699
    %1705 = vst [vmem:[#allocation3 + $0x2d8] sm:$0x3f] %v1701
    %v1706 = vld [vmem:[#allocation2 + $0x15e] sm:$0xff]
    %v1707 = vld [vmem:[#allocation2 + $0x166] sm:$0x3]
    %v1710 = vrot.slane %v1706, 2
    %v1711 = vrot.slane %v1707, 2
    %v1712 = vsel %vm1053, %v1710, %v1711
    %1715 = vst [vmem:[#allocation3 + $0x2d8] sm:$0xc0] %v1710
    %1716 = vst [vmem:[#allocation3 + $0x3a0] sm:$0xff] %v1712
    %v1717 = vld [vmem:[#allocation2 + $0x16c] sm:$0xff]
    %v1718 = vld [vmem:[#allocation2 + $0x174] sm:$0x3]
    %1719 = vst [vmem:[#allocation3 + $0x468] sm:$0xff] %v1717
    %1720 = vst [vmem:[#allocation3 + $0x530] sm:$0x3] %v1718
    %v1721 = vld [vmem:[#allocation2 + $0xd4] sm:$0xff]
    %v1722 = vld [vmem:[#allocation2 + $0xdc] sm:$0x3]
    %1723 = vst [vmem:[#allocation3 + $0x88] sm:$0xff] %v1721
    %1724 = vst [vmem:[#allocation3 + $0x150] sm:$0x3] %v1722
    %v1725 = vld [vmem:[#allocation2 + $0xe2] sm:$0xff]
    %v1726 = vld [vmem:[#allocation2 + $0xea] sm:$0x3]
    %v1729 = vrot.slane %v1725, 6
    %v1730 = vrot.slane %v1726, 6
    %v1731 = vsel %vm1029, %v1729, %v1730
    %1734 = vst [vmem:[#allocation3 + $0x150] sm:$0xfc] %v1729
    %1735 = vst [vmem:[#allocation3 + $0x218] sm:$0xf] %v1731
    %v1736 = vld [vmem:[#allocation2 + $0xf0] sm:$0xff]
    %v1737 = vld [vmem:[#allocation2 + $0xf8] sm:$0x3]
    %v1740 = vrot.slane %v1736, 4
    %v1741 = vrot.slane %v1737, 4
    %v1742 = vsel %vm1041, %v1740, %v1741
    %1745 = vst [vmem:[#allocation3 + $0x218] sm:$0xf0] %v1740
    %1746 = vst [vmem:[#allocation3 + $0x2e0] sm:$0x3f] %v1742
    %v1747 = vld [vmem:[#allocation2 + $0xfe] sm:$0xff]
    %v1748 = vld [vmem:[#allocation2 + $0x106] sm:$0x3]
    %v1751 = vrot.slane %v1747, 2
    %v1752 = vrot.slane %v1748, 2
    %v1753 = vsel %vm1053, %v1751, %v1752
    %1756 = vst [vmem:[#allocation3 + $0x2e0] sm:$0xc0] %v1751
    %1757 = vst [vmem:[#allocation3 + $0x3a8] sm:$0xff] %v1753
    %v1758 = vld [vmem:[#allocation2 + $0x10c] sm:$0xff]
    %v1759 = vld [vmem:[#allocation2 + $0x114] sm:$0x3]
    %1760 = vst [vmem:[#allocation3 + $0x470] sm:$0xff] %v1758
    %1761 = vst [vmem:[#allocation3 + $0x538] sm:$0x3] %v1759
    %v1762 = vld [vmem:[#allocation2 + $0x136] sm:$0xff]
    %v1763 = vld [vmem:[#allocation2 + $0x13e] sm:$0x3]
    %1764 = vst [vmem:[#allocation3 + $0x90] sm:$0xff] %v1762
    %1765 = vst [vmem:[#allocation3 + $0x158] sm:$0x3] %v1763
    %v1766 = vld [vmem:[#allocation2 + $0x144] sm:$0xff]
    %v1767 = vld [vmem:[#allocation2 + $0x14c] sm:$0x3]
    %v1770 = vrot.slane %v1766, 6
    %v1771 = vrot.slane %v1767, 6
    %v1772 = vsel %vm1029, %v1770, %v1771
    %1775 = vst [vmem:[#allocation3 + $0x158] sm:$0xfc] %v1770
    %1776 = vst [vmem:[#allocation3 + $0x220] sm:$0xf] %v1772
    %v1777 = vld [vmem:[#allocation2 + $0x152] sm:$0xff]
    %v1778 = vld [vmem:[#allocation2 + $0x15a] sm:$0x3]
    %v1781 = vrot.slane %v1777, 4
    %v1782 = vrot.slane %v1778, 4
    %v1783 = vsel %vm1041, %v1781, %v1782
    %1786 = vst [vmem:[#allocation3 + $0x220] sm:$0xf0] %v1781
    %1787 = vst [vmem:[#allocation3 + $0x2e8] sm:$0x3f] %v1783
    %v1788 = vld [vmem:[#allocation2 + $0x160] sm:$0xff]
    %v1789 = vld [vmem:[#allocation2 + $0x168] sm:$0x3]
    %v1792 = vrot.slane %v1788, 2
    %v1793 = vrot.slane %v1789, 2
    %v1794 = vsel %vm1053, %v1792, %v1793
    %1797 = vst [vmem:[#allocation3 + $0x2e8] sm:$0xc0] %v1792
    %1798 = vst [vmem:[#allocation3 + $0x3b0] sm:$0xff] %v1794
    %v1799 = vld [vmem:[#allocation2 + $0x16e] sm:$0xff]
    %v1800 = vld [vmem:[#allocation2 + $0x176] sm:$0x3]
    %1801 = vst [vmem:[#allocation3 + $0x478] sm:$0xff] %v1799
    %1802 = vst [vmem:[#allocation3 + $0x540] sm:$0x3] %v1800
    %v1803 = vld [vmem:[#allocation2 + $0xd6] sm:$0xff]
    %v1804 = vld [vmem:[#allocation2 + $0xde] sm:$0x3]
    %1805 = vst [vmem:[#allocation3 + $0x98] sm:$0xff] %v1803
    %1806 = vst [vmem:[#allocation3 + $0x160] sm:$0x3] %v1804
    %v1807 = vld [vmem:[#allocation2 + $0xe4] sm:$0xff]
    %v1808 = vld [vmem:[#allocation2 + $0xec] sm:$0x3]
    %v1811 = vrot.slane %v1807, 6
    %v1812 = vrot.slane %v1808, 6
    %v1813 = vsel %vm1029, %v1811, %v1812
    %1816 = vst [vmem:[#allocation3 + $0x160] sm:$0xfc] %v1811
    %1817 = vst [vmem:[#allocation3 + $0x228] sm:$0xf] %v1813
    %v1818 = vld [vmem:[#allocation2 + $0xf2] sm:$0xff]
    %v1819 = vld [vmem:[#allocation2 + $0xfa] sm:$0x3]
    %v1822 = vrot.slane %v1818, 4
    %v1823 = vrot.slane %v1819, 4
    %v1824 = vsel %vm1041, %v1822, %v1823
    %1827 = vst [vmem:[#allocation3 + $0x228] sm:$0xf0] %v1822
    %1828 = vst [vmem:[#allocation3 + $0x2f0] sm:$0x3f] %v1824
    %v1829 = vld [vmem:[#allocation2 + $0x100] sm:$0xff]
    %v1830 = vld [vmem:[#allocation2 + $0x108] sm:$0x3]
    %v1833 = vrot.slane %v1829, 2
    %v1834 = vrot.slane %v1830, 2
    %v1835 = vsel %vm1053, %v1833, %v1834
    %1838 = vst [vmem:[#allocation3 + $0x2f0] sm:$0xc0] %v1833
    %1839 = vst [vmem:[#allocation3 + $0x3b8] sm:$0xff] %v1835
    %v1840 = vld [vmem:[#allocation2 + $0x10e] sm:$0xff]
    %v1841 = vld [vmem:[#allocation2 + $0x116] sm:$0x3]
    %1842 = vst [vmem:[#allocation3 + $0x480] sm:$0xff] %v1840
    %1843 = vst [vmem:[#allocation3 + $0x548] sm:$0x3] %v1841
    %v1844 = vld [vmem:[#allocation2 + $0x1c] sm:$0xff]
    %v1845 = vld [vmem:[#allocation2 + $0x24] sm:$0x3]
    %1846 = vst [vmem:[#allocation3 + $0xa0] sm:$0xff] %v1844
    %1847 = vst [vmem:[#allocation3 + $0x168] sm:$0x3] %v1845
    %v1848 = vld [vmem:[#allocation2 + $0x2a] sm:$0xff]
    %v1849 = vld [vmem:[#allocation2 + $0x32] sm:$0x3]
    %v1852 = vrot.slane %v1848, 6
    %v1853 = vrot.slane %v1849, 6
    %v1854 = vsel %vm1029, %v1852, %v1853
    %1857 = vst [vmem:[#allocation3 + $0x168] sm:$0xfc] %v1852
    %1858 = vst [vmem:[#allocation3 + $0x230] sm:$0xf] %v1854
    %v1859 = vld [vmem:[#allocation2 + $0x38] sm:$0xff]
    %v1860 = vld [vmem:[#allocation2 + $0x40] sm:$0x3]
    %v1863 = vrot.slane %v1859, 4
    %v1864 = vrot.slane %v1860, 4
    %v1865 = vsel %vm1041, %v1863, %v1864
    %1868 = vst [vmem:[#allocation3 + $0x230] sm:$0xf0] %v1863
    %1869 = vst [vmem:[#allocation3 + $0x2f8] sm:$0x3f] %v1865
    %v1870 = vld [vmem:[#allocation2 + $0x46] sm:$0xff]
    %v1871 = vld [vmem:[#allocation2 + $0x4e] sm:$0x3]
    %v1874 = vrot.slane %v1870, 2
    %v1875 = vrot.slane %v1871, 2
    %v1876 = vsel %vm1053, %v1874, %v1875
    %1879 = vst [vmem:[#allocation3 + $0x2f8] sm:$0xc0] %v1874
    %1880 = vst [vmem:[#allocation3 + $0x3c0] sm:$0xff] %v1876
    %v1881 = vld [vmem:[#allocation2 + $0x54] sm:$0xff]
    %v1882 = vld [vmem:[#allocation2 + $0x5c] sm:$0x3]
    %1883 = vst [vmem:[#allocation3 + $0x488] sm:$0xff] %v1881
    %1884 = vst [vmem:[#allocation3 + $0x550] sm:$0x3] %v1882
    %v1885 = vld [vmem:[#allocation2 + $0x7e] sm:$0xff]
    %v1886 = vld [vmem:[#allocation2 + $0x86] sm:$0x3]
    %1887 = vst [vmem:[#allocation3 + $0xa8] sm:$0xff] %v1885
    %1888 = vst [vmem:[#allocation3 + $0x170] sm:$0x3] %v1886
    %v1889 = vld [vmem:[#allocation2 + $0x8c] sm:$0xff]
    %v1890 = vld [vmem:[#allocation2 + $0x94] sm:$0x3]
    %v1893 = vrot.slane %v1889, 6
    %v1894 = vrot.slane %v1890, 6
    %v1895 = vsel %vm1029, %v1893, %v1894
    %1898 = vst [vmem:[#allocation3 + $0x170] sm:$0xfc] %v1893
    %1899 = vst [vmem:[#allocation3 + $0x238] sm:$0xf] %v1895
    %v1900 = vld [vmem:[#allocation2 + $0x9a] sm:$0xff]
    %v1901 = vld [vmem:[#allocation2 + $0xa2] sm:$0x3]
    %v1904 = vrot.slane %v1900, 4
    %v1905 = vrot.slane %v1901, 4
    %v1906 = vsel %vm1041, %v1904, %v1905
    %1909 = vst [vmem:[#allocation3 + $0x238] sm:$0xf0] %v1904
    %1910 = vst [vmem:[#allocation3 + $0x300] sm:$0x3f] %v1906
    %v1911 = vld [vmem:[#allocation2 + $0xa8] sm:$0xff]
    %v1912 = vld [vmem:[#allocation2 + $0xb0] sm:$0x3]
    %v1915 = vrot.slane %v1911, 2
    %v1916 = vrot.slane %v1912, 2
    %v1917 = vsel %vm1053, %v1915, %v1916
    %1920 = vst [vmem:[#allocation3 + $0x300] sm:$0xc0] %v1915
    %1921 = vst [vmem:[#allocation3 + $0x3c8] sm:$0xff] %v1917
    %v1922 = vld [vmem:[#allocation2 + $0xb6] sm:$0xff]
    %v1923 = vld [vmem:[#allocation2 + $0xbe] sm:$0x3]
    %1924 = vst [vmem:[#allocation3 + $0x490] sm:$0xff] %v1922
    %1925 = vst [vmem:[#allocation3 + $0x558] sm:$0x3] %v1923
    %v1926 = vld [vmem:[#allocation2 + $0x1e] sm:$0xff]
    %v1927 = vld [vmem:[#allocation2 + $0x26] sm:$0x3]
    %1928 = vst [vmem:[#allocation3 + $0xb0] sm:$0xff] %v1926
    %1929 = vst [vmem:[#allocation3 + $0x178] sm:$0x3] %v1927
    %v1930 = vld [vmem:[#allocation2 + $0x2c] sm:$0xff]
    %v1931 = vld [vmem:[#allocation2 + $0x34] sm:$0x3]
    %v1934 = vrot.slane %v1930, 6
    %v1935 = vrot.slane %v1931, 6
    %v1936 = vsel %vm1029, %v1934, %v1935
    %1939 = vst [vmem:[#allocation3 + $0x178] sm:$0xfc] %v1934
    %1940 = vst [vmem:[#allocation3 + $0x240] sm:$0xf] %v1936
    %v1941 = vld [vmem:[#allocation2 + $0x3a] sm:$0xff]
    %v1942 = vld [vmem:[#allocation2 + $0x42] sm:$0x3]
    %v1945 = vrot.slane %v1941, 4
    %v1946 = vrot.slane %v1942, 4
    %v1947 = vsel %vm1041, %v1945, %v1946
    %1950 = vst [vmem:[#allocation3 + $0x240] sm:$0xf0] %v1945
    %1951 = vst [vmem:[#allocation3 + $0x308] sm:$0x3f] %v1947
    %v1952 = vld [vmem:[#allocation2 + $0x48] sm:$0xff]
    %v1953 = vld [vmem:[#allocation2 + $0x50] sm:$0x3]
    %v1956 = vrot.slane %v1952, 2
    %v1957 = vrot.slane %v1953, 2
    %v1958 = vsel %vm1053, %v1956, %v1957
    %1961 = vst [vmem:[#allocation3 + $0x308] sm:$0xc0] %v1956
    %1962 = vst [vmem:[#allocation3 + $0x3d0] sm:$0xff] %v1958
    %v1963 = vld [vmem:[#allocation2 + $0x56] sm:$0xff]
    %v1964 = vld [vmem:[#allocation2 + $0x5e] sm:$0x3]
    %1965 = vst [vmem:[#allocation3 + $0x498] sm:$0xff] %v1963
    %1966 = vst [vmem:[#allocation3 + $0x560] sm:$0x3] %v1964
    %v1967 = vld [vmem:[#allocation2 + $0x80] sm:$0xff]
    %v1968 = vld [vmem:[#allocation2 + $0x88] sm:$0x3]
    %1969 = vst [vmem:[#allocation3 + $0xb8] sm:$0xff] %v1967
    %1970 = vst [vmem:[#allocation3 + $0x180] sm:$0x3] %v1968
    %v1971 = vld [vmem:[#allocation2 + $0x8e] sm:$0xff]
    %v1972 = vld [vmem:[#allocation2 + $0x96] sm:$0x3]
    %v1975 = vrot.slane %v1971, 6
    %v1976 = vrot.slane %v1972, 6
    %v1977 = vsel %vm1029, %v1975, %v1976
    %1980 = vst [vmem:[#allocation3 + $0x180] sm:$0xfc] %v1975
    %1981 = vst [vmem:[#allocation3 + $0x248] sm:$0xf] %v1977
    %v1982 = vld [vmem:[#allocation2 + $0x9c] sm:$0xff]
    %v1983 = vld [vmem:[#allocation2 + $0xa4] sm:$0x3]
    %v1986 = vrot.slane %v1982, 4
    %v1987 = vrot.slane %v1983, 4
    %v1988 = vsel %vm1041, %v1986, %v1987
    %1991 = vst [vmem:[#allocation3 + $0x248] sm:$0xf0] %v1986
    %1992 = vst [vmem:[#allocation3 + $0x310] sm:$0x3f] %v1988
    %v1993 = vld [vmem:[#allocation2 + $0xaa] sm:$0xff]
    %v1994 = vld [vmem:[#allocation2 + $0xb2] sm:$0x3]
    %v1997 = vrot.slane %v1993, 2
    %v1998 = vrot.slane %v1994, 2
    %v1999 = vsel %vm1053, %v1997, %v1998
    %2002 = vst [vmem:[#allocation3 + $0x310] sm:$0xc0] %v1997
    %2003 = vst [vmem:[#allocation3 + $0x3d8] sm:$0xff] %v1999
    %v2004 = vld [vmem:[#allocation2 + $0xb8] sm:$0xff]
    %v2005 = vld [vmem:[#allocation2 + $0xc0] sm:$0x3]
    %2006 = vst [vmem:[#allocation3 + $0x4a0] sm:$0xff] %v2004
    %2007 = vst [vmem:[#allocation3 + $0x568] sm:$0x3] %v2005
    %v2008 = vld [vmem:[#allocation2 + $0x20] sm:$0xff]
    %v2009 = vld [vmem:[#allocation2 + $0x28] sm:$0x3]
    %2010 = vst [vmem:[#allocation3 + $0xc0] sm:$0xff] %v2008
    %2011 = vst [vmem:[#allocation3 + $0x188] sm:$0x3] %v2009
    %v2012 = vld [vmem:[#allocation2 + $0x2e] sm:$0xff]
    %v2013 = vld [vmem:[#allocation2 + $0x36] sm:$0x3]
    %v2016 = vrot.slane %v2012, 6
    %v2017 = vrot.slane %v2013, 6
    %v2018 = vsel %vm1029, %v2016, %v2017
    %2021 = vst [vmem:[#allocation3 + $0x188] sm:$0xfc] %v2016
    %2022 = vst [vmem:[#allocation3 + $0x250] sm:$0xf] %v2018
    %v2023 = vld [vmem:[#allocation2 + $0x3c] sm:$0xff]
    %v2024 = vld [vmem:[#allocation2 + $0x44] sm:$0x3]
    %v2027 = vrot.slane %v2023, 4
    %v2028 = vrot.slane %v2024, 4
    %v2029 = vsel %vm1041, %v2027, %v2028
    %2032 = vst [vmem:[#allocation3 + $0x250] sm:$0xf0] %v2027
    %2033 = vst [vmem:[#allocation3 + $0x318] sm:$0x3f] %v2029
    %v2034 = vld [vmem:[#allocation2 + $0x4a] sm:$0xff]
    %v2035 = vld [vmem:[#allocation2 + $0x52] sm:$0x3]
    %v2038 = vrot.slane %v2034, 2
    %v2039 = vrot.slane %v2035, 2
    %v2040 = vsel %vm1053, %v2038, %v2039
    %2043 = vst [vmem:[#allocation3 + $0x318] sm:$0xc0] %v2038
    %2044 = vst [vmem:[#allocation3 + $0x3e0] sm:$0xff] %v2040
    %v2045 = vld [vmem:[#allocation2 + $0x58] sm:$0xff]
    %v2046 = vld [vmem:[#allocation2 + $0x60] sm:$0x3]
    %2047 = vst [vmem:[#allocation3 + $0x4a8] sm:$0xff] %v2045
    %2048 = vst [vmem:[#allocation3 + $0x570] sm:$0x3] %v2046
    %v2049 = vld [vmem:[#allocation3] sm:$0xff]
    %v2050 = vld [vmem:[#allocation3 + $0x8] sm:$0xff]
    %v2051 = vld [vmem:[#allocation3 + $0x10] sm:$0xff]
    %v2052 = vld [vmem:[#allocation3 + $0x18] sm:$0xff]
    %v2053 = vld [vmem:[#allocation3 + $0x20] sm:$0xff]
    %v2054 = vld [vmem:[#allocation3 + $0x28] sm:$0xff]
    %v2055 = vld [vmem:[#allocation3 + $0x30] sm:$0xff]
    %v2056 = vld [vmem:[#allocation3 + $0x38] sm:$0xff]
    %v2057 = vld [vmem:[#allocation3 + $0x40] sm:$0xff]
    %v2058 = vld [vmem:[#allocation3 + $0x48] sm:$0xff]
    %v2059 = vld [vmem:[#allocation3 + $0x50] sm:$0xff]
    %v2060 = vld [vmem:[#allocation3 + $0x58] sm:$0xff]
    %v2061 = vld [vmem:[#allocation3 + $0x60] sm:$0xff]
    %v2062 = vld [vmem:[#allocation3 + $0x68] sm:$0xff]
    %v2063 = vld [vmem:[#allocation3 + $0x70] sm:$0xff]
    %v2064 = vld [vmem:[#allocation3 + $0x78] sm:$0xff]
    %v2065 = vld [vmem:[#allocation3 + $0x80] sm:$0xff]
    %v2066 = vld [vmem:[#allocation3 + $0x88] sm:$0xff]
    %v2067 = vld [vmem:[#allocation3 + $0x90] sm:$0xff]
    %v2068 = vld [vmem:[#allocation3 + $0x98] sm:$0xff]
    %v2069 = vld [vmem:[#allocation3 + $0xa0] sm:$0xff]
    %v2070 = vld [vmem:[#allocation3 + $0xa8] sm:$0xff]
    %v2071 = vld [vmem:[#allocation3 + $0xb0] sm:$0xff]
    %v2072 = vld [vmem:[#allocation3 + $0xb8] sm:$0xff]
    %v2073 = vld [vmem:[#allocation3 + $0xc0] sm:$0xff]
    %v2074 = vld [vmem:[#allocation3 + $0xc8] sm:$0xff]
    %v2075 = vld [vmem:[#allocation3 + $0xd0] sm:$0xff]
    %v2076 = vld [vmem:[#allocation3 + $0xd8] sm:$0xff]
    %v2077 = vld [vmem:[#allocation3 + $0xe0] sm:$0xff]
    %v2078 = vld [vmem:[#allocation3 + $0xe8] sm:$0xff]
    %v2079 = vld [vmem:[#allocation3 + $0xf0] sm:$0xff]
    %v2080 = vld [vmem:[#allocation3 + $0xf8] sm:$0xff]
    %v2081 = vld [vmem:[#allocation3 + $0x100] sm:$0xff]
    %v2082 = vld [vmem:[#allocation3 + $0x108] sm:$0xff]
    %v2083 = vld [vmem:[#allocation3 + $0x110] sm:$0xff]
    %v2084 = vld [vmem:[#allocation3 + $0x118] sm:$0xff]
    %v2085 = vld [vmem:[#allocation3 + $0x120] sm:$0xff]
    %v2086 = vld [vmem:[#allocation3 + $0x128] sm:$0xff]
    %v2087 = vld [vmem:[#allocation3 + $0x130] sm:$0xff]
    %v2088 = vld [vmem:[#allocation3 + $0x138] sm:$0xff]
    %v2089 = vld [vmem:[#allocation3 + $0x140] sm:$0xff]
    %v2090 = vld [vmem:[#allocation3 + $0x148] sm:$0xff]
    %v2091 = vld [vmem:[#allocation3 + $0x150] sm:$0xff]
    %v2092 = vld [vmem:[#allocation3 + $0x158] sm:$0xff]
    %v2093 = vld [vmem:[#allocation3 + $0x160] sm:$0xff]
    %v2094 = vld [vmem:[#allocation3 + $0x168] sm:$0xff]
    %v2095 = vld [vmem:[#allocation3 + $0x170] sm:$0xff]
    %v2096 = vld [vmem:[#allocation3 + $0x178] sm:$0xff]
    %v2097 = vld [vmem:[#allocation3 + $0x180] sm:$0xff]
    %v2098 = vld [vmem:[#allocation3 + $0x188] sm:$0xff]
    %v2099 = vld [vmem:[#allocation3 + $0x190] sm:$0xff]
    %v2100 = vld [vmem:[#allocation3 + $0x198] sm:$0xff]
    %v2101 = vld [vmem:[#allocation3 + $0x1a0] sm:$0xff]
    %v2102 = vld [vmem:[#allocation3 + $0x1a8] sm:$0xff]
    %v2103 = vld [vmem:[#allocation3 + $0x1b0] sm:$0xff]
    %v2104 = vld [vmem:[#allocation3 + $0x1b8] sm:$0xff]
    %v2105 = vld [vmem:[#allocation3 + $0x1c0] sm:$0xff]
    %v2106 = vld [vmem:[#allocation3 + $0x1c8] sm:$0xff]
    %v2107 = vld [vmem:[#allocation3 + $0x1d0] sm:$0xff]
    %v2108 = vld [vmem:[#allocation3 + $0x1d8] sm:$0xff]
    %v2109 = vld [vmem:[#allocation3 + $0x1e0] sm:$0xff]
    %v2110 = vld [vmem:[#allocation3 + $0x1e8] sm:$0xff]
    %v2111 = vld [vmem:[#allocation3 + $0x1f0] sm:$0xff]
    %v2112 = vld [vmem:[#allocation3 + $0x1f8] sm:$0xff]
    %v2113 = vld [vmem:[#allocation3 + $0x200] sm:$0xff]
    %v2114 = vld [vmem:[#allocation3 + $0x208] sm:$0xff]
    %v2115 = vld [vmem:[#allocation3 + $0x210] sm:$0xff]
    %v2116 = vld [vmem:[#allocation3 + $0x218] sm:$0xff]
    %v2117 = vld [vmem:[#allocation3 + $0x220] sm:$0xff]
    %v2118 = vld [vmem:[#allocation3 + $0x228] sm:$0xff]
    %v2119 = vld [vmem:[#allocation3 + $0x230] sm:$0xff]
    %v2120 = vld [vmem:[#allocation3 + $0x238] sm:$0xff]
    %v2121 = vld [vmem:[#allocation3 + $0x240] sm:$0xff]
    %v2122 = vld [vmem:[#allocation3 + $0x248] sm:$0xff]
    %v2123 = vld [vmem:[#allocation3 + $0x250] sm:$0xff]
    %v2124 = vld [vmem:[#allocation3 + $0x258] sm:$0xff]
    %v2125 = vld [vmem:[#allocation3 + $0x260] sm:$0xff]
    %v2126 = vld [vmem:[#allocation3 + $0x268] sm:$0xff]
    %v2127 = vld [vmem:[#allocation3 + $0x270] sm:$0xff]
    %v2128 = vld [vmem:[#allocation3 + $0x278] sm:$0xff]
    %v2129 = vld [vmem:[#allocation3 + $0x280] sm:$0xff]
    %v2130 = vld [vmem:[#allocation3 + $0x288] sm:$0xff]
    %v2131 = vld [vmem:[#allocation3 + $0x290] sm:$0xff]
    %v2132 = vld [vmem:[#allocation3 + $0x298] sm:$0xff]
    %v2133 = vld [vmem:[#allocation3 + $0x2a0] sm:$0xff]
    %v2134 = vld [vmem:[#allocation3 + $0x2a8] sm:$0xff]
    %v2135 = vld [vmem:[#allocation3 + $0x2b0] sm:$0xff]
    %v2136 = vld [vmem:[#allocation3 + $0x2b8] sm:$0xff]
    %v2137 = vld [vmem:[#allocation3 + $0x2c0] sm:$0xff]
    %v2138 = vld [vmem:[#allocation3 + $0x2c8] sm:$0xff]
    %v2139 = vld [vmem:[#allocation3 + $0x2d0] sm:$0xff]
    %v2140 = vld [vmem:[#allocation3 + $0x2d8] sm:$0xff]
    %v2141 = vld [vmem:[#allocation3 + $0x2e0] sm:$0xff]
    %v2142 = vld [vmem:[#allocation3 + $0x2e8] sm:$0xff]
    %v2143 = vld [vmem:[#allocation3 + $0x2f0] sm:$0xff]
    %v2144 = vld [vmem:[#allocation3 + $0x2f8] sm:$0xff]
    %v2145 = vld [vmem:[#allocation3 + $0x300] sm:$0xff]
    %v2146 = vld [vmem:[#allocation3 + $0x308] sm:$0xff]
    %v2147 = vld [vmem:[#allocation3 + $0x310] sm:$0xff]
    %v2148 = vld [vmem:[#allocation3 + $0x318] sm:$0xff]
    %v2149 = vld [vmem:[#allocation3 + $0x320] sm:$0xff]
    %v2150 = vld [vmem:[#allocation3 + $0x328] sm:$0xff]
    %v2151 = vld [vmem:[#allocation3 + $0x330] sm:$0xff]
    %v2152 = vld [vmem:[#allocation3 + $0x338] sm:$0xff]
    %v2153 = vld [vmem:[#allocation3 + $0x340] sm:$0xff]
    %v2154 = vld [vmem:[#allocation3 + $0x348] sm:$0xff]
    %v2155 = vld [vmem:[#allocation3 + $0x350] sm:$0xff]
    %v2156 = vld [vmem:[#allocation3 + $0x358] sm:$0xff]
    %v2157 = vld [vmem:[#allocation3 + $0x360] sm:$0xff]
    %v2158 = vld [vmem:[#allocation3 + $0x368] sm:$0xff]
    %v2159 = vld [vmem:[#allocation3 + $0x370] sm:$0xff]
    %v2160 = vld [vmem:[#allocation3 + $0x378] sm:$0xff]
    %v2161 = vld [vmem:[#allocation3 + $0x380] sm:$0xff]
    %v2162 = vld [vmem:[#allocation3 + $0x388] sm:$0xff]
    %v2163 = vld [vmem:[#allocation3 + $0x390] sm:$0xff]
    %v2164 = vld [vmem:[#allocation3 + $0x398] sm:$0xff]
    %v2165 = vld [vmem:[#allocation3 + $0x3a0] sm:$0xff]
    %v2166 = vld [vmem:[#allocation3 + $0x3a8] sm:$0xff]
    %v2167 = vld [vmem:[#allocation3 + $0x3b0] sm:$0xff]
    %v2168 = vld [vmem:[#allocation3 + $0x3b8] sm:$0xff]
    %v2169 = vld [vmem:[#allocation3 + $0x3c0] sm:$0xff]
    %v2170 = vld [vmem:[#allocation3 + $0x3c8] sm:$0xff]
    %v2171 = vld [vmem:[#allocation3 + $0x3d0] sm:$0xff]
    %v2172 = vld [vmem:[#allocation3 + $0x3d8] sm:$0xff]
    %v2173 = vld [vmem:[#allocation3 + $0x3e0] sm:$0xff]
    %v2174 = vld [vmem:[#allocation3 + $0x3e8] sm:$0xff]
    %v2175 = vld [vmem:[#allocation3 + $0x3f0] sm:$0xff]
    %v2176 = vld [vmem:[#allocation3 + $0x3f8] sm:$0xff]
    %v2177 = vld [vmem:[#allocation3 + $0x400] sm:$0xff]
    %v2178 = vld [vmem:[#allocation3 + $0x408] sm:$0xff]
    %v2179 = vld [vmem:[#allocation3 + $0x410] sm:$0xff]
    %v2180 = vld [vmem:[#allocation3 + $0x418] sm:$0xff]
    %v2181 = vld [vmem:[#allocation3 + $0x420] sm:$0xff]
    %v2182 = vld [vmem:[#allocation3 + $0x428] sm:$0xff]
    %v2183 = vld [vmem:[#allocation3 + $0x430] sm:$0xff]
    %v2184 = vld [vmem:[#allocation3 + $0x438] sm:$0xff]
    %v2185 = vld [vmem:[#allocation3 + $0x440] sm:$0xff]
    %v2186 = vld [vmem:[#allocation3 + $0x448] sm:$0xff]
    %v2187 = vld [vmem:[#allocation3 + $0x450] sm:$0xff]
    %v2188 = vld [vmem:[#allocation3 + $0x458] sm:$0xff]
    %v2189 = vld [vmem:[#allocation3 + $0x460] sm:$0xff]
    %v2190 = vld [vmem:[#allocation3 + $0x468] sm:$0xff]
    %v2191 = vld [vmem:[#allocation3 + $0x470] sm:$0xff]
    %v2192 = vld [vmem:[#allocation3 + $0x478] sm:$0xff]
    %v2193 = vld [vmem:[#allocation3 + $0x480] sm:$0xff]
    %v2194 = vld [vmem:[#allocation3 + $0x488] sm:$0xff]
    %v2195 = vld [vmem:[#allocation3 + $0x490] sm:$0xff]
    %v2196 = vld [vmem:[#allocation3 + $0x498] sm:$0xff]
    %v2197 = vld [vmem:[#allocation3 + $0x4a0] sm:$0xff]
    %v2198 = vld [vmem:[#allocation3 + $0x4a8] sm:$0xff]
    %v2199 = vld [vmem:[#allocation3 + $0x4b0] sm:$0x3]
    %v2200 = vld [vmem:[#allocation3 + $0x4b8] sm:$0x3]
    %v2201 = vld [vmem:[#allocation3 + $0x4c0] sm:$0x3]
    %v2202 = vld [vmem:[#allocation3 + $0x4c8] sm:$0x3]
    %v2203 = vld [vmem:[#allocation3 + $0x4d0] sm:$0x3]
    %v2204 = vld [vmem:[#allocation3 + $0x4d8] sm:$0x3]
    %v2205 = vld [vmem:[#allocation3 + $0x4e0] sm:$0x3]
    %v2206 = vld [vmem:[#allocation3 + $0x4e8] sm:$0x3]
    %v2207 = vld [vmem:[#allocation3 + $0x4f0] sm:$0x3]
    %v2208 = vld [vmem:[#allocation3 + $0x4f8] sm:$0x3]
    %v2209 = vld [vmem:[#allocation3 + $0x500] sm:$0x3]
    %v2210 = vld [vmem:[#allocation3 + $0x508] sm:$0x3]
    %v2211 = vld [vmem:[#allocation3 + $0x510] sm:$0x3]
    %v2212 = vld [vmem:[#allocation3 + $0x518] sm:$0x3]
    %v2213 = vld [vmem:[#allocation3 + $0x520] sm:$0x3]
    %v2214 = vld [vmem:[#allocation3 + $0x528] sm:$0x3]
    %v2215 = vld [vmem:[#allocation3 + $0x530] sm:$0x3]
    %v2216 = vld [vmem:[#allocation3 + $0x538] sm:$0x3]
    %v2217 = vld [vmem:[#allocation3 + $0x540] sm:$0x3]
    %v2218 = vld [vmem:[#allocation3 + $0x548] sm:$0x3]
    %v2219 = vld [vmem:[#allocation3 + $0x550] sm:$0x3]
    %v2220 = vld [vmem:[#allocation3 + $0x558] sm:$0x3]
    %v2221 = vld [vmem:[#allocation3 + $0x560] sm:$0x3]
    %v2222 = vld [vmem:[#allocation3 + $0x568] sm:$0x3]
    %v2223 = vld [vmem:[#allocation3 + $0x570] sm:$0x3]
    %v2224 = vpack.c.bf16 %v2074, %v2049
    %v2225 = vpack.c.bf16 %v2075, %v2050
    %v2226 = vpack.c.bf16 %v2076, %v2051
    %v2227 = vpack.c.bf16 %v2077, %v2052
    %v2228 = vpack.c.bf16 %v2078, %v2053
    %v2229 = vpack.c.bf16 %v2079, %v2054
    %v2230 = vpack.c.bf16 %v2080, %v2055
    %v2231 = vpack.c.bf16 %v2081, %v2056
    %v2232 = vpack.c.bf16 %v2082, %v2057
    %v2233 = vpack.c.bf16 %v2083, %v2058
    %v2234 = vpack.c.bf16 %v2084, %v2059
    %v2235 = vpack.c.bf16 %v2085, %v2060
    %v2236 = vpack.c.bf16 %v2086, %v2061
    %v2237 = vpack.c.bf16 %v2087, %v2062
    %v2238 = vpack.c.bf16 %v2088, %v2063
    %v2239 = vpack.c.bf16 %v2089, %v2064
    %v2240 = vpack.c.bf16 %v2090, %v2065
    %v2241 = vpack.c.bf16 %v2091, %v2066
    %v2242 = vpack.c.bf16 %v2092, %v2067
    %v2243 = vpack.c.bf16 %v2093, %v2068
    %v2244 = vpack.c.bf16 %v2094, %v2069
    %v2245 = vpack.c.bf16 %v2095, %v2070
    %v2246 = vpack.c.bf16 %v2096, %v2071
    %v2247 = vpack.c.bf16 %v2097, %v2072
    %v2248 = vpack.c.bf16 %v2098, %v2073
    %v2249 = vpack.c.bf16 %v2124, %v2099
    %v2250 = vpack.c.bf16 %v2125, %v2100
    %v2251 = vpack.c.bf16 %v2126, %v2101
    %v2252 = vpack.c.bf16 %v2127, %v2102
    %v2253 = vpack.c.bf16 %v2128, %v2103
    %v2254 = vpack.c.bf16 %v2129, %v2104
    %v2255 = vpack.c.bf16 %v2130, %v2105
    %v2256 = vpack.c.bf16 %v2131, %v2106
    %v2257 = vpack.c.bf16 %v2132, %v2107
    %v2258 = vpack.c.bf16 %v2133, %v2108
    %v2259 = vpack.c.bf16 %v2134, %v2109
    %v2260 = vpack.c.bf16 %v2135, %v2110
    %v2261 = vpack.c.bf16 %v2136, %v2111
    %v2262 = vpack.c.bf16 %v2137, %v2112
    %v2263 = vpack.c.bf16 %v2138, %v2113
    %v2264 = vpack.c.bf16 %v2139, %v2114
    %v2265 = vpack.c.bf16 %v2140, %v2115
    %v2266 = vpack.c.bf16 %v2141, %v2116
    %v2267 = vpack.c.bf16 %v2142, %v2117
    %v2268 = vpack.c.bf16 %v2143, %v2118
    %v2269 = vpack.c.bf16 %v2144, %v2119
    %v2270 = vpack.c.bf16 %v2145, %v2120
    %v2271 = vpack.c.bf16 %v2146, %v2121
    %v2272 = vpack.c.bf16 %v2147, %v2122
    %v2273 = vpack.c.bf16 %v2148, %v2123
    %v2274 = vpack.c.bf16 %v2174, %v2149
    %v2275 = vpack.c.bf16 %v2175, %v2150
    %v2276 = vpack.c.bf16 %v2176, %v2151
    %v2277 = vpack.c.bf16 %v2177, %v2152
    %v2278 = vpack.c.bf16 %v2178, %v2153
    %v2279 = vpack.c.bf16 %v2179, %v2154
    %v2280 = vpack.c.bf16 %v2180, %v2155
    %v2281 = vpack.c.bf16 %v2181, %v2156
    %v2282 = vpack.c.bf16 %v2182, %v2157
    %v2283 = vpack.c.bf16 %v2183, %v2158
    %v2284 = vpack.c.bf16 %v2184, %v2159
    %v2285 = vpack.c.bf16 %v2185, %v2160
    %v2286 = vpack.c.bf16 %v2186, %v2161
    %v2287 = vpack.c.bf16 %v2187, %v2162
    %v2288 = vpack.c.bf16 %v2188, %v2163
    %v2289 = vpack.c.bf16 %v2189, %v2164
    %v2290 = vpack.c.bf16 %v2190, %v2165
    %v2291 = vpack.c.bf16 %v2191, %v2166
    %v2292 = vpack.c.bf16 %v2192, %v2167
    %v2293 = vpack.c.bf16 %v2193, %v2168
    %v2294 = vpack.c.bf16 %v2194, %v2169
    %v2295 = vpack.c.bf16 %v2195, %v2170
    %v2296 = vpack.c.bf16 %v2196, %v2171
    %v2297 = vpack.c.bf16 %v2197, %v2172
    %v2298 = vpack.c.bf16 %v2198, %v2173
    %v2299 = vpack.c.bf16 %v2199, %v2199
    %v2300 = vpack.c.bf16 %v2200, %v2200
    %v2301 = vpack.c.bf16 %v2201, %v2201
    %v2302 = vpack.c.bf16 %v2202, %v2202
    %v2303 = vpack.c.bf16 %v2203, %v2203
    %v2304 = vpack.c.bf16 %v2204, %v2204
    %v2305 = vpack.c.bf16 %v2205, %v2205
    %v2306 = vpack.c.bf16 %v2206, %v2206
    %v2307 = vpack.c.bf16 %v2207, %v2207
    %v2308 = vpack.c.bf16 %v2208, %v2208
    %v2309 = vpack.c.bf16 %v2209, %v2209
    %v2310 = vpack.c.bf16 %v2210, %v2210
    %v2311 = vpack.c.bf16 %v2211, %v2211
    %v2312 = vpack.c.bf16 %v2212, %v2212
    %v2313 = vpack.c.bf16 %v2213, %v2213
    %v2314 = vpack.c.bf16 %v2214, %v2214
    %v2315 = vpack.c.bf16 %v2215, %v2215
    %v2316 = vpack.c.bf16 %v2216, %v2216
    %v2317 = vpack.c.bf16 %v2217, %v2217
    %v2318 = vpack.c.bf16 %v2218, %v2218
    %v2319 = vpack.c.bf16 %v2219, %v2219
    %v2320 = vpack.c.bf16 %v2220, %v2220
    %v2321 = vpack.c.bf16 %v2221, %v2221
    %v2322 = vpack.c.bf16 %v2222, %v2222
    %v2323 = vpack.c.bf16 %v2223, %v2223
    %v2324 = vld [vmem:[%s5] sm:$0xf]
    %v2325 = vld [vmem:[%s5 + $0x4] sm:$0xf]
    %v2326 = vld [vmem:[%s5 + $0x8] sm:$0xf]
    %v2327 = vld [vmem:[%s5 + $0xc] sm:$0xf]
    %v2328 = vld [vmem:[%s5 + $0x10] sm:$0xf]
    %v2329 = vld [vmem:[%s5 + $0x14] sm:$0xf]
    %v2330 = vld [vmem:[%s5 + $0x18] sm:$0xf]
    %v2331 = vld [vmem:[%s5 + $0x1c] sm:$0xf]
    %v2332 = vld [vmem:[%s5 + $0x20] sm:$0xf]
    %v2333 = vld [vmem:[%s5 + $0x24] sm:$0xf]
    %v2334 = vld [vmem:[%s5 + $0x28] sm:$0xf]
    %v2335 = vld [vmem:[%s5 + $0x2c] sm:$0xf]
    %v2336 = vld [vmem:[%s5 + $0x30] sm:$0xf]
    %v2337 = vld [vmem:[%s5 + $0x34] sm:$0xf]
    %v2338 = vld [vmem:[%s5 + $0x38] sm:$0xf]
    %v2339 = vld [vmem:[%s5 + $0x3c] sm:$0xf]
    %v2340 = vld [vmem:[%s5 + $0x40] sm:$0xf]
    %v2341 = vld [vmem:[%s5 + $0x44] sm:$0xf]
    %v2342 = vld [vmem:[%s5 + $0x48] sm:$0xf]
    %v2343 = vld [vmem:[%s5 + $0x4c] sm:$0xf]
    %v2344 = vld [vmem:[%s5 + $0x50] sm:$0xf]
    %v2345 = vld [vmem:[%s5 + $0x54] sm:$0xf]
    %v2346 = vld [vmem:[%s5 + $0x58] sm:$0xf]
    %v2347 = vld [vmem:[%s5 + $0x5c] sm:$0xf]
    %v2348 = vld [vmem:[%s5 + $0x60] sm:$0xf]
    %v2349 = vld [vmem:[%s5 + $0x64] sm:$0xf]
    %v2350 = vld [vmem:[%s5 + $0x68] sm:$0xf]
    %v2351 = vld [vmem:[%s5 + $0x6c] sm:$0xf]
    %v2352 = vld [vmem:[%s5 + $0x70] sm:$0xf]
    %v2353 = vld [vmem:[%s5 + $0x74] sm:$0xf]
    %v2354 = vld [vmem:[%s5 + $0x78] sm:$0xf]
    %v2355 = vld [vmem:[%s5 + $0x7c] sm:$0xf]
    %v2356 = vld [vmem:[%s5 + $0x80] sm:$0xf]
    %v2357 = vld [vmem:[%s5 + $0x84] sm:$0xf]
    %v2358 = vld [vmem:[%s5 + $0x88] sm:$0xf]
    %v2359 = vld [vmem:[%s5 + $0x8c] sm:$0xf]
    %v2360 = vld [vmem:[%s5 + $0x90] sm:$0xf]
    %v2361 = vld [vmem:[%s5 + $0x94] sm:$0xf]
    %v2362 = vld [vmem:[%s5 + $0x98] sm:$0xf]
    %v2363 = vld [vmem:[%s5 + $0x9c] sm:$0xf]
    %v2364 = vld [vmem:[%s5 + $0xa0] sm:$0xf]
    %v2365 = vld [vmem:[%s5 + $0xa4] sm:$0xf]
    %v2366 = vld [vmem:[%s5 + $0xa8] sm:$0xf]
    %v2367 = vld [vmem:[%s5 + $0xac] sm:$0xf]
    %v2368 = vld [vmem:[%s5 + $0xb0] sm:$0xf]
    %v2369 = vld [vmem:[%s5 + $0xb4] sm:$0xf]
    %v2370 = vld [vmem:[%s5 + $0xb8] sm:$0xf]
    %v2371 = vld [vmem:[%s5 + $0xbc] sm:$0xf]
    %v2372 = vld [vmem:[%s5 + $0xc0] sm:$0xf]
    %v2373 = vld [vmem:[%s5 + $0xc4] sm:$0xf]
    %v2374 = vld [vmem:[%s5 + $0xc8] sm:$0xf]
    %v2375 = vld [vmem:[%s5 + $0xcc] sm:$0xf]
    %v2376 = vld [vmem:[%s5 + $0xd0] sm:$0xf]
    %v2377 = vld [vmem:[%s5 + $0xd4] sm:$0xf]
    %v2378 = vld [vmem:[%s5 + $0xd8] sm:$0xf]
    %v2379 = vld [vmem:[%s5 + $0xdc] sm:$0xf]
    %v2380 = vld [vmem:[%s5 + $0xe0] sm:$0xf]
    %v2381 = vld [vmem:[%s5 + $0xe4] sm:$0xf]
    %v2382 = vld [vmem:[%s5 + $0xe8] sm:$0xf]
    %v2383 = vld [vmem:[%s5 + $0xec] sm:$0xf]
    %v2384 = vld [vmem:[%s5 + $0xf0] sm:$0xf]
    %v2385 = vld [vmem:[%s5 + $0xf4] sm:$0xf]
    %v2386 = vld [vmem:[%s5 + $0xf8] sm:$0xf]
    %v2387 = vld [vmem:[%s5 + $0xfc] sm:$0xf]
    %v2388 = vld [vmem:[%s5 + $0x100] sm:$0xf]
    %v2389 = vld [vmem:[%s5 + $0x104] sm:$0xf]
    %v2390 = vld [vmem:[%s5 + $0x108] sm:$0xf]
    %v2391 = vld [vmem:[%s5 + $0x10c] sm:$0xf]
    %v2392 = vld [vmem:[%s5 + $0x110] sm:$0xf]
    %v2393 = vld [vmem:[%s5 + $0x114] sm:$0xf]
    %v2394 = vld [vmem:[%s5 + $0x118] sm:$0xf]
    %v2395 = vld [vmem:[%s5 + $0x11c] sm:$0xf]
    %v2396 = vld [vmem:[%s5 + $0x120] sm:$0xf]
    %v2397 = vld [vmem:[%s5 + $0x124] sm:$0xf]
    %v2398 = vld [vmem:[%s5 + $0x128] sm:$0xf]
    %v2399 = vld [vmem:[%s5 + $0x12c] sm:$0xf]
    %v2400 = vld [vmem:[%s5 + $0x130] sm:$0xf]
    %v2401 = vld [vmem:[%s5 + $0x134] sm:$0xf]
    %v2402 = vld [vmem:[%s5 + $0x138] sm:$0xf]
    %v2403 = vld [vmem:[%s5 + $0x13c] sm:$0xf]
    %v2404 = vld [vmem:[%s5 + $0x140] sm:$0xf]
    %v2405 = vld [vmem:[%s5 + $0x144] sm:$0xf]
    %v2406 = vld [vmem:[%s5 + $0x148] sm:$0xf]
    %v2407 = vld [vmem:[%s5 + $0x14c] sm:$0xf]
    %v2408 = vld [vmem:[%s5 + $0x150] sm:$0xf]
    %v2409 = vld [vmem:[%s5 + $0x154] sm:$0xf]
    %v2410 = vld [vmem:[%s5 + $0x158] sm:$0xf]
    %v2411 = vld [vmem:[%s5 + $0x15c] sm:$0xf]
    %v2412 = vld [vmem:[%s5 + $0x160] sm:$0xf]
    %v2413 = vld [vmem:[%s5 + $0x164] sm:$0xf]
    %v2414 = vld [vmem:[%s5 + $0x168] sm:$0xf]
    %v2415 = vld [vmem:[%s5 + $0x16c] sm:$0xf]
    %v2416 = vld [vmem:[%s5 + $0x170] sm:$0xf]
    %v2417 = vld [vmem:[%s5 + $0x174] sm:$0xf]
    %v2418 = vld [vmem:[%s5 + $0x178] sm:$0xf]
    %v2419 = vld [vmem:[%s5 + $0x17c] sm:$0xf]
    %v2420 = vld [vmem:[%s5 + $0x180] sm:$0xf]
    %v2421 = vld [vmem:[%s5 + $0x184] sm:$0xf]
    %v2422 = vld [vmem:[%s5 + $0x188] sm:$0xf]
    %v2423 = vld [vmem:[%s5 + $0x18c] sm:$0xf]
    %v2424 = vld [vmem:[%s5 + $0x190] sm:$0xf]
    %v2425 = vld [vmem:[%s5 + $0x194] sm:$0xf]
    %v2426 = vld [vmem:[%s5 + $0x198] sm:$0xf]
    %v2427 = vld [vmem:[%s5 + $0x19c] sm:$0xf]
    %v2428 = vld [vmem:[%s5 + $0x1a0] sm:$0xf]
    %v2429 = vld [vmem:[%s5 + $0x1a4] sm:$0xf]
    %v2430 = vld [vmem:[%s5 + $0x1a8] sm:$0xf]
    %v2431 = vld [vmem:[%s5 + $0x1ac] sm:$0xf]
    %v2432 = vld [vmem:[%s5 + $0x1b0] sm:$0xf]
    %v2433 = vld [vmem:[%s5 + $0x1b4] sm:$0xf]
    %v2434 = vld [vmem:[%s5 + $0x1b8] sm:$0xf]
    %v2435 = vld [vmem:[%s5 + $0x1bc] sm:$0xf]
    %v2436 = vld [vmem:[%s5 + $0x1c0] sm:$0xf]
    %v2437 = vld [vmem:[%s5 + $0x1c4] sm:$0xf]
    %v2438 = vld [vmem:[%s5 + $0x1c8] sm:$0xf]
    %v2439 = vld [vmem:[%s5 + $0x1cc] sm:$0xf]
    %v2440 = vld [vmem:[%s5 + $0x1d0] sm:$0xf]
    %v2441 = vld [vmem:[%s5 + $0x1d4] sm:$0xf]
    %v2442 = vld [vmem:[%s5 + $0x1d8] sm:$0xf]
    %v2443 = vld [vmem:[%s5 + $0x1dc] sm:$0xf]
    %v2444 = vld [vmem:[%s5 + $0x1e0] sm:$0xf]
    %v2445 = vld [vmem:[%s5 + $0x1e4] sm:$0xf]
    %v2446 = vld [vmem:[%s5 + $0x1e8] sm:$0xf]
    %v2447 = vld [vmem:[%s5 + $0x1ec] sm:$0xf]
    %v2448 = vld [vmem:[%s5 + $0x1f0] sm:$0xf]
    %v2449 = vld [vmem:[%s5 + $0x1f4] sm:$0xf]
    %v2450 = vld [vmem:[%s5 + $0x1f8] sm:$0xf]
    %v2451 = vld [vmem:[%s5 + $0x1fc] sm:$0xf]
    %v2452 = vld [vmem:[%s5 + $0x200] sm:$0xf]
    %v2453 = vld [vmem:[%s5 + $0x204] sm:$0xf]
    %v2454 = vld [vmem:[%s5 + $0x208] sm:$0xf]
    %v2455 = vld [vmem:[%s5 + $0x20c] sm:$0xf]
    %v2456 = vld [vmem:[%s5 + $0x210] sm:$0xf]
    %v2457 = vld [vmem:[%s5 + $0x214] sm:$0xf]
    %v2458 = vld [vmem:[%s5 + $0x218] sm:$0xf]
    %v2459 = vld [vmem:[%s5 + $0x21c] sm:$0xf]
    %v2460 = vld [vmem:[%s5 + $0x220] sm:$0xf]
    %v2461 = vld [vmem:[%s5 + $0x224] sm:$0xf]
    %v2462 = vld [vmem:[%s5 + $0x228] sm:$0xf]
    %v2463 = vld [vmem:[%s5 + $0x22c] sm:$0xf]
    %v2464 = vld [vmem:[%s5 + $0x230] sm:$0xf]
    %v2465 = vld [vmem:[%s5 + $0x234] sm:$0xf]
    %v2466 = vld [vmem:[%s5 + $0x238] sm:$0xf]
    %v2467 = vld [vmem:[%s5 + $0x23c] sm:$0xf]
    %v2468 = vld [vmem:[%s5 + $0x240] sm:$0xf]
    %v2469 = vld [vmem:[%s5 + $0x244] sm:$0xf]
    %v2470 = vld [vmem:[%s5 + $0x248] sm:$0xf]
    %v2471 = vld [vmem:[%s5 + $0x24c] sm:$0xf]
    %v2472 = vld [vmem:[%s5 + $0x250] sm:$0xf]
    %v2473 = vld [vmem:[%s5 + $0x254] sm:$0xf]
    %v2474 = vld [vmem:[%s5 + $0x258] sm:$0xf]
    %v2475 = vld [vmem:[%s5 + $0x25c] sm:$0xf]
    %v2476 = vld [vmem:[%s5 + $0x260] sm:$0xf]
    %v2477 = vld [vmem:[%s5 + $0x264] sm:$0xf]
    %v2478 = vld [vmem:[%s5 + $0x268] sm:$0xf]
    %v2479 = vld [vmem:[%s5 + $0x26c] sm:$0xf]
    %v2480 = vld [vmem:[%s5 + $0x270] sm:$0xf]
    %v2481 = vld [vmem:[%s5 + $0x274] sm:$0xf]
    %v2482 = vld [vmem:[%s5 + $0x278] sm:$0xf]
    %v2483 = vld [vmem:[%s5 + $0x27c] sm:$0xf]
    %v2484 = vld [vmem:[%s5 + $0x280] sm:$0xf]
    %v2485 = vld [vmem:[%s5 + $0x284] sm:$0xf]
    %v2486 = vld [vmem:[%s5 + $0x288] sm:$0xf]
    %v2487 = vld [vmem:[%s5 + $0x28c] sm:$0xf]
    %v2488 = vld [vmem:[%s5 + $0x290] sm:$0xf]
    %v2489 = vld [vmem:[%s5 + $0x294] sm:$0xf]
    %v2490 = vld [vmem:[%s5 + $0x298] sm:$0xf]
    %v2491 = vld [vmem:[%s5 + $0x29c] sm:$0xf]
    %v2492 = vld [vmem:[%s5 + $0x2a0] sm:$0xf]
    %v2493 = vld [vmem:[%s5 + $0x2a4] sm:$0xf]
    %v2494 = vld [vmem:[%s5 + $0x2a8] sm:$0xf]
    %v2495 = vld [vmem:[%s5 + $0x2ac] sm:$0xf]
    %v2496 = vld [vmem:[%s5 + $0x2b0] sm:$0xf]
    %v2497 = vld [vmem:[%s5 + $0x2b4] sm:$0xf]
    %v2498 = vld [vmem:[%s5 + $0x2b8] sm:$0xf]
    %v2499 = vld [vmem:[%s5 + $0x2bc] sm:$0xf]
    %v2500 = vld [vmem:[%s5 + $0x2c0] sm:$0xf]
    %v2501 = vld [vmem:[%s5 + $0x2c4] sm:$0xf]
    %v2502 = vld [vmem:[%s5 + $0x2c8] sm:$0xf]
    %v2503 = vld [vmem:[%s5 + $0x2cc] sm:$0xf]
    %v2504 = vld [vmem:[%s5 + $0x2d0] sm:$0xf]
    %v2505 = vld [vmem:[%s5 + $0x2d4] sm:$0xf]
    %v2506 = vld [vmem:[%s5 + $0x2d8] sm:$0xf]
    %v2507 = vld [vmem:[%s5 + $0x2dc] sm:$0xf]
    %v2508 = vld [vmem:[%s5 + $0x2e0] sm:$0xf]
    %v2509 = vld [vmem:[%s5 + $0x2e4] sm:$0xf]
    %v2510 = vld [vmem:[%s5 + $0x2e8] sm:$0xf]
    %v2511 = vld [vmem:[%s5 + $0x2ec] sm:$0xf]
    %v2512 = vld [vmem:[%s5 + $0x2f0] sm:$0xf]
    %v2513 = vld [vmem:[%s5 + $0x2f4] sm:$0xf]
    %v2514 = vld [vmem:[%s5 + $0x2f8] sm:$0xf]
    %v2515 = vld [vmem:[%s5 + $0x2fc] sm:$0xf]
    %v2516 = vld [vmem:[%s5 + $0x300] sm:$0xf]
    %v2517 = vld [vmem:[%s5 + $0x304] sm:$0xf]
    %v2518 = vld [vmem:[%s5 + $0x308] sm:$0xf]
    %v2519 = vld [vmem:[%s5 + $0x30c] sm:$0xf]
    %v2520 = vld [vmem:[%s5 + $0x310] sm:$0xf]
    %v2521 = vld [vmem:[%s5 + $0x314] sm:$0xf]
    %v2522 = vld [vmem:[%s5 + $0x318] sm:$0xf]
    %v2523 = vld [vmem:[%s5 + $0x31c] sm:$0xf]
    %v2524 = vld [vmem:[%s5 + $0x320] sm:$0xf]
    %v2525 = vld [vmem:[%s5 + $0x324] sm:$0xf]
    %v2526 = vld [vmem:[%s5 + $0x328] sm:$0xf]
    %v2527 = vld [vmem:[%s5 + $0x32c] sm:$0xf]
    %v2528 = vld [vmem:[%s5 + $0x330] sm:$0xf]
    %v2529 = vld [vmem:[%s5 + $0x334] sm:$0xf]
    %v2530 = vld [vmem:[%s5 + $0x338] sm:$0xf]
    %v2531 = vld [vmem:[%s5 + $0x33c] sm:$0xf]
    %v2532 = vld [vmem:[%s5 + $0x340] sm:$0xf]
    %v2533 = vld [vmem:[%s5 + $0x344] sm:$0xf]
    %v2534 = vld [vmem:[%s5 + $0x348] sm:$0xf]
    %v2535 = vld [vmem:[%s5 + $0x34c] sm:$0xf]
    %v2536 = vld [vmem:[%s5 + $0x350] sm:$0xf]
    %v2537 = vld [vmem:[%s5 + $0x354] sm:$0xf]
    %v2538 = vld [vmem:[%s5 + $0x358] sm:$0xf]
    %v2539 = vld [vmem:[%s5 + $0x35c] sm:$0xf]
    %v2540 = vld [vmem:[%s5 + $0x360] sm:$0xf]
    %v2541 = vld [vmem:[%s5 + $0x364] sm:$0xf]
    %v2542 = vld [vmem:[%s5 + $0x368] sm:$0xf]
    %v2543 = vld [vmem:[%s5 + $0x36c] sm:$0xf]
    %v2544 = vld [vmem:[%s5 + $0x370] sm:$0xf]
    %v2545 = vld [vmem:[%s5 + $0x374] sm:$0xf]
    %v2546 = vld [vmem:[%s5 + $0x378] sm:$0xf]
    %v2547 = vld [vmem:[%s5 + $0x37c] sm:$0xf]
    %v2548 = vld [vmem:[%s5 + $0x380] sm:$0xf]
    %v2549 = vld [vmem:[%s5 + $0x384] sm:$0xf]
    %v2550 = vld [vmem:[%s5 + $0x388] sm:$0xf]
    %v2551 = vld [vmem:[%s5 + $0x38c] sm:$0xf]
    %v2552 = vld [vmem:[%s5 + $0x390] sm:$0xf]
    %v2553 = vld [vmem:[%s5 + $0x394] sm:$0xf]
    %v2554 = vld [vmem:[%s5 + $0x398] sm:$0xf]
    %v2555 = vld [vmem:[%s5 + $0x39c] sm:$0xf]
    %v2556 = vld [vmem:[%s5 + $0x3a0] sm:$0xf]
    %v2557 = vld [vmem:[%s5 + $0x3a4] sm:$0xf]
    %v2558 = vld [vmem:[%s5 + $0x3a8] sm:$0xf]
    %v2559 = vld [vmem:[%s5 + $0x3ac] sm:$0xf]
    %v2560 = vld [vmem:[%s5 + $0x3b0] sm:$0xf]
    %v2561 = vld [vmem:[%s5 + $0x3b4] sm:$0xf]
    %v2562 = vld [vmem:[%s5 + $0x3b8] sm:$0xf]
    %v2563 = vld [vmem:[%s5 + $0x3bc] sm:$0xf]
    %v2564 = vld [vmem:[%s5 + $0x3c0] sm:$0xf]
    %v2565 = vld [vmem:[%s5 + $0x3c4] sm:$0xf]
    %v2566 = vld [vmem:[%s5 + $0x3c8] sm:$0xf]
    %v2567 = vld [vmem:[%s5 + $0x3cc] sm:$0xf]
    %v2568 = vld [vmem:[%s5 + $0x3d0] sm:$0xf]
    %v2569 = vld [vmem:[%s5 + $0x3d4] sm:$0xf]
    %v2570 = vld [vmem:[%s5 + $0x3d8] sm:$0xf]
    %v2571 = vld [vmem:[%s5 + $0x3dc] sm:$0xf]
    %v2572 = vld [vmem:[%s5 + $0x3e0] sm:$0xf]
    %v2573 = vld [vmem:[%s5 + $0x3e4] sm:$0xf]
    %v2574 = vld [vmem:[%s5 + $0x3e8] sm:$0xf]
    %v2575 = vld [vmem:[%s5 + $0x3ec] sm:$0xf]
    %v2576 = vld [vmem:[%s5 + $0x3f0] sm:$0xf]
    %v2577 = vld [vmem:[%s5 + $0x3f4] sm:$0xf]
    %v2578 = vld [vmem:[%s5 + $0x3f8] sm:$0xf]
    %v2579 = vld [vmem:[%s5 + $0x3fc] sm:$0xf]
    %v2580 = vld [vmem:[%s5 + $0x400] sm:$0xf]
    %v2581 = vld [vmem:[%s5 + $0x404] sm:$0xf]
    %v2582 = vld [vmem:[%s5 + $0x408] sm:$0xf]
    %v2583 = vld [vmem:[%s5 + $0x40c] sm:$0xf]
    %v2584 = vld [vmem:[%s5 + $0x410] sm:$0xf]
    %v2585 = vld [vmem:[%s5 + $0x414] sm:$0xf]
    %v2586 = vld [vmem:[%s5 + $0x418] sm:$0xf]
    %v2587 = vld [vmem:[%s5 + $0x41c] sm:$0xf]
    %v2588 = vld [vmem:[%s5 + $0x420] sm:$0xf]
    %v2589 = vld [vmem:[%s5 + $0x424] sm:$0xf]
    %v2590 = vld [vmem:[%s5 + $0x428] sm:$0xf]
    %v2591 = vld [vmem:[%s5 + $0x42c] sm:$0xf]
    %v2592 = vld [vmem:[%s5 + $0x430] sm:$0xf]
    %v2593 = vld [vmem:[%s5 + $0x434] sm:$0xf]
    %v2594 = vld [vmem:[%s5 + $0x438] sm:$0xf]
    %v2595 = vld [vmem:[%s5 + $0x43c] sm:$0xf]
    %v2596 = vld [vmem:[%s5 + $0x440] sm:$0xf]
    %v2597 = vld [vmem:[%s5 + $0x444] sm:$0xf]
    %v2598 = vld [vmem:[%s5 + $0x448] sm:$0xf]
    %v2599 = vld [vmem:[%s5 + $0x44c] sm:$0xf]
    %v2600 = vld [vmem:[%s5 + $0x450] sm:$0xf]
    %v2601 = vld [vmem:[%s5 + $0x454] sm:$0xf]
    %v2602 = vld [vmem:[%s5 + $0x458] sm:$0xf]
    %v2603 = vld [vmem:[%s5 + $0x45c] sm:$0xf]
    %v2604 = vld [vmem:[%s5 + $0x460] sm:$0xf]
    %v2605 = vld [vmem:[%s5 + $0x464] sm:$0xf]
    %v2606 = vld [vmem:[%s5 + $0x468] sm:$0xf]
    %v2607 = vld [vmem:[%s5 + $0x46c] sm:$0xf]
    %v2608 = vld [vmem:[%s5 + $0x470] sm:$0xf]
    %v2609 = vld [vmem:[%s5 + $0x474] sm:$0xf]
    %v2610 = vld [vmem:[%s5 + $0x478] sm:$0xf]
    %v2611 = vld [vmem:[%s5 + $0x47c] sm:$0xf]
    %v2612 = vld [vmem:[%s5 + $0x480] sm:$0xf]
    %v2613 = vld [vmem:[%s5 + $0x484] sm:$0xf]
    %v2614 = vld [vmem:[%s5 + $0x488] sm:$0xf]
    %v2615 = vld [vmem:[%s5 + $0x48c] sm:$0xf]
    %v2616 = vld [vmem:[%s5 + $0x490] sm:$0xf]
    %v2617 = vld [vmem:[%s5 + $0x494] sm:$0xf]
    %v2618 = vld [vmem:[%s5 + $0x498] sm:$0xf]
    %v2619 = vld [vmem:[%s5 + $0x49c] sm:$0xf]
    %v2620 = vld [vmem:[%s5 + $0x4a0] sm:$0xf]
    %v2621 = vld [vmem:[%s5 + $0x4a4] sm:$0xf]
    %v2622 = vld [vmem:[%s5 + $0x4a8] sm:$0xf]
    %v2623 = vld [vmem:[%s5 + $0x4ac] sm:$0xf]
    %v2624 = vld [vmem:[%s5 + $0x4b0] sm:$0xf]
    %v2625 = vld [vmem:[%s5 + $0x4b4] sm:$0xf]
    %v2626 = vld [vmem:[%s5 + $0x4b8] sm:$0xf]
    %v2627 = vld [vmem:[%s5 + $0x4bc] sm:$0xf]
    %v2628 = vld [vmem:[%s5 + $0x4c0] sm:$0xf]
    %v2629 = vld [vmem:[%s5 + $0x4c4] sm:$0xf]
    %v2630 = vld [vmem:[%s5 + $0x4c8] sm:$0xf]
    %v2631 = vld [vmem:[%s5 + $0x4cc] sm:$0xf]
    %v2632 = vld [vmem:[%s5 + $0x4d0] sm:$0xf]
    %v2633 = vld [vmem:[%s5 + $0x4d4] sm:$0xf]
    %v2634 = vld [vmem:[%s5 + $0x4d8] sm:$0xf]
    %v2635 = vld [vmem:[%s5 + $0x4dc] sm:$0xf]
    %v2636 = vld [vmem:[%s5 + $0x4e0] sm:$0xf]
    %v2637 = vld [vmem:[%s5 + $0x4e4] sm:$0xf]
    %v2638 = vld [vmem:[%s5 + $0x4e8] sm:$0xf]
    %v2639 = vld [vmem:[%s5 + $0x4ec] sm:$0xf]
    %v2640 = vld [vmem:[%s5 + $0x4f0] sm:$0xf]
    %v2641 = vld [vmem:[%s5 + $0x4f4] sm:$0xf]
    %v2642 = vld [vmem:[%s5 + $0x4f8] sm:$0xf]
    %v2643 = vld [vmem:[%s5 + $0x4fc] sm:$0xf]
    %v2644 = vld [vmem:[%s5 + $0x500] sm:$0xf]
    %v2645 = vld [vmem:[%s5 + $0x504] sm:$0xf]
    %v2646 = vld [vmem:[%s5 + $0x508] sm:$0xf]
    %v2647 = vld [vmem:[%s5 + $0x50c] sm:$0xf]
    %v2648 = vld [vmem:[%s5 + $0x510] sm:$0xf]
    %v2649 = vld [vmem:[%s5 + $0x514] sm:$0xf]
    %v2650 = vld [vmem:[%s5 + $0x518] sm:$0xf]
    %v2651 = vld [vmem:[%s5 + $0x51c] sm:$0xf]
    %v2652 = vld [vmem:[%s5 + $0x520] sm:$0xf]
    %v2653 = vld [vmem:[%s5 + $0x524] sm:$0xf]
    %v2654 = vld [vmem:[%s5 + $0x528] sm:$0xf]
    %v2655 = vld [vmem:[%s5 + $0x52c] sm:$0xf]
    %v2656 = vld [vmem:[%s5 + $0x530] sm:$0xf]
    %v2657 = vld [vmem:[%s5 + $0x534] sm:$0xf]
    %v2658 = vld [vmem:[%s5 + $0x538] sm:$0xf]
    %v2659 = vld [vmem:[%s5 + $0x53c] sm:$0xf]
    %v2660 = vld [vmem:[%s5 + $0x540] sm:$0xf]
    %v2661 = vld [vmem:[%s5 + $0x544] sm:$0xf]
    %v2662 = vld [vmem:[%s5 + $0x548] sm:$0xf]
    %v2663 = vld [vmem:[%s5 + $0x54c] sm:$0xf]
    %v2664 = vld [vmem:[%s5 + $0x550] sm:$0xf]
    %v2665 = vld [vmem:[%s5 + $0x554] sm:$0xf]
    %v2666 = vld [vmem:[%s5 + $0x558] sm:$0xf]
    %v2667 = vld [vmem:[%s5 + $0x55c] sm:$0xf]
    %v2668 = vld [vmem:[%s5 + $0x560] sm:$0xf]
    %v2669 = vld [vmem:[%s5 + $0x564] sm:$0xf]
    %v2670 = vld [vmem:[%s5 + $0x568] sm:$0xf]
    %v2671 = vld [vmem:[%s5 + $0x56c] sm:$0xf]
    %v2672 = vld [vmem:[%s5 + $0x570] sm:$0xf]
    %v2673 = vld [vmem:[%s5 + $0x574] sm:$0xf]
    %v2674 = vld [vmem:[%s5 + $0x578] sm:$0xf]
    %v2675 = vld [vmem:[%s5 + $0x57c] sm:$0xf]
    %v2676 = vld [vmem:[%s5 + $0x580] sm:$0xf]
    %v2677 = vld [vmem:[%s5 + $0x584] sm:$0xf]
    %v2678 = vld [vmem:[%s5 + $0x588] sm:$0xf]
    %v2679 = vld [vmem:[%s5 + $0x58c] sm:$0xf]
    %v2680 = vld [vmem:[%s5 + $0x590] sm:$0xf]
    %v2681 = vld [vmem:[%s5 + $0x594] sm:$0xf]
    %v2682 = vld [vmem:[%s5 + $0x598] sm:$0xf]
    %v2683 = vld [vmem:[%s5 + $0x59c] sm:$0xf]
    %v2684 = vld [vmem:[%s5 + $0x5a0] sm:$0xf]
    %v2685 = vld [vmem:[%s5 + $0x5a4] sm:$0xf]
    %v2686 = vld [vmem:[%s5 + $0x5a8] sm:$0xf]
    %v2687 = vld [vmem:[%s5 + $0x5ac] sm:$0xf]
    %v2688 = vld [vmem:[%s5 + $0x5b0] sm:$0xf]
    %v2689 = vld [vmem:[%s5 + $0x5b4] sm:$0xf]
    %v2690 = vld [vmem:[%s5 + $0x5b8] sm:$0xf]
    %v2691 = vld [vmem:[%s5 + $0x5bc] sm:$0xf]
    %v2692 = vld [vmem:[%s5 + $0x5c0] sm:$0xf]
    %v2693 = vld [vmem:[%s5 + $0x5c4] sm:$0xf]
    %v2694 = vld [vmem:[%s5 + $0x5c8] sm:$0xf]
    %v2695 = vld [vmem:[%s5 + $0x5cc] sm:$0xf]
    %v2696 = vld [vmem:[%s5 + $0x5d0] sm:$0xf]
    %v2697 = vld [vmem:[%s5 + $0x5d4] sm:$0xf]
    %v2698 = vld [vmem:[%s5 + $0x5d8] sm:$0xf]
    %v2699 = vld [vmem:[%s5 + $0x5dc] sm:$0xf]
    %v2700 = vld [vmem:[%s5 + $0x5e0] sm:$0xf]
    %v2701 = vld [vmem:[%s5 + $0x5e4] sm:$0xf]
    %v2702 = vld [vmem:[%s5 + $0x5e8] sm:$0xf]
    %v2703 = vld [vmem:[%s5 + $0x5ec] sm:$0xf]
    %v2704 = vld [vmem:[%s5 + $0x5f0] sm:$0xf]
    %v2705 = vld [vmem:[%s5 + $0x5f4] sm:$0xf]
    %v2706 = vld [vmem:[%s5 + $0x5f8] sm:$0xf]
    %v2707 = vld [vmem:[%s5 + $0x5fc] sm:$0xf]
    %v2708 = vld [vmem:[%s5 + $0x600] sm:$0xf]
    %v2709 = vld [vmem:[%s5 + $0x604] sm:$0xf]
    %v2710 = vld [vmem:[%s5 + $0x608] sm:$0xf]
    %v2711 = vld [vmem:[%s5 + $0x60c] sm:$0xf]
    %v2712 = vld [vmem:[%s5 + $0x610] sm:$0xf]
    %v2713 = vld [vmem:[%s5 + $0x614] sm:$0xf]
    %v2714 = vld [vmem:[%s5 + $0x618] sm:$0xf]
    %v2715 = vld [vmem:[%s5 + $0x61c] sm:$0xf]
    %v2716 = vld [vmem:[%s5 + $0x620] sm:$0xf]
    %v2717 = vld [vmem:[%s5 + $0x624] sm:$0xf]
    %v2718 = vld [vmem:[%s5 + $0x628] sm:$0xf]
    %v2719 = vld [vmem:[%s5 + $0x62c] sm:$0xf]
    %v2720 = vld [vmem:[%s5 + $0x630] sm:$0xf]
    %v2721 = vld [vmem:[%s5 + $0x634] sm:$0xf]
    %v2722 = vld [vmem:[%s5 + $0x638] sm:$0xf]
    %v2723 = vld [vmem:[%s5 + $0x63c] sm:$0xf]
    %v2724 = vld [vmem:[%s6] sm:$0x1]
    %v2726 = vlaneseq
    %v2727 = vshrl.u32 %v2726, 7
    %v2728 = vsub.s32 0, %v2727
    %v2729 = vrot.slane %v2724, %v2728
    %v3131 = vunpack.c.l.b16 %v2324
    %v3132 = vunpack.c.l.b16 %v2325
    %v3133 = vunpack.c.l.b16 %v2326
    %v3134 = vunpack.c.l.b16 %v2327
    %v3135 = vunpack.c.l.b16 %v2328
    %v3136 = vunpack.c.l.b16 %v2329
    %v3137 = vunpack.c.l.b16 %v2330
    %v3138 = vunpack.c.l.b16 %v2331
    %v3139 = vunpack.c.l.b16 %v2332
    %v3140 = vunpack.c.l.b16 %v2333
    %v3141 = vunpack.c.l.b16 %v2334
    %v3142 = vunpack.c.l.b16 %v2335
    %v3143 = vunpack.c.l.b16 %v2336
    %v3144 = vunpack.c.l.b16 %v2337
    %v3145 = vunpack.c.l.b16 %v2338
    %v3146 = vunpack.c.l.b16 %v2339
    %v3147 = vunpack.c.l.b16 %v2340
    %v3148 = vunpack.c.l.b16 %v2341
    %v3149 = vunpack.c.l.b16 %v2342
    %v3150 = vunpack.c.l.b16 %v2343
    %v3151 = vunpack.c.l.b16 %v2344
    %v3152 = vunpack.c.l.b16 %v2345
    %v3153 = vunpack.c.l.b16 %v2346
    %v3154 = vunpack.c.l.b16 %v2347
    %v3155 = vunpack.c.l.b16 %v2348
    %v3156 = vunpack.c.l.b16 %v2349
    %v3157 = vunpack.c.l.b16 %v2350
    %v3158 = vunpack.c.l.b16 %v2351
    %v3159 = vunpack.c.l.b16 %v2352
    %v3160 = vunpack.c.l.b16 %v2353
    %v3161 = vunpack.c.l.b16 %v2354
    %v3162 = vunpack.c.l.b16 %v2355
    %v3163 = vunpack.c.l.b16 %v2356
    %v3164 = vunpack.c.l.b16 %v2357
    %v3165 = vunpack.c.l.b16 %v2358
    %v3166 = vunpack.c.l.b16 %v2359
    %v3167 = vunpack.c.l.b16 %v2360
    %v3168 = vunpack.c.l.b16 %v2361
    %v3169 = vunpack.c.l.b16 %v2362
    %v3170 = vunpack.c.l.b16 %v2363
    %v3171 = vunpack.c.l.b16 %v2364
    %v3172 = vunpack.c.l.b16 %v2365
    %v3173 = vunpack.c.l.b16 %v2366
    %v3174 = vunpack.c.l.b16 %v2367
    %v3175 = vunpack.c.l.b16 %v2368
    %v3176 = vunpack.c.l.b16 %v2369
    %v3177 = vunpack.c.l.b16 %v2370
    %v3178 = vunpack.c.l.b16 %v2371
    %v3179 = vunpack.c.l.b16 %v2372
    %v3180 = vunpack.c.l.b16 %v2373
    %v3181 = vunpack.c.l.b16 %v2374
    %v3182 = vunpack.c.l.b16 %v2375
    %v3183 = vunpack.c.l.b16 %v2376
    %v3184 = vunpack.c.l.b16 %v2377
    %v3185 = vunpack.c.l.b16 %v2378
    %v3186 = vunpack.c.l.b16 %v2379
    %v3187 = vunpack.c.l.b16 %v2380
    %v3188 = vunpack.c.l.b16 %v2381
    %v3189 = vunpack.c.l.b16 %v2382
    %v3190 = vunpack.c.l.b16 %v2383
    %v3191 = vunpack.c.l.b16 %v2384
    %v3192 = vunpack.c.l.b16 %v2385
    %v3193 = vunpack.c.l.b16 %v2386
    %v3194 = vunpack.c.l.b16 %v2387
    %v3195 = vunpack.c.l.b16 %v2388
    %v3196 = vunpack.c.l.b16 %v2389
    %v3197 = vunpack.c.l.b16 %v2390
    %v3198 = vunpack.c.l.b16 %v2391
    %v3199 = vunpack.c.l.b16 %v2392
    %v3200 = vunpack.c.l.b16 %v2393
    %v3201 = vunpack.c.l.b16 %v2394
    %v3202 = vunpack.c.l.b16 %v2395
    %v3203 = vunpack.c.l.b16 %v2396
    %v3204 = vunpack.c.l.b16 %v2397
    %v3205 = vunpack.c.l.b16 %v2398
    %v3206 = vunpack.c.l.b16 %v2399
    %v3207 = vunpack.c.l.b16 %v2400
    %v3208 = vunpack.c.l.b16 %v2401
    %v3209 = vunpack.c.l.b16 %v2402
    %v3210 = vunpack.c.l.b16 %v2403
    %v3211 = vunpack.c.l.b16 %v2404
    %v3212 = vunpack.c.l.b16 %v2405
    %v3213 = vunpack.c.l.b16 %v2406
    %v3214 = vunpack.c.l.b16 %v2407
    %v3215 = vunpack.c.l.b16 %v2408
    %v3216 = vunpack.c.l.b16 %v2409
    %v3217 = vunpack.c.l.b16 %v2410
    %v3218 = vunpack.c.l.b16 %v2411
    %v3219 = vunpack.c.l.b16 %v2412
    %v3220 = vunpack.c.l.b16 %v2413
    %v3221 = vunpack.c.l.b16 %v2414
    %v3222 = vunpack.c.l.b16 %v2415
    %v3223 = vunpack.c.l.b16 %v2416
    %v3224 = vunpack.c.l.b16 %v2417
    %v3225 = vunpack.c.l.b16 %v2418
    %v3226 = vunpack.c.l.b16 %v2419
    %v3227 = vunpack.c.l.b16 %v2420
    %v3228 = vunpack.c.l.b16 %v2421
    %v3229 = vunpack.c.l.b16 %v2422
    %v3230 = vunpack.c.l.b16 %v2423
    %v3231 = vunpack.c.l.b16 %v2424
    %v3232 = vunpack.c.l.b16 %v2425
    %v3233 = vunpack.c.l.b16 %v2426
    %v3234 = vunpack.c.l.b16 %v2427
    %v3235 = vunpack.c.l.b16 %v2428
    %v3236 = vunpack.c.l.b16 %v2429
    %v3237 = vunpack.c.l.b16 %v2430
    %v3238 = vunpack.c.l.b16 %v2431
    %v3239 = vunpack.c.l.b16 %v2432
    %v3240 = vunpack.c.l.b16 %v2433
    %v3241 = vunpack.c.l.b16 %v2434
    %v3242 = vunpack.c.l.b16 %v2435
    %v3243 = vunpack.c.l.b16 %v2436
    %v3244 = vunpack.c.l.b16 %v2437
    %v3245 = vunpack.c.l.b16 %v2438
    %v3246 = vunpack.c.l.b16 %v2439
    %v3247 = vunpack.c.l.b16 %v2440
    %v3248 = vunpack.c.l.b16 %v2441
    %v3249 = vunpack.c.l.b16 %v2442
    %v3250 = vunpack.c.l.b16 %v2443
    %v3251 = vunpack.c.l.b16 %v2444
    %v3252 = vunpack.c.l.b16 %v2445
    %v3253 = vunpack.c.l.b16 %v2446
    %v3254 = vunpack.c.l.b16 %v2447
    %v3255 = vunpack.c.l.b16 %v2448
    %v3256 = vunpack.c.l.b16 %v2449
    %v3257 = vunpack.c.l.b16 %v2450
    %v3258 = vunpack.c.l.b16 %v2451
    %v3259 = vunpack.c.l.b16 %v2452
    %v3260 = vunpack.c.l.b16 %v2453
    %v3261 = vunpack.c.l.b16 %v2454
    %v3262 = vunpack.c.l.b16 %v2455
    %v3263 = vunpack.c.l.b16 %v2456
    %v3264 = vunpack.c.l.b16 %v2457
    %v3265 = vunpack.c.l.b16 %v2458
    %v3266 = vunpack.c.l.b16 %v2459
    %v3267 = vunpack.c.l.b16 %v2460
    %v3268 = vunpack.c.l.b16 %v2461
    %v3269 = vunpack.c.l.b16 %v2462
    %v3270 = vunpack.c.l.b16 %v2463
    %v3271 = vunpack.c.l.b16 %v2464
    %v3272 = vunpack.c.l.b16 %v2465
    %v3273 = vunpack.c.l.b16 %v2466
    %v3274 = vunpack.c.l.b16 %v2467
    %v3275 = vunpack.c.l.b16 %v2468
    %v3276 = vunpack.c.l.b16 %v2469
    %v3277 = vunpack.c.l.b16 %v2470
    %v3278 = vunpack.c.l.b16 %v2471
    %v3279 = vunpack.c.l.b16 %v2472
    %v3280 = vunpack.c.l.b16 %v2473
    %v3281 = vunpack.c.l.b16 %v2474
    %v3282 = vunpack.c.l.b16 %v2475
    %v3283 = vunpack.c.l.b16 %v2476
    %v3284 = vunpack.c.l.b16 %v2477
    %v3285 = vunpack.c.l.b16 %v2478
    %v3286 = vunpack.c.l.b16 %v2479
    %v3287 = vunpack.c.l.b16 %v2480
    %v3288 = vunpack.c.l.b16 %v2481
    %v3289 = vunpack.c.l.b16 %v2482
    %v3290 = vunpack.c.l.b16 %v2483
    %v3291 = vunpack.c.l.b16 %v2484
    %v3292 = vunpack.c.l.b16 %v2485
    %v3293 = vunpack.c.l.b16 %v2486
    %v3294 = vunpack.c.l.b16 %v2487
    %v3295 = vunpack.c.l.b16 %v2488
    %v3296 = vunpack.c.l.b16 %v2489
    %v3297 = vunpack.c.l.b16 %v2490
    %v3298 = vunpack.c.l.b16 %v2491
    %v3299 = vunpack.c.l.b16 %v2492
    %v3300 = vunpack.c.l.b16 %v2493
    %v3301 = vunpack.c.l.b16 %v2494
    %v3302 = vunpack.c.l.b16 %v2495
    %v3303 = vunpack.c.l.b16 %v2496
    %v3304 = vunpack.c.l.b16 %v2497
    %v3305 = vunpack.c.l.b16 %v2498
    %v3306 = vunpack.c.l.b16 %v2499
    %v3307 = vunpack.c.l.b16 %v2500
    %v3308 = vunpack.c.l.b16 %v2501
    %v3309 = vunpack.c.l.b16 %v2502
    %v3310 = vunpack.c.l.b16 %v2503
    %v3311 = vunpack.c.l.b16 %v2504
    %v3312 = vunpack.c.l.b16 %v2505
    %v3313 = vunpack.c.l.b16 %v2506
    %v3314 = vunpack.c.l.b16 %v2507
    %v3315 = vunpack.c.l.b16 %v2508
    %v3316 = vunpack.c.l.b16 %v2509
    %v3317 = vunpack.c.l.b16 %v2510
    %v3318 = vunpack.c.l.b16 %v2511
    %v3319 = vunpack.c.l.b16 %v2512
    %v3320 = vunpack.c.l.b16 %v2513
    %v3321 = vunpack.c.l.b16 %v2514
    %v3322 = vunpack.c.l.b16 %v2515
    %v3323 = vunpack.c.l.b16 %v2516
    %v3324 = vunpack.c.l.b16 %v2517
    %v3325 = vunpack.c.l.b16 %v2518
    %v3326 = vunpack.c.l.b16 %v2519
    %v3327 = vunpack.c.l.b16 %v2520
    %v3328 = vunpack.c.l.b16 %v2521
    %v3329 = vunpack.c.l.b16 %v2522
    %v3330 = vunpack.c.l.b16 %v2523
    %v3331 = vunpack.c.l.b16 %v2524
    %v3332 = vunpack.c.l.b16 %v2525
    %v3333 = vunpack.c.l.b16 %v2526
    %v3334 = vunpack.c.l.b16 %v2527
    %v3335 = vunpack.c.l.b16 %v2528
    %v3336 = vunpack.c.l.b16 %v2529
    %v3337 = vunpack.c.l.b16 %v2530
    %v3338 = vunpack.c.l.b16 %v2531
    %v3339 = vunpack.c.l.b16 %v2532
    %v3340 = vunpack.c.l.b16 %v2533
    %v3341 = vunpack.c.l.b16 %v2534
    %v3342 = vunpack.c.l.b16 %v2535
    %v3343 = vunpack.c.l.b16 %v2536
    %v3344 = vunpack.c.l.b16 %v2537
    %v3345 = vunpack.c.l.b16 %v2538
    %v3346 = vunpack.c.l.b16 %v2539
    %v3347 = vunpack.c.l.b16 %v2540
    %v3348 = vunpack.c.l.b16 %v2541
    %v3349 = vunpack.c.l.b16 %v2542
    %v3350 = vunpack.c.l.b16 %v2543
    %v3351 = vunpack.c.l.b16 %v2544
    %v3352 = vunpack.c.l.b16 %v2545
    %v3353 = vunpack.c.l.b16 %v2546
    %v3354 = vunpack.c.l.b16 %v2547
    %v3355 = vunpack.c.l.b16 %v2548
    %v3356 = vunpack.c.l.b16 %v2549
    %v3357 = vunpack.c.l.b16 %v2550
    %v3358 = vunpack.c.l.b16 %v2551
    %v3359 = vunpack.c.l.b16 %v2552
    %v3360 = vunpack.c.l.b16 %v2553
    %v3361 = vunpack.c.l.b16 %v2554
    %v3362 = vunpack.c.l.b16 %v2555
    %v3363 = vunpack.c.l.b16 %v2556
    %v3364 = vunpack.c.l.b16 %v2557
    %v3365 = vunpack.c.l.b16 %v2558
    %v3366 = vunpack.c.l.b16 %v2559
    %v3367 = vunpack.c.l.b16 %v2560
    %v3368 = vunpack.c.l.b16 %v2561
    %v3369 = vunpack.c.l.b16 %v2562
    %v3370 = vunpack.c.l.b16 %v2563
    %v3371 = vunpack.c.l.b16 %v2564
    %v3372 = vunpack.c.l.b16 %v2565
    %v3373 = vunpack.c.l.b16 %v2566
    %v3374 = vunpack.c.l.b16 %v2567
    %v3375 = vunpack.c.l.b16 %v2568
    %v3376 = vunpack.c.l.b16 %v2569
    %v3377 = vunpack.c.l.b16 %v2570
    %v3378 = vunpack.c.l.b16 %v2571
    %v3379 = vunpack.c.l.b16 %v2572
    %v3380 = vunpack.c.l.b16 %v2573
    %v3381 = vunpack.c.l.b16 %v2574
    %v3382 = vunpack.c.l.b16 %v2575
    %v3383 = vunpack.c.l.b16 %v2576
    %v3384 = vunpack.c.l.b16 %v2577
    %v3385 = vunpack.c.l.b16 %v2578
    %v3386 = vunpack.c.l.b16 %v2579
    %v3387 = vunpack.c.l.b16 %v2580
    %v3388 = vunpack.c.l.b16 %v2581
    %v3389 = vunpack.c.l.b16 %v2582
    %v3390 = vunpack.c.l.b16 %v2583
    %v3391 = vunpack.c.l.b16 %v2584
    %v3392 = vunpack.c.l.b16 %v2585
    %v3393 = vunpack.c.l.b16 %v2586
    %v3394 = vunpack.c.l.b16 %v2587
    %v3395 = vunpack.c.l.b16 %v2588
    %v3396 = vunpack.c.l.b16 %v2589
    %v3397 = vunpack.c.l.b16 %v2590
    %v3398 = vunpack.c.l.b16 %v2591
    %v3399 = vunpack.c.l.b16 %v2592
    %v3400 = vunpack.c.l.b16 %v2593
    %v3401 = vunpack.c.l.b16 %v2594
    %v3402 = vunpack.c.l.b16 %v2595
    %v3403 = vunpack.c.l.b16 %v2596
    %v3404 = vunpack.c.l.b16 %v2597
    %v3405 = vunpack.c.l.b16 %v2598
    %v3406 = vunpack.c.l.b16 %v2599
    %v3407 = vunpack.c.l.b16 %v2600
    %v3408 = vunpack.c.l.b16 %v2601
    %v3409 = vunpack.c.l.b16 %v2602
    %v3410 = vunpack.c.l.b16 %v2603
    %v3411 = vunpack.c.l.b16 %v2604
    %v3412 = vunpack.c.l.b16 %v2605
    %v3413 = vunpack.c.l.b16 %v2606
    %v3414 = vunpack.c.l.b16 %v2607
    %v3415 = vunpack.c.l.b16 %v2608
    %v3416 = vunpack.c.l.b16 %v2609
    %v3417 = vunpack.c.l.b16 %v2610
    %v3418 = vunpack.c.l.b16 %v2611
    %v3419 = vunpack.c.l.b16 %v2612
    %v3420 = vunpack.c.l.b16 %v2613
    %v3421 = vunpack.c.l.b16 %v2614
    %v3422 = vunpack.c.l.b16 %v2615
    %v3423 = vunpack.c.l.b16 %v2616
    %v3424 = vunpack.c.l.b16 %v2617
    %v3425 = vunpack.c.l.b16 %v2618
    %v3426 = vunpack.c.l.b16 %v2619
    %v3427 = vunpack.c.l.b16 %v2620
    %v3428 = vunpack.c.l.b16 %v2621
    %v3429 = vunpack.c.l.b16 %v2622
    %v3430 = vunpack.c.l.b16 %v2623
    %v3431 = vunpack.c.l.b16 %v2624
    %v3432 = vunpack.c.l.b16 %v2625
    %v3433 = vunpack.c.l.b16 %v2626
    %v3434 = vunpack.c.l.b16 %v2627
    %v3435 = vunpack.c.l.b16 %v2628
    %v3436 = vunpack.c.l.b16 %v2629
    %v3437 = vunpack.c.l.b16 %v2630
    %v3438 = vunpack.c.l.b16 %v2631
    %v3439 = vunpack.c.l.b16 %v2632
    %v3440 = vunpack.c.l.b16 %v2633
    %v3441 = vunpack.c.l.b16 %v2634
    %v3442 = vunpack.c.l.b16 %v2635
    %v3443 = vunpack.c.l.b16 %v2636
    %v3444 = vunpack.c.l.b16 %v2637
    %v3445 = vunpack.c.l.b16 %v2638
    %v3446 = vunpack.c.l.b16 %v2639
    %v3447 = vunpack.c.l.b16 %v2640
    %v3448 = vunpack.c.l.b16 %v2641
    %v3449 = vunpack.c.l.b16 %v2642
    %v3450 = vunpack.c.l.b16 %v2643
    %v3451 = vunpack.c.l.b16 %v2644
    %v3452 = vunpack.c.l.b16 %v2645
    %v3453 = vunpack.c.l.b16 %v2646
    %v3454 = vunpack.c.l.b16 %v2647
    %v3455 = vunpack.c.l.b16 %v2648
    %v3456 = vunpack.c.l.b16 %v2649
    %v3457 = vunpack.c.l.b16 %v2650
    %v3458 = vunpack.c.l.b16 %v2651
    %v3459 = vunpack.c.l.b16 %v2652
    %v3460 = vunpack.c.l.b16 %v2653
    %v3461 = vunpack.c.l.b16 %v2654
    %v3462 = vunpack.c.l.b16 %v2655
    %v3463 = vunpack.c.l.b16 %v2656
    %v3464 = vunpack.c.l.b16 %v2657
    %v3465 = vunpack.c.l.b16 %v2658
    %v3466 = vunpack.c.l.b16 %v2659
    %v3467 = vunpack.c.l.b16 %v2660
    %v3468 = vunpack.c.l.b16 %v2661
    %v3469 = vunpack.c.l.b16 %v2662
    %v3470 = vunpack.c.l.b16 %v2663
    %v3471 = vunpack.c.l.b16 %v2664
    %v3472 = vunpack.c.l.b16 %v2665
    %v3473 = vunpack.c.l.b16 %v2666
    %v3474 = vunpack.c.l.b16 %v2667
    %v3475 = vunpack.c.l.b16 %v2668
    %v3476 = vunpack.c.l.b16 %v2669
    %v3477 = vunpack.c.l.b16 %v2670
    %v3478 = vunpack.c.l.b16 %v2671
    %v3479 = vunpack.c.l.b16 %v2672
    %v3480 = vunpack.c.l.b16 %v2673
    %v3481 = vunpack.c.l.b16 %v2674
    %v3482 = vunpack.c.l.b16 %v2675
    %v3483 = vunpack.c.l.b16 %v2676
    %v3484 = vunpack.c.l.b16 %v2677
    %v3485 = vunpack.c.l.b16 %v2678
    %v3486 = vunpack.c.l.b16 %v2679
    %v3487 = vunpack.c.l.b16 %v2680
    %v3488 = vunpack.c.l.b16 %v2681
    %v3489 = vunpack.c.l.b16 %v2682
    %v3490 = vunpack.c.l.b16 %v2683
    %v3491 = vunpack.c.l.b16 %v2684
    %v3492 = vunpack.c.l.b16 %v2685
    %v3493 = vunpack.c.l.b16 %v2686
    %v3494 = vunpack.c.l.b16 %v2687
    %v3495 = vunpack.c.l.b16 %v2688
    %v3496 = vunpack.c.l.b16 %v2689
    %v3497 = vunpack.c.l.b16 %v2690
    %v3498 = vunpack.c.l.b16 %v2691
    %v3499 = vunpack.c.l.b16 %v2692
    %v3500 = vunpack.c.l.b16 %v2693
    %v3501 = vunpack.c.l.b16 %v2694
    %v3502 = vunpack.c.l.b16 %v2695
    %v3503 = vunpack.c.l.b16 %v2696
    %v3504 = vunpack.c.l.b16 %v2697
    %v3505 = vunpack.c.l.b16 %v2698
    %v3506 = vunpack.c.l.b16 %v2699
    %v3507 = vunpack.c.l.b16 %v2700
    %v3508 = vunpack.c.l.b16 %v2701
    %v3509 = vunpack.c.l.b16 %v2702
    %v3510 = vunpack.c.l.b16 %v2703
    %v3511 = vunpack.c.l.b16 %v2704
    %v3512 = vunpack.c.l.b16 %v2705
    %v3513 = vunpack.c.l.b16 %v2706
    %v3514 = vunpack.c.l.b16 %v2707
    %v3515 = vunpack.c.l.b16 %v2708
    %v3516 = vunpack.c.l.b16 %v2709
    %v3517 = vunpack.c.l.b16 %v2710
    %v3518 = vunpack.c.l.b16 %v2711
    %v3519 = vunpack.c.l.b16 %v2712
    %v3520 = vunpack.c.l.b16 %v2713
    %v3521 = vunpack.c.l.b16 %v2714
    %v3522 = vunpack.c.l.b16 %v2715
    %v3523 = vunpack.c.l.b16 %v2716
    %v3524 = vunpack.c.l.b16 %v2717
    %v3525 = vunpack.c.l.b16 %v2718
    %v3526 = vunpack.c.l.b16 %v2719
    %v3527 = vunpack.c.l.b16 %v2720
    %v3528 = vunpack.c.l.b16 %v2721
    %v3529 = vunpack.c.l.b16 %v2722
    %v3530 = vunpack.c.l.b16 %v2723
    %v3531 = vpack.c.b16 %v3132, %v3131
    %v3532 = vpack.c.b16 %v3134, %v3133
    %v3533 = vpack.c.b16 %v3136, %v3135
    %v3534 = vpack.c.b16 %v3138, %v3137
    %v3535 = vpack.c.b16 %v3140, %v3139
    %v3536 = vpack.c.b16 %v3142, %v3141
    %v3537 = vpack.c.b16 %v3144, %v3143
    %v3538 = vpack.c.b16 %v3146, %v3145
    %v3539 = vpack.c.b16 %v3148, %v3147
    %v3540 = vpack.c.b16 %v3150, %v3149
    %v3541 = vpack.c.b16 %v3152, %v3151
    %v3542 = vpack.c.b16 %v3154, %v3153
    %v3543 = vpack.c.b16 %v3156, %v3155
    %v3544 = vpack.c.b16 %v3158, %v3157
    %v3545 = vpack.c.b16 %v3160, %v3159
    %v3546 = vpack.c.b16 %v3162, %v3161
    %v3547 = vpack.c.b16 %v3164, %v3163
    %v3548 = vpack.c.b16 %v3166, %v3165
    %v3549 = vpack.c.b16 %v3168, %v3167
    %v3550 = vpack.c.b16 %v3170, %v3169
    %v3551 = vpack.c.b16 %v3172, %v3171
    %v3552 = vpack.c.b16 %v3174, %v3173
    %v3553 = vpack.c.b16 %v3176, %v3175
    %v3554 = vpack.c.b16 %v3178, %v3177
    %v3555 = vpack.c.b16 %v3180, %v3179
    %v3556 = vpack.c.b16 %v3182, %v3181
    %v3557 = vpack.c.b16 %v3184, %v3183
    %v3558 = vpack.c.b16 %v3186, %v3185
    %v3559 = vpack.c.b16 %v3188, %v3187
    %v3560 = vpack.c.b16 %v3190, %v3189
    %v3561 = vpack.c.b16 %v3192, %v3191
    %v3562 = vpack.c.b16 %v3194, %v3193
    %v3563 = vpack.c.b16 %v3196, %v3195
    %v3564 = vpack.c.b16 %v3198, %v3197
    %v3565 = vpack.c.b16 %v3200, %v3199
    %v3566 = vpack.c.b16 %v3202, %v3201
    %v3567 = vpack.c.b16 %v3204, %v3203
    %v3568 = vpack.c.b16 %v3206, %v3205
    %v3569 = vpack.c.b16 %v3208, %v3207
    %v3570 = vpack.c.b16 %v3210, %v3209
    %v3571 = vpack.c.b16 %v3212, %v3211
    %v3572 = vpack.c.b16 %v3214, %v3213
    %v3573 = vpack.c.b16 %v3216, %v3215
    %v3574 = vpack.c.b16 %v3218, %v3217
    %v3575 = vpack.c.b16 %v3220, %v3219
    %v3576 = vpack.c.b16 %v3222, %v3221
    %v3577 = vpack.c.b16 %v3224, %v3223
    %v3578 = vpack.c.b16 %v3226, %v3225
    %v3579 = vpack.c.b16 %v3228, %v3227
    %v3580 = vpack.c.b16 %v3230, %v3229
    %v3581 = vpack.c.b16 %v3232, %v3231
    %v3582 = vpack.c.b16 %v3234, %v3233
    %v3583 = vpack.c.b16 %v3236, %v3235
    %v3584 = vpack.c.b16 %v3238, %v3237
    %v3585 = vpack.c.b16 %v3240, %v3239
    %v3586 = vpack.c.b16 %v3242, %v3241
    %v3587 = vpack.c.b16 %v3244, %v3243
    %v3588 = vpack.c.b16 %v3246, %v3245
    %v3589 = vpack.c.b16 %v3248, %v3247
    %v3590 = vpack.c.b16 %v3250, %v3249
    %v3591 = vpack.c.b16 %v3252, %v3251
    %v3592 = vpack.c.b16 %v3254, %v3253
    %v3593 = vpack.c.b16 %v3256, %v3255
    %v3594 = vpack.c.b16 %v3258, %v3257
    %v3595 = vpack.c.b16 %v3260, %v3259
    %v3596 = vpack.c.b16 %v3262, %v3261
    %v3597 = vpack.c.b16 %v3264, %v3263
    %v3598 = vpack.c.b16 %v3266, %v3265
    %v3599 = vpack.c.b16 %v3268, %v3267
    %v3600 = vpack.c.b16 %v3270, %v3269
    %v3601 = vpack.c.b16 %v3272, %v3271
    %v3602 = vpack.c.b16 %v3274, %v3273
    %v3603 = vpack.c.b16 %v3276, %v3275
    %v3604 = vpack.c.b16 %v3278, %v3277
    %v3605 = vpack.c.b16 %v3280, %v3279
    %v3606 = vpack.c.b16 %v3282, %v3281
    %v3607 = vpack.c.b16 %v3284, %v3283
    %v3608 = vpack.c.b16 %v3286, %v3285
    %v3609 = vpack.c.b16 %v3288, %v3287
    %v3610 = vpack.c.b16 %v3290, %v3289
    %v3611 = vpack.c.b16 %v3292, %v3291
    %v3612 = vpack.c.b16 %v3294, %v3293
    %v3613 = vpack.c.b16 %v3296, %v3295
    %v3614 = vpack.c.b16 %v3298, %v3297
    %v3615 = vpack.c.b16 %v3300, %v3299
    %v3616 = vpack.c.b16 %v3302, %v3301
    %v3617 = vpack.c.b16 %v3304, %v3303
    %v3618 = vpack.c.b16 %v3306, %v3305
    %v3619 = vpack.c.b16 %v3308, %v3307
    %v3620 = vpack.c.b16 %v3310, %v3309
    %v3621 = vpack.c.b16 %v3312, %v3311
    %v3622 = vpack.c.b16 %v3314, %v3313
    %v3623 = vpack.c.b16 %v3316, %v3315
    %v3624 = vpack.c.b16 %v3318, %v3317
    %v3625 = vpack.c.b16 %v3320, %v3319
    %v3626 = vpack.c.b16 %v3322, %v3321
    %v3627 = vpack.c.b16 %v3324, %v3323
    %v3628 = vpack.c.b16 %v3326, %v3325
    %v3629 = vpack.c.b16 %v3328, %v3327
    %v3630 = vpack.c.b16 %v3330, %v3329
    %v3631 = vpack.c.b16 %v3332, %v3331
    %v3632 = vpack.c.b16 %v3334, %v3333
    %v3633 = vpack.c.b16 %v3336, %v3335
    %v3634 = vpack.c.b16 %v3338, %v3337
    %v3635 = vpack.c.b16 %v3340, %v3339
    %v3636 = vpack.c.b16 %v3342, %v3341
    %v3637 = vpack.c.b16 %v3344, %v3343
    %v3638 = vpack.c.b16 %v3346, %v3345
    %v3639 = vpack.c.b16 %v3348, %v3347
    %v3640 = vpack.c.b16 %v3350, %v3349
    %v3641 = vpack.c.b16 %v3352, %v3351
    %v3642 = vpack.c.b16 %v3354, %v3353
    %v3643 = vpack.c.b16 %v3356, %v3355
    %v3644 = vpack.c.b16 %v3358, %v3357
    %v3645 = vpack.c.b16 %v3360, %v3359
    %v3646 = vpack.c.b16 %v3362, %v3361
    %v3647 = vpack.c.b16 %v3364, %v3363
    %v3648 = vpack.c.b16 %v3366, %v3365
    %v3649 = vpack.c.b16 %v3368, %v3367
    %v3650 = vpack.c.b16 %v3370, %v3369
    %v3651 = vpack.c.b16 %v3372, %v3371
    %v3652 = vpack.c.b16 %v3374, %v3373
    %v3653 = vpack.c.b16 %v3376, %v3375
    %v3654 = vpack.c.b16 %v3378, %v3377
    %v3655 = vpack.c.b16 %v3380, %v3379
    %v3656 = vpack.c.b16 %v3382, %v3381
    %v3657 = vpack.c.b16 %v3384, %v3383
    %v3658 = vpack.c.b16 %v3386, %v3385
    %v3659 = vpack.c.b16 %v3388, %v3387
    %v3660 = vpack.c.b16 %v3390, %v3389
    %v3661 = vpack.c.b16 %v3392, %v3391
    %v3662 = vpack.c.b16 %v3394, %v3393
    %v3663 = vpack.c.b16 %v3396, %v3395
    %v3664 = vpack.c.b16 %v3398, %v3397
    %v3665 = vpack.c.b16 %v3400, %v3399
    %v3666 = vpack.c.b16 %v3402, %v3401
    %v3667 = vpack.c.b16 %v3404, %v3403
    %v3668 = vpack.c.b16 %v3406, %v3405
    %v3669 = vpack.c.b16 %v3408, %v3407
    %v3670 = vpack.c.b16 %v3410, %v3409
    %v3671 = vpack.c.b16 %v3412, %v3411
    %v3672 = vpack.c.b16 %v3414, %v3413
    %v3673 = vpack.c.b16 %v3416, %v3415
    %v3674 = vpack.c.b16 %v3418, %v3417
    %v3675 = vpack.c.b16 %v3420, %v3419
    %v3676 = vpack.c.b16 %v3422, %v3421
    %v3677 = vpack.c.b16 %v3424, %v3423
    %v3678 = vpack.c.b16 %v3426, %v3425
    %v3679 = vpack.c.b16 %v3428, %v3427
    %v3680 = vpack.c.b16 %v3430, %v3429
    %v3681 = vpack.c.b16 %v3432, %v3431
    %v3682 = vpack.c.b16 %v3434, %v3433
    %v3683 = vpack.c.b16 %v3436, %v3435
    %v3684 = vpack.c.b16 %v3438, %v3437
    %v3685 = vpack.c.b16 %v3440, %v3439
    %v3686 = vpack.c.b16 %v3442, %v3441
    %v3687 = vpack.c.b16 %v3444, %v3443
    %v3688 = vpack.c.b16 %v3446, %v3445
    %v3689 = vpack.c.b16 %v3448, %v3447
    %v3690 = vpack.c.b16 %v3450, %v3449
    %v3691 = vpack.c.b16 %v3452, %v3451
    %v3692 = vpack.c.b16 %v3454, %v3453
    %v3693 = vpack.c.b16 %v3456, %v3455
    %v3694 = vpack.c.b16 %v3458, %v3457
    %v3695 = vpack.c.b16 %v3460, %v3459
    %v3696 = vpack.c.b16 %v3462, %v3461
    %v3697 = vpack.c.b16 %v3464, %v3463
    %v3698 = vpack.c.b16 %v3466, %v3465
    %v3699 = vpack.c.b16 %v3468, %v3467
    %v3700 = vpack.c.b16 %v3470, %v3469
    %v3701 = vpack.c.b16 %v3472, %v3471
    %v3702 = vpack.c.b16 %v3474, %v3473
    %v3703 = vpack.c.b16 %v3476, %v3475
    %v3704 = vpack.c.b16 %v3478, %v3477
    %v3705 = vpack.c.b16 %v3480, %v3479
    %v3706 = vpack.c.b16 %v3482, %v3481
    %v3707 = vpack.c.b16 %v3484, %v3483
    %v3708 = vpack.c.b16 %v3486, %v3485
    %v3709 = vpack.c.b16 %v3488, %v3487
    %v3710 = vpack.c.b16 %v3490, %v3489
    %v3711 = vpack.c.b16 %v3492, %v3491
    %v3712 = vpack.c.b16 %v3494, %v3493
    %v3713 = vpack.c.b16 %v3496, %v3495
    %v3714 = vpack.c.b16 %v3498, %v3497
    %v3715 = vpack.c.b16 %v3500, %v3499
    %v3716 = vpack.c.b16 %v3502, %v3501
    %v3717 = vpack.c.b16 %v3504, %v3503
    %v3718 = vpack.c.b16 %v3506, %v3505
    %v3719 = vpack.c.b16 %v3508, %v3507
    %v3720 = vpack.c.b16 %v3510, %v3509
    %v3721 = vpack.c.b16 %v3512, %v3511
    %v3722 = vpack.c.b16 %v3514, %v3513
    %v3723 = vpack.c.b16 %v3516, %v3515
    %v3724 = vpack.c.b16 %v3518, %v3517
    %v3725 = vpack.c.b16 %v3520, %v3519
    %v3726 = vpack.c.b16 %v3522, %v3521
    %v3727 = vpack.c.b16 %v3524, %v3523
    %v3728 = vpack.c.b16 %v3526, %v3525
    %v3729 = vpack.c.b16 %v3528, %v3527
    %v3730 = vpack.c.b16 %v3530, %v3529
    %3931 = vmatprep.subr.bf16.mxu0 0
    %3932 = vmatpush1.bf16.msra.mxu0 %v3531
    %3933 = vmatprep.subr.bf16.mxu0 0
    %3934 = vmatpush1.bf16.msra.mxu0 %v3532
    %3935 = vmatprep.subr.bf16.mxu0 0
    %3936 = vmatpush1.bf16.msra.mxu0 %v3533
    %3937 = vmatprep.subr.bf16.mxu0 0
    %3938 = vmatpush1.bf16.msra.mxu0 %v3534
    %3939 = vmatprep.subr.bf16.mxu0 0
    %3940 = vmatpush1.bf16.msra.mxu0 %v3535
    %3941 = vmatprep.subr.bf16.mxu0 0
    %3942 = vmatpush1.bf16.msra.mxu0 %v3536
    %3943 = vmatprep.subr.bf16.mxu0 0
    %3944 = vmatpush1.bf16.msra.mxu0 %v3537
    %3945 = vmatprep.subr.bf16.mxu0 0
    %3946 = vmatpush1.bf16.msra.mxu0 %v3538
    %3947 = vmatprep.subr.bf16.mxu0 0
    %3948 = vmatpush1.bf16.msra.mxu0 %v3539
    %3949 = vmatprep.subr.bf16.mxu0 0
    %3950 = vmatpush1.bf16.msra.mxu0 %v3540
    %3951 = vmatprep.subr.bf16.mxu0 0
    %3952 = vmatpush1.bf16.msra.mxu0 %v3541
    %3953 = vmatprep.subr.bf16.mxu0 0
    %3954 = vmatpush1.bf16.msra.mxu0 %v3542
    %3955 = vmatprep.subr.bf16.mxu0 0
    %3956 = vmatpush1.bf16.msra.mxu0 %v3543
    %3957 = vmatprep.subr.bf16.mxu0 0
    %3958 = vmatpush1.bf16.msra.mxu0 %v3544
    %3959 = vmatprep.subr.bf16.mxu0 0
    %3960 = vmatpush1.bf16.msra.mxu0 %v3545
    %3961 = vmatprep.subr.bf16.mxu0 0
    %3962 = vmatpush1.bf16.msra.mxu0 %v3546
    %3963 = vmatprep.mubr.bf16.mxu0 %v2225
    %3964 = vmatmul.mubr.bf16.gmra.mrb[0].mxu0 %v2224
    %v3965 = vpop.f32.mrb[0].mxu0
    %v3966 = vadd.f32 %v2729, %v3965
    %v3967 = vpop.f32.mrb[0].mxu0
    %v3968 = vpop.f32.mrb[0].mxu0
    %v3969 = vadd.f32 %v2729, %v3968
    %v3970 = vpop.f32.mrb[0].mxu0
    %3971 = vmatprep.mubr.bf16.mxu0 %v2250
    %3972 = vmatmul.mubr.bf16.gmra.mrb[0].mxu0 %v2249
    %v3973 = vpop.f32.mrb[0].mxu0
    %v3974 = vadd.f32 %v2729, %v3973
    %v3975 = vpop.f32.mrb[0].mxu0
    %v3976 = vpop.f32.mrb[0].mxu0
    %v3977 = vadd.f32 %v2729, %v3976
    %v3978 = vpop.f32.mrb[0].mxu0
    %3979 = vmatprep.mubr.bf16.mxu0 %v2275
    %3980 = vmatmul.mubr.bf16.gmra.mrb[0].mxu0 %v2274
    %v3981 = vpop.f32.mrb[0].mxu0
    %v3982 = vadd.f32 %v2729, %v3981
    %v3983 = vpop.f32.mrb[0].mxu0
    %v3984 = vpop.f32.mrb[0].mxu0
    %v3985 = vadd.f32 %v2729, %v3984
    %v3986 = vpop.f32.mrb[0].mxu0
    %3987 = vmatprep.mubr.bf16.mxu0 %v2300
    %3988 = vmatmul.mubr.bf16.gmra.mrb[0].mxu0 %v2299
    %v3989 = vpop.f32.mrb[0].mxu0
    %v3990 = vadd.f32 %v2729, %v3989
    %v3991 = vpop.f32.mrb[0].mxu0
    %v3992 = vpop.f32.mrb[0].mxu0
    %v3993 = vpop.f32.mrb[0].mxu0
    %3994 = vdwg.mxu0
    %3995 = vmatprep.subr.bf16.mxu0 0
    %3996 = vmatpush1.bf16.msra.mxu0 %v3547
    %3997 = vmatprep.subr.bf16.mxu0 0
    %3998 = vmatpush1.bf16.msra.mxu0 %v3548
    %3999 = vmatprep.subr.bf16.mxu0 0
    %4000 = vmatpush1.bf16.msra.mxu0 %v3549
    %4001 = vmatprep.subr.bf16.mxu0 0
    %4002 = vmatpush1.bf16.msra.mxu0 %v3550
    %4003 = vmatprep.subr.bf16.mxu0 0
    %4004 = vmatpush1.bf16.msra.mxu0 %v3551
    %4005 = vmatprep.subr.bf16.mxu0 0
    %4006 = vmatpush1.bf16.msra.mxu0 %v3552
    %4007 = vmatprep.subr.bf16.mxu0 0
    %4008 = vmatpush1.bf16.msra.mxu0 %v3553
    %4009 = vmatprep.subr.bf16.mxu0 0
    %4010 = vmatpush1.bf16.msra.mxu0 %v3554
    %4011 = vmatprep.subr.bf16.mxu0 0
    %4012 = vmatpush1.bf16.msra.mxu0 %v3555
    %4013 = vmatprep.subr.bf16.mxu0 0
    %4014 = vmatpush1.bf16.msra.mxu0 %v3556
    %4015 = vmatprep.subr.bf16.mxu0 0
    %4016 = vmatpush1.bf16.msra.mxu0 %v3557
    %4017 = vmatprep.subr.bf16.mxu0 0
    %4018 = vmatpush1.bf16.msra.mxu0 %v3558
    %4019 = vmatprep.subr.bf16.mxu0 0
    %4020 = vmatpush1.bf16.msra.mxu0 %v3559
    %4021 = vmatprep.subr.bf16.mxu0 0
    %4022 = vmatpush1.bf16.msra.mxu0 %v3560
    %4023 = vmatprep.subr.bf16.mxu0 0
    %4024 = vmatpush1.bf16.msra.mxu0 %v3561
    %4025 = vmatprep.subr.bf16.mxu0 0
    %4026 = vmatpush1.bf16.msra.mxu0 %v3562
    %4027 = vmatprep.mubr.bf16.mxu0 %v2227
    %4028 = vmatmul.mubr.bf16.gmra.mrb[0].mxu0 %v2226
    %v4029 = vpop.f32.mrb[0].mxu0
    %v4030 = vadd.f32 %v3966, %v4029
    %v4031 = vpop.f32.mrb[0].mxu0
    %v4032 = vpop.f32.mrb[0].mxu0
    %v4033 = vadd.f32 %v3969, %v4032
    %v4034 = vpop.f32.mrb[0].mxu0
    %4035 = vmatprep.mubr.bf16.mxu0 %v2252
    %4036 = vmatmul.mubr.bf16.gmra.mrb[0].mxu0 %v2251
    %v4037 = vpop.f32.mrb[0].mxu0
    %v4038 = vadd.f32 %v3974, %v4037
    %v4039 = vpop.f32.mrb[0].mxu0
    %v4040 = vpop.f32.mrb[0].mxu0
    %v4041 = vadd.f32 %v3977, %v4040
    %v4042 = vpop.f32.mrb[0].mxu0
    %4043 = vmatprep.mubr.bf16.mxu0 %v2277
    %4044 = vmatmul.mubr.bf16.gmra.mrb[0].mxu0 %v2276
    %v4045 = vpop.f32.mrb[0].mxu0
    %v4046 = vadd.f32 %v3982, %v4045
    %v4047 = vpop.f32.mrb[0].mxu0
    %v4048 = vpop.f32.mrb[0].mxu0
    %v4049 = vadd.f32 %v3985, %v4048
    %v4050 = vpop.f32.mrb[0].mxu0
    %4051 = vmatprep.mubr.bf16.mxu0 %v2302
    %4052 = vmatmul.mubr.bf16.gmra.mrb[0].mxu0 %v2301
    %v4053 = vpop.f32.mrb[0].mxu0
    %v4054 = vadd.f32 %v3990, %v4053
    %v4055 = vpop.f32.mrb[0].mxu0
    %v4056 = vpop.f32.mrb[0].mxu0
    %v4057 = vpop.f32.mrb[0].mxu0
    %4058 = vdwg.mxu0
    %4059 = vmatprep.subr.bf16.mxu0 0
    %4060 = vmatpush1.bf16.msra.mxu0 %v3563
    %4061 = vmatprep.subr.bf16.mxu0 0
    %4062 = vmatpush1.bf16.msra.mxu0 %v3564
    %4063 = vmatprep.subr.bf16.mxu0 0
    %4064 = vmatpush1.bf16.msra.mxu0 %v3565
    %4065 = vmatprep.subr.bf16.mxu0 0
    %4066 = vmatpush1.bf16.msra.mxu0 %v3566
    %4067 = vmatprep.subr.bf16.mxu0 0
    %4068 = vmatpush1.bf16.msra.mxu0 %v3567
    %4069 = vmatprep.subr.bf16.mxu0 0
    %4070 = vmatpush1.bf16.msra.mxu0 %v3568
    %4071 = vmatprep.subr.bf16.mxu0 0
    %4072 = vmatpush1.bf16.msra.mxu0 %v3569
    %4073 = vmatprep.subr.bf16.mxu0 0
    %4074 = vmatpush1.bf16.msra.mxu0 %v3570
    %4075 = vmatprep.subr.bf16.mxu0 0
    %4076 = vmatpush1.bf16.msra.mxu0 %v3571
    %4077 = vmatprep.subr.bf16.mxu0 0
    %4078 = vmatpush1.bf16.msra.mxu0 %v3572
    %4079 = vmatprep.subr.bf16.mxu0 0
    %4080 = vmatpush1.bf16.msra.mxu0 %v3573
    %4081 = vmatprep.subr.bf16.mxu0 0
    %4082 = vmatpush1.bf16.msra.mxu0 %v3574
    %4083 = vmatprep.subr.bf16.mxu0 0
    %4084 = vmatpush1.bf16.msra.mxu0 %v3575
    %4085 = vmatprep.subr.bf16.mxu0 0
    %4086 = vmatpush1.bf16.msra.mxu0 %v3576
    %4087 = vmatprep.subr.bf16.mxu0 0
    %4088 = vmatpush1.bf16.msra.mxu0 %v3577
    %4089 = vmatprep.subr.bf16.mxu0 0
    %4090 = vmatpush1.bf16.msra.mxu0 %v3578
    %4091 = vmatprep.mubr.bf16.mxu0 %v2229
    %4092 = vmatmul.mubr.bf16.gmra.mrb[0].mxu0 %v2228
    %v4093 = vpop.f32.mrb[0].mxu0
    %v4094 = vadd.f32 %v4030, %v4093
    %v4095 = vpop.f32.mrb[0].mxu0
    %v4096 = vpop.f32.mrb[0].mxu0
    %v4097 = vadd.f32 %v4033, %v4096
    %v4098 = vpop.f32.mrb[0].mxu0
    %4099 = vmatprep.mubr.bf16.mxu0 %v2254
    %4100 = vmatmul.mubr.bf16.gmra.mrb[0].mxu0 %v2253
    %v4101 = vpop.f32.mrb[0].mxu0
    %v4102 = vadd.f32 %v4038, %v4101
    %v4103 = vpop.f32.mrb[0].mxu0
    %v4104 = vpop.f32.mrb[0].mxu0
    %v4105 = vadd.f32 %v4041, %v4104
    %v4106 = vpop.f32.mrb[0].mxu0
    %4107 = vmatprep.mubr.bf16.mxu0 %v2279
    %4108 = vmatmul.mubr.bf16.gmra.mrb[0].mxu0 %v2278
    %v4109 = vpop.f32.mrb[0].mxu0
    %v4110 = vadd.f32 %v4046, %v4109
    %v4111 = vpop.f32.mrb[0].mxu0
    %v4112 = vpop.f32.mrb[0].mxu0
    %v4113 = vadd.f32 %v4049, %v4112
    %v4114 = vpop.f32.mrb[0].mxu0
    %4115 = vmatprep.mubr.bf16.mxu0 %v2304
    %4116 = vmatmul.mubr.bf16.gmra.mrb[0].mxu0 %v2303
    %v4117 = vpop.f32.mrb[0].mxu0
    %v4118 = vadd.f32 %v4054, %v4117
    %v4119 = vpop.f32.mrb[0].mxu0
    %v4120 = vpop.f32.mrb[0].mxu0
    %v4121 = vpop.f32.mrb[0].mxu0
    %4122 = vdwg.mxu0
    %4123 = vmatprep.subr.bf16.mxu0 0
    %4124 = vmatpush1.bf16.msra.mxu0 %v3579
    %4125 = vmatprep.subr.bf16.mxu0 0
    %4126 = vmatpush1.bf16.msra.mxu0 %v3580
    %4127 = vmatprep.subr.bf16.mxu0 0
    %4128 = vmatpush1.bf16.msra.mxu0 %v3581
    %4129 = vmatprep.subr.bf16.mxu0 0
    %4130 = vmatpush1.bf16.msra.mxu0 %v3582
    %4131 = vmatprep.subr.bf16.mxu0 0
    %4132 = vmatpush1.bf16.msra.mxu0 %v3583
    %4133 = vmatprep.subr.bf16.mxu0 0
    %4134 = vmatpush1.bf16.msra.mxu0 %v3584
    %4135 = vmatprep.subr.bf16.mxu0 0
    %4136 = vmatpush1.bf16.msra.mxu0 %v3585
    %4137 = vmatprep.subr.bf16.mxu0 0
    %4138 = vmatpush1.bf16.msra.mxu0 %v3586
    %4139 = vmatprep.subr.bf16.mxu0 0
    %4140 = vmatpush1.bf16.msra.mxu0 %v3587
    %4141 = vmatprep.subr.bf16.mxu0 0
    %4142 = vmatpush1.bf16.msra.mxu0 %v3588
    %4143 = vmatprep.subr.bf16.mxu0 0
    %4144 = vmatpush1.bf16.msra.mxu0 %v3589
    %4145 = vmatprep.subr.bf16.mxu0 0
    %4146 = vmatpush1.bf16.msra.mxu0 %v3590
    %4147 = vmatprep.subr.bf16.mxu0 0
    %4148 = vmatpush1.bf16.msra.mxu0 %v3591
    %4149 = vmatprep.subr.bf16.mxu0 0
    %4150 = vmatpush1.bf16.msra.mxu0 %v3592
    %4151 = vmatprep.subr.bf16.mxu0 0
    %4152 = vmatpush1.bf16.msra.mxu0 %v3593
    %4153 = vmatprep.subr.bf16.mxu0 0
    %4154 = vmatpush1.bf16.msra.mxu0 %v3594
    %4155 = vmatprep.mubr.bf16.mxu0 %v2231
    %4156 = vmatmul.mubr.bf16.gmra.mrb[0].mxu0 %v2230
    %v4157 = vpop.f32.mrb[0].mxu0
    %v4158 = vadd.f32 %v4094, %v4157
    %v4159 = vpop.f32.mrb[0].mxu0
    %v4160 = vpop.f32.mrb[0].mxu0
    %v4161 = vadd.f32 %v4097, %v4160
    %v4162 = vpop.f32.mrb[0].mxu0
    %4163 = vmatprep.mubr.bf16.mxu0 %v2256
    %4164 = vmatmul.mubr.bf16.gmra.mrb[0].mxu0 %v2255
    %v4165 = vpop.f32.mrb[0].mxu0
    %v4166 = vadd.f32 %v4102, %v4165
    %v4167 = vpop.f32.mrb[0].mxu0
    %v4168 = vpop.f32.mrb[0].mxu0
    %v4169 = vadd.f32 %v4105, %v4168
    %v4170 = vpop.f32.mrb[0].mxu0
    %4171 = vmatprep.mubr.bf16.mxu0 %v2281
    %4172 = vmatmul.mubr.bf16.gmra.mrb[0].mxu0 %v2280
    %v4173 = vpop.f32.mrb[0].mxu0
    %v4174 = vadd.f32 %v4110, %v4173
    %v4175 = vpop.f32.mrb[0].mxu0
    %v4176 = vpop.f32.mrb[0].mxu0
    %v4177 = vadd.f32 %v4113, %v4176
    %v4178 = vpop.f32.mrb[0].mxu0
    %4179 = vmatprep.mubr.bf16.mxu0 %v2306
    %4180 = vmatmul.mubr.bf16.gmra.mrb[0].mxu0 %v2305
    %v4181 = vpop.f32.mrb[0].mxu0
    %v4182 = vadd.f32 %v4118, %v4181
    %v4183 = vpop.f32.mrb[0].mxu0
    %v4184 = vpop.f32.mrb[0].mxu0
    %v4185 = vpop.f32.mrb[0].mxu0
    %4186 = vdwg.mxu0
    %4187 = vmatprep.subr.bf16.mxu0 0
    %4188 = vmatpush1.bf16.msra.mxu0 %v3595
    %4189 = vmatprep.subr.bf16.mxu0 0
    %4190 = vmatpush1.bf16.msra.mxu0 %v3596
    %4191 = vmatprep.subr.bf16.mxu0 0
    %4192 = vmatpush1.bf16.msra.mxu0 %v3597
    %4193 = vmatprep.subr.bf16.mxu0 0
    %4194 = vmatpush1.bf16.msra.mxu0 %v3598
    %4195 = vmatprep.subr.bf16.mxu0 0
    %4196 = vmatpush1.bf16.msra.mxu0 %v3599
    %4197 = vmatprep.subr.bf16.mxu0 0
    %4198 = vmatpush1.bf16.msra.mxu0 %v3600
    %4199 = vmatprep.subr.bf16.mxu0 0
    %4200 = vmatpush1.bf16.msra.mxu0 %v3601
    %4201 = vmatprep.subr.bf16.mxu0 0
    %4202 = vmatpush1.bf16.msra.mxu0 %v3602
    %4203 = vmatprep.subr.bf16.mxu0 0
    %4204 = vmatpush1.bf16.msra.mxu0 %v3603
    %4205 = vmatprep.subr.bf16.mxu0 0
    %4206 = vmatpush1.bf16.msra.mxu0 %v3604
    %4207 = vmatprep.subr.bf16.mxu0 0
    %4208 = vmatpush1.bf16.msra.mxu0 %v3605
    %4209 = vmatprep.subr.bf16.mxu0 0
    %4210 = vmatpush1.bf16.msra.mxu0 %v3606
    %4211 = vmatprep.subr.bf16.mxu0 0
    %4212 = vmatpush1.bf16.msra.mxu0 %v3607
    %4213 = vmatprep.subr.bf16.mxu0 0
    %4214 = vmatpush1.bf16.msra.mxu0 %v3608
    %4215 = vmatprep.subr.bf16.mxu0 0
    %4216 = vmatpush1.bf16.msra.mxu0 %v3609
    %4217 = vmatprep.subr.bf16.mxu0 0
    %4218 = vmatpush1.bf16.msra.mxu0 %v3610
    %4219 = vmatprep.mubr.bf16.mxu0 %v2233
    %4220 = vmatmul.mubr.bf16.gmra.mrb[0].mxu0 %v2232
    %v4221 = vpop.f32.mrb[0].mxu0
    %v4222 = vadd.f32 %v4158, %v4221
    %v4223 = vpop.f32.mrb[0].mxu0
    %v4224 = vpop.f32.mrb[0].mxu0
    %v4225 = vadd.f32 %v4161, %v4224
    %v4226 = vpop.f32.mrb[0].mxu0
    %4227 = vmatprep.mubr.bf16.mxu0 %v2258
    %4228 = vmatmul.mubr.bf16.gmra.mrb[0].mxu0 %v2257
    %v4229 = vpop.f32.mrb[0].mxu0
    %v4230 = vadd.f32 %v4166, %v4229
    %v4231 = vpop.f32.mrb[0].mxu0
    %v4232 = vpop.f32.mrb[0].mxu0
    %v4233 = vadd.f32 %v4169, %v4232
    %v4234 = vpop.f32.mrb[0].mxu0
    %4235 = vmatprep.mubr.bf16.mxu0 %v2283
    %4236 = vmatmul.mubr.bf16.gmra.mrb[0].mxu0 %v2282
    %v4237 = vpop.f32.mrb[0].mxu0
    %v4238 = vadd.f32 %v4174, %v4237
    %v4239 = vpop.f32.mrb[0].mxu0
    %v4240 = vpop.f32.mrb[0].mxu0
    %v4241 = vadd.f32 %v4177, %v4240
    %v4242 = vpop.f32.mrb[0].mxu0
    %4243 = vmatprep.mubr.bf16.mxu0 %v2308
    %4244 = vmatmul.mubr.bf16.gmra.mrb[0].mxu0 %v2307
    %v4245 = vpop.f32.mrb[0].mxu0
    %v4246 = vadd.f32 %v4182, %v4245
    %v4247 = vpop.f32.mrb[0].mxu0
    %v4248 = vpop.f32.mrb[0].mxu0
    %v4249 = vpop.f32.mrb[0].mxu0
    %4250 = vdwg.mxu0
    %4251 = vmatprep.subr.bf16.mxu0 0
    %4252 = vmatpush1.bf16.msra.mxu0 %v3611
    %4253 = vmatprep.subr.bf16.mxu0 0
    %4254 = vmatpush1.bf16.msra.mxu0 %v3612
    %4255 = vmatprep.subr.bf16.mxu0 0
    %4256 = vmatpush1.bf16.msra.mxu0 %v3613
    %4257 = vmatprep.subr.bf16.mxu0 0
    %4258 = vmatpush1.bf16.msra.mxu0 %v3614
    %4259 = vmatprep.subr.bf16.mxu0 0
    %4260 = vmatpush1.bf16.msra.mxu0 %v3615
    %4261 = vmatprep.subr.bf16.mxu0 0
    %4262 = vmatpush1.bf16.msra.mxu0 %v3616
    %4263 = vmatprep.subr.bf16.mxu0 0
    %4264 = vmatpush1.bf16.msra.mxu0 %v3617
    %4265 = vmatprep.subr.bf16.mxu0 0
    %4266 = vmatpush1.bf16.msra.mxu0 %v3618
    %4267 = vmatprep.subr.bf16.mxu0 0
    %4268 = vmatpush1.bf16.msra.mxu0 %v3619
    %4269 = vmatprep.subr.bf16.mxu0 0
    %4270 = vmatpush1.bf16.msra.mxu0 %v3620
    %4271 = vmatprep.subr.bf16.mxu0 0
    %4272 = vmatpush1.bf16.msra.mxu0 %v3621
    %4273 = vmatprep.subr.bf16.mxu0 0
    %4274 = vmatpush1.bf16.msra.mxu0 %v3622
    %4275 = vmatprep.subr.bf16.mxu0 0
    %4276 = vmatpush1.bf16.msra.mxu0 %v3623
    %4277 = vmatprep.subr.bf16.mxu0 0
    %4278 = vmatpush1.bf16.msra.mxu0 %v3624
    %4279 = vmatprep.subr.bf16.mxu0 0
    %4280 = vmatpush1.bf16.msra.mxu0 %v3625
    %4281 = vmatprep.subr.bf16.mxu0 0
    %4282 = vmatpush1.bf16.msra.mxu0 %v3626
    %4283 = vmatprep.mubr.bf16.mxu0 %v2235
    %4284 = vmatmul.mubr.bf16.gmra.mrb[0].mxu0 %v2234
    %v4285 = vpop.f32.mrb[0].mxu0
    %v4286 = vadd.f32 %v4222, %v4285
    %v4287 = vpop.f32.mrb[0].mxu0
    %v4288 = vpop.f32.mrb[0].mxu0
    %v4289 = vadd.f32 %v4225, %v4288
    %v4290 = vpop.f32.mrb[0].mxu0
    %4291 = vmatprep.mubr.bf16.mxu0 %v2260
    %4292 = vmatmul.mubr.bf16.gmra.mrb[0].mxu0 %v2259
    %v4293 = vpop.f32.mrb[0].mxu0
    %v4294 = vadd.f32 %v4230, %v4293
    %v4295 = vpop.f32.mrb[0].mxu0
    %v4296 = vpop.f32.mrb[0].mxu0
    %v4297 = vadd.f32 %v4233, %v4296
    %v4298 = vpop.f32.mrb[0].mxu0
    %4299 = vmatprep.mubr.bf16.mxu0 %v2285
    %4300 = vmatmul.mubr.bf16.gmra.mrb[0].mxu0 %v2284
    %v4301 = vpop.f32.mrb[0].mxu0
    %v4302 = vadd.f32 %v4238, %v4301
    %v4303 = vpop.f32.mrb[0].mxu0
    %v4304 = vpop.f32.mrb[0].mxu0
    %v4305 = vadd.f32 %v4241, %v4304
    %v4306 = vpop.f32.mrb[0].mxu0
    %4307 = vmatprep.mubr.bf16.mxu0 %v2310
    %4308 = vmatmul.mubr.bf16.gmra.mrb[0].mxu0 %v2309
    %v4309 = vpop.f32.mrb[0].mxu0
    %v4310 = vadd.f32 %v4246, %v4309
    %v4311 = vpop.f32.mrb[0].mxu0
    %v4312 = vpop.f32.mrb[0].mxu0
    %v4313 = vpop.f32.mrb[0].mxu0
    %4314 = vdwg.mxu0
    %4315 = vmatprep.subr.bf16.mxu0 0
    %4316 = vmatpush1.bf16.msra.mxu0 %v3627
    %4317 = vmatprep.subr.bf16.mxu0 0
    %4318 = vmatpush1.bf16.msra.mxu0 %v3628
    %4319 = vmatprep.subr.bf16.mxu0 0
    %4320 = vmatpush1.bf16.msra.mxu0 %v3629
    %4321 = vmatprep.subr.bf16.mxu0 0
    %4322 = vmatpush1.bf16.msra.mxu0 %v3630
    %4323 = vmatprep.subr.bf16.mxu0 0
    %4324 = vmatpush1.bf16.msra.mxu0 %v3631
    %4325 = vmatprep.subr.bf16.mxu0 0
    %4326 = vmatpush1.bf16.msra.mxu0 %v3632
    %4327 = vmatprep.subr.bf16.mxu0 0
    %4328 = vmatpush1.bf16.msra.mxu0 %v3633
    %4329 = vmatprep.subr.bf16.mxu0 0
    %4330 = vmatpush1.bf16.msra.mxu0 %v3634
    %4331 = vmatprep.subr.bf16.mxu0 0
    %4332 = vmatpush1.bf16.msra.mxu0 %v3635
    %4333 = vmatprep.subr.bf16.mxu0 0
    %4334 = vmatpush1.bf16.msra.mxu0 %v3636
    %4335 = vmatprep.subr.bf16.mxu0 0
    %4336 = vmatpush1.bf16.msra.mxu0 %v3637
    %4337 = vmatprep.subr.bf16.mxu0 0
    %4338 = vmatpush1.bf16.msra.mxu0 %v3638
    %4339 = vmatprep.subr.bf16.mxu0 0
    %4340 = vmatpush1.bf16.msra.mxu0 %v3639
    %4341 = vmatprep.subr.bf16.mxu0 0
    %4342 = vmatpush1.bf16.msra.mxu0 %v3640
    %4343 = vmatprep.subr.bf16.mxu0 0
    %4344 = vmatpush1.bf16.msra.mxu0 %v3641
    %4345 = vmatprep.subr.bf16.mxu0 0
    %4346 = vmatpush1.bf16.msra.mxu0 %v3642
    %4347 = vmatprep.mubr.bf16.mxu0 %v2237
    %4348 = vmatmul.mubr.bf16.gmra.mrb[0].mxu0 %v2236
    %v4349 = vpop.f32.mrb[0].mxu0
    %v4350 = vadd.f32 %v4286, %v4349
    %v4351 = vpop.f32.mrb[0].mxu0
    %v4352 = vpop.f32.mrb[0].mxu0
    %v4353 = vadd.f32 %v4289, %v4352
    %v4354 = vpop.f32.mrb[0].mxu0
    %4355 = vmatprep.mubr.bf16.mxu0 %v2262
    %4356 = vmatmul.mubr.bf16.gmra.mrb[0].mxu0 %v2261
    %v4357 = vpop.f32.mrb[0].mxu0
    %v4358 = vadd.f32 %v4294, %v4357
    %v4359 = vpop.f32.mrb[0].mxu0
    %v4360 = vpop.f32.mrb[0].mxu0
    %v4361 = vadd.f32 %v4297, %v4360
    %v4362 = vpop.f32.mrb[0].mxu0
    %4363 = vmatprep.mubr.bf16.mxu0 %v2287
    %4364 = vmatmul.mubr.bf16.gmra.mrb[0].mxu0 %v2286
    %v4365 = vpop.f32.mrb[0].mxu0
    %v4366 = vadd.f32 %v4302, %v4365
    %v4367 = vpop.f32.mrb[0].mxu0
    %v4368 = vpop.f32.mrb[0].mxu0
    %v4369 = vadd.f32 %v4305, %v4368
    %v4370 = vpop.f32.mrb[0].mxu0
    %4371 = vmatprep.mubr.bf16.mxu0 %v2312
    %4372 = vmatmul.mubr.bf16.gmra.mrb[0].mxu0 %v2311
    %v4373 = vpop.f32.mrb[0].mxu0
    %v4374 = vadd.f32 %v4310, %v4373
    %v4375 = vpop.f32.mrb[0].mxu0
    %v4376 = vpop.f32.mrb[0].mxu0
    %v4377 = vpop.f32.mrb[0].mxu0
    %4378 = vdwg.mxu0
    %4379 = vmatprep.subr.bf16.mxu0 0
    %4380 = vmatpush1.bf16.msra.mxu0 %v3643
    %4381 = vmatprep.subr.bf16.mxu0 0
    %4382 = vmatpush1.bf16.msra.mxu0 %v3644
    %4383 = vmatprep.subr.bf16.mxu0 0
    %4384 = vmatpush1.bf16.msra.mxu0 %v3645
    %4385 = vmatprep.subr.bf16.mxu0 0
    %4386 = vmatpush1.bf16.msra.mxu0 %v3646
    %4387 = vmatprep.subr.bf16.mxu0 0
    %4388 = vmatpush1.bf16.msra.mxu0 %v3647
    %4389 = vmatprep.subr.bf16.mxu0 0
    %4390 = vmatpush1.bf16.msra.mxu0 %v3648
    %4391 = vmatprep.subr.bf16.mxu0 0
    %4392 = vmatpush1.bf16.msra.mxu0 %v3649
    %4393 = vmatprep.subr.bf16.mxu0 0
    %4394 = vmatpush1.bf16.msra.mxu0 %v3650
    %4395 = vmatprep.subr.bf16.mxu0 0
    %4396 = vmatpush1.bf16.msra.mxu0 %v3651
    %4397 = vmatprep.subr.bf16.mxu0 0
    %4398 = vmatpush1.bf16.msra.mxu0 %v3652
    %4399 = vmatprep.subr.bf16.mxu0 0
    %4400 = vmatpush1.bf16.msra.mxu0 %v3653
    %4401 = vmatprep.subr.bf16.mxu0 0
    %4402 = vmatpush1.bf16.msra.mxu0 %v3654
    %4403 = vmatprep.subr.bf16.mxu0 0
    %4404 = vmatpush1.bf16.msra.mxu0 %v3655
    %4405 = vmatprep.subr.bf16.mxu0 0
    %4406 = vmatpush1.bf16.msra.mxu0 %v3656
    %4407 = vmatprep.subr.bf16.mxu0 0
    %4408 = vmatpush1.bf16.msra.mxu0 %v3657
    %4409 = vmatprep.subr.bf16.mxu0 0
    %4410 = vmatpush1.bf16.msra.mxu0 %v3658
    %4411 = vmatprep.mubr.bf16.mxu0 %v2239
    %4412 = vmatmul.mubr.bf16.gmra.mrb[0].mxu0 %v2238
    %v4413 = vpop.f32.mrb[0].mxu0
    %v4414 = vadd.f32 %v4350, %v4413
    %v4415 = vpop.f32.mrb[0].mxu0
    %v4416 = vpop.f32.mrb[0].mxu0
    %v4417 = vadd.f32 %v4353, %v4416
    %v4418 = vpop.f32.mrb[0].mxu0
    %4419 = vmatprep.mubr.bf16.mxu0 %v2264
    %4420 = vmatmul.mubr.bf16.gmra.mrb[0].mxu0 %v2263
    %v4421 = vpop.f32.mrb[0].mxu0
    %v4422 = vadd.f32 %v4358, %v4421
    %v4423 = vpop.f32.mrb[0].mxu0
    %v4424 = vpop.f32.mrb[0].mxu0
    %v4425 = vadd.f32 %v4361, %v4424
    %v4426 = vpop.f32.mrb[0].mxu0
    %4427 = vmatprep.mubr.bf16.mxu0 %v2289
    %4428 = vmatmul.mubr.bf16.gmra.mrb[0].mxu0 %v2288
    %v4429 = vpop.f32.mrb[0].mxu0
    %v4430 = vadd.f32 %v4366, %v4429
    %v4431 = vpop.f32.mrb[0].mxu0
    %v4432 = vpop.f32.mrb[0].mxu0
    %v4433 = vadd.f32 %v4369, %v4432
    %v4434 = vpop.f32.mrb[0].mxu0
    %4435 = vmatprep.mubr.bf16.mxu0 %v2314
    %4436 = vmatmul.mubr.bf16.gmra.mrb[0].mxu0 %v2313
    %v4437 = vpop.f32.mrb[0].mxu0
    %v4438 = vadd.f32 %v4374, %v4437
    %v4439 = vpop.f32.mrb[0].mxu0
    %v4440 = vpop.f32.mrb[0].mxu0
    %v4441 = vpop.f32.mrb[0].mxu0
    %4442 = vdwg.mxu0
    %4443 = vmatprep.subr.bf16.mxu0 0
    %4444 = vmatpush1.bf16.msra.mxu0 %v3659
    %4445 = vmatprep.subr.bf16.mxu0 0
    %4446 = vmatpush1.bf16.msra.mxu0 %v3660
    %4447 = vmatprep.subr.bf16.mxu0 0
    %4448 = vmatpush1.bf16.msra.mxu0 %v3661
    %4449 = vmatprep.subr.bf16.mxu0 0
    %4450 = vmatpush1.bf16.msra.mxu0 %v3662
    %4451 = vmatprep.subr.bf16.mxu0 0
    %4452 = vmatpush1.bf16.msra.mxu0 %v3663
    %4453 = vmatprep.subr.bf16.mxu0 0
    %4454 = vmatpush1.bf16.msra.mxu0 %v3664
    %4455 = vmatprep.subr.bf16.mxu0 0
    %4456 = vmatpush1.bf16.msra.mxu0 %v3665
    %4457 = vmatprep.subr.bf16.mxu0 0
    %4458 = vmatpush1.bf16.msra.mxu0 %v3666
    %4459 = vmatprep.subr.bf16.mxu0 0
    %4460 = vmatpush1.bf16.msra.mxu0 %v3667
    %4461 = vmatprep.subr.bf16.mxu0 0
    %4462 = vmatpush1.bf16.msra.mxu0 %v3668
    %4463 = vmatprep.subr.bf16.mxu0 0
    %4464 = vmatpush1.bf16.msra.mxu0 %v3669
    %4465 = vmatprep.subr.bf16.mxu0 0
    %4466 = vmatpush1.bf16.msra.mxu0 %v3670
    %4467 = vmatprep.subr.bf16.mxu0 0
    %4468 = vmatpush1.bf16.msra.mxu0 %v3671
    %4469 = vmatprep.subr.bf16.mxu0 0
    %4470 = vmatpush1.bf16.msra.mxu0 %v3672
    %4471 = vmatprep.subr.bf16.mxu0 0
    %4472 = vmatpush1.bf16.msra.mxu0 %v3673
    %4473 = vmatprep.subr.bf16.mxu0 0
    %4474 = vmatpush1.bf16.msra.mxu0 %v3674
    %4475 = vmatprep.mubr.bf16.mxu0 %v2241
    %4476 = vmatmul.mubr.bf16.gmra.mrb[0].mxu0 %v2240
    %v4477 = vpop.f32.mrb[0].mxu0
    %v4478 = vadd.f32 %v4414, %v4477
    %v4479 = vpop.f32.mrb[0].mxu0
    %v4480 = vpop.f32.mrb[0].mxu0
    %v4481 = vadd.f32 %v4417, %v4480
    %v4482 = vpop.f32.mrb[0].mxu0
    %4483 = vmatprep.mubr.bf16.mxu0 %v2266
    %4484 = vmatmul.mubr.bf16.gmra.mrb[0].mxu0 %v2265
    %v4485 = vpop.f32.mrb[0].mxu0
    %v4486 = vadd.f32 %v4422, %v4485
    %v4487 = vpop.f32.mrb[0].mxu0
    %v4488 = vpop.f32.mrb[0].mxu0
    %v4489 = vadd.f32 %v4425, %v4488
    %v4490 = vpop.f32.mrb[0].mxu0
    %4491 = vmatprep.mubr.bf16.mxu0 %v2291
    %4492 = vmatmul.mubr.bf16.gmra.mrb[0].mxu0 %v2290
    %v4493 = vpop.f32.mrb[0].mxu0
    %v4494 = vadd.f32 %v4430, %v4493
    %v4495 = vpop.f32.mrb[0].mxu0
    %v4496 = vpop.f32.mrb[0].mxu0
    %v4497 = vadd.f32 %v4433, %v4496
    %v4498 = vpop.f32.mrb[0].mxu0
    %4499 = vmatprep.mubr.bf16.mxu0 %v2316
    %4500 = vmatmul.mubr.bf16.gmra.mrb[0].mxu0 %v2315
    %v4501 = vpop.f32.mrb[0].mxu0
    %v4502 = vadd.f32 %v4438, %v4501
    %v4503 = vpop.f32.mrb[0].mxu0
    %v4504 = vpop.f32.mrb[0].mxu0
    %v4505 = vpop.f32.mrb[0].mxu0
    %4506 = vdwg.mxu0
    %4507 = vmatprep.subr.bf16.mxu0 0
    %4508 = vmatpush1.bf16.msra.mxu0 %v3675
    %4509 = vmatprep.subr.bf16.mxu0 0
    %4510 = vmatpush1.bf16.msra.mxu0 %v3676
    %4511 = vmatprep.subr.bf16.mxu0 0
    %4512 = vmatpush1.bf16.msra.mxu0 %v3677
    %4513 = vmatprep.subr.bf16.mxu0 0
    %4514 = vmatpush1.bf16.msra.mxu0 %v3678
    %4515 = vmatprep.subr.bf16.mxu0 0
    %4516 = vmatpush1.bf16.msra.mxu0 %v3679
    %4517 = vmatprep.subr.bf16.mxu0 0
    %4518 = vmatpush1.bf16.msra.mxu0 %v3680
    %4519 = vmatprep.subr.bf16.mxu0 0
    %4520 = vmatpush1.bf16.msra.mxu0 %v3681
    %4521 = vmatprep.subr.bf16.mxu0 0
    %4522 = vmatpush1.bf16.msra.mxu0 %v3682
    %4523 = vmatprep.subr.bf16.mxu0 0
    %4524 = vmatpush1.bf16.msra.mxu0 %v3683
    %4525 = vmatprep.subr.bf16.mxu0 0
    %4526 = vmatpush1.bf16.msra.mxu0 %v3684
    %4527 = vmatprep.subr.bf16.mxu0 0
    %4528 = vmatpush1.bf16.msra.mxu0 %v3685
    %4529 = vmatprep.subr.bf16.mxu0 0
    %4530 = vmatpush1.bf16.msra.mxu0 %v3686
    %4531 = vmatprep.subr.bf16.mxu0 0
    %4532 = vmatpush1.bf16.msra.mxu0 %v3687
    %4533 = vmatprep.subr.bf16.mxu0 0
    %4534 = vmatpush1.bf16.msra.mxu0 %v3688
    %4535 = vmatprep.subr.bf16.mxu0 0
    %4536 = vmatpush1.bf16.msra.mxu0 %v3689
    %4537 = vmatprep.subr.bf16.mxu0 0
    %4538 = vmatpush1.bf16.msra.mxu0 %v3690
    %4539 = vmatprep.mubr.bf16.mxu0 %v2243
    %4540 = vmatmul.mubr.bf16.gmra.mrb[0].mxu0 %v2242
    %v4541 = vpop.f32.mrb[0].mxu0
    %v4542 = vadd.f32 %v4478, %v4541
    %v4543 = vpop.f32.mrb[0].mxu0
    %v4544 = vpop.f32.mrb[0].mxu0
    %v4545 = vadd.f32 %v4481, %v4544
    %v4546 = vpop.f32.mrb[0].mxu0
    %4547 = vmatprep.mubr.bf16.mxu0 %v2268
    %4548 = vmatmul.mubr.bf16.gmra.mrb[0].mxu0 %v2267
    %v4549 = vpop.f32.mrb[0].mxu0
    %v4550 = vadd.f32 %v4486, %v4549
    %v4551 = vpop.f32.mrb[0].mxu0
    %v4552 = vpop.f32.mrb[0].mxu0
    %v4553 = vadd.f32 %v4489, %v4552
    %v4554 = vpop.f32.mrb[0].mxu0
    %4555 = vmatprep.mubr.bf16.mxu0 %v2293
    %4556 = vmatmul.mubr.bf16.gmra.mrb[0].mxu0 %v2292
    %v4557 = vpop.f32.mrb[0].mxu0
    %v4558 = vadd.f32 %v4494, %v4557
    %v4559 = vpop.f32.mrb[0].mxu0
    %v4560 = vpop.f32.mrb[0].mxu0
    %v4561 = vadd.f32 %v4497, %v4560
    %v4562 = vpop.f32.mrb[0].mxu0
    %4563 = vmatprep.mubr.bf16.mxu0 %v2318
    %4564 = vmatmul.mubr.bf16.gmra.mrb[0].mxu0 %v2317
    %v4565 = vpop.f32.mrb[0].mxu0
    %v4566 = vadd.f32 %v4502, %v4565
    %v4567 = vpop.f32.mrb[0].mxu0
    %v4568 = vpop.f32.mrb[0].mxu0
    %v4569 = vpop.f32.mrb[0].mxu0
    %4570 = vdwg.mxu0
    %4571 = vmatprep.subr.bf16.mxu0 0
    %4572 = vmatpush1.bf16.msra.mxu0 %v3691
    %4573 = vmatprep.subr.bf16.mxu0 0
    %4574 = vmatpush1.bf16.msra.mxu0 %v3692
    %4575 = vmatprep.subr.bf16.mxu0 0
    %4576 = vmatpush1.bf16.msra.mxu0 %v3693
    %4577 = vmatprep.subr.bf16.mxu0 0
    %4578 = vmatpush1.bf16.msra.mxu0 %v3694
    %4579 = vmatprep.subr.bf16.mxu0 0
    %4580 = vmatpush1.bf16.msra.mxu0 %v3695
    %4581 = vmatprep.subr.bf16.mxu0 0
    %4582 = vmatpush1.bf16.msra.mxu0 %v3696
    %4583 = vmatprep.subr.bf16.mxu0 0
    %4584 = vmatpush1.bf16.msra.mxu0 %v3697
    %4585 = vmatprep.subr.bf16.mxu0 0
    %4586 = vmatpush1.bf16.msra.mxu0 %v3698
    %4587 = vmatprep.subr.bf16.mxu0 0
    %4588 = vmatpush1.bf16.msra.mxu0 %v3699
    %4589 = vmatprep.subr.bf16.mxu0 0
    %4590 = vmatpush1.bf16.msra.mxu0 %v3700
    %4591 = vmatprep.subr.bf16.mxu0 0
    %4592 = vmatpush1.bf16.msra.mxu0 %v3701
    %4593 = vmatprep.subr.bf16.mxu0 0
    %4594 = vmatpush1.bf16.msra.mxu0 %v3702
    %4595 = vmatprep.subr.bf16.mxu0 0
    %4596 = vmatpush1.bf16.msra.mxu0 %v3703
    %4597 = vmatprep.subr.bf16.mxu0 0
    %4598 = vmatpush1.bf16.msra.mxu0 %v3704
    %4599 = vmatprep.subr.bf16.mxu0 0
    %4600 = vmatpush1.bf16.msra.mxu0 %v3705
    %4601 = vmatprep.subr.bf16.mxu0 0
    %4602 = vmatpush1.bf16.msra.mxu0 %v3706
    %4603 = vmatprep.mubr.bf16.mxu0 %v2245
    %4604 = vmatmul.mubr.bf16.gmra.mrb[0].mxu0 %v2244
    %v4605 = vpop.f32.mrb[0].mxu0
    %v4606 = vadd.f32 %v4542, %v4605
    %v4607 = vpop.f32.mrb[0].mxu0
    %v4608 = vpop.f32.mrb[0].mxu0
    %v4609 = vadd.f32 %v4545, %v4608
    %v4610 = vpop.f32.mrb[0].mxu0
    %4611 = vmatprep.mubr.bf16.mxu0 %v2270
    %4612 = vmatmul.mubr.bf16.gmra.mrb[0].mxu0 %v2269
    %v4613 = vpop.f32.mrb[0].mxu0
    %v4614 = vadd.f32 %v4550, %v4613
    %v4615 = vpop.f32.mrb[0].mxu0
    %v4616 = vpop.f32.mrb[0].mxu0
    %v4617 = vadd.f32 %v4553, %v4616
    %v4618 = vpop.f32.mrb[0].mxu0
    %4619 = vmatprep.mubr.bf16.mxu0 %v2295
    %4620 = vmatmul.mubr.bf16.gmra.mrb[0].mxu0 %v2294
    %v4621 = vpop.f32.mrb[0].mxu0
    %v4622 = vadd.f32 %v4558, %v4621
    %v4623 = vpop.f32.mrb[0].mxu0
    %v4624 = vpop.f32.mrb[0].mxu0
    %v4625 = vadd.f32 %v4561, %v4624
    %v4626 = vpop.f32.mrb[0].mxu0
    %4627 = vmatprep.mubr.bf16.mxu0 %v2320
    %4628 = vmatmul.mubr.bf16.gmra.mrb[0].mxu0 %v2319
    %v4629 = vpop.f32.mrb[0].mxu0
    %v4630 = vadd.f32 %v4566, %v4629
    %v4631 = vpop.f32.mrb[0].mxu0
    %v4632 = vpop.f32.mrb[0].mxu0
    %v4633 = vpop.f32.mrb[0].mxu0
    %4634 = vdwg.mxu0
    %4635 = vmatprep.subr.bf16.mxu0 0
    %4636 = vmatpush1.bf16.msra.mxu0 %v3707
    %4637 = vmatprep.subr.bf16.mxu0 0
    %4638 = vmatpush1.bf16.msra.mxu0 %v3708
    %4639 = vmatprep.subr.bf16.mxu0 0
    %4640 = vmatpush1.bf16.msra.mxu0 %v3709
    %4641 = vmatprep.subr.bf16.mxu0 0
    %4642 = vmatpush1.bf16.msra.mxu0 %v3710
    %4643 = vmatprep.subr.bf16.mxu0 0
    %4644 = vmatpush1.bf16.msra.mxu0 %v3711
    %4645 = vmatprep.subr.bf16.mxu0 0
    %4646 = vmatpush1.bf16.msra.mxu0 %v3712
    %4647 = vmatprep.subr.bf16.mxu0 0
    %4648 = vmatpush1.bf16.msra.mxu0 %v3713
    %4649 = vmatprep.subr.bf16.mxu0 0
    %4650 = vmatpush1.bf16.msra.mxu0 %v3714
    %4651 = vmatprep.subr.bf16.mxu0 0
    %4652 = vmatpush1.bf16.msra.mxu0 %v3715
    %4653 = vmatprep.subr.bf16.mxu0 0
    %4654 = vmatpush1.bf16.msra.mxu0 %v3716
    %4655 = vmatprep.subr.bf16.mxu0 0
    %4656 = vmatpush1.bf16.msra.mxu0 %v3717
    %4657 = vmatprep.subr.bf16.mxu0 0
    %4658 = vmatpush1.bf16.msra.mxu0 %v3718
    %4659 = vmatprep.subr.bf16.mxu0 0
    %4660 = vmatpush1.bf16.msra.mxu0 %v3719
    %4661 = vmatprep.subr.bf16.mxu0 0
    %4662 = vmatpush1.bf16.msra.mxu0 %v3720
    %4663 = vmatprep.subr.bf16.mxu0 0
    %4664 = vmatpush1.bf16.msra.mxu0 %v3721
    %4665 = vmatprep.subr.bf16.mxu0 0
    %4666 = vmatpush1.bf16.msra.mxu0 %v3722
    %4667 = vmatprep.mubr.bf16.mxu0 %v2247
    %4668 = vmatmul.mubr.bf16.gmra.mrb[0].mxu0 %v2246
    %v4669 = vpop.f32.mrb[0].mxu0
    %v4670 = vadd.f32 %v4606, %v4669
    %v4671 = vpop.f32.mrb[0].mxu0
    %v4672 = vpop.f32.mrb[0].mxu0
    %v4673 = vadd.f32 %v4609, %v4672
    %v4674 = vpop.f32.mrb[0].mxu0
    %4675 = vmatprep.mubr.bf16.mxu0 %v2272
    %4676 = vmatmul.mubr.bf16.gmra.mrb[0].mxu0 %v2271
    %v4677 = vpop.f32.mrb[0].mxu0
    %v4678 = vadd.f32 %v4614, %v4677
    %v4679 = vpop.f32.mrb[0].mxu0
    %v4680 = vpop.f32.mrb[0].mxu0
    %v4681 = vadd.f32 %v4617, %v4680
    %v4682 = vpop.f32.mrb[0].mxu0
    %4683 = vmatprep.mubr.bf16.mxu0 %v2297
    %4684 = vmatmul.mubr.bf16.gmra.mrb[0].mxu0 %v2296
    %v4685 = vpop.f32.mrb[0].mxu0
    %v4686 = vadd.f32 %v4622, %v4685
    %v4687 = vpop.f32.mrb[0].mxu0
    %v4688 = vpop.f32.mrb[0].mxu0
    %v4689 = vadd.f32 %v4625, %v4688
    %v4690 = vpop.f32.mrb[0].mxu0
    %4691 = vmatprep.mubr.bf16.mxu0 %v2322
    %4692 = vmatmul.mubr.bf16.gmra.mrb[0].mxu0 %v2321
    %v4693 = vpop.f32.mrb[0].mxu0
    %v4694 = vadd.f32 %v4630, %v4693
    %v4695 = vpop.f32.mrb[0].mxu0
    %v4696 = vpop.f32.mrb[0].mxu0
    %v4697 = vpop.f32.mrb[0].mxu0
    %4698 = vdwg.mxu0
    %4699 = vmatprep.subr.bf16.mxu0 0
    %4700 = vmatpush1.bf16.msra.mxu0 %v3723
    %4701 = vmatprep.subr.bf16.mxu0 0
    %4702 = vmatpush1.bf16.msra.mxu0 %v3724
    %4703 = vmatprep.subr.bf16.mxu0 0
    %4704 = vmatpush1.bf16.msra.mxu0 %v3725
    %4705 = vmatprep.subr.bf16.mxu0 0
    %4706 = vmatpush1.bf16.msra.mxu0 %v3726
    %4707 = vmatprep.subr.bf16.mxu0 0
    %4708 = vmatpush1.bf16.msra.mxu0 %v3727
    %4709 = vmatprep.subr.bf16.mxu0 0
    %4710 = vmatpush1.bf16.msra.mxu0 %v3728
    %4711 = vmatprep.subr.bf16.mxu0 0
    %4712 = vmatpush1.bf16.msra.mxu0 %v3729
    %4713 = vmatprep.subr.bf16.mxu0 0
    %4714 = vmatpush1.bf16.msra.mxu0 %v3730
    %4715 = vmatprep.subr.bf16.mxu0 0
    %4716 = vmatpush1.bf16.msra.mxu0 0
    %4717 = vmatprep.subr.bf16.mxu0 0
    %4718 = vmatpush1.bf16.msra.mxu0 0
    %4719 = vmatprep.subr.bf16.mxu0 0
    %4720 = vmatpush1.bf16.msra.mxu0 0
    %4721 = vmatprep.subr.bf16.mxu0 0
    %4722 = vmatpush1.bf16.msra.mxu0 0
    %4723 = vmatprep.subr.bf16.mxu0 0
    %4724 = vmatpush1.bf16.msra.mxu0 0
    %4725 = vmatprep.subr.bf16.mxu0 0
    %4726 = vmatpush1.bf16.msra.mxu0 0
    %4727 = vmatprep.subr.bf16.mxu0 0
    %4728 = vmatpush1.bf16.msra.mxu0 0
    %4729 = vmatprep.subr.bf16.mxu0 0
    %4730 = vmatpush1.bf16.msra.mxu0 0
    %4731 = vmatprep.mubr.bf16.mxu0 0
    %4732 = vmatmul.mubr.bf16.gmra.mrb[0].mxu0 %v2248
    %v4733 = vpop.f32.mrb[0].mxu0
    %v4734 = vadd.f32 %v4670, %v4733
    %v4735 = vpop.f32.mrb[0].mxu0
    %v4736 = vpop.f32.mrb[0].mxu0
    %v4737 = vadd.f32 %v4673, %v4736
    %v4738 = vpop.f32.mrb[0].mxu0
    %4739 = vmatprep.mubr.bf16.mxu0 0
    %4740 = vmatmul.mubr.bf16.gmra.mrb[0].mxu0 %v2273
    %v4741 = vpop.f32.mrb[0].mxu0
    %v4742 = vadd.f32 %v4678, %v4741
    %v4743 = vpop.f32.mrb[0].mxu0
    %v4744 = vpop.f32.mrb[0].mxu0
    %v4745 = vadd.f32 %v4681, %v4744
    %v4746 = vpop.f32.mrb[0].mxu0
    %4747 = vmatprep.mubr.bf16.mxu0 0
    %4748 = vmatmul.mubr.bf16.gmra.mrb[0].mxu0 %v2298
    %v4749 = vpop.f32.mrb[0].mxu0
    %v4750 = vadd.f32 %v4686, %v4749
    %v4751 = vpop.f32.mrb[0].mxu0
    %v4752 = vpop.f32.mrb[0].mxu0
    %v4753 = vadd.f32 %v4689, %v4752
    %v4754 = vpop.f32.mrb[0].mxu0
    %4755 = vmatprep.mubr.bf16.mxu0 0
    %4756 = vmatmul.mubr.bf16.gmra.mrb[0].mxu0 %v2323
    %v4757 = vpop.f32.mrb[0].mxu0
    %v4758 = vadd.f32 %v4694, %v4757
    %v4759 = vpop.f32.mrb[0].mxu0
    %v4760 = vpop.f32.mrb[0].mxu0
    %v4761 = vpop.f32.mrb[0].mxu0
    %4762 = vdwg.mxu0
    %v4763 = vld [vmem:[%s7] sm:$0x1]
    %v4764 = vld [vmem:[%s8] sm:$0x1]
    %v4765 = vadd.f32 %v4734, %v4737
    %v4766 = vadd.f32 %v4765, %v4742
    %v4767 = vadd.f32 %v4766, %v4745
    %v4768 = vadd.f32 %v4767, %v4750
    %v4769 = vadd.f32 %v4768, %v4753
    %v4770 = vsel %vm1029, %v4758, 0.0
    %v4771 = vadd.f32 %v4769, %v4770
    %v4772 = vrot.slane %v4771, 4
    %v4773 = vadd.f32 %v4771, %v4772
    %v4774 = vrot.slane %v4773, 2
    %v4775 = vadd.f32 %v4773, %v4774
    %v4776 = vrot.slane %v4775, 1
    %v4777 = vadd.f32 %v4775, %v4776
    %v4778 = vmul.f32 %v4777, 0.02
    %v4779 = vsub.f32 %v4734, %v4778
    %v4780 = vsub.f32 %v4737, %v4778
    %v4781 = vsub.f32 %v4742, %v4778
    %v4782 = vsub.f32 %v4745, %v4778
    %v4783 = vsub.f32 %v4750, %v4778
    %v4784 = vsub.f32 %v4753, %v4778
    %v4785 = vsub.f32 %v4758, %v4778
    %v4786 = vmul.f32 %v4779, %v4779
    %v4787 = vmul.f32 %v4780, %v4780
    %v4788 = vmul.f32 %v4781, %v4781
    %v4789 = vmul.f32 %v4782, %v4782
    %v4790 = vmul.f32 %v4783, %v4783
    %v4791 = vmul.f32 %v4784, %v4784
    %v4792 = vmul.f32 %v4785, %v4785
    %v4793 = vadd.f32 %v4786, %v4787
    %v4794 = vadd.f32 %v4793, %v4788
    %v4795 = vadd.f32 %v4794, %v4789
    %v4796 = vadd.f32 %v4795, %v4790
    %v4797 = vadd.f32 %v4796, %v4791
    %v4798 = vsel %vm1029, %v4792, 0.0
    %v4799 = vadd.f32 %v4797, %v4798
    %v4800 = vrot.slane %v4799, 4
    %v4801 = vadd.f32 %v4799, %v4800
    %v4802 = vrot.slane %v4801, 2
    %v4803 = vadd.f32 %v4801, %v4802
    %v4804 = vrot.slane %v4803, 1
    %v4805 = vadd.f32 %v4803, %v4804
    %v4806 = vmul.f32 %v4805, 0.02
    %v4807 = vadd.f32 %v4806, 1e-05
    %v4808 = vrsqrt.pop %v4807
    %v4809 = vmul.f32 %v4779, %v4808
    %v4810 = vmul.f32 %v4780, %v4808
    %v4811 = vmul.f32 %v4781, %v4808
    %v4812 = vmul.f32 %v4782, %v4808
    %v4813 = vmul.f32 %v4783, %v4808
    %v4814 = vmul.f32 %v4784, %v4808
    %v4815 = vmul.f32 %v4785, %v4808
    %v4817 = vlaneseq
    %v4818 = vshrl.u32 %v4817, 7
    %v4819 = vsub.s32 0, %v4818
    %v4820 = vrot.slane %v4763, %v4819
    %v4822 = vmul.f32 %v4809, %v4820
    %v4823 = vmul.f32 %v4810, %v4820
    %v4824 = vmul.f32 %v4811, %v4820
    %v4825 = vmul.f32 %v4812, %v4820
    %v4826 = vmul.f32 %v4813, %v4820
    %v4827 = vmul.f32 %v4814, %v4820
    %v4828 = vmul.f32 %v4815, %v4820
    %v4830 = vlaneseq
    %v4831 = vshrl.u32 %v4830, 7
    %v4832 = vsub.s32 0, %v4831
    %v4833 = vrot.slane %v4764, %v4832
    %v4835 = vadd.f32 %v4822, %v4833
    %v4836 = vadd.f32 %v4823, %v4833
    %v4837 = vadd.f32 %v4824, %v4833
    %v4838 = vadd.f32 %v4825, %v4833
    %v4839 = vadd.f32 %v4826, %v4833
    %v4840 = vadd.f32 %v4827, %v4833
    %v4841 = vadd.f32 %v4828, %v4833
    %v4842 = vmax.f32 %v4835, 0.0
    %v4843 = vmax.f32 %v4836, 0.0
    %v4844 = vmax.f32 %v4837, 0.0
    %v4845 = vmax.f32 %v4838, 0.0
    %v4846 = vmax.f32 %v4839, 0.0
    %v4847 = vmax.f32 %v4840, 0.0
    %v4848 = vmax.f32 %v4841, 0.0
    %4849 = vst [vmem:[#allocation4] sm:$0xff] %v4842
    %4850 = vst [vmem:[#allocation4 + $0x8] sm:$0xff] %v4843
    %4851 = vst [vmem:[#allocation4 + $0x10] sm:$0xff] %v4844
    %4852 = vst [vmem:[#allocation4 + $0x18] sm:$0xff] %v4845
    %4853 = vst [vmem:[#allocation4 + $0x20] sm:$0xff] %v4846
    %4854 = vst [vmem:[#allocation4 + $0x28] sm:$0xff] %v4847
    %4855 = vst [vmem:[#allocation4 + $0x30] sm:$0x3] %v4848
    %v4856 = vld [vmem:[#allocation4] sm:$0x3]
    %4857 = vst [vmem:[#allocation5] sm:$0x3] %v4856
    %v4858 = vld [vmem:[#allocation4 + $0x2] sm:$0x3]
    %4859 = vst [vmem:[#allocation5 + $0x2] sm:$0x3] %v4858
    %v4860 = vld [vmem:[#allocation4 + $0x4] sm:$0x3]
    %4861 = vst [vmem:[#allocation5 + $0x4] sm:$0x3] %v4860
    %v4862 = vld [vmem:[#allocation4 + $0x6] sm:$0x3]
    %4863 = vst [vmem:[#allocation5 + $0x6] sm:$0x3] %v4862
    %v4864 = vld [vmem:[#allocation4 + $0x8] sm:$0x3]
    %4865 = vst [vmem:[#allocation5 + $0x8] sm:$0x3] %v4864
    %v4866 = vld [vmem:[#allocation4 + $0xa] sm:$0x3]
    %4867 = vst [vmem:[#allocation5 + $0xa] sm:$0x3] %v4866
    %v4868 = vld [vmem:[#allocation4 + $0xc] sm:$0x3]
    %4869 = vst [vmem:[#allocation5 + $0xc] sm:$0x3] %v4868
    %v4870 = vld [vmem:[#allocation4 + $0xe] sm:$0x3]
    %4871 = vst [vmem:[#allocation5 + $0xe] sm:$0x3] %v4870
    %v4872 = vld [vmem:[#allocation4 + $0x10] sm:$0x3]
    %4873 = vst [vmem:[#allocation5 + $0x10] sm:$0x3] %v4872
    %v4874 = vld [vmem:[#allocation4 + $0x12] sm:$0x3]
    %4875 = vst [vmem:[#allocation5 + $0x12] sm:$0x3] %v4874
    %v4876 = vld [vmem:[#allocation4 + $0x14] sm:$0x3]
    %4877 = vst [vmem:[#allocation5 + $0x14] sm:$0x3] %v4876
    %v4878 = vld [vmem:[#allocation4 + $0x16] sm:$0x3]
    %4879 = vst [vmem:[#allocation5 + $0x16] sm:$0x3] %v4878
    %v4880 = vld [vmem:[#allocation4 + $0x18] sm:$0x3]
    %4881 = vst [vmem:[#allocation5 + $0x18] sm:$0x3] %v4880
    %v4882 = vld [vmem:[#allocation4 + $0x1a] sm:$0x3]
    %4883 = vst [vmem:[#allocation5 + $0x1a] sm:$0x3] %v4882
    %v4884 = vld [vmem:[#allocation4 + $0x1c] sm:$0x3]
    %4885 = vst [vmem:[#allocation5 + $0x1c] sm:$0x3] %v4884
    %v4886 = vld [vmem:[#allocation4 + $0x1e] sm:$0x3]
    %4887 = vst [vmem:[#allocation5 + $0x1e] sm:$0x3] %v4886
    %v4888 = vld [vmem:[#allocation4 + $0x20] sm:$0x3]
    %4889 = vst [vmem:[#allocation5 + $0x20] sm:$0x3] %v4888
    %v4890 = vld [vmem:[#allocation4 + $0x22] sm:$0x3]
    %4891 = vst [vmem:[#allocation5 + $0x22] sm:$0x3] %v4890
    %v4892 = vld [vmem:[#allocation4 + $0x24] sm:$0x3]
    %4893 = vst [vmem:[#allocation5 + $0x24] sm:$0x3] %v4892
    %v4894 = vld [vmem:[#allocation4 + $0x26] sm:$0x3]
    %4895 = vst [vmem:[#allocation5 + $0x26] sm:$0x3] %v4894
    %v4896 = vld [vmem:[#allocation4 + $0x28] sm:$0x3]
    %4897 = vst [vmem:[#allocation5 + $0x28] sm:$0x3] %v4896
    %v4898 = vld [vmem:[#allocation4 + $0x2a] sm:$0x3]
    %4899 = vst [vmem:[#allocation5 + $0x2a] sm:$0x3] %v4898
    %v4900 = vld [vmem:[#allocation4 + $0x2c] sm:$0x3]
    %4901 = vst [vmem:[#allocation5 + $0x2c] sm:$0x3] %v4900
    %v4902 = vld [vmem:[#allocation4 + $0x2e] sm:$0x3]
    %4903 = vst [vmem:[#allocation5 + $0x2e] sm:$0x3] %v4902
    %v4904 = vld [vmem:[#allocation4 + $0x30] sm:$0x3]
    %4905 = vst [vmem:[#allocation5 + $0x30] sm:$0x3] %v4904
    %v4906 = vld [vmem:[#allocation5] sm:$0xff]
    %v4907 = vld [vmem:[#allocation5 + $0x8] sm:$0xff]
    %v4908 = vld [vmem:[#allocation5 + $0x10] sm:$0xff]
    %v4909 = vld [vmem:[#allocation5 + $0x18] sm:$0xff]
    %v4910 = vld [vmem:[#allocation5 + $0x20] sm:$0xff]
    %v4911 = vld [vmem:[#allocation5 + $0x28] sm:$0xff]
    %v4912 = vld [vmem:[#allocation5 + $0x30] sm:$0x3]
    %v4920 = vcombine.high %v4906, %v4906
    %v4922 = vunpack.c.l.s4 1983009808
    %v4923 = vunpack.c.0.s8 %v4922
    %v4924 = vlaneseq
    %v4925 = vshrl.u32 %v4924, 7
    %v4926 = vsub.s32 %v4923, %v4925
    %v4927 = vrot.slane %v4906, %v4926
    %v4929 = vunpack.c.l.s4 1983009808
    %v4930 = vunpack.c.0.s8 %v4929
    %v4931 = vlaneseq
    %v4932 = vshrl.u32 %v4931, 7
    %v4933 = vsub.s32 %v4930, %v4932
    %v4934 = vrot.slane %v4920, %v4933
    %v4935 = vcombine.high %v4927, %v4927
    %v4936 = vcombine.high %v4934, %v4934
    %v4937 = vcombine.high %v4907, %v4907
    %v4939 = vunpack.c.l.s4 1983009808
    %v4940 = vunpack.c.0.s8 %v4939
    %v4941 = vlaneseq
    %v4942 = vshrl.u32 %v4941, 7
    %v4943 = vsub.s32 %v4940, %v4942
    %v4944 = vrot.slane %v4907, %v4943
    %v4946 = vunpack.c.l.s4 1983009808
    %v4947 = vunpack.c.0.s8 %v4946
    %v4948 = vlaneseq
    %v4949 = vshrl.u32 %v4948, 7
    %v4950 = vsub.s32 %v4947, %v4949
    %v4951 = vrot.slane %v4937, %v4950
    %v4952 = vcombine.high %v4944, %v4944
    %v4953 = vcombine.high %v4951, %v4951
    %v4954 = vcombine.high %v4908, %v4908
    %v4956 = vunpack.c.l.s4 1983009808
    %v4957 = vunpack.c.0.s8 %v4956
    %v4958 = vlaneseq
    %v4959 = vshrl.u32 %v4958, 7
    %v4960 = vsub.s32 %v4957, %v4959
    %v4961 = vrot.slane %v4908, %v4960
    %v4963 = vunpack.c.l.s4 1983009808
    %v4964 = vunpack.c.0.s8 %v4963
    %v4965 = vlaneseq
    %v4966 = vshrl.u32 %v4965, 7
    %v4967 = vsub.s32 %v4964, %v4966
    %v4968 = vrot.slane %v4954, %v4967
    %v4969 = vcombine.high %v4961, %v4961
    %v4970 = vcombine.high %v4968, %v4968
    %v4971 = vcombine.high %v4909, %v4909
    %v4973 = vunpack.c.l.s4 1983009808
    %v4974 = vunpack.c.0.s8 %v4973
    %v4975 = vlaneseq
    %v4976 = vshrl.u32 %v4975, 7
    %v4977 = vsub.s32 %v4974, %v4976
    %v4978 = vrot.slane %v4909, %v4977
    %v4980 = vunpack.c.l.s4 1983009808
    %v4981 = vunpack.c.0.s8 %v4980
    %v4982 = vlaneseq
    %v4983 = vshrl.u32 %v4982, 7
    %v4984 = vsub.s32 %v4981, %v4983
    %v4985 = vrot.slane %v4971, %v4984
    %v4986 = vcombine.high %v4978, %v4978
    %v4987 = vcombine.high %v4985, %v4985
    %v4988 = vcombine.high %v4910, %v4910
    %v4990 = vunpack.c.l.s4 1983009808
    %v4991 = vunpack.c.0.s8 %v4990
    %v4992 = vlaneseq
    %v4993 = vshrl.u32 %v4992, 7
    %v4994 = vsub.s32 %v4991, %v4993
    %v4995 = vrot.slane %v4910, %v4994
    %v4997 = vunpack.c.l.s4 1983009808
    %v4998 = vunpack.c.0.s8 %v4997
    %v4999 = vlaneseq
    %v5000 = vshrl.u32 %v4999, 7
    %v5001 = vsub.s32 %v4998, %v5000
    %v5002 = vrot.slane %v4988, %v5001
    %v5003 = vcombine.high %v4995, %v4995
    %v5004 = vcombine.high %v5002, %v5002
    %v5005 = vcombine.high %v4911, %v4911
    %v5007 = vunpack.c.l.s4 1983009808
    %v5008 = vunpack.c.0.s8 %v5007
    %v5009 = vlaneseq
    %v5010 = vshrl.u32 %v5009, 7
    %v5011 = vsub.s32 %v5008, %v5010
    %v5012 = vrot.slane %v4911, %v5011
    %v5014 = vunpack.c.l.s4 1983009808
    %v5015 = vunpack.c.0.s8 %v5014
    %v5016 = vlaneseq
    %v5017 = vshrl.u32 %v5016, 7
    %v5018 = vsub.s32 %v5015, %v5017
    %v5019 = vrot.slane %v5005, %v5018
    %v5020 = vcombine.high %v5012, %v5012
    %v5021 = vcombine.high %v5019, %v5019
    %v5023 = vunpack.c.l.s4 1983009808
    %v5024 = vunpack.c.0.s8 %v5023
    %v5025 = vlaneseq
    %v5026 = vshrl.u32 %v5025, 7
    %v5027 = vsub.s32 %v5024, %v5026
    %v5028 = vrot.slane %v4912, %v5027
    %v5054 = vpack.c.bf16 %v4927, %v4927
    %v5055 = vpack.c.bf16 %v4935, %v4935
    %v5056 = vpack.c.bf16 %v4934, %v4934
    %v5057 = vpack.c.bf16 %v4936, %v4936
    %v5058 = vpack.c.bf16 %v4944, %v4944
    %v5059 = vpack.c.bf16 %v4952, %v4952
    %v5060 = vpack.c.bf16 %v4951, %v4951
    %v5061 = vpack.c.bf16 %v4953, %v4953
    %v5062 = vpack.c.bf16 %v4961, %v4961
    %v5063 = vpack.c.bf16 %v4969, %v4969
    %v5064 = vpack.c.bf16 %v4968, %v4968
    %v5065 = vpack.c.bf16 %v4970, %v4970
    %v5066 = vpack.c.bf16 %v4978, %v4978
    %v5067 = vpack.c.bf16 %v4986, %v4986
    %v5068 = vpack.c.bf16 %v4985, %v4985
    %v5069 = vpack.c.bf16 %v4987, %v4987
    %v5070 = vpack.c.bf16 %v4995, %v4995
    %v5071 = vpack.c.bf16 %v5003, %v5003
    %v5072 = vpack.c.bf16 %v5002, %v5002
    %v5073 = vpack.c.bf16 %v5004, %v5004
    %v5074 = vpack.c.bf16 %v5012, %v5012
    %v5075 = vpack.c.bf16 %v5020, %v5020
    %v5076 = vpack.c.bf16 %v5019, %v5019
    %v5077 = vpack.c.bf16 %v5021, %v5021
    %v5078 = vpack.c.bf16 %v5028, %v5028
    %v5079 = vld [vmem:[%s9] sm:$0xf]
    %v5080 = vld [vmem:[%s9 + $0x4] sm:$0xf]
    %v5081 = vld [vmem:[%s9 + $0x8] sm:$0xf]
    %v5082 = vld [vmem:[%s9 + $0xc] sm:$0xf]
    %v5083 = vld [vmem:[%s9 + $0x10] sm:$0xf]
    %v5084 = vld [vmem:[%s9 + $0x14] sm:$0xf]
    %v5085 = vld [vmem:[%s9 + $0x18] sm:$0xf]
    %v5086 = vld [vmem:[%s9 + $0x1c] sm:$0xf]
    %v5087 = vld [vmem:[%s9 + $0x20] sm:$0xf]
    %v5088 = vld [vmem:[%s9 + $0x24] sm:$0xf]
    %v5089 = vld [vmem:[%s9 + $0x28] sm:$0xf]
    %v5090 = vld [vmem:[%s9 + $0x2c] sm:$0xf]
    %v5091 = vld [vmem:[%s9 + $0x30] sm:$0xf]
    %v5092 = vld [vmem:[%s9 + $0x34] sm:$0xf]
    %v5093 = vld [vmem:[%s9 + $0x38] sm:$0xf]
    %v5094 = vld [vmem:[%s9 + $0x3c] sm:$0xf]
    %v5095 = vld [vmem:[%s9 + $0x40] sm:$0xf]
    %v5096 = vld [vmem:[%s9 + $0x44] sm:$0xf]
    %v5097 = vld [vmem:[%s9 + $0x48] sm:$0xf]
    %v5098 = vld [vmem:[%s9 + $0x4c] sm:$0xf]
    %v5099 = vld [vmem:[%s9 + $0x50] sm:$0xf]
    %v5100 = vld [vmem:[%s9 + $0x54] sm:$0xf]
    %v5101 = vld [vmem:[%s9 + $0x58] sm:$0xf]
    %v5102 = vld [vmem:[%s9 + $0x5c] sm:$0xf]
    %v5103 = vld [vmem:[%s9 + $0x60] sm:$0xf]
    %v5104 = vld [vmem:[%s9 + $0x64] sm:$0xf]
    %v5105 = vld [vmem:[%s9 + $0x68] sm:$0xf]
    %v5106 = vld [vmem:[%s9 + $0x6c] sm:$0xf]
    %v5107 = vld [vmem:[%s9 + $0x70] sm:$0xf]
    %v5108 = vld [vmem:[%s9 + $0x74] sm:$0xf]
    %v5109 = vld [vmem:[%s9 + $0x78] sm:$0xf]
    %v5110 = vld [vmem:[%s9 + $0x7c] sm:$0xf]
    %v5111 = vld [vmem:[%s9 + $0x80] sm:$0xf]
    %v5112 = vld [vmem:[%s9 + $0x84] sm:$0xf]
    %v5113 = vld [vmem:[%s9 + $0x88] sm:$0xf]
    %v5114 = vld [vmem:[%s9 + $0x8c] sm:$0xf]
    %v5115 = vld [vmem:[%s9 + $0x90] sm:$0xf]
    %v5116 = vld [vmem:[%s9 + $0x94] sm:$0xf]
    %v5117 = vld [vmem:[%s9 + $0x98] sm:$0xf]
    %v5118 = vld [vmem:[%s9 + $0x9c] sm:$0xf]
    %v5119 = vld [vmem:[%s9 + $0xa0] sm:$0xf]
    %v5120 = vld [vmem:[%s9 + $0xa4] sm:$0xf]
    %v5121 = vld [vmem:[%s9 + $0xa8] sm:$0xf]
    %v5122 = vld [vmem:[%s9 + $0xac] sm:$0xf]
    %v5123 = vld [vmem:[%s9 + $0xb0] sm:$0xf]
    %v5124 = vld [vmem:[%s9 + $0xb4] sm:$0xf]
    %v5125 = vld [vmem:[%s9 + $0xb8] sm:$0xf]
    %v5126 = vld [vmem:[%s9 + $0xbc] sm:$0xf]
    %v5127 = vld [vmem:[%s9 + $0xc0] sm:$0xf]
    %v5128 = vld [vmem:[%s9 + $0xc4] sm:$0xf]
    %v5129 = vld [vmem:[%s9 + $0xc8] sm:$0xf]
    %v5130 = vld [vmem:[%s9 + $0xcc] sm:$0xf]
    %v5131 = vld [vmem:[%s9 + $0xd0] sm:$0xf]
    %v5132 = vld [vmem:[%s9 + $0xd4] sm:$0xf]
    %v5133 = vld [vmem:[%s9 + $0xd8] sm:$0xf]
    %v5134 = vld [vmem:[%s9 + $0xdc] sm:$0xf]
    %v5135 = vld [vmem:[%s9 + $0xe0] sm:$0xf]
    %v5136 = vld [vmem:[%s9 + $0xe4] sm:$0xf]
    %v5137 = vld [vmem:[%s9 + $0xe8] sm:$0xf]
    %v5138 = vld [vmem:[%s9 + $0xec] sm:$0xf]
    %v5139 = vld [vmem:[%s9 + $0xf0] sm:$0xf]
    %v5140 = vld [vmem:[%s9 + $0xf4] sm:$0xf]
    %v5141 = vld [vmem:[%s9 + $0xf8] sm:$0xf]
    %v5142 = vld [vmem:[%s9 + $0xfc] sm:$0xf]
    %v5143 = vld [vmem:[%s9 + $0x100] sm:$0xf]
    %v5144 = vld [vmem:[%s9 + $0x104] sm:$0xf]
    %v5145 = vld [vmem:[%s9 + $0x108] sm:$0xf]
    %v5146 = vld [vmem:[%s9 + $0x10c] sm:$0xf]
    %v5147 = vld [vmem:[%s9 + $0x110] sm:$0xf]
    %v5148 = vld [vmem:[%s9 + $0x114] sm:$0xf]
    %v5149 = vld [vmem:[%s9 + $0x118] sm:$0xf]
    %v5150 = vld [vmem:[%s9 + $0x11c] sm:$0xf]
    %v5151 = vld [vmem:[%s9 + $0x120] sm:$0xf]
    %v5152 = vld [vmem:[%s9 + $0x124] sm:$0xf]
    %v5153 = vld [vmem:[%s9 + $0x128] sm:$0xf]
    %v5154 = vld [vmem:[%s9 + $0x12c] sm:$0xf]
    %v5155 = vld [vmem:[%s9 + $0x130] sm:$0xf]
    %v5156 = vld [vmem:[%s9 + $0x134] sm:$0xf]
    %v5157 = vld [vmem:[%s9 + $0x138] sm:$0xf]
    %v5158 = vld [vmem:[%s9 + $0x13c] sm:$0xf]
    %v5159 = vld [vmem:[%s9 + $0x140] sm:$0xf]
    %v5160 = vld [vmem:[%s9 + $0x144] sm:$0xf]
    %v5161 = vld [vmem:[%s9 + $0x148] sm:$0xf]
    %v5162 = vld [vmem:[%s9 + $0x14c] sm:$0xf]
    %v5163 = vld [vmem:[%s9 + $0x150] sm:$0xf]
    %v5164 = vld [vmem:[%s9 + $0x154] sm:$0xf]
    %v5165 = vld [vmem:[%s9 + $0x158] sm:$0xf]
    %v5166 = vld [vmem:[%s9 + $0x15c] sm:$0xf]
    %v5167 = vld [vmem:[%s9 + $0x160] sm:$0xf]
    %v5168 = vld [vmem:[%s9 + $0x164] sm:$0xf]
    %v5169 = vld [vmem:[%s9 + $0x168] sm:$0xf]
    %v5170 = vld [vmem:[%s9 + $0x16c] sm:$0xf]
    %v5171 = vld [vmem:[%s9 + $0x170] sm:$0xf]
    %v5172 = vld [vmem:[%s9 + $0x174] sm:$0xf]
    %v5173 = vld [vmem:[%s9 + $0x178] sm:$0xf]
    %v5174 = vld [vmem:[%s9 + $0x17c] sm:$0xf]
    %v5175 = vld [vmem:[%s9 + $0x180] sm:$0xf]
    %v5176 = vld [vmem:[%s9 + $0x184] sm:$0xf]
    %v5177 = vld [vmem:[%s9 + $0x188] sm:$0xf]
    %v5178 = vld [vmem:[%s9 + $0x18c] sm:$0xf]
    %v5179 = vld [vmem:[%s9 + $0x190] sm:$0xf]
    %v5180 = vld [vmem:[%s9 + $0x194] sm:$0xf]
    %v5181 = vld [vmem:[%s9 + $0x198] sm:$0xf]
    %v5182 = vld [vmem:[%s9 + $0x19c] sm:$0xf]
    %v5183 = vld [vmem:[%s9 + $0x1a0] sm:$0xf]
    %v5184 = vld [vmem:[%s9 + $0x1a4] sm:$0xf]
    %v5185 = vld [vmem:[%s9 + $0x1a8] sm:$0xf]
    %v5186 = vld [vmem:[%s9 + $0x1ac] sm:$0xf]
    %v5187 = vld [vmem:[%s9 + $0x1b0] sm:$0xf]
    %v5188 = vld [vmem:[%s9 + $0x1b4] sm:$0xf]
    %v5189 = vld [vmem:[%s9 + $0x1b8] sm:$0xf]
    %v5190 = vld [vmem:[%s9 + $0x1bc] sm:$0xf]
    %v5191 = vld [vmem:[%s9 + $0x1c0] sm:$0xf]
    %v5192 = vld [vmem:[%s9 + $0x1c4] sm:$0xf]
    %v5193 = vld [vmem:[%s9 + $0x1c8] sm:$0xf]
    %v5194 = vld [vmem:[%s9 + $0x1cc] sm:$0xf]
    %v5195 = vld [vmem:[%s9 + $0x1d0] sm:$0xf]
    %v5196 = vld [vmem:[%s9 + $0x1d4] sm:$0xf]
    %v5197 = vld [vmem:[%s9 + $0x1d8] sm:$0xf]
    %v5198 = vld [vmem:[%s9 + $0x1dc] sm:$0xf]
    %v5199 = vld [vmem:[%s9 + $0x1e0] sm:$0xf]
    %v5200 = vld [vmem:[%s9 + $0x1e4] sm:$0xf]
    %v5201 = vld [vmem:[%s9 + $0x1e8] sm:$0xf]
    %v5202 = vld [vmem:[%s9 + $0x1ec] sm:$0xf]
    %v5203 = vld [vmem:[%s9 + $0x1f0] sm:$0xf]
    %v5204 = vld [vmem:[%s9 + $0x1f4] sm:$0xf]
    %v5205 = vld [vmem:[%s9 + $0x1f8] sm:$0xf]
    %v5206 = vld [vmem:[%s9 + $0x1fc] sm:$0xf]
    %v5207 = vld [vmem:[%s9 + $0x200] sm:$0xf]
    %v5208 = vld [vmem:[%s9 + $0x204] sm:$0xf]
    %v5209 = vld [vmem:[%s9 + $0x208] sm:$0xf]
    %v5210 = vld [vmem:[%s9 + $0x20c] sm:$0xf]
    %v5211 = vld [vmem:[%s9 + $0x210] sm:$0xf]
    %v5212 = vld [vmem:[%s9 + $0x214] sm:$0xf]
    %v5213 = vld [vmem:[%s9 + $0x218] sm:$0xf]
    %v5214 = vld [vmem:[%s9 + $0x21c] sm:$0xf]
    %v5215 = vld [vmem:[%s9 + $0x220] sm:$0xf]
    %v5216 = vld [vmem:[%s9 + $0x224] sm:$0xf]
    %v5217 = vld [vmem:[%s9 + $0x228] sm:$0xf]
    %v5218 = vld [vmem:[%s9 + $0x22c] sm:$0xf]
    %v5219 = vld [vmem:[%s9 + $0x230] sm:$0xf]
    %v5220 = vld [vmem:[%s9 + $0x234] sm:$0xf]
    %v5221 = vld [vmem:[%s9 + $0x238] sm:$0xf]
    %v5222 = vld [vmem:[%s9 + $0x23c] sm:$0xf]
    %v5223 = vld [vmem:[%s9 + $0x240] sm:$0xf]
    %v5224 = vld [vmem:[%s9 + $0x244] sm:$0xf]
    %v5225 = vld [vmem:[%s9 + $0x248] sm:$0xf]
    %v5226 = vld [vmem:[%s9 + $0x24c] sm:$0xf]
    %v5227 = vld [vmem:[%s9 + $0x250] sm:$0xf]
    %v5228 = vld [vmem:[%s9 + $0x254] sm:$0xf]
    %v5229 = vld [vmem:[%s9 + $0x258] sm:$0xf]
    %v5230 = vld [vmem:[%s9 + $0x25c] sm:$0xf]
    %v5231 = vld [vmem:[%s9 + $0x260] sm:$0xf]
    %v5232 = vld [vmem:[%s9 + $0x264] sm:$0xf]
    %v5233 = vld [vmem:[%s9 + $0x268] sm:$0xf]
    %v5234 = vld [vmem:[%s9 + $0x26c] sm:$0xf]
    %v5235 = vld [vmem:[%s9 + $0x270] sm:$0xf]
    %v5236 = vld [vmem:[%s9 + $0x274] sm:$0xf]
    %v5237 = vld [vmem:[%s9 + $0x278] sm:$0xf]
    %v5238 = vld [vmem:[%s9 + $0x27c] sm:$0xf]
    %v5239 = vld [vmem:[%s9 + $0x280] sm:$0xf]
    %v5240 = vld [vmem:[%s9 + $0x284] sm:$0xf]
    %v5241 = vld [vmem:[%s9 + $0x288] sm:$0xf]
    %v5242 = vld [vmem:[%s9 + $0x28c] sm:$0xf]
    %v5243 = vld [vmem:[%s9 + $0x290] sm:$0xf]
    %v5244 = vld [vmem:[%s9 + $0x294] sm:$0xf]
    %v5245 = vld [vmem:[%s9 + $0x298] sm:$0xf]
    %v5246 = vld [vmem:[%s9 + $0x29c] sm:$0xf]
    %v5247 = vld [vmem:[%s9 + $0x2a0] sm:$0xf]
    %v5248 = vld [vmem:[%s9 + $0x2a4] sm:$0xf]
    %v5249 = vld [vmem:[%s9 + $0x2a8] sm:$0xf]
    %v5250 = vld [vmem:[%s9 + $0x2ac] sm:$0xf]
    %v5251 = vld [vmem:[%s9 + $0x2b0] sm:$0xf]
    %v5252 = vld [vmem:[%s9 + $0x2b4] sm:$0xf]
    %v5253 = vld [vmem:[%s9 + $0x2b8] sm:$0xf]
    %v5254 = vld [vmem:[%s9 + $0x2bc] sm:$0xf]
    %v5255 = vld [vmem:[%s9 + $0x2c0] sm:$0xf]
    %v5256 = vld [vmem:[%s9 + $0x2c4] sm:$0xf]
    %v5257 = vld [vmem:[%s9 + $0x2c8] sm:$0xf]
    %v5258 = vld [vmem:[%s9 + $0x2cc] sm:$0xf]
    %v5259 = vld [vmem:[%s9 + $0x2d0] sm:$0xf]
    %v5260 = vld [vmem:[%s9 + $0x2d4] sm:$0xf]
    %v5261 = vld [vmem:[%s9 + $0x2d8] sm:$0xf]
    %v5262 = vld [vmem:[%s9 + $0x2dc] sm:$0xf]
    %v5263 = vld [vmem:[%s9 + $0x2e0] sm:$0xf]
    %v5264 = vld [vmem:[%s9 + $0x2e4] sm:$0xf]
    %v5265 = vld [vmem:[%s9 + $0x2e8] sm:$0xf]
    %v5266 = vld [vmem:[%s9 + $0x2ec] sm:$0xf]
    %v5267 = vld [vmem:[%s9 + $0x2f0] sm:$0xf]
    %v5268 = vld [vmem:[%s9 + $0x2f4] sm:$0xf]
    %v5269 = vld [vmem:[%s9 + $0x2f8] sm:$0xf]
    %v5270 = vld [vmem:[%s9 + $0x2fc] sm:$0xf]
    %v5271 = vld [vmem:[%s9 + $0x300] sm:$0xf]
    %v5272 = vld [vmem:[%s9 + $0x304] sm:$0xf]
    %v5273 = vld [vmem:[%s9 + $0x308] sm:$0xf]
    %v5274 = vld [vmem:[%s9 + $0x30c] sm:$0xf]
    %v5275 = vld [vmem:[%s9 + $0x310] sm:$0xf]
    %v5276 = vld [vmem:[%s9 + $0x314] sm:$0xf]
    %v5277 = vld [vmem:[%s9 + $0x318] sm:$0xf]
    %v5278 = vld [vmem:[%s9 + $0x31c] sm:$0xf]
    %v5279 = vld [vmem:[%s9 + $0x320] sm:$0xf]
    %v5280 = vld [vmem:[%s9 + $0x324] sm:$0xf]
    %v5281 = vld [vmem:[%s9 + $0x328] sm:$0xf]
    %v5282 = vld [vmem:[%s9 + $0x32c] sm:$0xf]
    %v5283 = vld [vmem:[%s9 + $0x330] sm:$0xf]
    %v5284 = vld [vmem:[%s9 + $0x334] sm:$0xf]
    %v5285 = vld [vmem:[%s9 + $0x338] sm:$0xf]
    %v5286 = vld [vmem:[%s9 + $0x33c] sm:$0xf]
    %v5287 = vld [vmem:[%s9 + $0x340] sm:$0xf]
    %v5288 = vld [vmem:[%s9 + $0x344] sm:$0xf]
    %v5289 = vld [vmem:[%s9 + $0x348] sm:$0xf]
    %v5290 = vld [vmem:[%s9 + $0x34c] sm:$0xf]
    %v5291 = vld [vmem:[%s9 + $0x350] sm:$0xf]
    %v5292 = vld [vmem:[%s9 + $0x354] sm:$0xf]
    %v5293 = vld [vmem:[%s9 + $0x358] sm:$0xf]
    %v5294 = vld [vmem:[%s9 + $0x35c] sm:$0xf]
    %v5295 = vld [vmem:[%s9 + $0x360] sm:$0xf]
    %v5296 = vld [vmem:[%s9 + $0x364] sm:$0xf]
    %v5297 = vld [vmem:[%s9 + $0x368] sm:$0xf]
    %v5298 = vld [vmem:[%s9 + $0x36c] sm:$0xf]
    %v5299 = vld [vmem:[%s9 + $0x370] sm:$0xf]
    %v5300 = vld [vmem:[%s9 + $0x374] sm:$0xf]
    %v5301 = vld [vmem:[%s9 + $0x378] sm:$0xf]
    %v5302 = vld [vmem:[%s9 + $0x37c] sm:$0xf]
    %v5303 = vld [vmem:[%s9 + $0x380] sm:$0xf]
    %v5304 = vld [vmem:[%s9 + $0x384] sm:$0xf]
    %v5305 = vld [vmem:[%s9 + $0x388] sm:$0xf]
    %v5306 = vld [vmem:[%s9 + $0x38c] sm:$0xf]
    %v5307 = vld [vmem:[%s9 + $0x390] sm:$0xf]
    %v5308 = vld [vmem:[%s9 + $0x394] sm:$0xf]
    %v5309 = vld [vmem:[%s9 + $0x398] sm:$0xf]
    %v5310 = vld [vmem:[%s9 + $0x39c] sm:$0xf]
    %v5311 = vld [vmem:[%s9 + $0x3a0] sm:$0xf]
    %v5312 = vld [vmem:[%s9 + $0x3a4] sm:$0xf]
    %v5313 = vld [vmem:[%s9 + $0x3a8] sm:$0xf]
    %v5314 = vld [vmem:[%s9 + $0x3ac] sm:$0xf]
    %v5315 = vld [vmem:[%s9 + $0x3b0] sm:$0xf]
    %v5316 = vld [vmem:[%s9 + $0x3b4] sm:$0xf]
    %v5317 = vld [vmem:[%s9 + $0x3b8] sm:$0xf]
    %v5318 = vld [vmem:[%s9 + $0x3bc] sm:$0xf]
    %v5319 = vld [vmem:[%s9 + $0x3c0] sm:$0xf]
    %v5320 = vld [vmem:[%s9 + $0x3c4] sm:$0xf]
    %v5321 = vld [vmem:[%s9 + $0x3c8] sm:$0xf]
    %v5322 = vld [vmem:[%s9 + $0x3cc] sm:$0xf]
    %v5323 = vld [vmem:[%s9 + $0x3d0] sm:$0xf]
    %v5324 = vld [vmem:[%s9 + $0x3d4] sm:$0xf]
    %v5325 = vld [vmem:[%s9 + $0x3d8] sm:$0xf]
    %v5326 = vld [vmem:[%s9 + $0x3dc] sm:$0xf]
    %v5327 = vld [vmem:[%s9 + $0x3e0] sm:$0xf]
    %v5328 = vld [vmem:[%s9 + $0x3e4] sm:$0xf]
    %v5329 = vld [vmem:[%s9 + $0x3e8] sm:$0xf]
    %v5330 = vld [vmem:[%s9 + $0x3ec] sm:$0xf]
    %v5331 = vld [vmem:[%s9 + $0x3f0] sm:$0xf]
    %v5332 = vld [vmem:[%s9 + $0x3f4] sm:$0xf]
    %v5333 = vld [vmem:[%s9 + $0x3f8] sm:$0xf]
    %v5334 = vld [vmem:[%s9 + $0x3fc] sm:$0xf]
    %v5335 = vld [vmem:[%s9 + $0x400] sm:$0xf]
    %v5336 = vld [vmem:[%s9 + $0x404] sm:$0xf]
    %v5337 = vld [vmem:[%s9 + $0x408] sm:$0xf]
    %v5338 = vld [vmem:[%s9 + $0x40c] sm:$0xf]
    %v5339 = vld [vmem:[%s9 + $0x410] sm:$0xf]
    %v5340 = vld [vmem:[%s9 + $0x414] sm:$0xf]
    %v5341 = vld [vmem:[%s9 + $0x418] sm:$0xf]
    %v5342 = vld [vmem:[%s9 + $0x41c] sm:$0xf]
    %v5343 = vld [vmem:[%s9 + $0x420] sm:$0xf]
    %v5344 = vld [vmem:[%s9 + $0x424] sm:$0xf]
    %v5345 = vld [vmem:[%s9 + $0x428] sm:$0xf]
    %v5346 = vld [vmem:[%s9 + $0x42c] sm:$0xf]
    %v5347 = vld [vmem:[%s9 + $0x430] sm:$0xf]
    %v5348 = vld [vmem:[%s9 + $0x434] sm:$0xf]
    %v5349 = vld [vmem:[%s9 + $0x438] sm:$0xf]
    %v5350 = vld [vmem:[%s9 + $0x43c] sm:$0xf]
    %v5351 = vld [vmem:[%s9 + $0x440] sm:$0xf]
    %v5352 = vld [vmem:[%s9 + $0x444] sm:$0xf]
    %v5353 = vld [vmem:[%s9 + $0x448] sm:$0xf]
    %v5354 = vld [vmem:[%s9 + $0x44c] sm:$0xf]
    %v5355 = vld [vmem:[%s9 + $0x450] sm:$0xf]
    %v5356 = vld [vmem:[%s9 + $0x454] sm:$0xf]
    %v5357 = vld [vmem:[%s9 + $0x458] sm:$0xf]
    %v5358 = vld [vmem:[%s9 + $0x45c] sm:$0xf]
    %v5359 = vld [vmem:[%s9 + $0x460] sm:$0xf]
    %v5360 = vld [vmem:[%s9 + $0x464] sm:$0xf]
    %v5361 = vld [vmem:[%s9 + $0x468] sm:$0xf]
    %v5362 = vld [vmem:[%s9 + $0x46c] sm:$0xf]
    %v5363 = vld [vmem:[%s9 + $0x470] sm:$0xf]
    %v5364 = vld [vmem:[%s9 + $0x474] sm:$0xf]
    %v5365 = vld [vmem:[%s9 + $0x478] sm:$0xf]
    %v5366 = vld [vmem:[%s9 + $0x47c] sm:$0xf]
    %v5367 = vld [vmem:[%s9 + $0x480] sm:$0xf]
    %v5368 = vld [vmem:[%s9 + $0x484] sm:$0xf]
    %v5369 = vld [vmem:[%s9 + $0x488] sm:$0xf]
    %v5370 = vld [vmem:[%s9 + $0x48c] sm:$0xf]
    %v5371 = vld [vmem:[%s9 + $0x490] sm:$0xf]
    %v5372 = vld [vmem:[%s9 + $0x494] sm:$0xf]
    %v5373 = vld [vmem:[%s9 + $0x498] sm:$0xf]
    %v5374 = vld [vmem:[%s9 + $0x49c] sm:$0xf]
    %v5375 = vld [vmem:[%s9 + $0x4a0] sm:$0xf]
    %v5376 = vld [vmem:[%s9 + $0x4a4] sm:$0xf]
    %v5377 = vld [vmem:[%s9 + $0x4a8] sm:$0xf]
    %v5378 = vld [vmem:[%s9 + $0x4ac] sm:$0xf]
    %v5379 = vld [vmem:[%s9 + $0x4b0] sm:$0xf]
    %v5380 = vld [vmem:[%s9 + $0x4b4] sm:$0xf]
    %v5381 = vld [vmem:[%s9 + $0x4b8] sm:$0xf]
    %v5382 = vld [vmem:[%s9 + $0x4bc] sm:$0xf]
    %v5383 = vld [vmem:[%s9 + $0x4c0] sm:$0xf]
    %v5384 = vld [vmem:[%s9 + $0x4c4] sm:$0xf]
    %v5385 = vld [vmem:[%s9 + $0x4c8] sm:$0xf]
    %v5386 = vld [vmem:[%s9 + $0x4cc] sm:$0xf]
    %v5387 = vld [vmem:[%s9 + $0x4d0] sm:$0xf]
    %v5388 = vld [vmem:[%s9 + $0x4d4] sm:$0xf]
    %v5389 = vld [vmem:[%s9 + $0x4d8] sm:$0xf]
    %v5390 = vld [vmem:[%s9 + $0x4dc] sm:$0xf]
    %v5391 = vld [vmem:[%s9 + $0x4e0] sm:$0xf]
    %v5392 = vld [vmem:[%s9 + $0x4e4] sm:$0xf]
    %v5393 = vld [vmem:[%s9 + $0x4e8] sm:$0xf]
    %v5394 = vld [vmem:[%s9 + $0x4ec] sm:$0xf]
    %v5395 = vld [vmem:[%s9 + $0x4f0] sm:$0xf]
    %v5396 = vld [vmem:[%s9 + $0x4f4] sm:$0xf]
    %v5397 = vld [vmem:[%s9 + $0x4f8] sm:$0xf]
    %v5398 = vld [vmem:[%s9 + $0x4fc] sm:$0xf]
    %v5399 = vld [vmem:[%s9 + $0x500] sm:$0xf]
    %v5400 = vld [vmem:[%s9 + $0x504] sm:$0xf]
    %v5401 = vld [vmem:[%s9 + $0x508] sm:$0xf]
    %v5402 = vld [vmem:[%s9 + $0x50c] sm:$0xf]
    %v5403 = vld [vmem:[%s9 + $0x510] sm:$0xf]
    %v5404 = vld [vmem:[%s9 + $0x514] sm:$0xf]
    %v5405 = vld [vmem:[%s9 + $0x518] sm:$0xf]
    %v5406 = vld [vmem:[%s9 + $0x51c] sm:$0xf]
    %v5407 = vld [vmem:[%s9 + $0x520] sm:$0xf]
    %v5408 = vld [vmem:[%s9 + $0x524] sm:$0xf]
    %v5409 = vld [vmem:[%s9 + $0x528] sm:$0xf]
    %v5410 = vld [vmem:[%s9 + $0x52c] sm:$0xf]
    %v5411 = vld [vmem:[%s9 + $0x530] sm:$0xf]
    %v5412 = vld [vmem:[%s9 + $0x534] sm:$0xf]
    %v5413 = vld [vmem:[%s9 + $0x538] sm:$0xf]
    %v5414 = vld [vmem:[%s9 + $0x53c] sm:$0xf]
    %v5415 = vld [vmem:[%s9 + $0x540] sm:$0xf]
    %v5416 = vld [vmem:[%s9 + $0x544] sm:$0xf]
    %v5417 = vld [vmem:[%s9 + $0x548] sm:$0xf]
    %v5418 = vld [vmem:[%s9 + $0x54c] sm:$0xf]
    %v5419 = vld [vmem:[%s9 + $0x550] sm:$0xf]
    %v5420 = vld [vmem:[%s9 + $0x554] sm:$0xf]
    %v5421 = vld [vmem:[%s9 + $0x558] sm:$0xf]
    %v5422 = vld [vmem:[%s9 + $0x55c] sm:$0xf]
    %v5423 = vld [vmem:[%s9 + $0x560] sm:$0xf]
    %v5424 = vld [vmem:[%s9 + $0x564] sm:$0xf]
    %v5425 = vld [vmem:[%s9 + $0x568] sm:$0xf]
    %v5426 = vld [vmem:[%s9 + $0x56c] sm:$0xf]
    %v5427 = vld [vmem:[%s9 + $0x570] sm:$0xf]
    %v5428 = vld [vmem:[%s9 + $0x574] sm:$0xf]
    %v5429 = vld [vmem:[%s9 + $0x578] sm:$0xf]
    %v5430 = vld [vmem:[%s9 + $0x57c] sm:$0xf]
    %v5431 = vld [vmem:[%s9 + $0x580] sm:$0xf]
    %v5432 = vld [vmem:[%s9 + $0x584] sm:$0xf]
    %v5433 = vld [vmem:[%s9 + $0x588] sm:$0xf]
    %v5434 = vld [vmem:[%s9 + $0x58c] sm:$0xf]
    %v5435 = vld [vmem:[%s9 + $0x590] sm:$0xf]
    %v5436 = vld [vmem:[%s9 + $0x594] sm:$0xf]
    %v5437 = vld [vmem:[%s9 + $0x598] sm:$0xf]
    %v5438 = vld [vmem:[%s9 + $0x59c] sm:$0xf]
    %v5439 = vld [vmem:[%s9 + $0x5a0] sm:$0xf]
    %v5440 = vld [vmem:[%s9 + $0x5a4] sm:$0xf]
    %v5441 = vld [vmem:[%s9 + $0x5a8] sm:$0xf]
    %v5442 = vld [vmem:[%s9 + $0x5ac] sm:$0xf]
    %v5443 = vld [vmem:[%s9 + $0x5b0] sm:$0xf]
    %v5444 = vld [vmem:[%s9 + $0x5b4] sm:$0xf]
    %v5445 = vld [vmem:[%s9 + $0x5b8] sm:$0xf]
    %v5446 = vld [vmem:[%s9 + $0x5bc] sm:$0xf]
    %v5447 = vld [vmem:[%s9 + $0x5c0] sm:$0xf]
    %v5448 = vld [vmem:[%s9 + $0x5c4] sm:$0xf]
    %v5449 = vld [vmem:[%s9 + $0x5c8] sm:$0xf]
    %v5450 = vld [vmem:[%s9 + $0x5cc] sm:$0xf]
    %v5451 = vld [vmem:[%s9 + $0x5d0] sm:$0xf]
    %v5452 = vld [vmem:[%s9 + $0x5d4] sm:$0xf]
    %v5453 = vld [vmem:[%s9 + $0x5d8] sm:$0xf]
    %v5454 = vld [vmem:[%s9 + $0x5dc] sm:$0xf]
    %v5455 = vld [vmem:[%s9 + $0x5e0] sm:$0xf]
    %v5456 = vld [vmem:[%s9 + $0x5e4] sm:$0xf]
    %v5457 = vld [vmem:[%s9 + $0x5e8] sm:$0xf]
    %v5458 = vld [vmem:[%s9 + $0x5ec] sm:$0xf]
    %v5459 = vld [vmem:[%s9 + $0x5f0] sm:$0xf]
    %v5460 = vld [vmem:[%s9 + $0x5f4] sm:$0xf]
    %v5461 = vld [vmem:[%s9 + $0x5f8] sm:$0xf]
    %v5462 = vld [vmem:[%s9 + $0x5fc] sm:$0xf]
    %v5463 = vld [vmem:[%s9 + $0x600] sm:$0xf]
    %v5464 = vld [vmem:[%s9 + $0x604] sm:$0xf]
    %v5465 = vld [vmem:[%s9 + $0x608] sm:$0xf]
    %v5466 = vld [vmem:[%s9 + $0x60c] sm:$0xf]
    %v5467 = vld [vmem:[%s9 + $0x610] sm:$0xf]
    %v5468 = vld [vmem:[%s9 + $0x614] sm:$0xf]
    %v5469 = vld [vmem:[%s9 + $0x618] sm:$0xf]
    %v5470 = vld [vmem:[%s9 + $0x61c] sm:$0xf]
    %v5471 = vld [vmem:[%s9 + $0x620] sm:$0xf]
    %v5472 = vld [vmem:[%s9 + $0x624] sm:$0xf]
    %v5473 = vld [vmem:[%s9 + $0x628] sm:$0xf]
    %v5474 = vld [vmem:[%s9 + $0x62c] sm:$0xf]
    %v5475 = vld [vmem:[%s9 + $0x630] sm:$0xf]
    %v5476 = vld [vmem:[%s9 + $0x634] sm:$0xf]
    %v5477 = vld [vmem:[%s9 + $0x638] sm:$0xf]
    %v5478 = vld [vmem:[%s9 + $0x63c] sm:$0xf]
    %v5479 = vld [vmem:[%s10] sm:$0x1]
    %v5481 = vlaneseq
    %v5482 = vshrl.u32 %v5481, 7
    %v5483 = vsub.s32 0, %v5482
    %v5484 = vrot.slane %v5479, %v5483
    %v5886 = vunpack.c.l.b16 %v5079
    %v5887 = vunpack.c.l.b16 %v5080
    %v5888 = vunpack.c.l.b16 %v5081
    %v5889 = vunpack.c.l.b16 %v5082
    %v5890 = vunpack.c.l.b16 %v5083
    %v5891 = vunpack.c.l.b16 %v5084
    %v5892 = vunpack.c.l.b16 %v5085
    %v5893 = vunpack.c.l.b16 %v5086
    %v5894 = vunpack.c.l.b16 %v5087
    %v5895 = vunpack.c.l.b16 %v5088
    %v5896 = vunpack.c.l.b16 %v5089
    %v5897 = vunpack.c.l.b16 %v5090
    %v5898 = vunpack.c.l.b16 %v5091
    %v5899 = vunpack.c.l.b16 %v5092
    %v5900 = vunpack.c.l.b16 %v5093
    %v5901 = vunpack.c.l.b16 %v5094
    %v5902 = vunpack.c.l.b16 %v5095
    %v5903 = vunpack.c.l.b16 %v5096
    %v5904 = vunpack.c.l.b16 %v5097
    %v5905 = vunpack.c.l.b16 %v5098
    %v5906 = vunpack.c.l.b16 %v5099
    %v5907 = vunpack.c.l.b16 %v5100
    %v5908 = vunpack.c.l.b16 %v5101
    %v5909 = vunpack.c.l.b16 %v5102
    %v5910 = vunpack.c.l.b16 %v5103
    %v5911 = vunpack.c.l.b16 %v5104
    %v5912 = vunpack.c.l.b16 %v5105
    %v5913 = vunpack.c.l.b16 %v5106
    %v5914 = vunpack.c.l.b16 %v5107
    %v5915 = vunpack.c.l.b16 %v5108
    %v5916 = vunpack.c.l.b16 %v5109
    %v5917 = vunpack.c.l.b16 %v5110
    %v5918 = vunpack.c.l.b16 %v5111
    %v5919 = vunpack.c.l.b16 %v5112
    %v5920 = vunpack.c.l.b16 %v5113
    %v5921 = vunpack.c.l.b16 %v5114
    %v5922 = vunpack.c.l.b16 %v5115
    %v5923 = vunpack.c.l.b16 %v5116
    %v5924 = vunpack.c.l.b16 %v5117
    %v5925 = vunpack.c.l.b16 %v5118
    %v5926 = vunpack.c.l.b16 %v5119
    %v5927 = vunpack.c.l.b16 %v5120
    %v5928 = vunpack.c.l.b16 %v5121
    %v5929 = vunpack.c.l.b16 %v5122
    %v5930 = vunpack.c.l.b16 %v5123
    %v5931 = vunpack.c.l.b16 %v5124
    %v5932 = vunpack.c.l.b16 %v5125
    %v5933 = vunpack.c.l.b16 %v5126
    %v5934 = vunpack.c.l.b16 %v5127
    %v5935 = vunpack.c.l.b16 %v5128
    %v5936 = vunpack.c.l.b16 %v5129
    %v5937 = vunpack.c.l.b16 %v5130
    %v5938 = vunpack.c.l.b16 %v5131
    %v5939 = vunpack.c.l.b16 %v5132
    %v5940 = vunpack.c.l.b16 %v5133
    %v5941 = vunpack.c.l.b16 %v5134
    %v5942 = vunpack.c.l.b16 %v5135
    %v5943 = vunpack.c.l.b16 %v5136
    %v5944 = vunpack.c.l.b16 %v5137
    %v5945 = vunpack.c.l.b16 %v5138
    %v5946 = vunpack.c.l.b16 %v5139
    %v5947 = vunpack.c.l.b16 %v5140
    %v5948 = vunpack.c.l.b16 %v5141
    %v5949 = vunpack.c.l.b16 %v5142
    %v5950 = vunpack.c.l.b16 %v5143
    %v5951 = vunpack.c.l.b16 %v5144
    %v5952 = vunpack.c.l.b16 %v5145
    %v5953 = vunpack.c.l.b16 %v5146
    %v5954 = vunpack.c.l.b16 %v5147
    %v5955 = vunpack.c.l.b16 %v5148
    %v5956 = vunpack.c.l.b16 %v5149
    %v5957 = vunpack.c.l.b16 %v5150
    %v5958 = vunpack.c.l.b16 %v5151
    %v5959 = vunpack.c.l.b16 %v5152
    %v5960 = vunpack.c.l.b16 %v5153
    %v5961 = vunpack.c.l.b16 %v5154
    %v5962 = vunpack.c.l.b16 %v5155
    %v5963 = vunpack.c.l.b16 %v5156
    %v5964 = vunpack.c.l.b16 %v5157
    %v5965 = vunpack.c.l.b16 %v5158
    %v5966 = vunpack.c.l.b16 %v5159
    %v5967 = vunpack.c.l.b16 %v5160
    %v5968 = vunpack.c.l.b16 %v5161
    %v5969 = vunpack.c.l.b16 %v5162
    %v5970 = vunpack.c.l.b16 %v5163
    %v5971 = vunpack.c.l.b16 %v5164
    %v5972 = vunpack.c.l.b16 %v5165
    %v5973 = vunpack.c.l.b16 %v5166
    %v5974 = vunpack.c.l.b16 %v5167
    %v5975 = vunpack.c.l.b16 %v5168
    %v5976 = vunpack.c.l.b16 %v5169
    %v5977 = vunpack.c.l.b16 %v5170
    %v5978 = vunpack.c.l.b16 %v5171
    %v5979 = vunpack.c.l.b16 %v5172
    %v5980 = vunpack.c.l.b16 %v5173
    %v5981 = vunpack.c.l.b16 %v5174
    %v5982 = vunpack.c.l.b16 %v5175
    %v5983 = vunpack.c.l.b16 %v5176
    %v5984 = vunpack.c.l.b16 %v5177
    %v5985 = vunpack.c.l.b16 %v5178
    %v5986 = vunpack.c.l.b16 %v5179
    %v5987 = vunpack.c.l.b16 %v5180
    %v5988 = vunpack.c.l.b16 %v5181
    %v5989 = vunpack.c.l.b16 %v5182
    %v5990 = vunpack.c.l.b16 %v5183
    %v5991 = vunpack.c.l.b16 %v5184
    %v5992 = vunpack.c.l.b16 %v5185
    %v5993 = vunpack.c.l.b16 %v5186
    %v5994 = vunpack.c.l.b16 %v5187
    %v5995 = vunpack.c.l.b16 %v5188
    %v5996 = vunpack.c.l.b16 %v5189
    %v5997 = vunpack.c.l.b16 %v5190
    %v5998 = vunpack.c.l.b16 %v5191
    %v5999 = vunpack.c.l.b16 %v5192
    %v6000 = vunpack.c.l.b16 %v5193
    %v6001 = vunpack.c.l.b16 %v5194
    %v6002 = vunpack.c.l.b16 %v5195
    %v6003 = vunpack.c.l.b16 %v5196
    %v6004 = vunpack.c.l.b16 %v5197
    %v6005 = vunpack.c.l.b16 %v5198
    %v6006 = vunpack.c.l.b16 %v5199
    %v6007 = vunpack.c.l.b16 %v5200
    %v6008 = vunpack.c.l.b16 %v5201
    %v6009 = vunpack.c.l.b16 %v5202
    %v6010 = vunpack.c.l.b16 %v5203
    %v6011 = vunpack.c.l.b16 %v5204
    %v6012 = vunpack.c.l.b16 %v5205
    %v6013 = vunpack.c.l.b16 %v5206
    %v6014 = vunpack.c.l.b16 %v5207
    %v6015 = vunpack.c.l.b16 %v5208
    %v6016 = vunpack.c.l.b16 %v5209
    %v6017 = vunpack.c.l.b16 %v5210
    %v6018 = vunpack.c.l.b16 %v5211
    %v6019 = vunpack.c.l.b16 %v5212
    %v6020 = vunpack.c.l.b16 %v5213
    %v6021 = vunpack.c.l.b16 %v5214
    %v6022 = vunpack.c.l.b16 %v5215
    %v6023 = vunpack.c.l.b16 %v5216
    %v6024 = vunpack.c.l.b16 %v5217
    %v6025 = vunpack.c.l.b16 %v5218
    %v6026 = vunpack.c.l.b16 %v5219
    %v6027 = vunpack.c.l.b16 %v5220
    %v6028 = vunpack.c.l.b16 %v5221
    %v6029 = vunpack.c.l.b16 %v5222
    %v6030 = vunpack.c.l.b16 %v5223
    %v6031 = vunpack.c.l.b16 %v5224
    %v6032 = vunpack.c.l.b16 %v5225
    %v6033 = vunpack.c.l.b16 %v5226
    %v6034 = vunpack.c.l.b16 %v5227
    %v6035 = vunpack.c.l.b16 %v5228
    %v6036 = vunpack.c.l.b16 %v5229
    %v6037 = vunpack.c.l.b16 %v5230
    %v6038 = vunpack.c.l.b16 %v5231
    %v6039 = vunpack.c.l.b16 %v5232
    %v6040 = vunpack.c.l.b16 %v5233
    %v6041 = vunpack.c.l.b16 %v5234
    %v6042 = vunpack.c.l.b16 %v5235
    %v6043 = vunpack.c.l.b16 %v5236
    %v6044 = vunpack.c.l.b16 %v5237
    %v6045 = vunpack.c.l.b16 %v5238
    %v6046 = vunpack.c.l.b16 %v5239
    %v6047 = vunpack.c.l.b16 %v5240
    %v6048 = vunpack.c.l.b16 %v5241
    %v6049 = vunpack.c.l.b16 %v5242
    %v6050 = vunpack.c.l.b16 %v5243
    %v6051 = vunpack.c.l.b16 %v5244
    %v6052 = vunpack.c.l.b16 %v5245
    %v6053 = vunpack.c.l.b16 %v5246
    %v6054 = vunpack.c.l.b16 %v5247
    %v6055 = vunpack.c.l.b16 %v5248
    %v6056 = vunpack.c.l.b16 %v5249
    %v6057 = vunpack.c.l.b16 %v5250
    %v6058 = vunpack.c.l.b16 %v5251
    %v6059 = vunpack.c.l.b16 %v5252
    %v6060 = vunpack.c.l.b16 %v5253
    %v6061 = vunpack.c.l.b16 %v5254
    %v6062 = vunpack.c.l.b16 %v5255
    %v6063 = vunpack.c.l.b16 %v5256
    %v6064 = vunpack.c.l.b16 %v5257
    %v6065 = vunpack.c.l.b16 %v5258
    %v6066 = vunpack.c.l.b16 %v5259
    %v6067 = vunpack.c.l.b16 %v5260
    %v6068 = vunpack.c.l.b16 %v5261
    %v6069 = vunpack.c.l.b16 %v5262
    %v6070 = vunpack.c.l.b16 %v5263
    %v6071 = vunpack.c.l.b16 %v5264
    %v6072 = vunpack.c.l.b16 %v5265
    %v6073 = vunpack.c.l.b16 %v5266
    %v6074 = vunpack.c.l.b16 %v5267
    %v6075 = vunpack.c.l.b16 %v5268
    %v6076 = vunpack.c.l.b16 %v5269
    %v6077 = vunpack.c.l.b16 %v5270
    %v6078 = vunpack.c.l.b16 %v5271
    %v6079 = vunpack.c.l.b16 %v5272
    %v6080 = vunpack.c.l.b16 %v5273
    %v6081 = vunpack.c.l.b16 %v5274
    %v6082 = vunpack.c.l.b16 %v5275
    %v6083 = vunpack.c.l.b16 %v5276
    %v6084 = vunpack.c.l.b16 %v5277
    %v6085 = vunpack.c.l.b16 %v5278
    %v6086 = vunpack.c.l.b16 %v5279
    %v6087 = vunpack.c.l.b16 %v5280
    %v6088 = vunpack.c.l.b16 %v5281
    %v6089 = vunpack.c.l.b16 %v5282
    %v6090 = vunpack.c.l.b16 %v5283
    %v6091 = vunpack.c.l.b16 %v5284
    %v6092 = vunpack.c.l.b16 %v5285
    %v6093 = vunpack.c.l.b16 %v5286
    %v6094 = vunpack.c.l.b16 %v5287
    %v6095 = vunpack.c.l.b16 %v5288
    %v6096 = vunpack.c.l.b16 %v5289
    %v6097 = vunpack.c.l.b16 %v5290
    %v6098 = vunpack.c.l.b16 %v5291
    %v6099 = vunpack.c.l.b16 %v5292
    %v6100 = vunpack.c.l.b16 %v5293
    %v6101 = vunpack.c.l.b16 %v5294
    %v6102 = vunpack.c.l.b16 %v5295
    %v6103 = vunpack.c.l.b16 %v5296
    %v6104 = vunpack.c.l.b16 %v5297
    %v6105 = vunpack.c.l.b16 %v5298
    %v6106 = vunpack.c.l.b16 %v5299
    %v6107 = vunpack.c.l.b16 %v5300
    %v6108 = vunpack.c.l.b16 %v5301
    %v6109 = vunpack.c.l.b16 %v5302
    %v6110 = vunpack.c.l.b16 %v5303
    %v6111 = vunpack.c.l.b16 %v5304
    %v6112 = vunpack.c.l.b16 %v5305
    %v6113 = vunpack.c.l.b16 %v5306
    %v6114 = vunpack.c.l.b16 %v5307
    %v6115 = vunpack.c.l.b16 %v5308
    %v6116 = vunpack.c.l.b16 %v5309
    %v6117 = vunpack.c.l.b16 %v5310
    %v6118 = vunpack.c.l.b16 %v5311
    %v6119 = vunpack.c.l.b16 %v5312
    %v6120 = vunpack.c.l.b16 %v5313
    %v6121 = vunpack.c.l.b16 %v5314
    %v6122 = vunpack.c.l.b16 %v5315
    %v6123 = vunpack.c.l.b16 %v5316
    %v6124 = vunpack.c.l.b16 %v5317
    %v6125 = vunpack.c.l.b16 %v5318
    %v6126 = vunpack.c.l.b16 %v5319
    %v6127 = vunpack.c.l.b16 %v5320
    %v6128 = vunpack.c.l.b16 %v5321
    %v6129 = vunpack.c.l.b16 %v5322
    %v6130 = vunpack.c.l.b16 %v5323
    %v6131 = vunpack.c.l.b16 %v5324
    %v6132 = vunpack.c.l.b16 %v5325
    %v6133 = vunpack.c.l.b16 %v5326
    %v6134 = vunpack.c.l.b16 %v5327
    %v6135 = vunpack.c.l.b16 %v5328
    %v6136 = vunpack.c.l.b16 %v5329
    %v6137 = vunpack.c.l.b16 %v5330
    %v6138 = vunpack.c.l.b16 %v5331
    %v6139 = vunpack.c.l.b16 %v5332
    %v6140 = vunpack.c.l.b16 %v5333
    %v6141 = vunpack.c.l.b16 %v5334
    %v6142 = vunpack.c.l.b16 %v5335
    %v6143 = vunpack.c.l.b16 %v5336
    %v6144 = vunpack.c.l.b16 %v5337
    %v6145 = vunpack.c.l.b16 %v5338
    %v6146 = vunpack.c.l.b16 %v5339
    %v6147 = vunpack.c.l.b16 %v5340
    %v6148 = vunpack.c.l.b16 %v5341
    %v6149 = vunpack.c.l.b16 %v5342
    %v6150 = vunpack.c.l.b16 %v5343
    %v6151 = vunpack.c.l.b16 %v5344
    %v6152 = vunpack.c.l.b16 %v5345
    %v6153 = vunpack.c.l.b16 %v5346
    %v6154 = vunpack.c.l.b16 %v5347
    %v6155 = vunpack.c.l.b16 %v5348
    %v6156 = vunpack.c.l.b16 %v5349
    %v6157 = vunpack.c.l.b16 %v5350
    %v6158 = vunpack.c.l.b16 %v5351
    %v6159 = vunpack.c.l.b16 %v5352
    %v6160 = vunpack.c.l.b16 %v5353
    %v6161 = vunpack.c.l.b16 %v5354
    %v6162 = vunpack.c.l.b16 %v5355
    %v6163 = vunpack.c.l.b16 %v5356
    %v6164 = vunpack.c.l.b16 %v5357
    %v6165 = vunpack.c.l.b16 %v5358
    %v6166 = vunpack.c.l.b16 %v5359
    %v6167 = vunpack.c.l.b16 %v5360
    %v6168 = vunpack.c.l.b16 %v5361
    %v6169 = vunpack.c.l.b16 %v5362
    %v6170 = vunpack.c.l.b16 %v5363
    %v6171 = vunpack.c.l.b16 %v5364
    %v6172 = vunpack.c.l.b16 %v5365
    %v6173 = vunpack.c.l.b16 %v5366
    %v6174 = vunpack.c.l.b16 %v5367
    %v6175 = vunpack.c.l.b16 %v5368
    %v6176 = vunpack.c.l.b16 %v5369
    %v6177 = vunpack.c.l.b16 %v5370
    %v6178 = vunpack.c.l.b16 %v5371
    %v6179 = vunpack.c.l.b16 %v5372
    %v6180 = vunpack.c.l.b16 %v5373
    %v6181 = vunpack.c.l.b16 %v5374
    %v6182 = vunpack.c.l.b16 %v5375
    %v6183 = vunpack.c.l.b16 %v5376
    %v6184 = vunpack.c.l.b16 %v5377
    %v6185 = vunpack.c.l.b16 %v5378
    %v6186 = vunpack.c.l.b16 %v5379
    %v6187 = vunpack.c.l.b16 %v5380
    %v6188 = vunpack.c.l.b16 %v5381
    %v6189 = vunpack.c.l.b16 %v5382
    %v6190 = vunpack.c.l.b16 %v5383
    %v6191 = vunpack.c.l.b16 %v5384
    %v6192 = vunpack.c.l.b16 %v5385
    %v6193 = vunpack.c.l.b16 %v5386
    %v6194 = vunpack.c.l.b16 %v5387
    %v6195 = vunpack.c.l.b16 %v5388
    %v6196 = vunpack.c.l.b16 %v5389
    %v6197 = vunpack.c.l.b16 %v5390
    %v6198 = vunpack.c.l.b16 %v5391
    %v6199 = vunpack.c.l.b16 %v5392
    %v6200 = vunpack.c.l.b16 %v5393
    %v6201 = vunpack.c.l.b16 %v5394
    %v6202 = vunpack.c.l.b16 %v5395
    %v6203 = vunpack.c.l.b16 %v5396
    %v6204 = vunpack.c.l.b16 %v5397
    %v6205 = vunpack.c.l.b16 %v5398
    %v6206 = vunpack.c.l.b16 %v5399
    %v6207 = vunpack.c.l.b16 %v5400
    %v6208 = vunpack.c.l.b16 %v5401
    %v6209 = vunpack.c.l.b16 %v5402
    %v6210 = vunpack.c.l.b16 %v5403
    %v6211 = vunpack.c.l.b16 %v5404
    %v6212 = vunpack.c.l.b16 %v5405
    %v6213 = vunpack.c.l.b16 %v5406
    %v6214 = vunpack.c.l.b16 %v5407
    %v6215 = vunpack.c.l.b16 %v5408
    %v6216 = vunpack.c.l.b16 %v5409
    %v6217 = vunpack.c.l.b16 %v5410
    %v6218 = vunpack.c.l.b16 %v5411
    %v6219 = vunpack.c.l.b16 %v5412
    %v6220 = vunpack.c.l.b16 %v5413
    %v6221 = vunpack.c.l.b16 %v5414
    %v6222 = vunpack.c.l.b16 %v5415
    %v6223 = vunpack.c.l.b16 %v5416
    %v6224 = vunpack.c.l.b16 %v5417
    %v6225 = vunpack.c.l.b16 %v5418
    %v6226 = vunpack.c.l.b16 %v5419
    %v6227 = vunpack.c.l.b16 %v5420
    %v6228 = vunpack.c.l.b16 %v5421
    %v6229 = vunpack.c.l.b16 %v5422
    %v6230 = vunpack.c.l.b16 %v5423
    %v6231 = vunpack.c.l.b16 %v5424
    %v6232 = vunpack.c.l.b16 %v5425
    %v6233 = vunpack.c.l.b16 %v5426
    %v6234 = vunpack.c.l.b16 %v5427
    %v6235 = vunpack.c.l.b16 %v5428
    %v6236 = vunpack.c.l.b16 %v5429
    %v6237 = vunpack.c.l.b16 %v5430
    %v6238 = vunpack.c.l.b16 %v5431
    %v6239 = vunpack.c.l.b16 %v5432
    %v6240 = vunpack.c.l.b16 %v5433
    %v6241 = vunpack.c.l.b16 %v5434
    %v6242 = vunpack.c.l.b16 %v5435
    %v6243 = vunpack.c.l.b16 %v5436
    %v6244 = vunpack.c.l.b16 %v5437
    %v6245 = vunpack.c.l.b16 %v5438
    %v6246 = vunpack.c.l.b16 %v5439
    %v6247 = vunpack.c.l.b16 %v5440
    %v6248 = vunpack.c.l.b16 %v5441
    %v6249 = vunpack.c.l.b16 %v5442
    %v6250 = vunpack.c.l.b16 %v5443
    %v6251 = vunpack.c.l.b16 %v5444
    %v6252 = vunpack.c.l.b16 %v5445
    %v6253 = vunpack.c.l.b16 %v5446
    %v6254 = vunpack.c.l.b16 %v5447
    %v6255 = vunpack.c.l.b16 %v5448
    %v6256 = vunpack.c.l.b16 %v5449
    %v6257 = vunpack.c.l.b16 %v5450
    %v6258 = vunpack.c.l.b16 %v5451
    %v6259 = vunpack.c.l.b16 %v5452
    %v6260 = vunpack.c.l.b16 %v5453
    %v6261 = vunpack.c.l.b16 %v5454
    %v6262 = vunpack.c.l.b16 %v5455
    %v6263 = vunpack.c.l.b16 %v5456
    %v6264 = vunpack.c.l.b16 %v5457
    %v6265 = vunpack.c.l.b16 %v5458
    %v6266 = vunpack.c.l.b16 %v5459
    %v6267 = vunpack.c.l.b16 %v5460
    %v6268 = vunpack.c.l.b16 %v5461
    %v6269 = vunpack.c.l.b16 %v5462
    %v6270 = vunpack.c.l.b16 %v5463
    %v6271 = vunpack.c.l.b16 %v5464
    %v6272 = vunpack.c.l.b16 %v5465
    %v6273 = vunpack.c.l.b16 %v5466
    %v6274 = vunpack.c.l.b16 %v5467
    %v6275 = vunpack.c.l.b16 %v5468
    %v6276 = vunpack.c.l.b16 %v5469
    %v6277 = vunpack.c.l.b16 %v5470
    %v6278 = vunpack.c.l.b16 %v5471
    %v6279 = vunpack.c.l.b16 %v5472
    %v6280 = vunpack.c.l.b16 %v5473
    %v6281 = vunpack.c.l.b16 %v5474
    %v6282 = vunpack.c.l.b16 %v5475
    %v6283 = vunpack.c.l.b16 %v5476
    %v6284 = vunpack.c.l.b16 %v5477
    %v6285 = vunpack.c.l.b16 %v5478
    %v6286 = vpack.c.b16 %v5887, %v5886
    %v6287 = vpack.c.b16 %v5889, %v5888
    %v6288 = vpack.c.b16 %v5891, %v5890
    %v6289 = vpack.c.b16 %v5893, %v5892
    %v6290 = vpack.c.b16 %v5895, %v5894
    %v6291 = vpack.c.b16 %v5897, %v5896
    %v6292 = vpack.c.b16 %v5899, %v5898
    %v6293 = vpack.c.b16 %v5901, %v5900
    %v6294 = vpack.c.b16 %v5903, %v5902
    %v6295 = vpack.c.b16 %v5905, %v5904
    %v6296 = vpack.c.b16 %v5907, %v5906
    %v6297 = vpack.c.b16 %v5909, %v5908
    %v6298 = vpack.c.b16 %v5911, %v5910
    %v6299 = vpack.c.b16 %v5913, %v5912
    %v6300 = vpack.c.b16 %v5915, %v5914
    %v6301 = vpack.c.b16 %v5917, %v5916
    %v6302 = vpack.c.b16 %v5919, %v5918
    %v6303 = vpack.c.b16 %v5921, %v5920
    %v6304 = vpack.c.b16 %v5923, %v5922
    %v6305 = vpack.c.b16 %v5925, %v5924
    %v6306 = vpack.c.b16 %v5927, %v5926
    %v6307 = vpack.c.b16 %v5929, %v5928
    %v6308 = vpack.c.b16 %v5931, %v5930
    %v6309 = vpack.c.b16 %v5933, %v5932
    %v6310 = vpack.c.b16 %v5935, %v5934
    %v6311 = vpack.c.b16 %v5937, %v5936
    %v6312 = vpack.c.b16 %v5939, %v5938
    %v6313 = vpack.c.b16 %v5941, %v5940
    %v6314 = vpack.c.b16 %v5943, %v5942
    %v6315 = vpack.c.b16 %v5945, %v5944
    %v6316 = vpack.c.b16 %v5947, %v5946
    %v6317 = vpack.c.b16 %v5949, %v5948
    %v6318 = vpack.c.b16 %v5951, %v5950
    %v6319 = vpack.c.b16 %v5953, %v5952
    %v6320 = vpack.c.b16 %v5955, %v5954
    %v6321 = vpack.c.b16 %v5957, %v5956
    %v6322 = vpack.c.b16 %v5959, %v5958
    %v6323 = vpack.c.b16 %v5961, %v5960
    %v6324 = vpack.c.b16 %v5963, %v5962
    %v6325 = vpack.c.b16 %v5965, %v5964
    %v6326 = vpack.c.b16 %v5967, %v5966
    %v6327 = vpack.c.b16 %v5969, %v5968
    %v6328 = vpack.c.b16 %v5971, %v5970
    %v6329 = vpack.c.b16 %v5973, %v5972
    %v6330 = vpack.c.b16 %v5975, %v5974
    %v6331 = vpack.c.b16 %v5977, %v5976
    %v6332 = vpack.c.b16 %v5979, %v5978
    %v6333 = vpack.c.b16 %v5981, %v5980
    %v6334 = vpack.c.b16 %v5983, %v5982
    %v6335 = vpack.c.b16 %v5985, %v5984
    %v6336 = vpack.c.b16 %v5987, %v5986
    %v6337 = vpack.c.b16 %v5989, %v5988
    %v6338 = vpack.c.b16 %v5991, %v5990
    %v6339 = vpack.c.b16 %v5993, %v5992
    %v6340 = vpack.c.b16 %v5995, %v5994
    %v6341 = vpack.c.b16 %v5997, %v5996
    %v6342 = vpack.c.b16 %v5999, %v5998
    %v6343 = vpack.c.b16 %v6001, %v6000
    %v6344 = vpack.c.b16 %v6003, %v6002
    %v6345 = vpack.c.b16 %v6005, %v6004
    %v6346 = vpack.c.b16 %v6007, %v6006
    %v6347 = vpack.c.b16 %v6009, %v6008
    %v6348 = vpack.c.b16 %v6011, %v6010
    %v6349 = vpack.c.b16 %v6013, %v6012
    %v6350 = vpack.c.b16 %v6015, %v6014
    %v6351 = vpack.c.b16 %v6017, %v6016
    %v6352 = vpack.c.b16 %v6019, %v6018
    %v6353 = vpack.c.b16 %v6021, %v6020
    %v6354 = vpack.c.b16 %v6023, %v6022
    %v6355 = vpack.c.b16 %v6025, %v6024
    %v6356 = vpack.c.b16 %v6027, %v6026
    %v6357 = vpack.c.b16 %v6029, %v6028
    %v6358 = vpack.c.b16 %v6031, %v6030
    %v6359 = vpack.c.b16 %v6033, %v6032
    %v6360 = vpack.c.b16 %v6035, %v6034
    %v6361 = vpack.c.b16 %v6037, %v6036
    %v6362 = vpack.c.b16 %v6039, %v6038
    %v6363 = vpack.c.b16 %v6041, %v6040
    %v6364 = vpack.c.b16 %v6043, %v6042
    %v6365 = vpack.c.b16 %v6045, %v6044
    %v6366 = vpack.c.b16 %v6047, %v6046
    %v6367 = vpack.c.b16 %v6049, %v6048
    %v6368 = vpack.c.b16 %v6051, %v6050
    %v6369 = vpack.c.b16 %v6053, %v6052
    %v6370 = vpack.c.b16 %v6055, %v6054
    %v6371 = vpack.c.b16 %v6057, %v6056
    %v6372 = vpack.c.b16 %v6059, %v6058
    %v6373 = vpack.c.b16 %v6061, %v6060
    %v6374 = vpack.c.b16 %v6063, %v6062
    %v6375 = vpack.c.b16 %v6065, %v6064
    %v6376 = vpack.c.b16 %v6067, %v6066
    %v6377 = vpack.c.b16 %v6069, %v6068
    %v6378 = vpack.c.b16 %v6071, %v6070
    %v6379 = vpack.c.b16 %v6073, %v6072
    %v6380 = vpack.c.b16 %v6075, %v6074
    %v6381 = vpack.c.b16 %v6077, %v6076
    %v6382 = vpack.c.b16 %v6079, %v6078
    %v6383 = vpack.c.b16 %v6081, %v6080
    %v6384 = vpack.c.b16 %v6083, %v6082
    %v6385 = vpack.c.b16 %v6085, %v6084
    %v6386 = vpack.c.b16 %v6087, %v6086
    %v6387 = vpack.c.b16 %v6089, %v6088
    %v6388 = vpack.c.b16 %v6091, %v6090
    %v6389 = vpack.c.b16 %v6093, %v6092
    %v6390 = vpack.c.b16 %v6095, %v6094
    %v6391 = vpack.c.b16 %v6097, %v6096
    %v6392 = vpack.c.b16 %v6099, %v6098
    %v6393 = vpack.c.b16 %v6101, %v6100
    %v6394 = vpack.c.b16 %v6103, %v6102
    %v6395 = vpack.c.b16 %v6105, %v6104
    %v6396 = vpack.c.b16 %v6107, %v6106
    %v6397 = vpack.c.b16 %v6109, %v6108
    %v6398 = vpack.c.b16 %v6111, %v6110
    %v6399 = vpack.c.b16 %v6113, %v6112
    %v6400 = vpack.c.b16 %v6115, %v6114
    %v6401 = vpack.c.b16 %v6117, %v6116
    %v6402 = vpack.c.b16 %v6119, %v6118
    %v6403 = vpack.c.b16 %v6121, %v6120
    %v6404 = vpack.c.b16 %v6123, %v6122
    %v6405 = vpack.c.b16 %v6125, %v6124
    %v6406 = vpack.c.b16 %v6127, %v6126
    %v6407 = vpack.c.b16 %v6129, %v6128
    %v6408 = vpack.c.b16 %v6131, %v6130
    %v6409 = vpack.c.b16 %v6133, %v6132
    %v6410 = vpack.c.b16 %v6135, %v6134
    %v6411 = vpack.c.b16 %v6137, %v6136
    %v6412 = vpack.c.b16 %v6139, %v6138
    %v6413 = vpack.c.b16 %v6141, %v6140
    %v6414 = vpack.c.b16 %v6143, %v6142
    %v6415 = vpack.c.b16 %v6145, %v6144
    %v6416 = vpack.c.b16 %v6147, %v6146
    %v6417 = vpack.c.b16 %v6149, %v6148
    %v6418 = vpack.c.b16 %v6151, %v6150
    %v6419 = vpack.c.b16 %v6153, %v6152
    %v6420 = vpack.c.b16 %v6155, %v6154
    %v6421 = vpack.c.b16 %v6157, %v6156
    %v6422 = vpack.c.b16 %v6159, %v6158
    %v6423 = vpack.c.b16 %v6161, %v6160
    %v6424 = vpack.c.b16 %v6163, %v6162
    %v6425 = vpack.c.b16 %v6165, %v6164
    %v6426 = vpack.c.b16 %v6167, %v6166
    %v6427 = vpack.c.b16 %v6169, %v6168
    %v6428 = vpack.c.b16 %v6171, %v6170
    %v6429 = vpack.c.b16 %v6173, %v6172
    %v6430 = vpack.c.b16 %v6175, %v6174
    %v6431 = vpack.c.b16 %v6177, %v6176
    %v6432 = vpack.c.b16 %v6179, %v6178
    %v6433 = vpack.c.b16 %v6181, %v6180
    %v6434 = vpack.c.b16 %v6183, %v6182
    %v6435 = vpack.c.b16 %v6185, %v6184
    %v6436 = vpack.c.b16 %v6187, %v6186
    %v6437 = vpack.c.b16 %v6189, %v6188
    %v6438 = vpack.c.b16 %v6191, %v6190
    %v6439 = vpack.c.b16 %v6193, %v6192
    %v6440 = vpack.c.b16 %v6195, %v6194
    %v6441 = vpack.c.b16 %v6197, %v6196
    %v6442 = vpack.c.b16 %v6199, %v6198
    %v6443 = vpack.c.b16 %v6201, %v6200
    %v6444 = vpack.c.b16 %v6203, %v6202
    %v6445 = vpack.c.b16 %v6205, %v6204
    %v6446 = vpack.c.b16 %v6207, %v6206
    %v6447 = vpack.c.b16 %v6209, %v6208
    %v6448 = vpack.c.b16 %v6211, %v6210
    %v6449 = vpack.c.b16 %v6213, %v6212
    %v6450 = vpack.c.b16 %v6215, %v6214
    %v6451 = vpack.c.b16 %v6217, %v6216
    %v6452 = vpack.c.b16 %v6219, %v6218
    %v6453 = vpack.c.b16 %v6221, %v6220
    %v6454 = vpack.c.b16 %v6223, %v6222
    %v6455 = vpack.c.b16 %v6225, %v6224
    %v6456 = vpack.c.b16 %v6227, %v6226
    %v6457 = vpack.c.b16 %v6229, %v6228
    %v6458 = vpack.c.b16 %v6231, %v6230
    %v6459 = vpack.c.b16 %v6233, %v6232
    %v6460 = vpack.c.b16 %v6235, %v6234
    %v6461 = vpack.c.b16 %v6237, %v6236
    %v6462 = vpack.c.b16 %v6239, %v6238
    %v6463 = vpack.c.b16 %v6241, %v6240
    %v6464 = vpack.c.b16 %v6243, %v6242
    %v6465 = vpack.c.b16 %v6245, %v6244
    %v6466 = vpack.c.b16 %v6247, %v6246
    %v6467 = vpack.c.b16 %v6249, %v6248
    %v6468 = vpack.c.b16 %v6251, %v6250
    %v6469 = vpack.c.b16 %v6253, %v6252
    %v6470 = vpack.c.b16 %v6255, %v6254
    %v6471 = vpack.c.b16 %v6257, %v6256
    %v6472 = vpack.c.b16 %v6259, %v6258
    %v6473 = vpack.c.b16 %v6261, %v6260
    %v6474 = vpack.c.b16 %v6263, %v6262
    %v6475 = vpack.c.b16 %v6265, %v6264
    %v6476 = vpack.c.b16 %v6267, %v6266
    %v6477 = vpack.c.b16 %v6269, %v6268
    %v6478 = vpack.c.b16 %v6271, %v6270
    %v6479 = vpack.c.b16 %v6273, %v6272
    %v6480 = vpack.c.b16 %v6275, %v6274
    %v6481 = vpack.c.b16 %v6277, %v6276
    %v6482 = vpack.c.b16 %v6279, %v6278
    %v6483 = vpack.c.b16 %v6281, %v6280
    %v6484 = vpack.c.b16 %v6283, %v6282
    %v6485 = vpack.c.b16 %v6285, %v6284
    %6686 = vmatprep.subr.bf16.mxu0 0
    %6687 = vmatpush1.bf16.msra.mxu0 %v6286
    %6688 = vmatprep.subr.bf16.mxu0 0
    %6689 = vmatpush1.bf16.msra.mxu0 %v6287
    %6690 = vmatprep.subr.bf16.mxu0 0
    %6691 = vmatpush1.bf16.msra.mxu0 %v6288
    %6692 = vmatprep.subr.bf16.mxu0 0
    %6693 = vmatpush1.bf16.msra.mxu0 %v6289
    %6694 = vmatprep.subr.bf16.mxu0 0
    %6695 = vmatpush1.bf16.msra.mxu0 %v6290
    %6696 = vmatprep.subr.bf16.mxu0 0
    %6697 = vmatpush1.bf16.msra.mxu0 %v6291
    %6698 = vmatprep.subr.bf16.mxu0 0
    %6699 = vmatpush1.bf16.msra.mxu0 %v6292
    %6700 = vmatprep.subr.bf16.mxu0 0
    %6701 = vmatpush1.bf16.msra.mxu0 %v6293
    %6702 = vmatprep.subr.bf16.mxu0 0
    %6703 = vmatpush1.bf16.msra.mxu0 %v6294
    %6704 = vmatprep.subr.bf16.mxu0 0
    %6705 = vmatpush1.bf16.msra.mxu0 %v6295
    %6706 = vmatprep.subr.bf16.mxu0 0
    %6707 = vmatpush1.bf16.msra.mxu0 %v6296
    %6708 = vmatprep.subr.bf16.mxu0 0
    %6709 = vmatpush1.bf16.msra.mxu0 %v6297
    %6710 = vmatprep.subr.bf16.mxu0 0
    %6711 = vmatpush1.bf16.msra.mxu0 %v6298
    %6712 = vmatprep.subr.bf16.mxu0 0
    %6713 = vmatpush1.bf16.msra.mxu0 %v6299
    %6714 = vmatprep.subr.bf16.mxu0 0
    %6715 = vmatpush1.bf16.msra.mxu0 %v6300
    %6716 = vmatprep.subr.bf16.mxu0 0
    %6717 = vmatpush1.bf16.msra.mxu0 %v6301
    %6718 = vmatprep.mubr.bf16.mxu0 %v5055
    %6719 = vmatmul.mubr.bf16.gmra.mrb[0].mxu0 %v5054
    %v6720 = vpop.f32.mrb[0].mxu0
    %v6721 = vadd.f32 %v5484, %v6720
    %v6722 = vpop.f32.mrb[0].mxu0
    %v6723 = vpop.f32.mrb[0].mxu0
    %v6724 = vpop.f32.mrb[0].mxu0
    %6725 = vdwg.mxu0
    %6726 = vmatprep.subr.bf16.mxu0 0
    %6727 = vmatpush1.bf16.msra.mxu0 %v6302
    %6728 = vmatprep.subr.bf16.mxu0 0
    %6729 = vmatpush1.bf16.msra.mxu0 %v6303
    %6730 = vmatprep.subr.bf16.mxu0 0
    %6731 = vmatpush1.bf16.msra.mxu0 %v6304
    %6732 = vmatprep.subr.bf16.mxu0 0
    %6733 = vmatpush1.bf16.msra.mxu0 %v6305
    %6734 = vmatprep.subr.bf16.mxu0 0
    %6735 = vmatpush1.bf16.msra.mxu0 %v6306
    %6736 = vmatprep.subr.bf16.mxu0 0
    %6737 = vmatpush1.bf16.msra.mxu0 %v6307
    %6738 = vmatprep.subr.bf16.mxu0 0
    %6739 = vmatpush1.bf16.msra.mxu0 %v6308
    %6740 = vmatprep.subr.bf16.mxu0 0
    %6741 = vmatpush1.bf16.msra.mxu0 %v6309
    %6742 = vmatprep.subr.bf16.mxu0 0
    %6743 = vmatpush1.bf16.msra.mxu0 %v6310
    %6744 = vmatprep.subr.bf16.mxu0 0
    %6745 = vmatpush1.bf16.msra.mxu0 %v6311
    %6746 = vmatprep.subr.bf16.mxu0 0
    %6747 = vmatpush1.bf16.msra.mxu0 %v6312
    %6748 = vmatprep.subr.bf16.mxu0 0
    %6749 = vmatpush1.bf16.msra.mxu0 %v6313
    %6750 = vmatprep.subr.bf16.mxu0 0
    %6751 = vmatpush1.bf16.msra.mxu0 %v6314
    %6752 = vmatprep.subr.bf16.mxu0 0
    %6753 = vmatpush1.bf16.msra.mxu0 %v6315
    %6754 = vmatprep.subr.bf16.mxu0 0
    %6755 = vmatpush1.bf16.msra.mxu0 %v6316
    %6756 = vmatprep.subr.bf16.mxu0 0
    %6757 = vmatpush1.bf16.msra.mxu0 %v6317
    %6758 = vmatprep.mubr.bf16.mxu0 %v5057
    %6759 = vmatmul.mubr.bf16.gmra.mrb[0].mxu0 %v5056
    %v6760 = vpop.f32.mrb[0].mxu0
    %v6761 = vadd.f32 %v6721, %v6760
    %v6762 = vpop.f32.mrb[0].mxu0
    %v6763 = vpop.f32.mrb[0].mxu0
    %v6764 = vpop.f32.mrb[0].mxu0
    %6765 = vdwg.mxu0
    %6766 = vmatprep.subr.bf16.mxu0 0
    %6767 = vmatpush1.bf16.msra.mxu0 %v6318
    %6768 = vmatprep.subr.bf16.mxu0 0
    %6769 = vmatpush1.bf16.msra.mxu0 %v6319
    %6770 = vmatprep.subr.bf16.mxu0 0
    %6771 = vmatpush1.bf16.msra.mxu0 %v6320
    %6772 = vmatprep.subr.bf16.mxu0 0
    %6773 = vmatpush1.bf16.msra.mxu0 %v6321
    %6774 = vmatprep.subr.bf16.mxu0 0
    %6775 = vmatpush1.bf16.msra.mxu0 %v6322
    %6776 = vmatprep.subr.bf16.mxu0 0
    %6777 = vmatpush1.bf16.msra.mxu0 %v6323
    %6778 = vmatprep.subr.bf16.mxu0 0
    %6779 = vmatpush1.bf16.msra.mxu0 %v6324
    %6780 = vmatprep.subr.bf16.mxu0 0
    %6781 = vmatpush1.bf16.msra.mxu0 %v6325
    %6782 = vmatprep.subr.bf16.mxu0 0
    %6783 = vmatpush1.bf16.msra.mxu0 %v6326
    %6784 = vmatprep.subr.bf16.mxu0 0
    %6785 = vmatpush1.bf16.msra.mxu0 %v6327
    %6786 = vmatprep.subr.bf16.mxu0 0
    %6787 = vmatpush1.bf16.msra.mxu0 %v6328
    %6788 = vmatprep.subr.bf16.mxu0 0
    %6789 = vmatpush1.bf16.msra.mxu0 %v6329
    %6790 = vmatprep.subr.bf16.mxu0 0
    %6791 = vmatpush1.bf16.msra.mxu0 %v6330
    %6792 = vmatprep.subr.bf16.mxu0 0
    %6793 = vmatpush1.bf16.msra.mxu0 %v6331
    %6794 = vmatprep.subr.bf16.mxu0 0
    %6795 = vmatpush1.bf16.msra.mxu0 %v6332
    %6796 = vmatprep.subr.bf16.mxu0 0
    %6797 = vmatpush1.bf16.msra.mxu0 %v6333
    %6798 = vmatprep.mubr.bf16.mxu0 %v5059
    %6799 = vmatmul.mubr.bf16.gmra.mrb[0].mxu0 %v5058
    %v6800 = vpop.f32.mrb[0].mxu0
    %v6801 = vadd.f32 %v6761, %v6800
    %v6802 = vpop.f32.mrb[0].mxu0
    %v6803 = vpop.f32.mrb[0].mxu0
    %v6804 = vpop.f32.mrb[0].mxu0
    %6805 = vdwg.mxu0
    %6806 = vmatprep.subr.bf16.mxu0 0
    %6807 = vmatpush1.bf16.msra.mxu0 %v6334
    %6808 = vmatprep.subr.bf16.mxu0 0
    %6809 = vmatpush1.bf16.msra.mxu0 %v6335
    %6810 = vmatprep.subr.bf16.mxu0 0
    %6811 = vmatpush1.bf16.msra.mxu0 %v6336
    %6812 = vmatprep.subr.bf16.mxu0 0
    %6813 = vmatpush1.bf16.msra.mxu0 %v6337
    %6814 = vmatprep.subr.bf16.mxu0 0
    %6815 = vmatpush1.bf16.msra.mxu0 %v6338
    %6816 = vmatprep.subr.bf16.mxu0 0
    %6817 = vmatpush1.bf16.msra.mxu0 %v6339
    %6818 = vmatprep.subr.bf16.mxu0 0
    %6819 = vmatpush1.bf16.msra.mxu0 %v6340
    %6820 = vmatprep.subr.bf16.mxu0 0
    %6821 = vmatpush1.bf16.msra.mxu0 %v6341
    %6822 = vmatprep.subr.bf16.mxu0 0
    %6823 = vmatpush1.bf16.msra.mxu0 %v6342
    %6824 = vmatprep.subr.bf16.mxu0 0
    %6825 = vmatpush1.bf16.msra.mxu0 %v6343
    %6826 = vmatprep.subr.bf16.mxu0 0
    %6827 = vmatpush1.bf16.msra.mxu0 %v6344
    %6828 = vmatprep.subr.bf16.mxu0 0
    %6829 = vmatpush1.bf16.msra.mxu0 %v6345
    %6830 = vmatprep.subr.bf16.mxu0 0
    %6831 = vmatpush1.bf16.msra.mxu0 %v6346
    %6832 = vmatprep.subr.bf16.mxu0 0
    %6833 = vmatpush1.bf16.msra.mxu0 %v6347
    %6834 = vmatprep.subr.bf16.mxu0 0
    %6835 = vmatpush1.bf16.msra.mxu0 %v6348
    %6836 = vmatprep.subr.bf16.mxu0 0
    %6837 = vmatpush1.bf16.msra.mxu0 %v6349
    %6838 = vmatprep.mubr.bf16.mxu0 %v5061
    %6839 = vmatmul.mubr.bf16.gmra.mrb[0].mxu0 %v5060
    %v6840 = vpop.f32.mrb[0].mxu0
    %v6841 = vadd.f32 %v6801, %v6840
    %v6842 = vpop.f32.mrb[0].mxu0
    %v6843 = vpop.f32.mrb[0].mxu0
    %v6844 = vpop.f32.mrb[0].mxu0
    %6845 = vdwg.mxu0
    %6846 = vmatprep.subr.bf16.mxu0 0
    %6847 = vmatpush1.bf16.msra.mxu0 %v6350
    %6848 = vmatprep.subr.bf16.mxu0 0
    %6849 = vmatpush1.bf16.msra.mxu0 %v6351
    %6850 = vmatprep.subr.bf16.mxu0 0
    %6851 = vmatpush1.bf16.msra.mxu0 %v6352
    %6852 = vmatprep.subr.bf16.mxu0 0
    %6853 = vmatpush1.bf16.msra.mxu0 %v6353
    %6854 = vmatprep.subr.bf16.mxu0 0
    %6855 = vmatpush1.bf16.msra.mxu0 %v6354
    %6856 = vmatprep.subr.bf16.mxu0 0
    %6857 = vmatpush1.bf16.msra.mxu0 %v6355
    %6858 = vmatprep.subr.bf16.mxu0 0
    %6859 = vmatpush1.bf16.msra.mxu0 %v6356
    %6860 = vmatprep.subr.bf16.mxu0 0
    %6861 = vmatpush1.bf16.msra.mxu0 %v6357
    %6862 = vmatprep.subr.bf16.mxu0 0
    %6863 = vmatpush1.bf16.msra.mxu0 %v6358
    %6864 = vmatprep.subr.bf16.mxu0 0
    %6865 = vmatpush1.bf16.msra.mxu0 %v6359
    %6866 = vmatprep.subr.bf16.mxu0 0
    %6867 = vmatpush1.bf16.msra.mxu0 %v6360
    %6868 = vmatprep.subr.bf16.mxu0 0
    %6869 = vmatpush1.bf16.msra.mxu0 %v6361
    %6870 = vmatprep.subr.bf16.mxu0 0
    %6871 = vmatpush1.bf16.msra.mxu0 %v6362
    %6872 = vmatprep.subr.bf16.mxu0 0
    %6873 = vmatpush1.bf16.msra.mxu0 %v6363
    %6874 = vmatprep.subr.bf16.mxu0 0
    %6875 = vmatpush1.bf16.msra.mxu0 %v6364
    %6876 = vmatprep.subr.bf16.mxu0 0
    %6877 = vmatpush1.bf16.msra.mxu0 %v6365
    %6878 = vmatprep.mubr.bf16.mxu0 %v5063
    %6879 = vmatmul.mubr.bf16.gmra.mrb[0].mxu0 %v5062
    %v6880 = vpop.f32.mrb[0].mxu0
    %v6881 = vadd.f32 %v6841, %v6880
    %v6882 = vpop.f32.mrb[0].mxu0
    %v6883 = vpop.f32.mrb[0].mxu0
    %v6884 = vpop.f32.mrb[0].mxu0
    %6885 = vdwg.mxu0
    %6886 = vmatprep.subr.bf16.mxu0 0
    %6887 = vmatpush1.bf16.msra.mxu0 %v6366
    %6888 = vmatprep.subr.bf16.mxu0 0
    %6889 = vmatpush1.bf16.msra.mxu0 %v6367
    %6890 = vmatprep.subr.bf16.mxu0 0
    %6891 = vmatpush1.bf16.msra.mxu0 %v6368
    %6892 = vmatprep.subr.bf16.mxu0 0
    %6893 = vmatpush1.bf16.msra.mxu0 %v6369
    %6894 = vmatprep.subr.bf16.mxu0 0
    %6895 = vmatpush1.bf16.msra.mxu0 %v6370
    %6896 = vmatprep.subr.bf16.mxu0 0
    %6897 = vmatpush1.bf16.msra.mxu0 %v6371
    %6898 = vmatprep.subr.bf16.mxu0 0
    %6899 = vmatpush1.bf16.msra.mxu0 %v6372
    %6900 = vmatprep.subr.bf16.mxu0 0
    %6901 = vmatpush1.bf16.msra.mxu0 %v6373
    %6902 = vmatprep.subr.bf16.mxu0 0
    %6903 = vmatpush1.bf16.msra.mxu0 %v6374
    %6904 = vmatprep.subr.bf16.mxu0 0
    %6905 = vmatpush1.bf16.msra.mxu0 %v6375
    %6906 = vmatprep.subr.bf16.mxu0 0
    %6907 = vmatpush1.bf16.msra.mxu0 %v6376
    %6908 = vmatprep.subr.bf16.mxu0 0
    %6909 = vmatpush1.bf16.msra.mxu0 %v6377
    %6910 = vmatprep.subr.bf16.mxu0 0
    %6911 = vmatpush1.bf16.msra.mxu0 %v6378
    %6912 = vmatprep.subr.bf16.mxu0 0
    %6913 = vmatpush1.bf16.msra.mxu0 %v6379
    %6914 = vmatprep.subr.bf16.mxu0 0
    %6915 = vmatpush1.bf16.msra.mxu0 %v6380
    %6916 = vmatprep.subr.bf16.mxu0 0
    %6917 = vmatpush1.bf16.msra.mxu0 %v6381
    %6918 = vmatprep.mubr.bf16.mxu0 %v5065
    %6919 = vmatmul.mubr.bf16.gmra.mrb[0].mxu0 %v5064
    %v6920 = vpop.f32.mrb[0].mxu0
    %v6921 = vadd.f32 %v6881, %v6920
    %v6922 = vpop.f32.mrb[0].mxu0
    %v6923 = vpop.f32.mrb[0].mxu0
    %v6924 = vpop.f32.mrb[0].mxu0
    %6925 = vdwg.mxu0
    %6926 = vmatprep.subr.bf16.mxu0 0
    %6927 = vmatpush1.bf16.msra.mxu0 %v6382
    %6928 = vmatprep.subr.bf16.mxu0 0
    %6929 = vmatpush1.bf16.msra.mxu0 %v6383
    %6930 = vmatprep.subr.bf16.mxu0 0
    %6931 = vmatpush1.bf16.msra.mxu0 %v6384
    %6932 = vmatprep.subr.bf16.mxu0 0
    %6933 = vmatpush1.bf16.msra.mxu0 %v6385
    %6934 = vmatprep.subr.bf16.mxu0 0
    %6935 = vmatpush1.bf16.msra.mxu0 %v6386
    %6936 = vmatprep.subr.bf16.mxu0 0
    %6937 = vmatpush1.bf16.msra.mxu0 %v6387
    %6938 = vmatprep.subr.bf16.mxu0 0
    %6939 = vmatpush1.bf16.msra.mxu0 %v6388
    %6940 = vmatprep.subr.bf16.mxu0 0
    %6941 = vmatpush1.bf16.msra.mxu0 %v6389
    %6942 = vmatprep.subr.bf16.mxu0 0
    %6943 = vmatpush1.bf16.msra.mxu0 %v6390
    %6944 = vmatprep.subr.bf16.mxu0 0
    %6945 = vmatpush1.bf16.msra.mxu0 %v6391
    %6946 = vmatprep.subr.bf16.mxu0 0
    %6947 = vmatpush1.bf16.msra.mxu0 %v6392
    %6948 = vmatprep.subr.bf16.mxu0 0
    %6949 = vmatpush1.bf16.msra.mxu0 %v6393
    %6950 = vmatprep.subr.bf16.mxu0 0
    %6951 = vmatpush1.bf16.msra.mxu0 %v6394
    %6952 = vmatprep.subr.bf16.mxu0 0
    %6953 = vmatpush1.bf16.msra.mxu0 %v6395
    %6954 = vmatprep.subr.bf16.mxu0 0
    %6955 = vmatpush1.bf16.msra.mxu0 %v6396
    %6956 = vmatprep.subr.bf16.mxu0 0
    %6957 = vmatpush1.bf16.msra.mxu0 %v6397
    %6958 = vmatprep.mubr.bf16.mxu0 %v5067
    %6959 = vmatmul.mubr.bf16.gmra.mrb[0].mxu0 %v5066
    %v6960 = vpop.f32.mrb[0].mxu0
    %v6961 = vadd.f32 %v6921, %v6960
    %v6962 = vpop.f32.mrb[0].mxu0
    %v6963 = vpop.f32.mrb[0].mxu0
    %v6964 = vpop.f32.mrb[0].mxu0
    %6965 = vdwg.mxu0
    %6966 = vmatprep.subr.bf16.mxu0 0
    %6967 = vmatpush1.bf16.msra.mxu0 %v6398
    %6968 = vmatprep.subr.bf16.mxu0 0
    %6969 = vmatpush1.bf16.msra.mxu0 %v6399
    %6970 = vmatprep.subr.bf16.mxu0 0
    %6971 = vmatpush1.bf16.msra.mxu0 %v6400
    %6972 = vmatprep.subr.bf16.mxu0 0
    %6973 = vmatpush1.bf16.msra.mxu0 %v6401
    %6974 = vmatprep.subr.bf16.mxu0 0
    %6975 = vmatpush1.bf16.msra.mxu0 %v6402
    %6976 = vmatprep.subr.bf16.mxu0 0
    %6977 = vmatpush1.bf16.msra.mxu0 %v6403
    %6978 = vmatprep.subr.bf16.mxu0 0
    %6979 = vmatpush1.bf16.msra.mxu0 %v6404
    %6980 = vmatprep.subr.bf16.mxu0 0
    %6981 = vmatpush1.bf16.msra.mxu0 %v6405
    %6982 = vmatprep.subr.bf16.mxu0 0
    %6983 = vmatpush1.bf16.msra.mxu0 %v6406
    %6984 = vmatprep.subr.bf16.mxu0 0
    %6985 = vmatpush1.bf16.msra.mxu0 %v6407
    %6986 = vmatprep.subr.bf16.mxu0 0
    %6987 = vmatpush1.bf16.msra.mxu0 %v6408
    %6988 = vmatprep.subr.bf16.mxu0 0
    %6989 = vmatpush1.bf16.msra.mxu0 %v6409
    %6990 = vmatprep.subr.bf16.mxu0 0
    %6991 = vmatpush1.bf16.msra.mxu0 %v6410
    %6992 = vmatprep.subr.bf16.mxu0 0
    %6993 = vmatpush1.bf16.msra.mxu0 %v6411
    %6994 = vmatprep.subr.bf16.mxu0 0
    %6995 = vmatpush1.bf16.msra.mxu0 %v6412
    %6996 = vmatprep.subr.bf16.mxu0 0
    %6997 = vmatpush1.bf16.msra.mxu0 %v6413
    %6998 = vmatprep.mubr.bf16.mxu0 %v5069
    %6999 = vmatmul.mubr.bf16.gmra.mrb[0].mxu0 %v5068
    %v7000 = vpop.f32.mrb[0].mxu0
    %v7001 = vadd.f32 %v6961, %v7000
    %v7002 = vpop.f32.mrb[0].mxu0
    %v7003 = vpop.f32.mrb[0].mxu0
    %v7004 = vpop.f32.mrb[0].mxu0
    %7005 = vdwg.mxu0
    %7006 = vmatprep.subr.bf16.mxu0 0
    %7007 = vmatpush1.bf16.msra.mxu0 %v6414
    %7008 = vmatprep.subr.bf16.mxu0 0
    %7009 = vmatpush1.bf16.msra.mxu0 %v6415
    %7010 = vmatprep.subr.bf16.mxu0 0
    %7011 = vmatpush1.bf16.msra.mxu0 %v6416
    %7012 = vmatprep.subr.bf16.mxu0 0
    %7013 = vmatpush1.bf16.msra.mxu0 %v6417
    %7014 = vmatprep.subr.bf16.mxu0 0
    %7015 = vmatpush1.bf16.msra.mxu0 %v6418
    %7016 = vmatprep.subr.bf16.mxu0 0
    %7017 = vmatpush1.bf16.msra.mxu0 %v6419
    %7018 = vmatprep.subr.bf16.mxu0 0
    %7019 = vmatpush1.bf16.msra.mxu0 %v6420
    %7020 = vmatprep.subr.bf16.mxu0 0
    %7021 = vmatpush1.bf16.msra.mxu0 %v6421
    %7022 = vmatprep.subr.bf16.mxu0 0
    %7023 = vmatpush1.bf16.msra.mxu0 %v6422
    %7024 = vmatprep.subr.bf16.mxu0 0
    %7025 = vmatpush1.bf16.msra.mxu0 %v6423
    %7026 = vmatprep.subr.bf16.mxu0 0
    %7027 = vmatpush1.bf16.msra.mxu0 %v6424
    %7028 = vmatprep.subr.bf16.mxu0 0
    %7029 = vmatpush1.bf16.msra.mxu0 %v6425
    %7030 = vmatprep.subr.bf16.mxu0 0
    %7031 = vmatpush1.bf16.msra.mxu0 %v6426
    %7032 = vmatprep.subr.bf16.mxu0 0
    %7033 = vmatpush1.bf16.msra.mxu0 %v6427
    %7034 = vmatprep.subr.bf16.mxu0 0
    %7035 = vmatpush1.bf16.msra.mxu0 %v6428
    %7036 = vmatprep.subr.bf16.mxu0 0
    %7037 = vmatpush1.bf16.msra.mxu0 %v6429
    %7038 = vmatprep.mubr.bf16.mxu0 %v5071
    %7039 = vmatmul.mubr.bf16.gmra.mrb[0].mxu0 %v5070
    %v7040 = vpop.f32.mrb[0].mxu0
    %v7041 = vadd.f32 %v7001, %v7040
    %v7042 = vpop.f32.mrb[0].mxu0
    %v7043 = vpop.f32.mrb[0].mxu0
    %v7044 = vpop.f32.mrb[0].mxu0
    %7045 = vdwg.mxu0
    %7046 = vmatprep.subr.bf16.mxu0 0
    %7047 = vmatpush1.bf16.msra.mxu0 %v6430
    %7048 = vmatprep.subr.bf16.mxu0 0
    %7049 = vmatpush1.bf16.msra.mxu0 %v6431
    %7050 = vmatprep.subr.bf16.mxu0 0
    %7051 = vmatpush1.bf16.msra.mxu0 %v6432
    %7052 = vmatprep.subr.bf16.mxu0 0
    %7053 = vmatpush1.bf16.msra.mxu0 %v6433
    %7054 = vmatprep.subr.bf16.mxu0 0
    %7055 = vmatpush1.bf16.msra.mxu0 %v6434
    %7056 = vmatprep.subr.bf16.mxu0 0
    %7057 = vmatpush1.bf16.msra.mxu0 %v6435
    %7058 = vmatprep.subr.bf16.mxu0 0
    %7059 = vmatpush1.bf16.msra.mxu0 %v6436
    %7060 = vmatprep.subr.bf16.mxu0 0
    %7061 = vmatpush1.bf16.msra.mxu0 %v6437
    %7062 = vmatprep.subr.bf16.mxu0 0
    %7063 = vmatpush1.bf16.msra.mxu0 %v6438
    %7064 = vmatprep.subr.bf16.mxu0 0
    %7065 = vmatpush1.bf16.msra.mxu0 %v6439
    %7066 = vmatprep.subr.bf16.mxu0 0
    %7067 = vmatpush1.bf16.msra.mxu0 %v6440
    %7068 = vmatprep.subr.bf16.mxu0 0
    %7069 = vmatpush1.bf16.msra.mxu0 %v6441
    %7070 = vmatprep.subr.bf16.mxu0 0
    %7071 = vmatpush1.bf16.msra.mxu0 %v6442
    %7072 = vmatprep.subr.bf16.mxu0 0
    %7073 = vmatpush1.bf16.msra.mxu0 %v6443
    %7074 = vmatprep.subr.bf16.mxu0 0
    %7075 = vmatpush1.bf16.msra.mxu0 %v6444
    %7076 = vmatprep.subr.bf16.mxu0 0
    %7077 = vmatpush1.bf16.msra.mxu0 %v6445
    %7078 = vmatprep.mubr.bf16.mxu0 %v5073
    %7079 = vmatmul.mubr.bf16.gmra.mrb[0].mxu0 %v5072
    %v7080 = vpop.f32.mrb[0].mxu0
    %v7081 = vadd.f32 %v7041, %v7080
    %v7082 = vpop.f32.mrb[0].mxu0
    %v7083 = vpop.f32.mrb[0].mxu0
    %v7084 = vpop.f32.mrb[0].mxu0
    %7085 = vdwg.mxu0
    %7086 = vmatprep.subr.bf16.mxu0 0
    %7087 = vmatpush1.bf16.msra.mxu0 %v6446
    %7088 = vmatprep.subr.bf16.mxu0 0
    %7089 = vmatpush1.bf16.msra.mxu0 %v6447
    %7090 = vmatprep.subr.bf16.mxu0 0
    %7091 = vmatpush1.bf16.msra.mxu0 %v6448
    %7092 = vmatprep.subr.bf16.mxu0 0
    %7093 = vmatpush1.bf16.msra.mxu0 %v6449
    %7094 = vmatprep.subr.bf16.mxu0 0
    %7095 = vmatpush1.bf16.msra.mxu0 %v6450
    %7096 = vmatprep.subr.bf16.mxu0 0
    %7097 = vmatpush1.bf16.msra.mxu0 %v6451
    %7098 = vmatprep.subr.bf16.mxu0 0
    %7099 = vmatpush1.bf16.msra.mxu0 %v6452
    %7100 = vmatprep.subr.bf16.mxu0 0
    %7101 = vmatpush1.bf16.msra.mxu0 %v6453
    %7102 = vmatprep.subr.bf16.mxu0 0
    %7103 = vmatpush1.bf16.msra.mxu0 %v6454
    %7104 = vmatprep.subr.bf16.mxu0 0
    %7105 = vmatpush1.bf16.msra.mxu0 %v6455
    %7106 = vmatprep.subr.bf16.mxu0 0
    %7107 = vmatpush1.bf16.msra.mxu0 %v6456
    %7108 = vmatprep.subr.bf16.mxu0 0
    %7109 = vmatpush1.bf16.msra.mxu0 %v6457
    %7110 = vmatprep.subr.bf16.mxu0 0
    %7111 = vmatpush1.bf16.msra.mxu0 %v6458
    %7112 = vmatprep.subr.bf16.mxu0 0
    %7113 = vmatpush1.bf16.msra.mxu0 %v6459
    %7114 = vmatprep.subr.bf16.mxu0 0
    %7115 = vmatpush1.bf16.msra.mxu0 %v6460
    %7116 = vmatprep.subr.bf16.mxu0 0
    %7117 = vmatpush1.bf16.msra.mxu0 %v6461
    %7118 = vmatprep.mubr.bf16.mxu0 %v5075
    %7119 = vmatmul.mubr.bf16.gmra.mrb[0].mxu0 %v5074
    %v7120 = vpop.f32.mrb[0].mxu0
    %v7121 = vadd.f32 %v7081, %v7120
    %v7122 = vpop.f32.mrb[0].mxu0
    %v7123 = vpop.f32.mrb[0].mxu0
    %v7124 = vpop.f32.mrb[0].mxu0
    %7125 = vdwg.mxu0
    %7126 = vmatprep.subr.bf16.mxu0 0
    %7127 = vmatpush1.bf16.msra.mxu0 %v6462
    %7128 = vmatprep.subr.bf16.mxu0 0
    %7129 = vmatpush1.bf16.msra.mxu0 %v6463
    %7130 = vmatprep.subr.bf16.mxu0 0
    %7131 = vmatpush1.bf16.msra.mxu0 %v6464
    %7132 = vmatprep.subr.bf16.mxu0 0
    %7133 = vmatpush1.bf16.msra.mxu0 %v6465
    %7134 = vmatprep.subr.bf16.mxu0 0
    %7135 = vmatpush1.bf16.msra.mxu0 %v6466
    %7136 = vmatprep.subr.bf16.mxu0 0
    %7137 = vmatpush1.bf16.msra.mxu0 %v6467
    %7138 = vmatprep.subr.bf16.mxu0 0
    %7139 = vmatpush1.bf16.msra.mxu0 %v6468
    %7140 = vmatprep.subr.bf16.mxu0 0
    %7141 = vmatpush1.bf16.msra.mxu0 %v6469
    %7142 = vmatprep.subr.bf16.mxu0 0
    %7143 = vmatpush1.bf16.msra.mxu0 %v6470
    %7144 = vmatprep.subr.bf16.mxu0 0
    %7145 = vmatpush1.bf16.msra.mxu0 %v6471
    %7146 = vmatprep.subr.bf16.mxu0 0
    %7147 = vmatpush1.bf16.msra.mxu0 %v6472
    %7148 = vmatprep.subr.bf16.mxu0 0
    %7149 = vmatpush1.bf16.msra.mxu0 %v6473
    %7150 = vmatprep.subr.bf16.mxu0 0
    %7151 = vmatpush1.bf16.msra.mxu0 %v6474
    %7152 = vmatprep.subr.bf16.mxu0 0
    %7153 = vmatpush1.bf16.msra.mxu0 %v6475
    %7154 = vmatprep.subr.bf16.mxu0 0
    %7155 = vmatpush1.bf16.msra.mxu0 %v6476
    %7156 = vmatprep.subr.bf16.mxu0 0
    %7157 = vmatpush1.bf16.msra.mxu0 %v6477
    %7158 = vmatprep.mubr.bf16.mxu0 %v5077
    %7159 = vmatmul.mubr.bf16.gmra.mrb[0].mxu0 %v5076
    %v7160 = vpop.f32.mrb[0].mxu0
    %v7161 = vadd.f32 %v7121, %v7160
    %v7162 = vpop.f32.mrb[0].mxu0
    %v7163 = vpop.f32.mrb[0].mxu0
    %v7164 = vpop.f32.mrb[0].mxu0
    %7165 = vdwg.mxu0
    %7166 = vmatprep.subr.bf16.mxu0 0
    %7167 = vmatpush1.bf16.msra.mxu0 %v6478
    %7168 = vmatprep.subr.bf16.mxu0 0
    %7169 = vmatpush1.bf16.msra.mxu0 %v6479
    %7170 = vmatprep.subr.bf16.mxu0 0
    %7171 = vmatpush1.bf16.msra.mxu0 %v6480
    %7172 = vmatprep.subr.bf16.mxu0 0
    %7173 = vmatpush1.bf16.msra.mxu0 %v6481
    %7174 = vmatprep.subr.bf16.mxu0 0
    %7175 = vmatpush1.bf16.msra.mxu0 %v6482
    %7176 = vmatprep.subr.bf16.mxu0 0
    %7177 = vmatpush1.bf16.msra.mxu0 %v6483
    %7178 = vmatprep.subr.bf16.mxu0 0
    %7179 = vmatpush1.bf16.msra.mxu0 %v6484
    %7180 = vmatprep.subr.bf16.mxu0 0
    %7181 = vmatpush1.bf16.msra.mxu0 %v6485
    %7182 = vmatprep.subr.bf16.mxu0 0
    %7183 = vmatpush1.bf16.msra.mxu0 0
    %7184 = vmatprep.subr.bf16.mxu0 0
    %7185 = vmatpush1.bf16.msra.mxu0 0
    %7186 = vmatprep.subr.bf16.mxu0 0
    %7187 = vmatpush1.bf16.msra.mxu0 0
    %7188 = vmatprep.subr.bf16.mxu0 0
    %7189 = vmatpush1.bf16.msra.mxu0 0
    %7190 = vmatprep.subr.bf16.mxu0 0
    %7191 = vmatpush1.bf16.msra.mxu0 0
    %7192 = vmatprep.subr.bf16.mxu0 0
    %7193 = vmatpush1.bf16.msra.mxu0 0
    %7194 = vmatprep.subr.bf16.mxu0 0
    %7195 = vmatpush1.bf16.msra.mxu0 0
    %7196 = vmatprep.subr.bf16.mxu0 0
    %7197 = vmatpush1.bf16.msra.mxu0 0
    %7198 = vmatprep.mubr.bf16.mxu0 0
    %7199 = vmatmul.mubr.bf16.gmra.mrb[0].mxu0 %v5078
    %v7200 = vpop.f32.mrb[0].mxu0
    %v7201 = vadd.f32 %v7161, %v7200
    %v7202 = vpop.f32.mrb[0].mxu0
    %v7203 = vpop.f32.mrb[0].mxu0
    %v7204 = vpop.f32.mrb[0].mxu0
    %7205 = vdwg.mxu0
    %v7206 = vld [vmem:[%s11] sm:$0x1]
    %v7207 = vld [vmem:[%s12] sm:$0x1]
    %v7208 = vsel %vm1029, %v7201, 0.0
    %v7209 = vrot.slane %v7208, 4
    %v7210 = vadd.f32 %v7208, %v7209
    %v7211 = vrot.slane %v7210, 2
    %v7212 = vadd.f32 %v7210, %v7211
    %v7213 = vrot.slane %v7212, 1
    %v7214 = vadd.f32 %v7212, %v7213
    %v7215 = vmul.f32 %v7214, 0.5
    %v7216 = vsub.f32 %v7201, %v7215
    %v7217 = vmul.f32 %v7216, %v7216
    %v7218 = vsel %vm1029, %v7217, 0.0
    %v7219 = vrot.slane %v7218, 4
    %v7220 = vadd.f32 %v7218, %v7219
    %v7221 = vrot.slane %v7220, 2
    %v7222 = vadd.f32 %v7220, %v7221
    %v7223 = vrot.slane %v7222, 1
    %v7224 = vadd.f32 %v7222, %v7223
    %v7225 = vmul.f32 %v7224, 0.5
    %v7226 = vadd.f32 %v7225, 1e-05
    %v7227 = vrsqrt.pop %v7226
    %v7228 = vmul.f32 %v7216, %v7227
    %v7230 = vlaneseq
    %v7231 = vshrl.u32 %v7230, 7
    %v7232 = vsub.s32 0, %v7231
    %v7233 = vrot.slane %v7206, %v7232
    %v7235 = vmul.f32 %v7228, %v7233
    %v7237 = vlaneseq
    %v7238 = vshrl.u32 %v7237, 7
    %v7239 = vsub.s32 0, %v7238
    %v7240 = vrot.slane %v7207, %v7239
    %v7242 = vadd.f32 %v7235, %v7240
    %v7243 = vmax.f32 %v7242, 0.0
    %v7244 = vpack.c.bf16 %v7243, %v7243
    %v7245 = vld [vmem:[%s13] sm:$0xf]
    %v7246 = vld [vmem:[%s13 + $0x4] sm:$0xf]
    %v7247 = vld [vmem:[%s13 + $0x8] sm:$0xf]
    %v7248 = vld [vmem:[%s13 + $0xc] sm:$0xf]
    %v7249 = vld [vmem:[%s13 + $0x10] sm:$0xf]
    %v7250 = vld [vmem:[%s13 + $0x14] sm:$0xf]
    %v7251 = vld [vmem:[%s13 + $0x18] sm:$0xf]
    %v7252 = vld [vmem:[%s13 + $0x1c] sm:$0xf]
    %v7253 = vld [vmem:[%s13 + $0x20] sm:$0xf]
    %v7254 = vld [vmem:[%s13 + $0x24] sm:$0xf]
    %v7255 = vld [vmem:[%s13 + $0x28] sm:$0xf]
    %v7256 = vld [vmem:[%s13 + $0x2c] sm:$0xf]
    %v7257 = vld [vmem:[%s13 + $0x30] sm:$0xf]
    %v7258 = vld [vmem:[%s13 + $0x34] sm:$0xf]
    %v7259 = vld [vmem:[%s13 + $0x38] sm:$0xf]
    %v7260 = vld [vmem:[%s13 + $0x3c] sm:$0xf]
    %v7261 = vld [vmem:[%s14] sm:$0x1]
    %v7263 = vlaneseq
    %v7264 = vshrl.u32 %v7263, 7
    %v7265 = vsub.s32 0, %v7264
    %v7266 = vrot.slane %v7261, %v7265
    %v7284 = vunpack.c.l.b16 %v7245
    %v7285 = vunpack.c.l.b16 %v7246
    %v7286 = vunpack.c.l.b16 %v7247
    %v7287 = vunpack.c.l.b16 %v7248
    %v7288 = vunpack.c.l.b16 %v7249
    %v7289 = vunpack.c.l.b16 %v7250
    %v7290 = vunpack.c.l.b16 %v7251
    %v7291 = vunpack.c.l.b16 %v7252
    %v7292 = vunpack.c.l.b16 %v7253
    %v7293 = vunpack.c.l.b16 %v7254
    %v7294 = vunpack.c.l.b16 %v7255
    %v7295 = vunpack.c.l.b16 %v7256
    %v7296 = vunpack.c.l.b16 %v7257
    %v7297 = vunpack.c.l.b16 %v7258
    %v7298 = vunpack.c.l.b16 %v7259
    %v7299 = vunpack.c.l.b16 %v7260
    %v7300 = vpack.c.b16 %v7285, %v7284
    %v7301 = vpack.c.b16 %v7287, %v7286
    %v7302 = vpack.c.b16 %v7289, %v7288
    %v7303 = vpack.c.b16 %v7291, %v7290
    %v7304 = vpack.c.b16 %v7293, %v7292
    %v7305 = vpack.c.b16 %v7295, %v7294
    %v7306 = vpack.c.b16 %v7297, %v7296
    %v7307 = vpack.c.b16 %v7299, %v7298
    %7316 = vmatprep.subr.bf16.mxu0 0
    %7317 = vmatpush1.bf16.msra.mxu0 %v7300
    %7318 = vmatprep.subr.bf16.mxu0 0
    %7319 = vmatpush1.bf16.msra.mxu0 %v7301
    %7320 = vmatprep.subr.bf16.mxu0 0
    %7321 = vmatpush1.bf16.msra.mxu0 %v7302
    %7322 = vmatprep.subr.bf16.mxu0 0
    %7323 = vmatpush1.bf16.msra.mxu0 %v7303
    %7324 = vmatprep.subr.bf16.mxu0 0
    %7325 = vmatpush1.bf16.msra.mxu0 %v7304
    %7326 = vmatprep.subr.bf16.mxu0 0
    %7327 = vmatpush1.bf16.msra.mxu0 %v7305
    %7328 = vmatprep.subr.bf16.mxu0 0
    %7329 = vmatpush1.bf16.msra.mxu0 %v7306
    %7330 = vmatprep.subr.bf16.mxu0 0
    %7331 = vmatpush1.bf16.msra.mxu0 %v7307
    %7332 = vmatprep.subr.bf16.mxu0 0
    %7333 = vmatpush1.bf16.msra.mxu0 0
    %7334 = vmatprep.subr.bf16.mxu0 0
    %7335 = vmatpush1.bf16.msra.mxu0 0
    %7336 = vmatprep.subr.bf16.mxu0 0
    %7337 = vmatpush1.bf16.msra.mxu0 0
    %7338 = vmatprep.subr.bf16.mxu0 0
    %7339 = vmatpush1.bf16.msra.mxu0 0
    %7340 = vmatprep.subr.bf16.mxu0 0
    %7341 = vmatpush1.bf16.msra.mxu0 0
    %7342 = vmatprep.subr.bf16.mxu0 0
    %7343 = vmatpush1.bf16.msra.mxu0 0
    %7344 = vmatprep.subr.bf16.mxu0 0
    %7345 = vmatpush1.bf16.msra.mxu0 0
    %7346 = vmatprep.subr.bf16.mxu0 0
    %7347 = vmatpush1.bf16.msra.mxu0 0
    %7348 = vmatprep.mubr.bf16.mxu0 0
    %7349 = vmatmul.mubr.bf16.gmra.mrb[0].mxu0 %v7244
    %v7350 = vpop.f32.mrb[0].mxu0
    %v7351 = vadd.f32 %v7266, %v7350
    %v7352 = vpop.f32.mrb[0].mxu0
    %v7353 = vpop.f32.mrb[0].mxu0
    %v7354 = vpop.f32.mrb[0].mxu0
    %7355 = vdwg.mxu0
    %v7356 = vtanh.pop %v7351
    %7357 = vst [vmem:[#allocation6] sm:$0x3] %v7356
    // Predicated region
    $region62: #{_lambda_.1} parent=1 // pred_check
      _
    $region63: #{_lambda_.1} parent=1 // pred_check_branch
      %7359 = sbr.rel (0) target = $region65
    $region64: #{_lambda_.1} parent=1 // pred_region
      %s7361 = ssub.s32 32, 32
      %7362 = vsyncadd [#allocation7], %s7361
      %s7364 = sshll.u32 [#allocation6], 4
      %s7365 = int_to_ptr.vmem [resolvable:$true] %s7364
      %7367 = dma.vmem_to_hbm [thread:$0]  %s7365, 32, %s15, [#allocation7]
    $region65: #{_lambda_.1} parent=1 // pred_fallthru
      _
    // Predicated region
    $region66: #{_lambda_.1} parent=1 // pred_check
      _
    $region67: #{_lambda_.1} parent=1 // pred_check_branch
      %7369 = sbr.rel (0) target = $region69
    $region68: #{_lambda_.1} parent=1 // pred_region
      %7370 = dma.done [#allocation7], 32
    $region69: #{_lambda_.1} parent=1 // pred_fallthru
      _
    %7371 = vsyncpa [#allocation7], 1

</llo_original>
